<compile_context>
chip_gen: v6e
topology: v6e:2x2x1
jax: 0.10.0
libtpu: 0.0.40
codegen_flags: <defaults>
</compile_context>

<pallas_src>
import jax
import jax.numpy as jnp
from jax.experimental import pallas as pl
from jax.experimental.pallas import tpu as pltpu

BN_EPS = 1e-5


def _make_fused_kernel(n, cin, cout, h, w):
    """Build the fused 3-stage kernel for static shapes (N, Cin, Cout, H, W)."""
    hp, wp = h + 2, w + 2
    s = hp * wp                         # padded, lane-flattened spatial extent
    l = (h - 1) * wp + w                # "embedded" output strip length
    po = wp + 1                         # lane offset of interior (1,1) in padded buf
    offs = [dy * wp + dx for dy in range(3) for dx in range(3)]   # 9 tap offsets
    cnt1 = float(n * h * w)                                   # valid outputs, stride 1
    cnt2 = float(n * ((h + 1) // 2) * ((w + 1) // 2))          # valid outputs, stride 2

    def conv9(a, w_ref, c_in):
        # a: (c_in, S) bf16 padded activation of one sample.
        # 3x3 conv = 9 lane-shifted matmuls accumulated in f32 (bf16 MXU operands).
        y = jnp.zeros((cout, l), jnp.float32)
        for t, off in enumerate(offs):
            wt = w_ref[:, t * c_in:(t + 1) * c_in]              # (Cout, c_in) bf16
            y = y + jnp.dot(wt, a[:, off:off + l],
                            preferred_element_type=jnp.float32)
        return y

    def bn_relu(ys, gamma, beta, mask, cnt):
        # Training-mode BatchNorm (exact batch stats over valid lanes) + ReLU, in f32.
        inv_cnt = 1.0 / cnt
        mean = sum(jnp.sum(y * mask, axis=1, keepdims=True) for y in ys) * inv_cnt
        var = sum(jnp.sum(((y - mean) ** 2) * mask, axis=1, keepdims=True)
                  for y in ys) * inv_cnt
        scale = gamma * jax.lax.rsqrt(var + BN_EPS)
        shift = beta - mean * scale
        return [jnp.maximum(y * scale + shift, 0.0) for y in ys]

    def kernel(x_ref, w1_ref, w2_ref, w3_ref, gb_ref, m1_ref, m2_ref,
               o1_ref, o2_ref, h1_ref, h2_ref):
        # Zero the padded VMEM activation buffers: their halo must stay 0.
        h1_ref[...] = jnp.zeros_like(h1_ref)
        h2_ref[...] = jnp.zeros_like(h2_ref)

        mask1 = m1_ref[...]         # (1, L): 1.0 at valid stride-1 output lanes
        mask2 = m2_ref[...]         # (1, L): 1.0 at valid stride-2 output lanes

        def gamma_beta(i):
            return gb_ref[:, 2 * i:2 * i + 1], gb_ref[:, 2 * i + 1:2 * i + 2]

        # ---- stage 1: Conv(Cin->Cout, s=1) + BN + ReLU -------------------------
        # (conv bias omitted: exactly cancelled by the BN mean subtraction)
        g, b = gamma_beta(0)
        zs = bn_relu([conv9(x_ref[i], w1_ref, cin) for i in range(n)],
                     g, b, mask1, cnt1)
        for i in range(n):
            h1_ref[i, :, po:po + l] = (zs[i] * mask1).astype(jnp.bfloat16)

        # ---- stage 2: Conv(Cout->Cout, s=1) + BN + ReLU  -> "out" --------------
        g, b = gamma_beta(1)
        zs = bn_relu([conv9(h1_ref[i], w2_ref, cout) for i in range(n)],
                     g, b, mask1, cnt1)
        for i in range(n):
            zm = zs[i] * mask1
            o1_ref[i, :, po:po + l] = zm                          # f32 output
            h2_ref[i, :, po:po + l] = zm.astype(jnp.bfloat16)     # bf16 stage-3 input

        # ---- stage 3: Conv(Cout->Cout, s=2) + BN + ReLU  -> "out_2" ------------
        # Computed at every stride-1 position; the stride-2 outputs are the even
        # (row, col) subset which the wrapper extracts with a strided slice.
        # BN statistics are masked to that subset only (exact stride-2 stats).
        g, b = gamma_beta(2)
        zs = bn_relu([conv9(h2_ref[i], w3_ref, cout) for i in range(n)],
                     g, b, mask2, cnt2)
        for i in range(n):
            o2_ref[i, :, po:po + l] = zs[i]

        # TODO(synk): PyTorch BatchNorm also updates running_mean/running_var in
        # training mode; that in-place buffer mutation is not replicated here.

    return kernel, s, l


def downsample_layer_forward(x_nchw, params):
    """Matches DownsampleLayer.forward: returns (out, out_2), both NCHW float32."""
    n, cin, h, w = x_nchw.shape
    cout = params["w1"].shape[0]
    hp, wp = h + 2, w + 2

    kernel, s, l = _make_fused_kernel(n, cin, cout, h, w)

    def pack_w(wt):
        # torch layout (Cout, Cin, 3, 3) -> (Cout, 9*Cin), tap-major (dy, dx), bf16.
        co, ci = wt.shape[0], wt.shape[1]
        return jnp.transpose(wt, (0, 2, 3, 1)).reshape(co, 9 * ci).astype(jnp.bfloat16)

    w1p, w2p, w3p = pack_w(params["w1"]), pack_w(params["w2"]), pack_w(params["w3"])
    gb = jnp.stack([params["g1"], params["be1"],
                    params["g2"], params["be2"],
                    params["g3"], params["be3"]], axis=1).astype(jnp.float32)   # (Cout, 6)

    # Zero-pad spatially, flatten (Hp, Wp) onto the lane axis, cast bf16 for the MXU.
    x_pad = jnp.pad(x_nchw.astype(jnp.bfloat16),
                    ((0, 0), (0, 0), (1, 1), (1, 1))).reshape(n, cin, s)

    # Validity masks over the embedded output strip (static, built once from shapes).
    q = jnp.arange(l, dtype=jnp.int32)
    col, row = q % wp, q // wp
    mask1 = (col < w).astype(jnp.float32).reshape(1, l)
    mask2 = ((col < w) & (col % 2 == 0) & (row % 2 == 0)).astype(jnp.float32).reshape(1, l)

    def full(shape):
        return pl.BlockSpec(shape, lambda i: (0,) * len(shape))

    o1, o2 = pl.pallas_call(
        kernel,
        out_shape=(jax.ShapeDtypeStruct((n, cout, s), jnp.float32),
                   jax.ShapeDtypeStruct((n, cout, s), jnp.float32)),
        grid=(1,),
        in_specs=[full((n, cin, s)),
                  full((cout, 9 * cin)), full((cout, 9 * cout)), full((cout, 9 * cout)),
                  full((cout, 6)), full((1, l)), full((1, l))],
        out_specs=(full((n, cout, s)), full((n, cout, s))),
        scratch_shapes=[pltpu.VMEM((n, cout, s), jnp.bfloat16),
                        pltpu.VMEM((n, cout, s), jnp.bfloat16)],
        compiler_params=pltpu.CompilerParams(dimension_semantics=("arbitrary",)),
    )(x_pad, w1p, w2p, w3p, gb, mask1, mask2)

    o1 = o1.reshape(n, cout, hp, wp)
    o2 = o2.reshape(n, cout, hp, wp)
    out = o1[:, :, 1:1 + h, 1:1 + w]             # (N, Cout, H, W)   -- already NCHW
    out_2 = o2[:, :, 1:1 + h:2, 1:1 + w:2]       # (N, Cout, ceil(H/2), ceil(W/2))
    return out, out_2


def init_params(key, in_ch, out_ch):
    """Deterministic synthetic parameters (shapes / layouts match the nn.Module)."""
    ks = jax.random.split(key, 12)

    def conv(kw, kb, ci, co):
        wt = 0.1 * jax.random.normal(kw, (co, ci, 3, 3), jnp.float32)   # (Cout,Cin,3,3)
        b = 0.1 * jax.random.normal(kb, (co,), jnp.float32)
        return wt, b

    w1, b1 = conv(ks[0], ks[1], in_ch, out_ch)
    w2, b2 = conv(ks[2], ks[3], out_ch, out_ch)
    w3, b3 = conv(ks[4], ks[5], out_ch, out_ch)
    gam = lambda k: 1.0 + 0.1 * jax.random.normal(k, (out_ch,), jnp.float32)
    bet = lambda k: 0.1 * jax.random.normal(k, (out_ch,), jnp.float32)
    return {
        "w1": w1, "b1": b1, "g1": gam(ks[6]), "be1": bet(ks[7]),
        "w2": w2, "b2": b2, "g2": gam(ks[8]), "be2": bet(ks[9]),
        "w3": w3, "b3": b3, "g3": gam(ks[10]), "be3": bet(ks[11]),
    }


def _reference_forward(x, params):
    """Pure-JAX reference (XLA conv), matching the kernel's bf16-operand convention."""
    def block(a, wt, b, g, be, stride):
        y = jax.lax.conv_general_dilated(
            a.astype(jnp.bfloat16), wt.astype(jnp.bfloat16),
            window_strides=(stride, stride), padding=((1, 1), (1, 1)),
            dimension_numbers=("NCHW", "OIHW", "NCHW"),
            preferred_element_type=jnp.float32)
        y = y + b.reshape(1, -1, 1, 1)
        mean = jnp.mean(y, axis=(0, 2, 3), keepdims=True)
        var = jnp.mean((y - mean) ** 2, axis=(0, 2, 3), keepdims=True)
        yh = (y - mean) * jax.lax.rsqrt(var + BN_EPS)
        return jnp.maximum(yh * g.reshape(1, -1, 1, 1) + be.reshape(1, -1, 1, 1), 0.0)

    h1 = block(x, params["w1"], params["b1"], params["g1"], params["be1"], 1)
    out = block(h1, params["w2"], params["b2"], params["g2"], params["be2"], 1)
    out_2 = block(out, params["w3"], params["b3"], params["g3"], params["be3"], 2)
    return out, out_2


if __name__ == "__main__":
    key = jax.random.PRNGKey(0)
    k_x, k_p = jax.random.split(key)

    batch, in_ch, out_ch, spatial = 2, 4, 8, 16
    x = jax.random.normal(k_x, (batch, in_ch, spatial, spatial), jnp.float32)   # NCHW
    params = init_params(k_p, in_ch, out_ch)

    fwd = jax.jit(downsample_layer_forward)
    out, out_2 = fwd(x, params)
    jax.block_until_ready((out, out_2))

    assert out.shape == (batch, out_ch, spatial, spatial), out.shape
    assert out_2.shape == (batch, out_ch, spatial // 2, spatial // 2), out_2.shape
    assert bool(jnp.all(out >= 0)) and bool(jnp.all(out_2 >= 0))   # ReLU outputs

    # Correctness against a pure-JAX reference (same bf16 operand convention).
    ref_out, ref_out_2 = _reference_forward(x, params)
    err1 = float(jnp.max(jnp.abs(out - ref_out)))
    err2 = float(jnp.max(jnp.abs(out_2 - ref_out_2)))
    assert err1 < 3e-2 and err2 < 3e-2, (err1, err2)

    print("KERNEL_OK")
</pallas_src>

<mosaic_0001>
module attributes {stable_mosaic.version = 11 : i64} {
  func.func @kernel(%arg0: i32, %arg1: memref<2x4x324xbf16, #tpu.memory_space<vmem>>, %arg2: memref<8x36xbf16, #tpu.memory_space<vmem>>, %arg3: memref<8x72xbf16, #tpu.memory_space<vmem>>, %arg4: memref<8x72xbf16, #tpu.memory_space<vmem>>, %arg5: memref<8x6xf32, #tpu.memory_space<vmem>>, %arg6: memref<1x286xf32, #tpu.memory_space<vmem>>, %arg7: memref<1x286xf32, #tpu.memory_space<vmem>>, %arg8: memref<2x8x324xf32, #tpu.memory_space<vmem>>, %arg9: memref<2x8x324xf32, #tpu.memory_space<vmem>>, %arg10: memref<2x8x324xbf16, #tpu.memory_space<vmem>>, %arg11: memref<2x8x324xbf16, #tpu.memory_space<vmem>>) attributes {dimension_semantics = [#tpu.dimension_semantics<arbitrary>], iteration_bounds = array<i64: 1>, scalar_prefetch = 0 : i64, scratch_operands = 2 : i64, tpu.core_type = #tpu.core_type<tc>, window_params = [{pipeline_mode = #tpu.pipeline_mode<synchronous>, transform_indices = @transform_0, window_bounds = array<i64: 2, 4, 324>}, {pipeline_mode = #tpu.pipeline_mode<synchronous>, transform_indices = @transform_1, window_bounds = array<i64: 8, 36>}, {pipeline_mode = #tpu.pipeline_mode<synchronous>, transform_indices = @transform_2, window_bounds = array<i64: 8, 72>}, {pipeline_mode = #tpu.pipeline_mode<synchronous>, transform_indices = @transform_3, window_bounds = array<i64: 8, 72>}, {pipeline_mode = #tpu.pipeline_mode<synchronous>, transform_indices = @transform_4, window_bounds = array<i64: 8, 6>}, {pipeline_mode = #tpu.pipeline_mode<synchronous>, transform_indices = @transform_5, window_bounds = array<i64: 1, 286>}, {pipeline_mode = #tpu.pipeline_mode<synchronous>, transform_indices = @transform_6, window_bounds = array<i64: 1, 286>}, {pipeline_mode = #tpu.pipeline_mode<synchronous>, transform_indices = @transform_7, window_bounds = array<i64: 2, 8, 324>}, {pipeline_mode = #tpu.pipeline_mode<synchronous>, transform_indices = @transform_8, window_bounds = array<i64: 2, 8, 324>}]} {
    %cst = arith.constant 0.000000e+00 : bf16
    %0 = vector.broadcast %cst : bf16 to vector<2x8x324xbf16>
    %c0 = arith.constant 0 : index
    %c0_0 = arith.constant 0 : index
    %c0_1 = arith.constant 0 : index
    %1 = vector.load %arg10[%c0, %c0_0, %c0_1] : memref<2x8x324xbf16, #tpu.memory_space<vmem>>, vector<2x8x324xbf16>
    tpu.vector_store %arg10[%c0, %c0_0, %c0_1], %0 {strides = array<i32>} : memref<2x8x324xbf16, #tpu.memory_space<vmem>>, vector<2x8x324xbf16>,
    %cst_2 = arith.constant 0.000000e+00 : bf16
    %2 = vector.broadcast %cst_2 : bf16 to vector<2x8x324xbf16>
    %c0_3 = arith.constant 0 : index
    %c0_4 = arith.constant 0 : index
    %c0_5 = arith.constant 0 : index
    %3 = vector.load %arg11[%c0_3, %c0_4, %c0_5] : memref<2x8x324xbf16, #tpu.memory_space<vmem>>, vector<2x8x324xbf16>
    tpu.vector_store %arg11[%c0_3, %c0_4, %c0_5], %2 {strides = array<i32>} : memref<2x8x324xbf16, #tpu.memory_space<vmem>>, vector<2x8x324xbf16>,
    %c0_6 = arith.constant 0 : index
    %c0_7 = arith.constant 0 : index
    %4 = vector.load %arg6[%c0_6, %c0_7] : memref<1x286xf32, #tpu.memory_space<vmem>>, vector<1x286xf32>
    %c0_8 = arith.constant 0 : index
    %c0_9 = arith.constant 0 : index
    %5 = vector.load %arg7[%c0_8, %c0_9] : memref<1x286xf32, #tpu.memory_space<vmem>>, vector<1x286xf32>
    %c0_10 = arith.constant 0 : index
    %c0_11 = arith.constant 0 : index
    %6 = vector.load %arg5[%c0_10, %c0_11] : memref<8x6xf32, #tpu.memory_space<vmem>>, vector<8x1xf32>
    %c0_12 = arith.constant 0 : index
    %c1 = arith.constant 1 : index
    %7 = vector.load %arg5[%c0_12, %c1] : memref<8x6xf32, #tpu.memory_space<vmem>>, vector<8x1xf32>
    %c0_13 = arith.constant 0 : index
    %c0_14 = arith.constant 0 : index
    %c0_15 = arith.constant 0 : index
    %8 = vector.load %arg1[%c0_13, %c0_14, %c0_15] : memref<2x4x324xbf16, #tpu.memory_space<vmem>>, vector<1x4x324xbf16>
    %9 = vector.shape_cast %8 : vector<1x4x324xbf16> to vector<4x324xbf16>
    %cst_16 = arith.constant 0.000000e+00 : f32
    %10 = vector.broadcast %cst_16 : f32 to vector<8x286xf32>
    %c0_17 = arith.constant 0 : index
    %c0_18 = arith.constant 0 : index
    %11 = vector.load %arg2[%c0_17, %c0_18] : memref<8x36xbf16, #tpu.memory_space<vmem>>, vector<8x4xbf16>
    %12 = vector.extract_strided_slice %9 {offsets = [0, 0], sizes = [4, 286], strides = [1, 1]} : vector<4x324xbf16> to vector<4x286xbf16>
    %cst_19 = arith.constant dense<0.000000e+00> : vector<8x286xf32>
    %13 = tpu.matmul %11, %12, %cst_19 {dimension_numbers = #tpu.dot_dimension_numbers<[1], [0], [0], [1], [0, 0, 1, 1], [], []>} : vector<8x4xbf16>, vector<4x286xbf16>, vector<8x286xf32> -> vector<8x286xf32>
    %14 = arith.addf %10, %13 : vector<8x286xf32>
    %c0_20 = arith.constant 0 : index
    %c4 = arith.constant 4 : index
    %15 = vector.load %arg2[%c0_20, %c4] : memref<8x36xbf16, #tpu.memory_space<vmem>>, vector<8x4xbf16>
    %16 = vector.extract_strided_slice %9 {offsets = [0, 1], sizes = [4, 286], strides = [1, 1]} : vector<4x324xbf16> to vector<4x286xbf16>
    %cst_21 = arith.constant dense<0.000000e+00> : vector<8x286xf32>
    %17 = tpu.matmul %15, %16, %cst_21 {dimension_numbers = #tpu.dot_dimension_numbers<[1], [0], [0], [1], [0, 0, 1, 1], [], []>} : vector<8x4xbf16>, vector<4x286xbf16>, vector<8x286xf32> -> vector<8x286xf32>
    %18 = arith.addf %14, %17 : vector<8x286xf32>
    %c0_22 = arith.constant 0 : index
    %c8 = arith.constant 8 : index
    %19 = vector.load %arg2[%c0_22, %c8] : memref<8x36xbf16, #tpu.memory_space<vmem>>, vector<8x4xbf16>
    %20 = vector.extract_strided_slice %9 {offsets = [0, 2], sizes = [4, 286], strides = [1, 1]} : vector<4x324xbf16> to vector<4x286xbf16>
    %cst_23 = arith.constant dense<0.000000e+00> : vector<8x286xf32>
    %21 = tpu.matmul %19, %20, %cst_23 {dimension_numbers = #tpu.dot_dimension_numbers<[1], [0], [0], [1], [0, 0, 1, 1], [], []>} : vector<8x4xbf16>, vector<4x286xbf16>, vector<8x286xf32> -> vector<8x286xf32>
    %22 = arith.addf %18, %21 : vector<8x286xf32>
    %c0_24 = arith.constant 0 : index
    %c12 = arith.constant 12 : index
    %23 = vector.load %arg2[%c0_24, %c12] : memref<8x36xbf16, #tpu.memory_space<vmem>>, vector<8x4xbf16>
    %24 = vector.extract_strided_slice %9 {offsets = [0, 18], sizes = [4, 286], strides = [1, 1]} : vector<4x324xbf16> to vector<4x286xbf16>
    %cst_25 = arith.constant dense<0.000000e+00> : vector<8x286xf32>
    %25 = tpu.matmul %23, %24, %cst_25 {dimension_numbers = #tpu.dot_dimension_numbers<[1], [0], [0], [1], [0, 0, 1, 1], [], []>} : vector<8x4xbf16>, vector<4x286xbf16>, vector<8x286xf32> -> vector<8x286xf32>
    %26 = arith.addf %22, %25 : vector<8x286xf32>
    %c0_26 = arith.constant 0 : index
    %c16 = arith.constant 16 : index
    %27 = vector.load %arg2[%c0_26, %c16] : memref<8x36xbf16, #tpu.memory_space<vmem>>, vector<8x4xbf16>
    %28 = vector.extract_strided_slice %9 {offsets = [0, 19], sizes = [4, 286], strides = [1, 1]} : vector<4x324xbf16> to vector<4x286xbf16>
    %cst_27 = arith.constant dense<0.000000e+00> : vector<8x286xf32>
    %29 = tpu.matmul %27, %28, %cst_27 {dimension_numbers = #tpu.dot_dimension_numbers<[1], [0], [0], [1], [0, 0, 1, 1], [], []>} : vector<8x4xbf16>, vector<4x286xbf16>, vector<8x286xf32> -> vector<8x286xf32>
    %30 = arith.addf %26, %29 : vector<8x286xf32>
    %c0_28 = arith.constant 0 : index
    %c20 = arith.constant 20 : index
    %31 = vector.load %arg2[%c0_28, %c20] : memref<8x36xbf16, #tpu.memory_space<vmem>>, vector<8x4xbf16>
    %32 = vector.extract_strided_slice %9 {offsets = [0, 20], sizes = [4, 286], strides = [1, 1]} : vector<4x324xbf16> to vector<4x286xbf16>
    %cst_29 = arith.constant dense<0.000000e+00> : vector<8x286xf32>
    %33 = tpu.matmul %31, %32, %cst_29 {dimension_numbers = #tpu.dot_dimension_numbers<[1], [0], [0], [1], [0, 0, 1, 1], [], []>} : vector<8x4xbf16>, vector<4x286xbf16>, vector<8x286xf32> -> vector<8x286xf32>
    %34 = arith.addf %30, %33 : vector<8x286xf32>
    %c0_30 = arith.constant 0 : index
    %c24 = arith.constant 24 : index
    %35 = vector.load %arg2[%c0_30, %c24] : memref<8x36xbf16, #tpu.memory_space<vmem>>, vector<8x4xbf16>
    %36 = vector.extract_strided_slice %9 {offsets = [0, 36], sizes = [4, 286], strides = [1, 1]} : vector<4x324xbf16> to vector<4x286xbf16>
    %cst_31 = arith.constant dense<0.000000e+00> : vector<8x286xf32>
    %37 = tpu.matmul %35, %36, %cst_31 {dimension_numbers = #tpu.dot_dimension_numbers<[1], [0], [0], [1], [0, 0, 1, 1], [], []>} : vector<8x4xbf16>, vector<4x286xbf16>, vector<8x286xf32> -> vector<8x286xf32>
    %38 = arith.addf %34, %37 : vector<8x286xf32>
    %c0_32 = arith.constant 0 : index
    %c28 = arith.constant 28 : index
    %39 = vector.load %arg2[%c0_32, %c28] : memref<8x36xbf16, #tpu.memory_space<vmem>>, vector<8x4xbf16>
    %40 = vector.extract_strided_slice %9 {offsets = [0, 37], sizes = [4, 286], strides = [1, 1]} : vector<4x324xbf16> to vector<4x286xbf16>
    %cst_33 = arith.constant dense<0.000000e+00> : vector<8x286xf32>
    %41 = tpu.matmul %39, %40, %cst_33 {dimension_numbers = #tpu.dot_dimension_numbers<[1], [0], [0], [1], [0, 0, 1, 1], [], []>} : vector<8x4xbf16>, vector<4x286xbf16>, vector<8x286xf32> -> vector<8x286xf32>
    %42 = arith.addf %38, %41 : vector<8x286xf32>
    %c0_34 = arith.constant 0 : index
    %c32 = arith.constant 32 : index
    %43 = vector.load %arg2[%c0_34, %c32] : memref<8x36xbf16, #tpu.memory_space<vmem>>, vector<8x4xbf16>
    %44 = vector.extract_strided_slice %9 {offsets = [0, 38], sizes = [4, 286], strides = [1, 1]} : vector<4x324xbf16> to vector<4x286xbf16>
    %cst_35 = arith.constant dense<0.000000e+00> : vector<8x286xf32>
    %45 = tpu.matmul %43, %44, %cst_35 {dimension_numbers = #tpu.dot_dimension_numbers<[1], [0], [0], [1], [0, 0, 1, 1], [], []>} : vector<8x4xbf16>, vector<4x286xbf16>, vector<8x286xf32> -> vector<8x286xf32>
    %46 = arith.addf %42, %45 : vector<8x286xf32>
    %c1_36 = arith.constant 1 : index
    %c0_37 = arith.constant 0 : index
    %c0_38 = arith.constant 0 : index
    %47 = vector.load %arg1[%c1_36, %c0_37, %c0_38] : memref<2x4x324xbf16, #tpu.memory_space<vmem>>, vector<1x4x324xbf16>
    %48 = vector.shape_cast %47 : vector<1x4x324xbf16> to vector<4x324xbf16>
    %cst_39 = arith.constant 0.000000e+00 : f32
    %49 = vector.broadcast %cst_39 : f32 to vector<8x286xf32>
    %c0_40 = arith.constant 0 : index
    %c0_41 = arith.constant 0 : index
    %50 = vector.load %arg2[%c0_40, %c0_41] : memref<8x36xbf16, #tpu.memory_space<vmem>>, vector<8x4xbf16>
    %51 = vector.extract_strided_slice %48 {offsets = [0, 0], sizes = [4, 286], strides = [1, 1]} : vector<4x324xbf16> to vector<4x286xbf16>
    %cst_42 = arith.constant dense<0.000000e+00> : vector<8x286xf32>
    %52 = tpu.matmul %50, %51, %cst_42 {dimension_numbers = #tpu.dot_dimension_numbers<[1], [0], [0], [1], [0, 0, 1, 1], [], []>} : vector<8x4xbf16>, vector<4x286xbf16>, vector<8x286xf32> -> vector<8x286xf32>
    %53 = arith.addf %49, %52 : vector<8x286xf32>
    %c0_43 = arith.constant 0 : index
    %c4_44 = arith.constant 4 : index
    %54 = vector.load %arg2[%c0_43, %c4_44] : memref<8x36xbf16, #tpu.memory_space<vmem>>, vector<8x4xbf16>
    %55 = vector.extract_strided_slice %48 {offsets = [0, 1], sizes = [4, 286], strides = [1, 1]} : vector<4x324xbf16> to vector<4x286xbf16>
    %cst_45 = arith.constant dense<0.000000e+00> : vector<8x286xf32>
    %56 = tpu.matmul %54, %55, %cst_45 {dimension_numbers = #tpu.dot_dimension_numbers<[1], [0], [0], [1], [0, 0, 1, 1], [], []>} : vector<8x4xbf16>, vector<4x286xbf16>, vector<8x286xf32> -> vector<8x286xf32>
    %57 = arith.addf %53, %56 : vector<8x286xf32>
    %c0_46 = arith.constant 0 : index
    %c8_47 = arith.constant 8 : index
    %58 = vector.load %arg2[%c0_46, %c8_47] : memref<8x36xbf16, #tpu.memory_space<vmem>>, vector<8x4xbf16>
    %59 = vector.extract_strided_slice %48 {offsets = [0, 2], sizes = [4, 286], strides = [1, 1]} : vector<4x324xbf16> to vector<4x286xbf16>
    %cst_48 = arith.constant dense<0.000000e+00> : vector<8x286xf32>
    %60 = tpu.matmul %58, %59, %cst_48 {dimension_numbers = #tpu.dot_dimension_numbers<[1], [0], [0], [1], [0, 0, 1, 1], [], []>} : vector<8x4xbf16>, vector<4x286xbf16>, vector<8x286xf32> -> vector<8x286xf32>
    %61 = arith.addf %57, %60 : vector<8x286xf32>
    %c0_49 = arith.constant 0 : index
    %c12_50 = arith.constant 12 : index
    %62 = vector.load %arg2[%c0_49, %c12_50] : memref<8x36xbf16, #tpu.memory_space<vmem>>, vector<8x4xbf16>
    %63 = vector.extract_strided_slice %48 {offsets = [0, 18], sizes = [4, 286], strides = [1, 1]} : vector<4x324xbf16> to vector<4x286xbf16>
    %cst_51 = arith.constant dense<0.000000e+00> : vector<8x286xf32>
    %64 = tpu.matmul %62, %63, %cst_51 {dimension_numbers = #tpu.dot_dimension_numbers<[1], [0], [0], [1], [0, 0, 1, 1], [], []>} : vector<8x4xbf16>, vector<4x286xbf16>, vector<8x286xf32> -> vector<8x286xf32>
    %65 = arith.addf %61, %64 : vector<8x286xf32>
    %c0_52 = arith.constant 0 : index
    %c16_53 = arith.constant 16 : index
    %66 = vector.load %arg2[%c0_52, %c16_53] : memref<8x36xbf16, #tpu.memory_space<vmem>>, vector<8x4xbf16>
    %67 = vector.extract_strided_slice %48 {offsets = [0, 19], sizes = [4, 286], strides = [1, 1]} : vector<4x324xbf16> to vector<4x286xbf16>
    %cst_54 = arith.constant dense<0.000000e+00> : vector<8x286xf32>
    %68 = tpu.matmul %66, %67, %cst_54 {dimension_numbers = #tpu.dot_dimension_numbers<[1], [0], [0], [1], [0, 0, 1, 1], [], []>} : vector<8x4xbf16>, vector<4x286xbf16>, vector<8x286xf32> -> vector<8x286xf32>
    %69 = arith.addf %65, %68 : vector<8x286xf32>
    %c0_55 = arith.constant 0 : index
    %c20_56 = arith.constant 20 : index
    %70 = vector.load %arg2[%c0_55, %c20_56] : memref<8x36xbf16, #tpu.memory_space<vmem>>, vector<8x4xbf16>
    %71 = vector.extract_strided_slice %48 {offsets = [0, 20], sizes = [4, 286], strides = [1, 1]} : vector<4x324xbf16> to vector<4x286xbf16>
    %cst_57 = arith.constant dense<0.000000e+00> : vector<8x286xf32>
    %72 = tpu.matmul %70, %71, %cst_57 {dimension_numbers = #tpu.dot_dimension_numbers<[1], [0], [0], [1], [0, 0, 1, 1], [], []>} : vector<8x4xbf16>, vector<4x286xbf16>, vector<8x286xf32> -> vector<8x286xf32>
    %73 = arith.addf %69, %72 : vector<8x286xf32>
    %c0_58 = arith.constant 0 : index
    %c24_59 = arith.constant 24 : index
    %74 = vector.load %arg2[%c0_58, %c24_59] : memref<8x36xbf16, #tpu.memory_space<vmem>>, vector<8x4xbf16>
    %75 = vector.extract_strided_slice %48 {offsets = [0, 36], sizes = [4, 286], strides = [1, 1]} : vector<4x324xbf16> to vector<4x286xbf16>
    %cst_60 = arith.constant dense<0.000000e+00> : vector<8x286xf32>
    %76 = tpu.matmul %74, %75, %cst_60 {dimension_numbers = #tpu.dot_dimension_numbers<[1], [0], [0], [1], [0, 0, 1, 1], [], []>} : vector<8x4xbf16>, vector<4x286xbf16>, vector<8x286xf32> -> vector<8x286xf32>
    %77 = arith.addf %73, %76 : vector<8x286xf32>
    %c0_61 = arith.constant 0 : index
    %c28_62 = arith.constant 28 : index
    %78 = vector.load %arg2[%c0_61, %c28_62] : memref<8x36xbf16, #tpu.memory_space<vmem>>, vector<8x4xbf16>
    %79 = vector.extract_strided_slice %48 {offsets = [0, 37], sizes = [4, 286], strides = [1, 1]} : vector<4x324xbf16> to vector<4x286xbf16>
    %cst_63 = arith.constant dense<0.000000e+00> : vector<8x286xf32>
    %80 = tpu.matmul %78, %79, %cst_63 {dimension_numbers = #tpu.dot_dimension_numbers<[1], [0], [0], [1], [0, 0, 1, 1], [], []>} : vector<8x4xbf16>, vector<4x286xbf16>, vector<8x286xf32> -> vector<8x286xf32>
    %81 = arith.addf %77, %80 : vector<8x286xf32>
    %c0_64 = arith.constant 0 : index
    %c32_65 = arith.constant 32 : index
    %82 = vector.load %arg2[%c0_64, %c32_65] : memref<8x36xbf16, #tpu.memory_space<vmem>>, vector<8x4xbf16>
    %83 = vector.extract_strided_slice %48 {offsets = [0, 38], sizes = [4, 286], strides = [1, 1]} : vector<4x324xbf16> to vector<4x286xbf16>
    %cst_66 = arith.constant dense<0.000000e+00> : vector<8x286xf32>
    %84 = tpu.matmul %82, %83, %cst_66 {dimension_numbers = #tpu.dot_dimension_numbers<[1], [0], [0], [1], [0, 0, 1, 1], [], []>} : vector<8x4xbf16>, vector<4x286xbf16>, vector<8x286xf32> -> vector<8x286xf32>
    %85 = arith.addf %81, %84 : vector<8x286xf32>
    %86 = vector.broadcast %4 : vector<1x286xf32> to vector<8x286xf32>
    %87 = arith.mulf %46, %86 : vector<8x286xf32>
    %cst_67 = arith.constant dense<0.000000e+00> : vector<8xf32>
    %88 = vector.multi_reduction <add>, %87, %cst_67 [1] : vector<8x286xf32> to vector<8xf32>
    %89 = vector.shape_cast %88 : vector<8xf32> to vector<8x1xf32>
    %cst_68 = arith.constant 0.000000e+00 : f32
    %90 = vector.broadcast %cst_68 : f32 to vector<8x1xf32>
    %91 = arith.addf %90, %89 : vector<8x1xf32>
    %92 = vector.broadcast %4 : vector<1x286xf32> to vector<8x286xf32>
    %93 = arith.mulf %85, %92 : vector<8x286xf32>
    %cst_69 = arith.constant dense<0.000000e+00> : vector<8xf32>
    %94 = vector.multi_reduction <add>, %93, %cst_69 [1] : vector<8x286xf32> to vector<8xf32>
    %95 = vector.shape_cast %94 : vector<8xf32> to vector<8x1xf32>
    %96 = arith.addf %91, %95 : vector<8x1xf32>
    %cst_70 = arith.constant 0.001953125 : f32
    %97 = vector.broadcast %cst_70 : f32 to vector<8x1xf32>
    %98 = arith.mulf %96, %97 : vector<8x1xf32>
    %99 = vector.broadcast %98 : vector<8x1xf32> to vector<8x286xf32>
    %100 = arith.subf %46, %99 : vector<8x286xf32>
    %101 = arith.mulf %100, %100 : vector<8x286xf32>
    %102 = vector.broadcast %4 : vector<1x286xf32> to vector<8x286xf32>
    %103 = arith.mulf %101, %102 : vector<8x286xf32>
    %cst_71 = arith.constant dense<0.000000e+00> : vector<8xf32>
    %104 = vector.multi_reduction <add>, %103, %cst_71 [1] : vector<8x286xf32> to vector<8xf32>
    %105 = vector.shape_cast %104 : vector<8xf32> to vector<8x1xf32>
    %cst_72 = arith.constant 0.000000e+00 : f32
    %106 = vector.broadcast %cst_72 : f32 to vector<8x1xf32>
    %107 = arith.addf %106, %105 : vector<8x1xf32>
    %108 = vector.broadcast %98 : vector<8x1xf32> to vector<8x286xf32>
    %109 = arith.subf %85, %108 : vector<8x286xf32>
    %110 = arith.mulf %109, %109 : vector<8x286xf32>
    %111 = vector.broadcast %4 : vector<1x286xf32> to vector<8x286xf32>
    %112 = arith.mulf %110, %111 : vector<8x286xf32>
    %cst_73 = arith.constant dense<0.000000e+00> : vector<8xf32>
    %113 = vector.multi_reduction <add>, %112, %cst_73 [1] : vector<8x286xf32> to vector<8xf32>
    %114 = vector.shape_cast %113 : vector<8xf32> to vector<8x1xf32>
    %115 = arith.addf %107, %114 : vector<8x1xf32>
    %cst_74 = arith.constant 0.001953125 : f32
    %116 = vector.broadcast %cst_74 : f32 to vector<8x1xf32>
    %117 = arith.mulf %115, %116 : vector<8x1xf32>
    %cst_75 = arith.constant 9.99999974E-6 : f32
    %118 = vector.broadcast %cst_75 : f32 to vector<8x1xf32>
    %119 = arith.addf %117, %118 : vector<8x1xf32>
    %120 = math.rsqrt %119 : vector<8x1xf32>
    %121 = arith.mulf %6, %120 : vector<8x1xf32>
    %122 = arith.mulf %98, %121 : vector<8x1xf32>
    %123 = arith.subf %7, %122 : vector<8x1xf32>
    %124 = vector.broadcast %121 : vector<8x1xf32> to vector<8x286xf32>
    %125 = arith.mulf %46, %124 : vector<8x286xf32>
    %126 = vector.broadcast %123 : vector<8x1xf32> to vector<8x286xf32>
    %127 = arith.addf %125, %126 : vector<8x286xf32>
    %cst_76 = arith.constant 0.000000e+00 : f32
    %128 = vector.broadcast %cst_76 : f32 to vector<8x286xf32>
    %129 = arith.maximumf %127, %128 : vector<8x286xf32>
    %130 = vector.broadcast %121 : vector<8x1xf32> to vector<8x286xf32>
    %131 = arith.mulf %85, %130 : vector<8x286xf32>
    %132 = vector.broadcast %123 : vector<8x1xf32> to vector<8x286xf32>
    %133 = arith.addf %131, %132 : vector<8x286xf32>
    %cst_77 = arith.constant 0.000000e+00 : f32
    %134 = vector.broadcast %cst_77 : f32 to vector<8x286xf32>
    %135 = arith.maximumf %133, %134 : vector<8x286xf32>
    %136 = vector.broadcast %4 : vector<1x286xf32> to vector<8x286xf32>
    %137 = arith.mulf %129, %136 : vector<8x286xf32>
    %138 = arith.truncf %137 : vector<8x286xf32> to vector<8x286xbf16>
    %c0_78 = arith.constant 0 : index
    %c0_79 = arith.constant 0 : index
    %c19 = arith.constant 19 : index
    %139 = vector.load %arg10[%c0_78, %c0_79, %c19] : memref<2x8x324xbf16, #tpu.memory_space<vmem>>, vector<1x8x286xbf16>
    %140 = vector.shape_cast %139 : vector<1x8x286xbf16> to vector<8x286xbf16>
    %141 = vector.shape_cast %138 : vector<8x286xbf16> to vector<1x8x286xbf16>
    tpu.vector_store %arg10[%c0_78, %c0_79, %c19], %141 {strides = array<i32>} : memref<2x8x324xbf16, #tpu.memory_space<vmem>>, vector<1x8x286xbf16>,
    %142 = vector.broadcast %4 : vector<1x286xf32> to vector<8x286xf32>
    %143 = arith.mulf %135, %142 : vector<8x286xf32>
    %144 = arith.truncf %143 : vector<8x286xf32> to vector<8x286xbf16>
    %c1_80 = arith.constant 1 : index
    %c0_81 = arith.constant 0 : index
    %c19_82 = arith.constant 19 : index
    %145 = vector.load %arg10[%c1_80, %c0_81, %c19_82] : memref<2x8x324xbf16, #tpu.memory_space<vmem>>, vector<1x8x286xbf16>
    %146 = vector.shape_cast %145 : vector<1x8x286xbf16> to vector<8x286xbf16>
    %147 = vector.shape_cast %144 : vector<8x286xbf16> to vector<1x8x286xbf16>
    tpu.vector_store %arg10[%c1_80, %c0_81, %c19_82], %147 {strides = array<i32>} : memref<2x8x324xbf16, #tpu.memory_space<vmem>>, vector<1x8x286xbf16>,
    %c0_83 = arith.constant 0 : index
    %c2 = arith.constant 2 : index
    %148 = vector.load %arg5[%c0_83, %c2] : memref<8x6xf32, #tpu.memory_space<vmem>>, vector<8x1xf32>
    %c0_84 = arith.constant 0 : index
    %c3 = arith.constant 3 : index
    %149 = vector.load %arg5[%c0_84, %c3] : memref<8x6xf32, #tpu.memory_space<vmem>>, vector<8x1xf32>
    %c0_85 = arith.constant 0 : index
    %c0_86 = arith.constant 0 : index
    %c0_87 = arith.constant 0 : index
    %150 = vector.load %arg10[%c0_85, %c0_86, %c0_87] : memref<2x8x324xbf16, #tpu.memory_space<vmem>>, vector<1x8x324xbf16>
    %151 = vector.shape_cast %150 : vector<1x8x324xbf16> to vector<8x324xbf16>
    %cst_88 = arith.constant 0.000000e+00 : f32
    %152 = vector.broadcast %cst_88 : f32 to vector<8x286xf32>
    %c0_89 = arith.constant 0 : index
    %c0_90 = arith.constant 0 : index
    %153 = vector.load %arg3[%c0_89, %c0_90] : memref<8x72xbf16, #tpu.memory_space<vmem>>, vector<8x8xbf16>
    %154 = vector.extract_strided_slice %151 {offsets = [0, 0], sizes = [8, 286], strides = [1, 1]} : vector<8x324xbf16> to vector<8x286xbf16>
    %cst_91 = arith.constant dense<0.000000e+00> : vector<8x286xf32>
    %155 = tpu.matmul %153, %154, %cst_91 {dimension_numbers = #tpu.dot_dimension_numbers<[1], [0], [0], [1], [0, 0, 1, 1], [], []>} : vector<8x8xbf16>, vector<8x286xbf16>, vector<8x286xf32> -> vector<8x286xf32>
    %156 = arith.addf %152, %155 : vector<8x286xf32>
    %c0_92 = arith.constant 0 : index
    %c8_93 = arith.constant 8 : index
    %157 = vector.load %arg3[%c0_92, %c8_93] : memref<8x72xbf16, #tpu.memory_space<vmem>>, vector<8x8xbf16>
    %158 = vector.extract_strided_slice %151 {offsets = [0, 1], sizes = [8, 286], strides = [1, 1]} : vector<8x324xbf16> to vector<8x286xbf16>
    %cst_94 = arith.constant dense<0.000000e+00> : vector<8x286xf32>
    %159 = tpu.matmul %157, %158, %cst_94 {dimension_numbers = #tpu.dot_dimension_numbers<[1], [0], [0], [1], [0, 0, 1, 1], [], []>} : vector<8x8xbf16>, vector<8x286xbf16>, vector<8x286xf32> -> vector<8x286xf32>
    %160 = arith.addf %156, %159 : vector<8x286xf32>
    %c0_95 = arith.constant 0 : index
    %c16_96 = arith.constant 16 : index
    %161 = vector.load %arg3[%c0_95, %c16_96] : memref<8x72xbf16, #tpu.memory_space<vmem>>, vector<8x8xbf16>
    %162 = vector.extract_strided_slice %151 {offsets = [0, 2], sizes = [8, 286], strides = [1, 1]} : vector<8x324xbf16> to vector<8x286xbf16>
    %cst_97 = arith.constant dense<0.000000e+00> : vector<8x286xf32>
    %163 = tpu.matmul %161, %162, %cst_97 {dimension_numbers = #tpu.dot_dimension_numbers<[1], [0], [0], [1], [0, 0, 1, 1], [], []>} : vector<8x8xbf16>, vector<8x286xbf16>, vector<8x286xf32> -> vector<8x286xf32>
    %164 = arith.addf %160, %163 : vector<8x286xf32>
    %c0_98 = arith.constant 0 : index
    %c24_99 = arith.constant 24 : index
    %165 = vector.load %arg3[%c0_98, %c24_99] : memref<8x72xbf16, #tpu.memory_space<vmem>>, vector<8x8xbf16>
    %166 = vector.extract_strided_slice %151 {offsets = [0, 18], sizes = [8, 286], strides = [1, 1]} : vector<8x324xbf16> to vector<8x286xbf16>
    %cst_100 = arith.constant dense<0.000000e+00> : vector<8x286xf32>
    %167 = tpu.matmul %165, %166, %cst_100 {dimension_numbers = #tpu.dot_dimension_numbers<[1], [0], [0], [1], [0, 0, 1, 1], [], []>} : vector<8x8xbf16>, vector<8x286xbf16>, vector<8x286xf32> -> vector<8x286xf32>
    %168 = arith.addf %164, %167 : vector<8x286xf32>
    %c0_101 = arith.constant 0 : index
    %c32_102 = arith.constant 32 : index
    %169 = vector.load %arg3[%c0_101, %c32_102] : memref<8x72xbf16, #tpu.memory_space<vmem>>, vector<8x8xbf16>
    %170 = vector.extract_strided_slice %151 {offsets = [0, 19], sizes = [8, 286], strides = [1, 1]} : vector<8x324xbf16> to vector<8x286xbf16>
    %cst_103 = arith.constant dense<0.000000e+00> : vector<8x286xf32>
    %171 = tpu.matmul %169, %170, %cst_103 {dimension_numbers = #tpu.dot_dimension_numbers<[1], [0], [0], [1], [0, 0, 1, 1], [], []>} : vector<8x8xbf16>, vector<8x286xbf16>, vector<8x286xf32> -> vector<8x286xf32>
    %172 = arith.addf %168, %171 : vector<8x286xf32>
    %c0_104 = arith.constant 0 : index
    %c40 = arith.constant 40 : index
    %173 = vector.load %arg3[%c0_104, %c40] : memref<8x72xbf16, #tpu.memory_space<vmem>>, vector<8x8xbf16>
    %174 = vector.extract_strided_slice %151 {offsets = [0, 20], sizes = [8, 286], strides = [1, 1]} : vector<8x324xbf16> to vector<8x286xbf16>
    %cst_105 = arith.constant dense<0.000000e+00> : vector<8x286xf32>
    %175 = tpu.matmul %173, %174, %cst_105 {dimension_numbers = #tpu.dot_dimension_numbers<[1], [0], [0], [1], [0, 0, 1, 1], [], []>} : vector<8x8xbf16>, vector<8x286xbf16>, vector<8x286xf32> -> vector<8x286xf32>
    %176 = arith.addf %172, %175 : vector<8x286xf32>
    %c0_106 = arith.constant 0 : index
    %c48 = arith.constant 48 : index
    %177 = vector.load %arg3[%c0_106, %c48] : memref<8x72xbf16, #tpu.memory_space<vmem>>, vector<8x8xbf16>
    %178 = vector.extract_strided_slice %151 {offsets = [0, 36], sizes = [8, 286], strides = [1, 1]} : vector<8x324xbf16> to vector<8x286xbf16>
    %cst_107 = arith.constant dense<0.000000e+00> : vector<8x286xf32>
    %179 = tpu.matmul %177, %178, %cst_107 {dimension_numbers = #tpu.dot_dimension_numbers<[1], [0], [0], [1], [0, 0, 1, 1], [], []>} : vector<8x8xbf16>, vector<8x286xbf16>, vector<8x286xf32> -> vector<8x286xf32>
    %180 = arith.addf %176, %179 : vector<8x286xf32>
    %c0_108 = arith.constant 0 : index
    %c56 = arith.constant 56 : index
    %181 = vector.load %arg3[%c0_108, %c56] : memref<8x72xbf16, #tpu.memory_space<vmem>>, vector<8x8xbf16>
    %182 = vector.extract_strided_slice %151 {offsets = [0, 37], sizes = [8, 286], strides = [1, 1]} : vector<8x324xbf16> to vector<8x286xbf16>
    %cst_109 = arith.constant dense<0.000000e+00> : vector<8x286xf32>
    %183 = tpu.matmul %181, %182, %cst_109 {dimension_numbers = #tpu.dot_dimension_numbers<[1], [0], [0], [1], [0, 0, 1, 1], [], []>} : vector<8x8xbf16>, vector<8x286xbf16>, vector<8x286xf32> -> vector<8x286xf32>
    %184 = arith.addf %180, %183 : vector<8x286xf32>
    %c0_110 = arith.constant 0 : index
    %c64 = arith.constant 64 : index
    %185 = vector.load %arg3[%c0_110, %c64] : memref<8x72xbf16, #tpu.memory_space<vmem>>, vector<8x8xbf16>
    %186 = vector.extract_strided_slice %151 {offsets = [0, 38], sizes = [8, 286], strides = [1, 1]} : vector<8x324xbf16> to vector<8x286xbf16>
    %cst_111 = arith.constant dense<0.000000e+00> : vector<8x286xf32>
    %187 = tpu.matmul %185, %186, %cst_111 {dimension_numbers = #tpu.dot_dimension_numbers<[1], [0], [0], [1], [0, 0, 1, 1], [], []>} : vector<8x8xbf16>, vector<8x286xbf16>, vector<8x286xf32> -> vector<8x286xf32>
    %188 = arith.addf %184, %187 : vector<8x286xf32>
    %c1_112 = arith.constant 1 : index
    %c0_113 = arith.constant 0 : index
    %c0_114 = arith.constant 0 : index
    %189 = vector.load %arg10[%c1_112, %c0_113, %c0_114] : memref<2x8x324xbf16, #tpu.memory_space<vmem>>, vector<1x8x324xbf16>
    %190 = vector.shape_cast %189 : vector<1x8x324xbf16> to vector<8x324xbf16>
    %cst_115 = arith.constant 0.000000e+00 : f32
    %191 = vector.broadcast %cst_115 : f32 to vector<8x286xf32>
    %c0_116 = arith.constant 0 : index
    %c0_117 = arith.constant 0 : index
    %192 = vector.load %arg3[%c0_116, %c0_117] : memref<8x72xbf16, #tpu.memory_space<vmem>>, vector<8x8xbf16>
    %193 = vector.extract_strided_slice %190 {offsets = [0, 0], sizes = [8, 286], strides = [1, 1]} : vector<8x324xbf16> to vector<8x286xbf16>
    %cst_118 = arith.constant dense<0.000000e+00> : vector<8x286xf32>
    %194 = tpu.matmul %192, %193, %cst_118 {dimension_numbers = #tpu.dot_dimension_numbers<[1], [0], [0], [1], [0, 0, 1, 1], [], []>} : vector<8x8xbf16>, vector<8x286xbf16>, vector<8x286xf32> -> vector<8x286xf32>
    %195 = arith.addf %191, %194 : vector<8x286xf32>
    %c0_119 = arith.constant 0 : index
    %c8_120 = arith.constant 8 : index
    %196 = vector.load %arg3[%c0_119, %c8_120] : memref<8x72xbf16, #tpu.memory_space<vmem>>, vector<8x8xbf16>
    %197 = vector.extract_strided_slice %190 {offsets = [0, 1], sizes = [8, 286], strides = [1, 1]} : vector<8x324xbf16> to vector<8x286xbf16>
    %cst_121 = arith.constant dense<0.000000e+00> : vector<8x286xf32>
    %198 = tpu.matmul %196, %197, %cst_121 {dimension_numbers = #tpu.dot_dimension_numbers<[1], [0], [0], [1], [0, 0, 1, 1], [], []>} : vector<8x8xbf16>, vector<8x286xbf16>, vector<8x286xf32> -> vector<8x286xf32>
    %199 = arith.addf %195, %198 : vector<8x286xf32>
    %c0_122 = arith.constant 0 : index
    %c16_123 = arith.constant 16 : index
    %200 = vector.load %arg3[%c0_122, %c16_123] : memref<8x72xbf16, #tpu.memory_space<vmem>>, vector<8x8xbf16>
    %201 = vector.extract_strided_slice %190 {offsets = [0, 2], sizes = [8, 286], strides = [1, 1]} : vector<8x324xbf16> to vector<8x286xbf16>
    %cst_124 = arith.constant dense<0.000000e+00> : vector<8x286xf32>
    %202 = tpu.matmul %200, %201, %cst_124 {dimension_numbers = #tpu.dot_dimension_numbers<[1], [0], [0], [1], [0, 0, 1, 1], [], []>} : vector<8x8xbf16>, vector<8x286xbf16>, vector<8x286xf32> -> vector<8x286xf32>
    %203 = arith.addf %199, %202 : vector<8x286xf32>
    %c0_125 = arith.constant 0 : index
    %c24_126 = arith.constant 24 : index
    %204 = vector.load %arg3[%c0_125, %c24_126] : memref<8x72xbf16, #tpu.memory_space<vmem>>, vector<8x8xbf16>
    %205 = vector.extract_strided_slice %190 {offsets = [0, 18], sizes = [8, 286], strides = [1, 1]} : vector<8x324xbf16> to vector<8x286xbf16>
    %cst_127 = arith.constant dense<0.000000e+00> : vector<8x286xf32>
    %206 = tpu.matmul %204, %205, %cst_127 {dimension_numbers = #tpu.dot_dimension_numbers<[1], [0], [0], [1], [0, 0, 1, 1], [], []>} : vector<8x8xbf16>, vector<8x286xbf16>, vector<8x286xf32> -> vector<8x286xf32>
    %207 = arith.addf %203, %206 : vector<8x286xf32>
    %c0_128 = arith.constant 0 : index
    %c32_129 = arith.constant 32 : index
    %208 = vector.load %arg3[%c0_128, %c32_129] : memref<8x72xbf16, #tpu.memory_space<vmem>>, vector<8x8xbf16>
    %209 = vector.extract_strided_slice %190 {offsets = [0, 19], sizes = [8, 286], strides = [1, 1]} : vector<8x324xbf16> to vector<8x286xbf16>
    %cst_130 = arith.constant dense<0.000000e+00> : vector<8x286xf32>
    %210 = tpu.matmul %208, %209, %cst_130 {dimension_numbers = #tpu.dot_dimension_numbers<[1], [0], [0], [1], [0, 0, 1, 1], [], []>} : vector<8x8xbf16>, vector<8x286xbf16>, vector<8x286xf32> -> vector<8x286xf32>
    %211 = arith.addf %207, %210 : vector<8x286xf32>
    %c0_131 = arith.constant 0 : index
    %c40_132 = arith.constant 40 : index
    %212 = vector.load %arg3[%c0_131, %c40_132] : memref<8x72xbf16, #tpu.memory_space<vmem>>, vector<8x8xbf16>
    %213 = vector.extract_strided_slice %190 {offsets = [0, 20], sizes = [8, 286], strides = [1, 1]} : vector<8x324xbf16> to vector<8x286xbf16>
    %cst_133 = arith.constant dense<0.000000e+00> : vector<8x286xf32>
    %214 = tpu.matmul %212, %213, %cst_133 {dimension_numbers = #tpu.dot_dimension_numbers<[1], [0], [0], [1], [0, 0, 1, 1], [], []>} : vector<8x8xbf16>, vector<8x286xbf16>, vector<8x286xf32> -> vector<8x286xf32>
    %215 = arith.addf %211, %214 : vector<8x286xf32>
    %c0_134 = arith.constant 0 : index
    %c48_135 = arith.constant 48 : index
    %216 = vector.load %arg3[%c0_134, %c48_135] : memref<8x72xbf16, #tpu.memory_space<vmem>>, vector<8x8xbf16>
    %217 = vector.extract_strided_slice %190 {offsets = [0, 36], sizes = [8, 286], strides = [1, 1]} : vector<8x324xbf16> to vector<8x286xbf16>
    %cst_136 = arith.constant dense<0.000000e+00> : vector<8x286xf32>
    %218 = tpu.matmul %216, %217, %cst_136 {dimension_numbers = #tpu.dot_dimension_numbers<[1], [0], [0], [1], [0, 0, 1, 1], [], []>} : vector<8x8xbf16>, vector<8x286xbf16>, vector<8x286xf32> -> vector<8x286xf32>
    %219 = arith.addf %215, %218 : vector<8x286xf32>
    %c0_137 = arith.constant 0 : index
    %c56_138 = arith.constant 56 : index
    %220 = vector.load %arg3[%c0_137, %c56_138] : memref<8x72xbf16, #tpu.memory_space<vmem>>, vector<8x8xbf16>
    %221 = vector.extract_strided_slice %190 {offsets = [0, 37], sizes = [8, 286], strides = [1, 1]} : vector<8x324xbf16> to vector<8x286xbf16>
    %cst_139 = arith.constant dense<0.000000e+00> : vector<8x286xf32>
    %222 = tpu.matmul %220, %221, %cst_139 {dimension_numbers = #tpu.dot_dimension_numbers<[1], [0], [0], [1], [0, 0, 1, 1], [], []>} : vector<8x8xbf16>, vector<8x286xbf16>, vector<8x286xf32> -> vector<8x286xf32>
    %223 = arith.addf %219, %222 : vector<8x286xf32>
    %c0_140 = arith.constant 0 : index
    %c64_141 = arith.constant 64 : index
    %224 = vector.load %arg3[%c0_140, %c64_141] : memref<8x72xbf16, #tpu.memory_space<vmem>>, vector<8x8xbf16>
    %225 = vector.extract_strided_slice %190 {offsets = [0, 38], sizes = [8, 286], strides = [1, 1]} : vector<8x324xbf16> to vector<8x286xbf16>
    %cst_142 = arith.constant dense<0.000000e+00> : vector<8x286xf32>
    %226 = tpu.matmul %224, %225, %cst_142 {dimension_numbers = #tpu.dot_dimension_numbers<[1], [0], [0], [1], [0, 0, 1, 1], [], []>} : vector<8x8xbf16>, vector<8x286xbf16>, vector<8x286xf32> -> vector<8x286xf32>
    %227 = arith.addf %223, %226 : vector<8x286xf32>
    %228 = vector.broadcast %4 : vector<1x286xf32> to vector<8x286xf32>
    %229 = arith.mulf %188, %228 : vector<8x286xf32>
    %cst_143 = arith.constant dense<0.000000e+00> : vector<8xf32>
    %230 = vector.multi_reduction <add>, %229, %cst_143 [1] : vector<8x286xf32> to vector<8xf32>
    %231 = vector.shape_cast %230 : vector<8xf32> to vector<8x1xf32>
    %cst_144 = arith.constant 0.000000e+00 : f32
    %232 = vector.broadcast %cst_144 : f32 to vector<8x1xf32>
    %233 = arith.addf %232, %231 : vector<8x1xf32>
    %234 = vector.broadcast %4 : vector<1x286xf32> to vector<8x286xf32>
    %235 = arith.mulf %227, %234 : vector<8x286xf32>
    %cst_145 = arith.constant dense<0.000000e+00> : vector<8xf32>
    %236 = vector.multi_reduction <add>, %235, %cst_145 [1] : vector<8x286xf32> to vector<8xf32>
    %237 = vector.shape_cast %236 : vector<8xf32> to vector<8x1xf32>
    %238 = arith.addf %233, %237 : vector<8x1xf32>
    %cst_146 = arith.constant 0.001953125 : f32
    %239 = vector.broadcast %cst_146 : f32 to vector<8x1xf32>
    %240 = arith.mulf %238, %239 : vector<8x1xf32>
    %241 = vector.broadcast %240 : vector<8x1xf32> to vector<8x286xf32>
    %242 = arith.subf %188, %241 : vector<8x286xf32>
    %243 = arith.mulf %242, %242 : vector<8x286xf32>
    %244 = vector.broadcast %4 : vector<1x286xf32> to vector<8x286xf32>
    %245 = arith.mulf %243, %244 : vector<8x286xf32>
    %cst_147 = arith.constant dense<0.000000e+00> : vector<8xf32>
    %246 = vector.multi_reduction <add>, %245, %cst_147 [1] : vector<8x286xf32> to vector<8xf32>
    %247 = vector.shape_cast %246 : vector<8xf32> to vector<8x1xf32>
    %cst_148 = arith.constant 0.000000e+00 : f32
    %248 = vector.broadcast %cst_148 : f32 to vector<8x1xf32>
    %249 = arith.addf %248, %247 : vector<8x1xf32>
    %250 = vector.broadcast %240 : vector<8x1xf32> to vector<8x286xf32>
    %251 = arith.subf %227, %250 : vector<8x286xf32>
    %252 = arith.mulf %251, %251 : vector<8x286xf32>
    %253 = vector.broadcast %4 : vector<1x286xf32> to vector<8x286xf32>
    %254 = arith.mulf %252, %253 : vector<8x286xf32>
    %cst_149 = arith.constant dense<0.000000e+00> : vector<8xf32>
    %255 = vector.multi_reduction <add>, %254, %cst_149 [1] : vector<8x286xf32> to vector<8xf32>
    %256 = vector.shape_cast %255 : vector<8xf32> to vector<8x1xf32>
    %257 = arith.addf %249, %256 : vector<8x1xf32>
    %cst_150 = arith.constant 0.001953125 : f32
    %258 = vector.broadcast %cst_150 : f32 to vector<8x1xf32>
    %259 = arith.mulf %257, %258 : vector<8x1xf32>
    %cst_151 = arith.constant 9.99999974E-6 : f32
    %260 = vector.broadcast %cst_151 : f32 to vector<8x1xf32>
    %261 = arith.addf %259, %260 : vector<8x1xf32>
    %262 = math.rsqrt %261 : vector<8x1xf32>
    %263 = arith.mulf %148, %262 : vector<8x1xf32>
    %264 = arith.mulf %240, %263 : vector<8x1xf32>
    %265 = arith.subf %149, %264 : vector<8x1xf32>
    %266 = vector.broadcast %263 : vector<8x1xf32> to vector<8x286xf32>
    %267 = arith.mulf %188, %266 : vector<8x286xf32>
    %268 = vector.broadcast %265 : vector<8x1xf32> to vector<8x286xf32>
    %269 = arith.addf %267, %268 : vector<8x286xf32>
    %cst_152 = arith.constant 0.000000e+00 : f32
    %270 = vector.broadcast %cst_152 : f32 to vector<8x286xf32>
    %271 = arith.maximumf %269, %270 : vector<8x286xf32>
    %272 = vector.broadcast %263 : vector<8x1xf32> to vector<8x286xf32>
    %273 = arith.mulf %227, %272 : vector<8x286xf32>
    %274 = vector.broadcast %265 : vector<8x1xf32> to vector<8x286xf32>
    %275 = arith.addf %273, %274 : vector<8x286xf32>
    %cst_153 = arith.constant 0.000000e+00 : f32
    %276 = vector.broadcast %cst_153 : f32 to vector<8x286xf32>
    %277 = arith.maximumf %275, %276 : vector<8x286xf32>
    %278 = vector.broadcast %4 : vector<1x286xf32> to vector<8x286xf32>
    %279 = arith.mulf %271, %278 : vector<8x286xf32>
    %c0_154 = arith.constant 0 : index
    %c0_155 = arith.constant 0 : index
    %c19_156 = arith.constant 19 : index
    %280 = vector.load %arg8[%c0_154, %c0_155, %c19_156] : memref<2x8x324xf32, #tpu.memory_space<vmem>>, vector<1x8x286xf32>
    %281 = vector.shape_cast %280 : vector<1x8x286xf32> to vector<8x286xf32>
    %282 = vector.shape_cast %279 : vector<8x286xf32> to vector<1x8x286xf32>
    tpu.vector_store %arg8[%c0_154, %c0_155, %c19_156], %282 {strides = array<i32>} : memref<2x8x324xf32, #tpu.memory_space<vmem>>, vector<1x8x286xf32>,
    %283 = arith.truncf %279 : vector<8x286xf32> to vector<8x286xbf16>
    %c0_157 = arith.constant 0 : index
    %c0_158 = arith.constant 0 : index
    %c19_159 = arith.constant 19 : index
    %284 = vector.load %arg11[%c0_157, %c0_158, %c19_159] : memref<2x8x324xbf16, #tpu.memory_space<vmem>>, vector<1x8x286xbf16>
    %285 = vector.shape_cast %284 : vector<1x8x286xbf16> to vector<8x286xbf16>
    %286 = vector.shape_cast %283 : vector<8x286xbf16> to vector<1x8x286xbf16>
    tpu.vector_store %arg11[%c0_157, %c0_158, %c19_159], %286 {strides = array<i32>} : memref<2x8x324xbf16, #tpu.memory_space<vmem>>, vector<1x8x286xbf16>,
    %287 = vector.broadcast %4 : vector<1x286xf32> to vector<8x286xf32>
    %288 = arith.mulf %277, %287 : vector<8x286xf32>
    %c1_160 = arith.constant 1 : index
    %c0_161 = arith.constant 0 : index
    %c19_162 = arith.constant 19 : index
    %289 = vector.load %arg8[%c1_160, %c0_161, %c19_162] : memref<2x8x324xf32, #tpu.memory_space<vmem>>, vector<1x8x286xf32>
    %290 = vector.shape_cast %289 : vector<1x8x286xf32> to vector<8x286xf32>
    %291 = vector.shape_cast %288 : vector<8x286xf32> to vector<1x8x286xf32>
    tpu.vector_store %arg8[%c1_160, %c0_161, %c19_162], %291 {strides = array<i32>} : memref<2x8x324xf32, #tpu.memory_space<vmem>>, vector<1x8x286xf32>,
    %292 = arith.truncf %288 : vector<8x286xf32> to vector<8x286xbf16>
    %c1_163 = arith.constant 1 : index
    %c0_164 = arith.constant 0 : index
    %c19_165 = arith.constant 19 : index
    %293 = vector.load %arg11[%c1_163, %c0_164, %c19_165] : memref<2x8x324xbf16, #tpu.memory_space<vmem>>, vector<1x8x286xbf16>
    %294 = vector.shape_cast %293 : vector<1x8x286xbf16> to vector<8x286xbf16>
    %295 = vector.shape_cast %292 : vector<8x286xbf16> to vector<1x8x286xbf16>
    tpu.vector_store %arg11[%c1_163, %c0_164, %c19_165], %295 {strides = array<i32>} : memref<2x8x324xbf16, #tpu.memory_space<vmem>>, vector<1x8x286xbf16>,
    %c0_166 = arith.constant 0 : index
    %c4_167 = arith.constant 4 : index
    %296 = vector.load %arg5[%c0_166, %c4_167] : memref<8x6xf32, #tpu.memory_space<vmem>>, vector<8x1xf32>
    %c0_168 = arith.constant 0 : index
    %c5 = arith.constant 5 : index
    %297 = vector.load %arg5[%c0_168, %c5] : memref<8x6xf32, #tpu.memory_space<vmem>>, vector<8x1xf32>
    %c0_169 = arith.constant 0 : index
    %c0_170 = arith.constant 0 : index
    %c0_171 = arith.constant 0 : index
    %298 = vector.load %arg11[%c0_169, %c0_170, %c0_171] : memref<2x8x324xbf16, #tpu.memory_space<vmem>>, vector<1x8x324xbf16>
    %299 = vector.shape_cast %298 : vector<1x8x324xbf16> to vector<8x324xbf16>
    %cst_172 = arith.constant 0.000000e+00 : f32
    %300 = vector.broadcast %cst_172 : f32 to vector<8x286xf32>
    %c0_173 = arith.constant 0 : index
    %c0_174 = arith.constant 0 : index
    %301 = vector.load %arg4[%c0_173, %c0_174] : memref<8x72xbf16, #tpu.memory_space<vmem>>, vector<8x8xbf16>
    %302 = vector.extract_strided_slice %299 {offsets = [0, 0], sizes = [8, 286], strides = [1, 1]} : vector<8x324xbf16> to vector<8x286xbf16>
    %cst_175 = arith.constant dense<0.000000e+00> : vector<8x286xf32>
    %303 = tpu.matmul %301, %302, %cst_175 {dimension_numbers = #tpu.dot_dimension_numbers<[1], [0], [0], [1], [0, 0, 1, 1], [], []>} : vector<8x8xbf16>, vector<8x286xbf16>, vector<8x286xf32> -> vector<8x286xf32>
    %304 = arith.addf %300, %303 : vector<8x286xf32>
    %c0_176 = arith.constant 0 : index
    %c8_177 = arith.constant 8 : index
    %305 = vector.load %arg4[%c0_176, %c8_177] : memref<8x72xbf16, #tpu.memory_space<vmem>>, vector<8x8xbf16>
    %306 = vector.extract_strided_slice %299 {offsets = [0, 1], sizes = [8, 286], strides = [1, 1]} : vector<8x324xbf16> to vector<8x286xbf16>
    %cst_178 = arith.constant dense<0.000000e+00> : vector<8x286xf32>
    %307 = tpu.matmul %305, %306, %cst_178 {dimension_numbers = #tpu.dot_dimension_numbers<[1], [0], [0], [1], [0, 0, 1, 1], [], []>} : vector<8x8xbf16>, vector<8x286xbf16>, vector<8x286xf32> -> vector<8x286xf32>
    %308 = arith.addf %304, %307 : vector<8x286xf32>
    %c0_179 = arith.constant 0 : index
    %c16_180 = arith.constant 16 : index
    %309 = vector.load %arg4[%c0_179, %c16_180] : memref<8x72xbf16, #tpu.memory_space<vmem>>, vector<8x8xbf16>
    %310 = vector.extract_strided_slice %299 {offsets = [0, 2], sizes = [8, 286], strides = [1, 1]} : vector<8x324xbf16> to vector<8x286xbf16>
    %cst_181 = arith.constant dense<0.000000e+00> : vector<8x286xf32>
    %311 = tpu.matmul %309, %310, %cst_181 {dimension_numbers = #tpu.dot_dimension_numbers<[1], [0], [0], [1], [0, 0, 1, 1], [], []>} : vector<8x8xbf16>, vector<8x286xbf16>, vector<8x286xf32> -> vector<8x286xf32>
    %312 = arith.addf %308, %311 : vector<8x286xf32>
    %c0_182 = arith.constant 0 : index
    %c24_183 = arith.constant 24 : index
    %313 = vector.load %arg4[%c0_182, %c24_183] : memref<8x72xbf16, #tpu.memory_space<vmem>>, vector<8x8xbf16>
    %314 = vector.extract_strided_slice %299 {offsets = [0, 18], sizes = [8, 286], strides = [1, 1]} : vector<8x324xbf16> to vector<8x286xbf16>
    %cst_184 = arith.constant dense<0.000000e+00> : vector<8x286xf32>
    %315 = tpu.matmul %313, %314, %cst_184 {dimension_numbers = #tpu.dot_dimension_numbers<[1], [0], [0], [1], [0, 0, 1, 1], [], []>} : vector<8x8xbf16>, vector<8x286xbf16>, vector<8x286xf32> -> vector<8x286xf32>
    %316 = arith.addf %312, %315 : vector<8x286xf32>
    %c0_185 = arith.constant 0 : index
    %c32_186 = arith.constant 32 : index
    %317 = vector.load %arg4[%c0_185, %c32_186] : memref<8x72xbf16, #tpu.memory_space<vmem>>, vector<8x8xbf16>
    %318 = vector.extract_strided_slice %299 {offsets = [0, 19], sizes = [8, 286], strides = [1, 1]} : vector<8x324xbf16> to vector<8x286xbf16>
    %cst_187 = arith.constant dense<0.000000e+00> : vector<8x286xf32>
    %319 = tpu.matmul %317, %318, %cst_187 {dimension_numbers = #tpu.dot_dimension_numbers<[1], [0], [0], [1], [0, 0, 1, 1], [], []>} : vector<8x8xbf16>, vector<8x286xbf16>, vector<8x286xf32> -> vector<8x286xf32>
    %320 = arith.addf %316, %319 : vector<8x286xf32>
    %c0_188 = arith.constant 0 : index
    %c40_189 = arith.constant 40 : index
    %321 = vector.load %arg4[%c0_188, %c40_189] : memref<8x72xbf16, #tpu.memory_space<vmem>>, vector<8x8xbf16>
    %322 = vector.extract_strided_slice %299 {offsets = [0, 20], sizes = [8, 286], strides = [1, 1]} : vector<8x324xbf16> to vector<8x286xbf16>
    %cst_190 = arith.constant dense<0.000000e+00> : vector<8x286xf32>
    %323 = tpu.matmul %321, %322, %cst_190 {dimension_numbers = #tpu.dot_dimension_numbers<[1], [0], [0], [1], [0, 0, 1, 1], [], []>} : vector<8x8xbf16>, vector<8x286xbf16>, vector<8x286xf32> -> vector<8x286xf32>
    %324 = arith.addf %320, %323 : vector<8x286xf32>
    %c0_191 = arith.constant 0 : index
    %c48_192 = arith.constant 48 : index
    %325 = vector.load %arg4[%c0_191, %c48_192] : memref<8x72xbf16, #tpu.memory_space<vmem>>, vector<8x8xbf16>
    %326 = vector.extract_strided_slice %299 {offsets = [0, 36], sizes = [8, 286], strides = [1, 1]} : vector<8x324xbf16> to vector<8x286xbf16>
    %cst_193 = arith.constant dense<0.000000e+00> : vector<8x286xf32>
    %327 = tpu.matmul %325, %326, %cst_193 {dimension_numbers = #tpu.dot_dimension_numbers<[1], [0], [0], [1], [0, 0, 1, 1], [], []>} : vector<8x8xbf16>, vector<8x286xbf16>, vector<8x286xf32> -> vector<8x286xf32>
    %328 = arith.addf %324, %327 : vector<8x286xf32>
    %c0_194 = arith.constant 0 : index
    %c56_195 = arith.constant 56 : index
    %329 = vector.load %arg4[%c0_194, %c56_195] : memref<8x72xbf16, #tpu.memory_space<vmem>>, vector<8x8xbf16>
    %330 = vector.extract_strided_slice %299 {offsets = [0, 37], sizes = [8, 286], strides = [1, 1]} : vector<8x324xbf16> to vector<8x286xbf16>
    %cst_196 = arith.constant dense<0.000000e+00> : vector<8x286xf32>
    %331 = tpu.matmul %329, %330, %cst_196 {dimension_numbers = #tpu.dot_dimension_numbers<[1], [0], [0], [1], [0, 0, 1, 1], [], []>} : vector<8x8xbf16>, vector<8x286xbf16>, vector<8x286xf32> -> vector<8x286xf32>
    %332 = arith.addf %328, %331 : vector<8x286xf32>
    %c0_197 = arith.constant 0 : index
    %c64_198 = arith.constant 64 : index
    %333 = vector.load %arg4[%c0_197, %c64_198] : memref<8x72xbf16, #tpu.memory_space<vmem>>, vector<8x8xbf16>
    %334 = vector.extract_strided_slice %299 {offsets = [0, 38], sizes = [8, 286], strides = [1, 1]} : vector<8x324xbf16> to vector<8x286xbf16>
    %cst_199 = arith.constant dense<0.000000e+00> : vector<8x286xf32>
    %335 = tpu.matmul %333, %334, %cst_199 {dimension_numbers = #tpu.dot_dimension_numbers<[1], [0], [0], [1], [0, 0, 1, 1], [], []>} : vector<8x8xbf16>, vector<8x286xbf16>, vector<8x286xf32> -> vector<8x286xf32>
    %336 = arith.addf %332, %335 : vector<8x286xf32>
    %c1_200 = arith.constant 1 : index
    %c0_201 = arith.constant 0 : index
    %c0_202 = arith.constant 0 : index
    %337 = vector.load %arg11[%c1_200, %c0_201, %c0_202] : memref<2x8x324xbf16, #tpu.memory_space<vmem>>, vector<1x8x324xbf16>
    %338 = vector.shape_cast %337 : vector<1x8x324xbf16> to vector<8x324xbf16>
    %cst_203 = arith.constant 0.000000e+00 : f32
    %339 = vector.broadcast %cst_203 : f32 to vector<8x286xf32>
    %c0_204 = arith.constant 0 : index
    %c0_205 = arith.constant 0 : index
    %340 = vector.load %arg4[%c0_204, %c0_205] : memref<8x72xbf16, #tpu.memory_space<vmem>>, vector<8x8xbf16>
    %341 = vector.extract_strided_slice %338 {offsets = [0, 0], sizes = [8, 286], strides = [1, 1]} : vector<8x324xbf16> to vector<8x286xbf16>
    %cst_206 = arith.constant dense<0.000000e+00> : vector<8x286xf32>
    %342 = tpu.matmul %340, %341, %cst_206 {dimension_numbers = #tpu.dot_dimension_numbers<[1], [0], [0], [1], [0, 0, 1, 1], [], []>} : vector<8x8xbf16>, vector<8x286xbf16>, vector<8x286xf32> -> vector<8x286xf32>
    %343 = arith.addf %339, %342 : vector<8x286xf32>
    %c0_207 = arith.constant 0 : index
    %c8_208 = arith.constant 8 : index
    %344 = vector.load %arg4[%c0_207, %c8_208] : memref<8x72xbf16, #tpu.memory_space<vmem>>, vector<8x8xbf16>
    %345 = vector.extract_strided_slice %338 {offsets = [0, 1], sizes = [8, 286], strides = [1, 1]} : vector<8x324xbf16> to vector<8x286xbf16>
    %cst_209 = arith.constant dense<0.000000e+00> : vector<8x286xf32>
    %346 = tpu.matmul %344, %345, %cst_209 {dimension_numbers = #tpu.dot_dimension_numbers<[1], [0], [0], [1], [0, 0, 1, 1], [], []>} : vector<8x8xbf16>, vector<8x286xbf16>, vector<8x286xf32> -> vector<8x286xf32>
    %347 = arith.addf %343, %346 : vector<8x286xf32>
    %c0_210 = arith.constant 0 : index
    %c16_211 = arith.constant 16 : index
    %348 = vector.load %arg4[%c0_210, %c16_211] : memref<8x72xbf16, #tpu.memory_space<vmem>>, vector<8x8xbf16>
    %349 = vector.extract_strided_slice %338 {offsets = [0, 2], sizes = [8, 286], strides = [1, 1]} : vector<8x324xbf16> to vector<8x286xbf16>
    %cst_212 = arith.constant dense<0.000000e+00> : vector<8x286xf32>
    %350 = tpu.matmul %348, %349, %cst_212 {dimension_numbers = #tpu.dot_dimension_numbers<[1], [0], [0], [1], [0, 0, 1, 1], [], []>} : vector<8x8xbf16>, vector<8x286xbf16>, vector<8x286xf32> -> vector<8x286xf32>
    %351 = arith.addf %347, %350 : vector<8x286xf32>
    %c0_213 = arith.constant 0 : index
    %c24_214 = arith.constant 24 : index
    %352 = vector.load %arg4[%c0_213, %c24_214] : memref<8x72xbf16, #tpu.memory_space<vmem>>, vector<8x8xbf16>
    %353 = vector.extract_strided_slice %338 {offsets = [0, 18], sizes = [8, 286], strides = [1, 1]} : vector<8x324xbf16> to vector<8x286xbf16>
    %cst_215 = arith.constant dense<0.000000e+00> : vector<8x286xf32>
    %354 = tpu.matmul %352, %353, %cst_215 {dimension_numbers = #tpu.dot_dimension_numbers<[1], [0], [0], [1], [0, 0, 1, 1], [], []>} : vector<8x8xbf16>, vector<8x286xbf16>, vector<8x286xf32> -> vector<8x286xf32>
    %355 = arith.addf %351, %354 : vector<8x286xf32>
    %c0_216 = arith.constant 0 : index
    %c32_217 = arith.constant 32 : index
    %356 = vector.load %arg4[%c0_216, %c32_217] : memref<8x72xbf16, #tpu.memory_space<vmem>>, vector<8x8xbf16>
    %357 = vector.extract_strided_slice %338 {offsets = [0, 19], sizes = [8, 286], strides = [1, 1]} : vector<8x324xbf16> to vector<8x286xbf16>
    %cst_218 = arith.constant dense<0.000000e+00> : vector<8x286xf32>
    %358 = tpu.matmul %356, %357, %cst_218 {dimension_numbers = #tpu.dot_dimension_numbers<[1], [0], [0], [1], [0, 0, 1, 1], [], []>} : vector<8x8xbf16>, vector<8x286xbf16>, vector<8x286xf32> -> vector<8x286xf32>
    %359 = arith.addf %355, %358 : vector<8x286xf32>
    %c0_219 = arith.constant 0 : index
    %c40_220 = arith.constant 40 : index
    %360 = vector.load %arg4[%c0_219, %c40_220] : memref<8x72xbf16, #tpu.memory_space<vmem>>, vector<8x8xbf16>
    %361 = vector.extract_strided_slice %338 {offsets = [0, 20], sizes = [8, 286], strides = [1, 1]} : vector<8x324xbf16> to vector<8x286xbf16>
    %cst_221 = arith.constant dense<0.000000e+00> : vector<8x286xf32>
    %362 = tpu.matmul %360, %361, %cst_221 {dimension_numbers = #tpu.dot_dimension_numbers<[1], [0], [0], [1], [0, 0, 1, 1], [], []>} : vector<8x8xbf16>, vector<8x286xbf16>, vector<8x286xf32> -> vector<8x286xf32>
    %363 = arith.addf %359, %362 : vector<8x286xf32>
    %c0_222 = arith.constant 0 : index
    %c48_223 = arith.constant 48 : index
    %364 = vector.load %arg4[%c0_222, %c48_223] : memref<8x72xbf16, #tpu.memory_space<vmem>>, vector<8x8xbf16>
    %365 = vector.extract_strided_slice %338 {offsets = [0, 36], sizes = [8, 286], strides = [1, 1]} : vector<8x324xbf16> to vector<8x286xbf16>
    %cst_224 = arith.constant dense<0.000000e+00> : vector<8x286xf32>
    %366 = tpu.matmul %364, %365, %cst_224 {dimension_numbers = #tpu.dot_dimension_numbers<[1], [0], [0], [1], [0, 0, 1, 1], [], []>} : vector<8x8xbf16>, vector<8x286xbf16>, vector<8x286xf32> -> vector<8x286xf32>
    %367 = arith.addf %363, %366 : vector<8x286xf32>
    %c0_225 = arith.constant 0 : index
    %c56_226 = arith.constant 56 : index
    %368 = vector.load %arg4[%c0_225, %c56_226] : memref<8x72xbf16, #tpu.memory_space<vmem>>, vector<8x8xbf16>
    %369 = vector.extract_strided_slice %338 {offsets = [0, 37], sizes = [8, 286], strides = [1, 1]} : vector<8x324xbf16> to vector<8x286xbf16>
    %cst_227 = arith.constant dense<0.000000e+00> : vector<8x286xf32>
    %370 = tpu.matmul %368, %369, %cst_227 {dimension_numbers = #tpu.dot_dimension_numbers<[1], [0], [0], [1], [0, 0, 1, 1], [], []>} : vector<8x8xbf16>, vector<8x286xbf16>, vector<8x286xf32> -> vector<8x286xf32>
    %371 = arith.addf %367, %370 : vector<8x286xf32>
    %c0_228 = arith.constant 0 : index
    %c64_229 = arith.constant 64 : index
    %372 = vector.load %arg4[%c0_228, %c64_229] : memref<8x72xbf16, #tpu.memory_space<vmem>>, vector<8x8xbf16>
    %373 = vector.extract_strided_slice %338 {offsets = [0, 38], sizes = [8, 286], strides = [1, 1]} : vector<8x324xbf16> to vector<8x286xbf16>
    %cst_230 = arith.constant dense<0.000000e+00> : vector<8x286xf32>
    %374 = tpu.matmul %372, %373, %cst_230 {dimension_numbers = #tpu.dot_dimension_numbers<[1], [0], [0], [1], [0, 0, 1, 1], [], []>} : vector<8x8xbf16>, vector<8x286xbf16>, vector<8x286xf32> -> vector<8x286xf32>
    %375 = arith.addf %371, %374 : vector<8x286xf32>
    %376 = vector.broadcast %5 : vector<1x286xf32> to vector<8x286xf32>
    %377 = arith.mulf %336, %376 : vector<8x286xf32>
    %cst_231 = arith.constant dense<0.000000e+00> : vector<8xf32>
    %378 = vector.multi_reduction <add>, %377, %cst_231 [1] : vector<8x286xf32> to vector<8xf32>
    %379 = vector.shape_cast %378 : vector<8xf32> to vector<8x1xf32>
    %cst_232 = arith.constant 0.000000e+00 : f32
    %380 = vector.broadcast %cst_232 : f32 to vector<8x1xf32>
    %381 = arith.addf %380, %379 : vector<8x1xf32>
    %382 = vector.broadcast %5 : vector<1x286xf32> to vector<8x286xf32>
    %383 = arith.mulf %375, %382 : vector<8x286xf32>
    %cst_233 = arith.constant dense<0.000000e+00> : vector<8xf32>
    %384 = vector.multi_reduction <add>, %383, %cst_233 [1] : vector<8x286xf32> to vector<8xf32>
    %385 = vector.shape_cast %384 : vector<8xf32> to vector<8x1xf32>
    %386 = arith.addf %381, %385 : vector<8x1xf32>
    %cst_234 = arith.constant 7.812500e-03 : f32
    %387 = vector.broadcast %cst_234 : f32 to vector<8x1xf32>
    %388 = arith.mulf %386, %387 : vector<8x1xf32>
    %389 = vector.broadcast %388 : vector<8x1xf32> to vector<8x286xf32>
    %390 = arith.subf %336, %389 : vector<8x286xf32>
    %391 = arith.mulf %390, %390 : vector<8x286xf32>
    %392 = vector.broadcast %5 : vector<1x286xf32> to vector<8x286xf32>
    %393 = arith.mulf %391, %392 : vector<8x286xf32>
    %cst_235 = arith.constant dense<0.000000e+00> : vector<8xf32>
    %394 = vector.multi_reduction <add>, %393, %cst_235 [1] : vector<8x286xf32> to vector<8xf32>
    %395 = vector.shape_cast %394 : vector<8xf32> to vector<8x1xf32>
    %cst_236 = arith.constant 0.000000e+00 : f32
    %396 = vector.broadcast %cst_236 : f32 to vector<8x1xf32>
    %397 = arith.addf %396, %395 : vector<8x1xf32>
    %398 = vector.broadcast %388 : vector<8x1xf32> to vector<8x286xf32>
    %399 = arith.subf %375, %398 : vector<8x286xf32>
    %400 = arith.mulf %399, %399 : vector<8x286xf32>
    %401 = vector.broadcast %5 : vector<1x286xf32> to vector<8x286xf32>
    %402 = arith.mulf %400, %401 : vector<8x286xf32>
    %cst_237 = arith.constant dense<0.000000e+00> : vector<8xf32>
    %403 = vector.multi_reduction <add>, %402, %cst_237 [1] : vector<8x286xf32> to vector<8xf32>
    %404 = vector.shape_cast %403 : vector<8xf32> to vector<8x1xf32>
    %405 = arith.addf %397, %404 : vector<8x1xf32>
    %cst_238 = arith.constant 7.812500e-03 : f32
    %406 = vector.broadcast %cst_238 : f32 to vector<8x1xf32>
    %407 = arith.mulf %405, %406 : vector<8x1xf32>
    %cst_239 = arith.constant 9.99999974E-6 : f32
    %408 = vector.broadcast %cst_239 : f32 to vector<8x1xf32>
    %409 = arith.addf %407, %408 : vector<8x1xf32>
    %410 = math.rsqrt %409 : vector<8x1xf32>
    %411 = arith.mulf %296, %410 : vector<8x1xf32>
    %412 = arith.mulf %388, %411 : vector<8x1xf32>
    %413 = arith.subf %297, %412 : vector<8x1xf32>
    %414 = vector.broadcast %411 : vector<8x1xf32> to vector<8x286xf32>
    %415 = arith.mulf %336, %414 : vector<8x286xf32>
    %416 = vector.broadcast %413 : vector<8x1xf32> to vector<8x286xf32>
    %417 = arith.addf %415, %416 : vector<8x286xf32>
    %cst_240 = arith.constant 0.000000e+00 : f32
    %418 = vector.broadcast %cst_240 : f32 to vector<8x286xf32>
    %419 = arith.maximumf %417, %418 : vector<8x286xf32>
    %420 = vector.broadcast %411 : vector<8x1xf32> to vector<8x286xf32>
    %421 = arith.mulf %375, %420 : vector<8x286xf32>
    %422 = vector.broadcast %413 : vector<8x1xf32> to vector<8x286xf32>
    %423 = arith.addf %421, %422 : vector<8x286xf32>
    %cst_241 = arith.constant 0.000000e+00 : f32
    %424 = vector.broadcast %cst_241 : f32 to vector<8x286xf32>
    %425 = arith.maximumf %423, %424 : vector<8x286xf32>
    %c0_242 = arith.constant 0 : index
    %c0_243 = arith.constant 0 : index
    %c19_244 = arith.constant 19 : index
    %426 = vector.load %arg9[%c0_242, %c0_243, %c19_244] : memref<2x8x324xf32, #tpu.memory_space<vmem>>, vector<1x8x286xf32>
    %427 = vector.shape_cast %426 : vector<1x8x286xf32> to vector<8x286xf32>
    %428 = vector.shape_cast %419 : vector<8x286xf32> to vector<1x8x286xf32>
    tpu.vector_store %arg9[%c0_242, %c0_243, %c19_244], %428 {strides = array<i32>} : memref<2x8x324xf32, #tpu.memory_space<vmem>>, vector<1x8x286xf32>,
    %c1_245 = arith.constant 1 : index
    %c0_246 = arith.constant 0 : index
    %c19_247 = arith.constant 19 : index
    %429 = vector.load %arg9[%c1_245, %c0_246, %c19_247] : memref<2x8x324xf32, #tpu.memory_space<vmem>>, vector<1x8x286xf32>
    %430 = vector.shape_cast %429 : vector<1x8x286xf32> to vector<8x286xf32>
    %431 = vector.shape_cast %425 : vector<8x286xf32> to vector<1x8x286xf32>
    tpu.vector_store %arg9[%c1_245, %c0_246, %c19_247], %431 {strides = array<i32>} : memref<2x8x324xf32, #tpu.memory_space<vmem>>, vector<1x8x286xf32>,
    return
  }
  func.func @transform_0(%arg0: i32) -> (i32, i32, i32) {
    %c0_i32 = arith.constant 0 : i32
    %c0_i32_0 = arith.constant 0 : i32
    %c0_i32_1 = arith.constant 0 : i32
    %c0_i32_2 = arith.constant 0 : i32
    return %c0_i32, %c0_i32_0, %c0_i32_1 : i32, i32, i32
  }
  func.func @transform_1(%arg0: i32) -> (i32, i32) {
    %c0_i32 = arith.constant 0 : i32
    %c0_i32_0 = arith.constant 0 : i32
    %c0_i32_1 = arith.constant 0 : i32
    return %c0_i32, %c0_i32_0 : i32, i32
  }
  func.func @transform_2(%arg0: i32) -> (i32, i32) {
    %c0_i32 = arith.constant 0 : i32
    %c0_i32_0 = arith.constant 0 : i32
    %c0_i32_1 = arith.constant 0 : i32
    return %c0_i32, %c0_i32_0 : i32, i32
  }
  func.func @transform_3(%arg0: i32) -> (i32, i32) {
    %c0_i32 = arith.constant 0 : i32
    %c0_i32_0 = arith.constant 0 : i32
    %c0_i32_1 = arith.constant 0 : i32
    return %c0_i32, %c0_i32_0 : i32, i32
  }
  func.func @transform_4(%arg0: i32) -> (i32, i32) {
    %c0_i32 = arith.constant 0 : i32
    %c0_i32_0 = arith.constant 0 : i32
    %c0_i32_1 = arith.constant 0 : i32
    return %c0_i32, %c0_i32_0 : i32, i32
  }
  func.func @transform_5(%arg0: i32) -> (i32, i32) {
    %c0_i32 = arith.constant 0 : i32
    %c0_i32_0 = arith.constant 0 : i32
    %c0_i32_1 = arith.constant 0 : i32
    return %c0_i32, %c0_i32_0 : i32, i32
  }
  func.func @transform_6(%arg0: i32) -> (i32, i32) {
    %c0_i32 = arith.constant 0 : i32
    %c0_i32_0 = arith.constant 0 : i32
    %c0_i32_1 = arith.constant 0 : i32
    return %c0_i32, %c0_i32_0 : i32, i32
  }
  func.func @transform_7(%arg0: i32) -> (i32, i32, i32) {
    %c0_i32 = arith.constant 0 : i32
    %c0_i32_0 = arith.constant 0 : i32
    %c0_i32_1 = arith.constant 0 : i32
    %c0_i32_2 = arith.constant 0 : i32
    return %c0_i32, %c0_i32_0, %c0_i32_1 : i32, i32, i32
  }
  func.func @transform_8(%arg0: i32) -> (i32, i32, i32) {
    %c0_i32 = arith.constant 0 : i32
    %c0_i32_0 = arith.constant 0 : i32
    %c0_i32_1 = arith.constant 0 : i32
    %c0_i32_2 = arith.constant 0 : i32
    return %c0_i32, %c0_i32_0, %c0_i32_1 : i32, i32, i32
  }
}

</mosaic_0001>

<llo_original>
// kernel: downsample_layer_forward.1
$region0: #{downsample_layer_forward.1}
  #allocation0 [shape = 'u32[]', space=smem, size = 0x4, offset = 0x4, fixed_abs, tag = 'smem constant byte address 0x4 - core index']
  #allocation1 [shape = 'u32[144,128]{1,0:T(1,128)}', space=vmem, size = 0x12000, scoped, tag = 'internal scratch']
  #allocation2 [shape = 'bf16[2,8,324]{2,1,0:T(8,128)(2,1)}', space=vmem, size = 0x3000, scoped, tag = 'scratch operand']
  #allocation3 [shape = 'bf16[2,8,324]{2,1,0:T(8,128)(2,1)}', space=vmem, size = 0x3000, scoped, tag = 'scratch operand']
  %s0 = inlined_call_operand.vmem [shape: bf16[2,4,324], index: 0, kind: input, shape index: {}]
  %s1 = inlined_call_operand.vmem [shape: bf16[8,36], index: 1, kind: input, shape index: {}]
  %s2 = inlined_call_operand.vmem [shape: bf16[8,72], index: 2, kind: input, shape index: {}]
  %s3 = inlined_call_operand.vmem [shape: bf16[8,72], index: 3, kind: input, shape index: {}]
  %s4 = inlined_call_operand.vmem [shape: f32[8,6], index: 4, kind: input, shape index: {}]
  %s5 = inlined_call_operand.vmem [shape: f32[1,286], index: 5, kind: input, shape index: {}]
  %s6 = inlined_call_operand.vmem [shape: f32[1,286], index: 6, kind: input, shape index: {}]
  %s7 = inlined_call_operand.vmem [shape: f32[2,8,324], index: 7, kind: output, shape index: {0}]
  %s8 = inlined_call_operand.vmem [shape: f32[2,8,324], index: 8, kind: output, shape index: {1}]
  %9 = xla_tuple %s7, %s8
  %s10 = sld [smem:[#allocation0]]
  $region46: #{downsample_layer_forward.1} parent=0
    _
  %s12 = ssub.s32 1, %s10
  %s13 = scalar_select 0, %s12, %s10
  // Predicated region
  $region2: #{downsample_layer_forward.1} parent=0 // pred_check
    _
  $region3: #{downsample_layer_forward.1} parent=0 // pred_check_branch
    %15 = sbr.rel (0) target = $region5
  $region4: #{downsample_layer_forward.1} parent=0 // pred_region
    _
  $region5: #{downsample_layer_forward.1} parent=0 // pred_fallthru
    _
  // Predicated region
  $region6: #{downsample_layer_forward.1} parent=0 // pred_check
    _
  $region7: #{downsample_layer_forward.1} parent=0 // pred_check_branch
    %17 = sbr.rel (0) target = $region9
  $region8: #{downsample_layer_forward.1} parent=0 // pred_region
    _
  $region9: #{downsample_layer_forward.1} parent=0 // pred_fallthru
    _
  // Predicated region
  $region10: #{downsample_layer_forward.1} parent=0 // pred_check
    _
  $region11: #{downsample_layer_forward.1} parent=0 // pred_check_branch
    %19 = sbr.rel (0) target = $region13
  $region12: #{downsample_layer_forward.1} parent=0 // pred_region
    _
  $region13: #{downsample_layer_forward.1} parent=0 // pred_fallthru
    _
  // Predicated region
  $region14: #{downsample_layer_forward.1} parent=0 // pred_check
    _
  $region15: #{downsample_layer_forward.1} parent=0 // pred_check_branch
    %21 = sbr.rel (0) target = $region17
  $region16: #{downsample_layer_forward.1} parent=0 // pred_region
    _
  $region17: #{downsample_layer_forward.1} parent=0 // pred_fallthru
    _
  // Predicated region
  $region18: #{downsample_layer_forward.1} parent=0 // pred_check
    _
  $region19: #{downsample_layer_forward.1} parent=0 // pred_check_branch
    %23 = sbr.rel (0) target = $region21
  $region20: #{downsample_layer_forward.1} parent=0 // pred_region
    _
  $region21: #{downsample_layer_forward.1} parent=0 // pred_fallthru
    _
  // Predicated region
  $region22: #{downsample_layer_forward.1} parent=0 // pred_check
    _
  $region23: #{downsample_layer_forward.1} parent=0 // pred_check_branch
    %25 = sbr.rel (0) target = $region25
  $region24: #{downsample_layer_forward.1} parent=0 // pred_region
    _
  $region25: #{downsample_layer_forward.1} parent=0 // pred_fallthru
    _
  // Predicated region
  $region26: #{downsample_layer_forward.1} parent=0 // pred_check
    _
  $region27: #{downsample_layer_forward.1} parent=0 // pred_check_branch
    %27 = sbr.rel (0) target = $region29
  $region28: #{downsample_layer_forward.1} parent=0 // pred_region
    _
  $region29: #{downsample_layer_forward.1} parent=0 // pred_fallthru
    _
  %29 = vst [vmem:[#allocation2] sm:$0xff] 0
  %vm30 = vcmask 551936
  %31 = vst.msk [vmem:[#allocation2 + $0x8] sm:$0xf] %vm30, 0
  %32 = vst [vmem:[#allocation2 + $0xc] sm:$0xff] 0
  %33 = vst.msk [vmem:[#allocation2 + $0x14] sm:$0xf] %vm30, 0
  %34 = vst [vmem:[#allocation3] sm:$0xff] 0
  %35 = vst.msk [vmem:[#allocation3 + $0x8] sm:$0xf] %vm30, 0
  %36 = vst [vmem:[#allocation3 + $0xc] sm:$0xff] 0
  %37 = vst.msk [vmem:[#allocation3 + $0x14] sm:$0xf] %vm30, 0
  %v38 = vld [vmem:[%s5] sm:$0x7]
  %v39 = vld [vmem:[%s6] sm:$0x7]
  %v40 = vld [vmem:[%s4] sm:$0xff]
  %v41 = vld [vmem:[%s0] sm:$0x3f]
  %v42 = vld [vmem:[%s1] sm:$0xf]
  %v44 = vunpack.c.l.b16 %v42
  %v45 = vpack.c.b16 %v44, %v44
  %46 = vrot.lane.b32.xlu0 %v45, 124
  %v47 = vpop.permute.xlu0 %46
  %v49 = vcombine.high %v41, %v41
  %v51 = vunpack.c.l.s4 1983009808
  %v52 = vunpack.c.0.s8 %v51
  %v53 = vlaneseq
  %v54 = vshrl.u32 %v53, 7
  %v55 = vsub.s32 %v52, %v54
  %v56 = vrot.slane %v41, %v55
  %v58 = vunpack.c.l.s4 1983009808
  %v59 = vunpack.c.0.s8 %v58
  %v60 = vlaneseq
  %v61 = vshrl.u32 %v60, 7
  %v62 = vsub.s32 %v59, %v61
  %v63 = vrot.slane %v49, %v62
  %v64 = vcombine.high %v56, %v56
  %65 = vrot.lane.b32.xlu0 %v56, 127
  %v66 = vpop.permute.xlu0 %65
  %67 = vrot.lane.b32.xlu0 %v64, 127
  %v68 = vpop.permute.xlu0 %67
  %69 = vrot.lane.b32.xlu0 %v63, 127
  %v70 = vpop.permute.xlu0 %69
  %vm71 = vcmask 1039360
  %v72 = vsel %vm71, %v66, %v68
  %v73 = vsel %vm71, %v68, %v70
  %vm74 = vcmask 31744
  %v76 = vsel %vm74, %v47, 0
  %vm78 = vcmask 1041408
  %v80 = vsel %vm78, %v72, 0
  %v83 = vsel %vm78, %v73, 0
  %v86 = vsel %vm78, %v70, 0
  %88 = vmatprep.subr.bf16.mxu0 0
  %89 = vmatpush1.bf16.msra.mxu0 0
  %90 = vmatprep.subr.bf16.mxu0 0
  %91 = vmatpush1.bf16.msra.mxu0 0
  %92 = vmatprep.subr.bf16.mxu0 0
  %93 = vmatpush1.bf16.msra.mxu0 0
  %94 = vmatprep.subr.bf16.mxu0 0
  %95 = vmatpush1.bf16.msra.mxu0 0
  %96 = vmatprep.subr.bf16.mxu0 0
  %97 = vmatpush1.bf16.msra.mxu0 0
  %98 = vmatprep.subr.bf16.mxu0 0
  %99 = vmatpush1.bf16.msra.mxu0 0
  %100 = vmatprep.subr.bf16.mxu0 0
  %101 = vmatpush1.bf16.msra.mxu0 0
  %102 = vmatprep.subr.bf16.mxu0 %v83
  %103 = vmatpush1.bf16.msra.mxu0 %v80
  %104 = vmatprep.subr.bf16.mxu0 0
  %105 = vmatpush2.bf16.msra.mxu0 0
  %106 = vmatprep.subr.bf16.mxu0 0
  %107 = vmatpush2.bf16.msra.mxu0 0
  %108 = vmatprep.subr.bf16.mxu0 0
  %109 = vmatpush2.bf16.msra.mxu0 0
  %110 = vmatprep.subr.bf16.mxu0 0
  %111 = vmatpush2.bf16.msra.mxu0 0
  %112 = vmatprep.subr.bf16.mxu0 0
  %113 = vmatpush2.bf16.msra.mxu0 0
  %114 = vmatprep.subr.bf16.mxu0 0
  %115 = vmatpush2.bf16.msra.mxu0 0
  %116 = vmatprep.subr.bf16.mxu0 0
  %117 = vmatpush2.bf16.msra.mxu0 0
  %118 = vmatprep.subr.bf16.mxu0 0
  %119 = vmatpush2.bf16.msra.mxu0 0
  %120 = vmatprep.mubr.bf16.mxu0 0
  %121 = vmatmul.mubr.bf16.gmra.mxu0 %v76
  %v122 = vpop.f32.mrf.mxu0
  %v123 = vadd.f32 0.0, %v122
  %v124 = vpop.f32.mrf.mxu0
  %v125 = vadd.f32 0.0, %v124
  %v126 = vpop.f32.mrf.mxu0
  %v127 = vpop.f32.mrf.mxu0
  %128 = vdwg.mxu0
  %129 = vmatprep.subr.bf16.mxu0 0
  %130 = vmatpush1.bf16.msra.mxu0 0
  %131 = vmatprep.subr.bf16.mxu0 0
  %132 = vmatpush1.bf16.msra.mxu0 0
  %133 = vmatprep.subr.bf16.mxu0 0
  %134 = vmatpush1.bf16.msra.mxu0 0
  %135 = vmatprep.subr.bf16.mxu0 0
  %136 = vmatpush1.bf16.msra.mxu0 0
  %137 = vmatprep.subr.bf16.mxu0 0
  %138 = vmatpush1.bf16.msra.mxu0 0
  %139 = vmatprep.subr.bf16.mxu0 0
  %140 = vmatpush1.bf16.msra.mxu0 0
  %141 = vmatprep.subr.bf16.mxu0 0
  %142 = vmatpush1.bf16.msra.mxu0 0
  %143 = vmatprep.subr.bf16.mxu0 0
  %144 = vmatpush1.bf16.msra.mxu0 %v86
  %145 = vmatprep.subr.bf16.mxu0 0
  %146 = vmatpush2.bf16.msra.mxu0 0
  %147 = vmatprep.subr.bf16.mxu0 0
  %148 = vmatpush2.bf16.msra.mxu0 0
  %149 = vmatprep.subr.bf16.mxu0 0
  %150 = vmatpush2.bf16.msra.mxu0 0
  %151 = vmatprep.subr.bf16.mxu0 0
  %152 = vmatpush2.bf16.msra.mxu0 0
  %153 = vmatprep.subr.bf16.mxu0 0
  %154 = vmatpush2.bf16.msra.mxu0 0
  %155 = vmatprep.subr.bf16.mxu0 0
  %156 = vmatpush2.bf16.msra.mxu0 0
  %157 = vmatprep.subr.bf16.mxu0 0
  %158 = vmatpush2.bf16.msra.mxu0 0
  %159 = vmatprep.subr.bf16.mxu0 0
  %160 = vmatpush2.bf16.msra.mxu0 0
  %161 = vmatprep.mubr.bf16.mxu0 0
  %162 = vmatmul.mubr.bf16.gmra.mxu0 %v76
  %v163 = vpop.f32.mrf.mxu0
  %v164 = vadd.f32 0.0, %v163
  %v165 = vpop.f32.mrf.mxu0
  %v166 = vpop.f32.mrf.mxu0
  %v167 = vpop.f32.mrf.mxu0
  %168 = vdwg.mxu0
  %v170 = vsel %vm74, %v42, 0
  %v173 = vsel %vm78, %v56, 0
  %v176 = vsel %vm78, %v64, 0
  %v179 = vsel %vm78, %v63, 0
  %181 = vmatprep.subr.bf16.mxu0 0
  %182 = vmatpush1.bf16.msra.mxu0 0
  %183 = vmatprep.subr.bf16.mxu0 0
  %184 = vmatpush1.bf16.msra.mxu0 0
  %185 = vmatprep.subr.bf16.mxu0 0
  %186 = vmatpush1.bf16.msra.mxu0 0
  %187 = vmatprep.subr.bf16.mxu0 0
  %188 = vmatpush1.bf16.msra.mxu0 0
  %189 = vmatprep.subr.bf16.mxu0 0
  %190 = vmatpush1.bf16.msra.mxu0 0
  %191 = vmatprep.subr.bf16.mxu0 0
  %192 = vmatpush1.bf16.msra.mxu0 0
  %193 = vmatprep.subr.bf16.mxu0 0
  %194 = vmatpush1.bf16.msra.mxu0 0
  %195 = vmatprep.subr.bf16.mxu0 %v176
  %196 = vmatpush1.bf16.msra.mxu0 %v173
  %197 = vmatprep.subr.bf16.mxu0 0
  %198 = vmatpush2.bf16.msra.mxu0 0
  %199 = vmatprep.subr.bf16.mxu0 0
  %200 = vmatpush2.bf16.msra.mxu0 0
  %201 = vmatprep.subr.bf16.mxu0 0
  %202 = vmatpush2.bf16.msra.mxu0 0
  %203 = vmatprep.subr.bf16.mxu0 0
  %204 = vmatpush2.bf16.msra.mxu0 0
  %205 = vmatprep.subr.bf16.mxu0 0
  %206 = vmatpush2.bf16.msra.mxu0 0
  %207 = vmatprep.subr.bf16.mxu0 0
  %208 = vmatpush2.bf16.msra.mxu0 0
  %209 = vmatprep.subr.bf16.mxu0 0
  %210 = vmatpush2.bf16.msra.mxu0 0
  %211 = vmatprep.subr.bf16.mxu0 0
  %212 = vmatpush2.bf16.msra.mxu0 0
  %213 = vmatprep.mubr.bf16.mxu0 0
  %214 = vmatmul.mubr.bf16.gmra.mxu0 %v170
  %v215 = vpop.f32.mrf.mxu0
  %v216 = vadd.f32 %v123, %v215
  %v217 = vpop.f32.mrf.mxu0
  %v218 = vadd.f32 %v125, %v217
  %v219 = vpop.f32.mrf.mxu0
  %v220 = vpop.f32.mrf.mxu0
  %221 = vdwg.mxu0
  %222 = vmatprep.subr.bf16.mxu0 0
  %223 = vmatpush1.bf16.msra.mxu0 0
  %224 = vmatprep.subr.bf16.mxu0 0
  %225 = vmatpush1.bf16.msra.mxu0 0
  %226 = vmatprep.subr.bf16.mxu0 0
  %227 = vmatpush1.bf16.msra.mxu0 0
  %228 = vmatprep.subr.bf16.mxu0 0
  %229 = vmatpush1.bf16.msra.mxu0 0
  %230 = vmatprep.subr.bf16.mxu0 0
  %231 = vmatpush1.bf16.msra.mxu0 0
  %232 = vmatprep.subr.bf16.mxu0 0
  %233 = vmatpush1.bf16.msra.mxu0 0
  %234 = vmatprep.subr.bf16.mxu0 0
  %235 = vmatpush1.bf16.msra.mxu0 0
  %236 = vmatprep.subr.bf16.mxu0 0
  %237 = vmatpush1.bf16.msra.mxu0 %v179
  %238 = vmatprep.subr.bf16.mxu0 0
  %239 = vmatpush2.bf16.msra.mxu0 0
  %240 = vmatprep.subr.bf16.mxu0 0
  %241 = vmatpush2.bf16.msra.mxu0 0
  %242 = vmatprep.subr.bf16.mxu0 0
  %243 = vmatpush2.bf16.msra.mxu0 0
  %244 = vmatprep.subr.bf16.mxu0 0
  %245 = vmatpush2.bf16.msra.mxu0 0
  %246 = vmatprep.subr.bf16.mxu0 0
  %247 = vmatpush2.bf16.msra.mxu0 0
  %248 = vmatprep.subr.bf16.mxu0 0
  %249 = vmatpush2.bf16.msra.mxu0 0
  %250 = vmatprep.subr.bf16.mxu0 0
  %251 = vmatpush2.bf16.msra.mxu0 0
  %252 = vmatprep.subr.bf16.mxu0 0
  %253 = vmatpush2.bf16.msra.mxu0 0
  %254 = vmatprep.mubr.bf16.mxu0 0
  %255 = vmatmul.mubr.bf16.gmra.mxu0 %v170
  %v256 = vpop.f32.mrf.mxu0
  %v257 = vadd.f32 %v164, %v256
  %v258 = vpop.f32.mrf.mxu0
  %v259 = vpop.f32.mrf.mxu0
  %v260 = vpop.f32.mrf.mxu0
  %261 = vdwg.mxu0
  %v262 = vld [vmem:[%s1] sm:$0xf]
  %v264 = vunpack.c.l.b16 %v262
  %v265 = vpack.c.b16 %v264, %v264
  %266 = vrot.lane.b32.xlu0 %v265, 120
  %v267 = vpop.permute.xlu0 %266
  %268 = vrot.lane.b32.xlu0 %v56, 126
  %v269 = vpop.permute.xlu0 %268
  %270 = vrot.lane.b32.xlu0 %v64, 126
  %v271 = vpop.permute.xlu0 %270
  %272 = vrot.lane.b32.xlu0 %v63, 126
  %v273 = vpop.permute.xlu0 %272
  %vm274 = vcmask 1031168
  %v275 = vsel %vm274, %v269, %v271
  %v276 = vsel %vm274, %v271, %v273
  %v278 = vsel %vm74, %v267, 0
  %v281 = vsel %vm78, %v275, 0
  %v284 = vsel %vm78, %v276, 0
  %v287 = vsel %vm78, %v273, 0
  %289 = vmatprep.subr.bf16.mxu0 0
  %290 = vmatpush1.bf16.msra.mxu0 0
  %291 = vmatprep.subr.bf16.mxu0 0
  %292 = vmatpush1.bf16.msra.mxu0 0
  %293 = vmatprep.subr.bf16.mxu0 0
  %294 = vmatpush1.bf16.msra.mxu0 0
  %295 = vmatprep.subr.bf16.mxu0 0
  %296 = vmatpush1.bf16.msra.mxu0 0
  %297 = vmatprep.subr.bf16.mxu0 0
  %298 = vmatpush1.bf16.msra.mxu0 0
  %299 = vmatprep.subr.bf16.mxu0 0
  %300 = vmatpush1.bf16.msra.mxu0 0
  %301 = vmatprep.subr.bf16.mxu0 0
  %302 = vmatpush1.bf16.msra.mxu0 0
  %303 = vmatprep.subr.bf16.mxu0 %v284
  %304 = vmatpush1.bf16.msra.mxu0 %v281
  %305 = vmatprep.subr.bf16.mxu0 0
  %306 = vmatpush2.bf16.msra.mxu0 0
  %307 = vmatprep.subr.bf16.mxu0 0
  %308 = vmatpush2.bf16.msra.mxu0 0
  %309 = vmatprep.subr.bf16.mxu0 0
  %310 = vmatpush2.bf16.msra.mxu0 0
  %311 = vmatprep.subr.bf16.mxu0 0
  %312 = vmatpush2.bf16.msra.mxu0 0
  %313 = vmatprep.subr.bf16.mxu0 0
  %314 = vmatpush2.bf16.msra.mxu0 0
  %315 = vmatprep.subr.bf16.mxu0 0
  %316 = vmatpush2.bf16.msra.mxu0 0
  %317 = vmatprep.subr.bf16.mxu0 0
  %318 = vmatpush2.bf16.msra.mxu0 0
  %319 = vmatprep.subr.bf16.mxu0 0
  %320 = vmatpush2.bf16.msra.mxu0 0
  %321 = vmatprep.mubr.bf16.mxu0 0
  %322 = vmatmul.mubr.bf16.gmra.mxu0 %v278
  %v323 = vpop.f32.mrf.mxu0
  %v324 = vadd.f32 0.0, %v323
  %v325 = vpop.f32.mrf.mxu0
  %v326 = vadd.f32 0.0, %v325
  %v327 = vpop.f32.mrf.mxu0
  %v328 = vpop.f32.mrf.mxu0
  %329 = vdwg.mxu0
  %330 = vmatprep.subr.bf16.mxu0 0
  %331 = vmatpush1.bf16.msra.mxu0 0
  %332 = vmatprep.subr.bf16.mxu0 0
  %333 = vmatpush1.bf16.msra.mxu0 0
  %334 = vmatprep.subr.bf16.mxu0 0
  %335 = vmatpush1.bf16.msra.mxu0 0
  %336 = vmatprep.subr.bf16.mxu0 0
  %337 = vmatpush1.bf16.msra.mxu0 0
  %338 = vmatprep.subr.bf16.mxu0 0
  %339 = vmatpush1.bf16.msra.mxu0 0
  %340 = vmatprep.subr.bf16.mxu0 0
  %341 = vmatpush1.bf16.msra.mxu0 0
  %342 = vmatprep.subr.bf16.mxu0 0
  %343 = vmatpush1.bf16.msra.mxu0 0
  %344 = vmatprep.subr.bf16.mxu0 0
  %345 = vmatpush1.bf16.msra.mxu0 %v287
  %346 = vmatprep.subr.bf16.mxu0 0
  %347 = vmatpush2.bf16.msra.mxu0 0
  %348 = vmatprep.subr.bf16.mxu0 0
  %349 = vmatpush2.bf16.msra.mxu0 0
  %350 = vmatprep.subr.bf16.mxu0 0
  %351 = vmatpush2.bf16.msra.mxu0 0
  %352 = vmatprep.subr.bf16.mxu0 0
  %353 = vmatpush2.bf16.msra.mxu0 0
  %354 = vmatprep.subr.bf16.mxu0 0
  %355 = vmatpush2.bf16.msra.mxu0 0
  %356 = vmatprep.subr.bf16.mxu0 0
  %357 = vmatpush2.bf16.msra.mxu0 0
  %358 = vmatprep.subr.bf16.mxu0 0
  %359 = vmatpush2.bf16.msra.mxu0 0
  %360 = vmatprep.subr.bf16.mxu0 0
  %361 = vmatpush2.bf16.msra.mxu0 0
  %362 = vmatprep.mubr.bf16.mxu0 0
  %363 = vmatmul.mubr.bf16.gmra.mxu0 %v278
  %v364 = vpop.f32.mrf.mxu0
  %v365 = vadd.f32 0.0, %v364
  %v366 = vpop.f32.mrf.mxu0
  %v367 = vpop.f32.mrf.mxu0
  %v368 = vpop.f32.mrf.mxu0
  %369 = vdwg.mxu0
  %v370 = vadd.f32 %v216, %v324
  %v371 = vadd.f32 %v218, %v326
  %v372 = vadd.f32 %v257, %v365
  %v373 = vld [vmem:[%s1] sm:$0xf]
  %v375 = vunpack.c.l.b16 %v373
  %v376 = vpack.c.b16 %v375, %v375
  %377 = vrot.lane.b32.xlu0 %v376, 116
  %v378 = vpop.permute.xlu0 %377
  %379 = vrot.lane.b32.xlu0 %v56, 110
  %v380 = vpop.permute.xlu0 %379
  %381 = vrot.lane.b32.xlu0 %v64, 110
  %v382 = vpop.permute.xlu0 %381
  %383 = vrot.lane.b32.xlu0 %v63, 110
  %v384 = vpop.permute.xlu0 %383
  %vm385 = vcmask 900096
  %v386 = vsel %vm385, %v380, %v382
  %v387 = vsel %vm385, %v382, %v384
  %v389 = vsel %vm74, %v378, 0
  %v392 = vsel %vm78, %v386, 0
  %v395 = vsel %vm78, %v387, 0
  %v398 = vsel %vm78, %v384, 0
  %400 = vmatprep.subr.bf16.mxu0 0
  %401 = vmatpush1.bf16.msra.mxu0 0
  %402 = vmatprep.subr.bf16.mxu0 0
  %403 = vmatpush1.bf16.msra.mxu0 0
  %404 = vmatprep.subr.bf16.mxu0 0
  %405 = vmatpush1.bf16.msra.mxu0 0
  %406 = vmatprep.subr.bf16.mxu0 0
  %407 = vmatpush1.bf16.msra.mxu0 0
  %408 = vmatprep.subr.bf16.mxu0 0
  %409 = vmatpush1.bf16.msra.mxu0 0
  %410 = vmatprep.subr.bf16.mxu0 0
  %411 = vmatpush1.bf16.msra.mxu0 0
  %412 = vmatprep.subr.bf16.mxu0 0
  %413 = vmatpush1.bf16.msra.mxu0 0
  %414 = vmatprep.subr.bf16.mxu0 %v395
  %415 = vmatpush1.bf16.msra.mxu0 %v392
  %416 = vmatprep.subr.bf16.mxu0 0
  %417 = vmatpush2.bf16.msra.mxu0 0
  %418 = vmatprep.subr.bf16.mxu0 0
  %419 = vmatpush2.bf16.msra.mxu0 0
  %420 = vmatprep.subr.bf16.mxu0 0
  %421 = vmatpush2.bf16.msra.mxu0 0
  %422 = vmatprep.subr.bf16.mxu0 0
  %423 = vmatpush2.bf16.msra.mxu0 0
  %424 = vmatprep.subr.bf16.mxu0 0
  %425 = vmatpush2.bf16.msra.mxu0 0
  %426 = vmatprep.subr.bf16.mxu0 0
  %427 = vmatpush2.bf16.msra.mxu0 0
  %428 = vmatprep.subr.bf16.mxu0 0
  %429 = vmatpush2.bf16.msra.mxu0 0
  %430 = vmatprep.subr.bf16.mxu0 0
  %431 = vmatpush2.bf16.msra.mxu0 0
  %432 = vmatprep.mubr.bf16.mxu0 0
  %433 = vmatmul.mubr.bf16.gmra.mxu0 %v389
  %v434 = vpop.f32.mrf.mxu0
  %v435 = vadd.f32 0.0, %v434
  %v436 = vpop.f32.mrf.mxu0
  %v437 = vadd.f32 0.0, %v436
  %v438 = vpop.f32.mrf.mxu0
  %v439 = vpop.f32.mrf.mxu0
  %440 = vdwg.mxu0
  %441 = vmatprep.subr.bf16.mxu0 0
  %442 = vmatpush1.bf16.msra.mxu0 0
  %443 = vmatprep.subr.bf16.mxu0 0
  %444 = vmatpush1.bf16.msra.mxu0 0
  %445 = vmatprep.subr.bf16.mxu0 0
  %446 = vmatpush1.bf16.msra.mxu0 0
  %447 = vmatprep.subr.bf16.mxu0 0
  %448 = vmatpush1.bf16.msra.mxu0 0
  %449 = vmatprep.subr.bf16.mxu0 0
  %450 = vmatpush1.bf16.msra.mxu0 0
  %451 = vmatprep.subr.bf16.mxu0 0
  %452 = vmatpush1.bf16.msra.mxu0 0
  %453 = vmatprep.subr.bf16.mxu0 0
  %454 = vmatpush1.bf16.msra.mxu0 0
  %455 = vmatprep.subr.bf16.mxu0 0
  %456 = vmatpush1.bf16.msra.mxu0 %v398
  %457 = vmatprep.subr.bf16.mxu0 0
  %458 = vmatpush2.bf16.msra.mxu0 0
  %459 = vmatprep.subr.bf16.mxu0 0
  %460 = vmatpush2.bf16.msra.mxu0 0
  %461 = vmatprep.subr.bf16.mxu0 0
  %462 = vmatpush2.bf16.msra.mxu0 0
  %463 = vmatprep.subr.bf16.mxu0 0
  %464 = vmatpush2.bf16.msra.mxu0 0
  %465 = vmatprep.subr.bf16.mxu0 0
  %466 = vmatpush2.bf16.msra.mxu0 0
  %467 = vmatprep.subr.bf16.mxu0 0
  %468 = vmatpush2.bf16.msra.mxu0 0
  %469 = vmatprep.subr.bf16.mxu0 0
  %470 = vmatpush2.bf16.msra.mxu0 0
  %471 = vmatprep.subr.bf16.mxu0 0
  %472 = vmatpush2.bf16.msra.mxu0 0
  %473 = vmatprep.mubr.bf16.mxu0 0
  %474 = vmatmul.mubr.bf16.gmra.mxu0 %v389
  %v475 = vpop.f32.mrf.mxu0
  %v476 = vadd.f32 0.0, %v475
  %v477 = vpop.f32.mrf.mxu0
  %v478 = vpop.f32.mrf.mxu0
  %v479 = vpop.f32.mrf.mxu0
  %480 = vdwg.mxu0
  %v481 = vadd.f32 %v370, %v435
  %v482 = vadd.f32 %v371, %v437
  %v483 = vadd.f32 %v372, %v476
  %v484 = vld [vmem:[%s1] sm:$0xf]
  %v486 = vunpack.c.l.b16 %v484
  %v487 = vpack.c.b16 %v486, %v486
  %488 = vrot.lane.b32.xlu0 %v487, 112
  %v489 = vpop.permute.xlu0 %488
  %490 = vrot.lane.b32.xlu0 %v56, 109
  %v491 = vpop.permute.xlu0 %490
  %492 = vrot.lane.b32.xlu0 %v64, 109
  %v493 = vpop.permute.xlu0 %492
  %494 = vrot.lane.b32.xlu0 %v63, 109
  %v495 = vpop.permute.xlu0 %494
  %vm496 = vcmask 891904
  %v497 = vsel %vm496, %v491, %v493
  %v498 = vsel %vm496, %v493, %v495
  %v500 = vsel %vm74, %v489, 0
  %v503 = vsel %vm78, %v497, 0
  %v506 = vsel %vm78, %v498, 0
  %v509 = vsel %vm78, %v495, 0
  %511 = vmatprep.subr.bf16.mxu0 0
  %512 = vmatpush1.bf16.msra.mxu0 0
  %513 = vmatprep.subr.bf16.mxu0 0
  %514 = vmatpush1.bf16.msra.mxu0 0
  %515 = vmatprep.subr.bf16.mxu0 0
  %516 = vmatpush1.bf16.msra.mxu0 0
  %517 = vmatprep.subr.bf16.mxu0 0
  %518 = vmatpush1.bf16.msra.mxu0 0
  %519 = vmatprep.subr.bf16.mxu0 0
  %520 = vmatpush1.bf16.msra.mxu0 0
  %521 = vmatprep.subr.bf16.mxu0 0
  %522 = vmatpush1.bf16.msra.mxu0 0
  %523 = vmatprep.subr.bf16.mxu0 0
  %524 = vmatpush1.bf16.msra.mxu0 0
  %525 = vmatprep.subr.bf16.mxu0 %v506
  %526 = vmatpush1.bf16.msra.mxu0 %v503
  %527 = vmatprep.subr.bf16.mxu0 0
  %528 = vmatpush2.bf16.msra.mxu0 0
  %529 = vmatprep.subr.bf16.mxu0 0
  %530 = vmatpush2.bf16.msra.mxu0 0
  %531 = vmatprep.subr.bf16.mxu0 0
  %532 = vmatpush2.bf16.msra.mxu0 0
  %533 = vmatprep.subr.bf16.mxu0 0
  %534 = vmatpush2.bf16.msra.mxu0 0
  %535 = vmatprep.subr.bf16.mxu0 0
  %536 = vmatpush2.bf16.msra.mxu0 0
  %537 = vmatprep.subr.bf16.mxu0 0
  %538 = vmatpush2.bf16.msra.mxu0 0
  %539 = vmatprep.subr.bf16.mxu0 0
  %540 = vmatpush2.bf16.msra.mxu0 0
  %541 = vmatprep.subr.bf16.mxu0 0
  %542 = vmatpush2.bf16.msra.mxu0 0
  %543 = vmatprep.mubr.bf16.mxu0 0
  %544 = vmatmul.mubr.bf16.gmra.mxu0 %v500
  %v545 = vpop.f32.mrf.mxu0
  %v546 = vadd.f32 0.0, %v545
  %v547 = vpop.f32.mrf.mxu0
  %v548 = vadd.f32 0.0, %v547
  %v549 = vpop.f32.mrf.mxu0
  %v550 = vpop.f32.mrf.mxu0
  %551 = vdwg.mxu0
  %552 = vmatprep.subr.bf16.mxu0 0
  %553 = vmatpush1.bf16.msra.mxu0 0
  %554 = vmatprep.subr.bf16.mxu0 0
  %555 = vmatpush1.bf16.msra.mxu0 0
  %556 = vmatprep.subr.bf16.mxu0 0
  %557 = vmatpush1.bf16.msra.mxu0 0
  %558 = vmatprep.subr.bf16.mxu0 0
  %559 = vmatpush1.bf16.msra.mxu0 0
  %560 = vmatprep.subr.bf16.mxu0 0
  %561 = vmatpush1.bf16.msra.mxu0 0
  %562 = vmatprep.subr.bf16.mxu0 0
  %563 = vmatpush1.bf16.msra.mxu0 0
  %564 = vmatprep.subr.bf16.mxu0 0
  %565 = vmatpush1.bf16.msra.mxu0 0
  %566 = vmatprep.subr.bf16.mxu0 0
  %567 = vmatpush1.bf16.msra.mxu0 %v509
  %568 = vmatprep.subr.bf16.mxu0 0
  %569 = vmatpush2.bf16.msra.mxu0 0
  %570 = vmatprep.subr.bf16.mxu0 0
  %571 = vmatpush2.bf16.msra.mxu0 0
  %572 = vmatprep.subr.bf16.mxu0 0
  %573 = vmatpush2.bf16.msra.mxu0 0
  %574 = vmatprep.subr.bf16.mxu0 0
  %575 = vmatpush2.bf16.msra.mxu0 0
  %576 = vmatprep.subr.bf16.mxu0 0
  %577 = vmatpush2.bf16.msra.mxu0 0
  %578 = vmatprep.subr.bf16.mxu0 0
  %579 = vmatpush2.bf16.msra.mxu0 0
  %580 = vmatprep.subr.bf16.mxu0 0
  %581 = vmatpush2.bf16.msra.mxu0 0
  %582 = vmatprep.subr.bf16.mxu0 0
  %583 = vmatpush2.bf16.msra.mxu0 0
  %584 = vmatprep.mubr.bf16.mxu0 0
  %585 = vmatmul.mubr.bf16.gmra.mxu0 %v500
  %v586 = vpop.f32.mrf.mxu0
  %v587 = vadd.f32 0.0, %v586
  %v588 = vpop.f32.mrf.mxu0
  %v589 = vpop.f32.mrf.mxu0
  %v590 = vpop.f32.mrf.mxu0
  %591 = vdwg.mxu0
  %v592 = vadd.f32 %v481, %v546
  %v593 = vadd.f32 %v482, %v548
  %v594 = vadd.f32 %v483, %v587
  %v595 = vld [vmem:[%s1] sm:$0xf]
  %v597 = vunpack.c.l.b16 %v595
  %v598 = vpack.c.b16 %v597, %v597
  %599 = vrot.lane.b32.xlu0 %v598, 108
  %v600 = vpop.permute.xlu0 %599
  %601 = vrot.lane.b32.xlu0 %v56, 108
  %v602 = vpop.permute.xlu0 %601
  %603 = vrot.lane.b32.xlu0 %v64, 108
  %v604 = vpop.permute.xlu0 %603
  %605 = vrot.lane.b32.xlu0 %v63, 108
  %v606 = vpop.permute.xlu0 %605
  %vm607 = vcmask 883712
  %v608 = vsel %vm607, %v602, %v604
  %v609 = vsel %vm607, %v604, %v606
  %v611 = vsel %vm74, %v600, 0
  %v614 = vsel %vm78, %v608, 0
  %v617 = vsel %vm78, %v609, 0
  %v620 = vsel %vm78, %v606, 0
  %622 = vmatprep.subr.bf16.mxu0 0
  %623 = vmatpush1.bf16.msra.mxu0 0
  %624 = vmatprep.subr.bf16.mxu0 0
  %625 = vmatpush1.bf16.msra.mxu0 0
  %626 = vmatprep.subr.bf16.mxu0 0
  %627 = vmatpush1.bf16.msra.mxu0 0
  %628 = vmatprep.subr.bf16.mxu0 0
  %629 = vmatpush1.bf16.msra.mxu0 0
  %630 = vmatprep.subr.bf16.mxu0 0
  %631 = vmatpush1.bf16.msra.mxu0 0
  %632 = vmatprep.subr.bf16.mxu0 0
  %633 = vmatpush1.bf16.msra.mxu0 0
  %634 = vmatprep.subr.bf16.mxu0 0
  %635 = vmatpush1.bf16.msra.mxu0 0
  %636 = vmatprep.subr.bf16.mxu0 %v617
  %637 = vmatpush1.bf16.msra.mxu0 %v614
  %638 = vmatprep.subr.bf16.mxu0 0
  %639 = vmatpush2.bf16.msra.mxu0 0
  %640 = vmatprep.subr.bf16.mxu0 0
  %641 = vmatpush2.bf16.msra.mxu0 0
  %642 = vmatprep.subr.bf16.mxu0 0
  %643 = vmatpush2.bf16.msra.mxu0 0
  %644 = vmatprep.subr.bf16.mxu0 0
  %645 = vmatpush2.bf16.msra.mxu0 0
  %646 = vmatprep.subr.bf16.mxu0 0
  %647 = vmatpush2.bf16.msra.mxu0 0
  %648 = vmatprep.subr.bf16.mxu0 0
  %649 = vmatpush2.bf16.msra.mxu0 0
  %650 = vmatprep.subr.bf16.mxu0 0
  %651 = vmatpush2.bf16.msra.mxu0 0
  %652 = vmatprep.subr.bf16.mxu0 0
  %653 = vmatpush2.bf16.msra.mxu0 0
  %654 = vmatprep.mubr.bf16.mxu0 0
  %655 = vmatmul.mubr.bf16.gmra.mxu0 %v611
  %v656 = vpop.f32.mrf.mxu0
  %v657 = vadd.f32 0.0, %v656
  %v658 = vpop.f32.mrf.mxu0
  %v659 = vadd.f32 0.0, %v658
  %v660 = vpop.f32.mrf.mxu0
  %v661 = vpop.f32.mrf.mxu0
  %662 = vdwg.mxu0
  %663 = vmatprep.subr.bf16.mxu0 0
  %664 = vmatpush1.bf16.msra.mxu0 0
  %665 = vmatprep.subr.bf16.mxu0 0
  %666 = vmatpush1.bf16.msra.mxu0 0
  %667 = vmatprep.subr.bf16.mxu0 0
  %668 = vmatpush1.bf16.msra.mxu0 0
  %669 = vmatprep.subr.bf16.mxu0 0
  %670 = vmatpush1.bf16.msra.mxu0 0
  %671 = vmatprep.subr.bf16.mxu0 0
  %672 = vmatpush1.bf16.msra.mxu0 0
  %673 = vmatprep.subr.bf16.mxu0 0
  %674 = vmatpush1.bf16.msra.mxu0 0
  %675 = vmatprep.subr.bf16.mxu0 0
  %676 = vmatpush1.bf16.msra.mxu0 0
  %677 = vmatprep.subr.bf16.mxu0 0
  %678 = vmatpush1.bf16.msra.mxu0 %v620
  %679 = vmatprep.subr.bf16.mxu0 0
  %680 = vmatpush2.bf16.msra.mxu0 0
  %681 = vmatprep.subr.bf16.mxu0 0
  %682 = vmatpush2.bf16.msra.mxu0 0
  %683 = vmatprep.subr.bf16.mxu0 0
  %684 = vmatpush2.bf16.msra.mxu0 0
  %685 = vmatprep.subr.bf16.mxu0 0
  %686 = vmatpush2.bf16.msra.mxu0 0
  %687 = vmatprep.subr.bf16.mxu0 0
  %688 = vmatpush2.bf16.msra.mxu0 0
  %689 = vmatprep.subr.bf16.mxu0 0
  %690 = vmatpush2.bf16.msra.mxu0 0
  %691 = vmatprep.subr.bf16.mxu0 0
  %692 = vmatpush2.bf16.msra.mxu0 0
  %693 = vmatprep.subr.bf16.mxu0 0
  %694 = vmatpush2.bf16.msra.mxu0 0
  %695 = vmatprep.mubr.bf16.mxu0 0
  %696 = vmatmul.mubr.bf16.gmra.mxu0 %v611
  %v697 = vpop.f32.mrf.mxu0
  %v698 = vadd.f32 0.0, %v697
  %v699 = vpop.f32.mrf.mxu0
  %v700 = vpop.f32.mrf.mxu0
  %v701 = vpop.f32.mrf.mxu0
  %702 = vdwg.mxu0
  %v703 = vadd.f32 %v592, %v657
  %v704 = vadd.f32 %v593, %v659
  %v705 = vadd.f32 %v594, %v698
  %v706 = vld [vmem:[%s1] sm:$0xf]
  %v708 = vunpack.c.l.b16 %v706
  %v709 = vpack.c.b16 %v708, %v708
  %710 = vrot.lane.b32.xlu0 %v709, 104
  %v711 = vpop.permute.xlu0 %710
  %712 = vrot.lane.b32.xlu0 %v56, 92
  %v713 = vpop.permute.xlu0 %712
  %714 = vrot.lane.b32.xlu0 %v64, 92
  %v715 = vpop.permute.xlu0 %714
  %716 = vrot.lane.b32.xlu0 %v63, 92
  %v717 = vpop.permute.xlu0 %716
  %vm718 = vcmask 752640
  %v719 = vsel %vm718, %v713, %v715
  %v720 = vsel %vm718, %v715, %v717
  %v722 = vsel %vm74, %v711, 0
  %v725 = vsel %vm78, %v719, 0
  %v728 = vsel %vm78, %v720, 0
  %v731 = vsel %vm78, %v717, 0
  %733 = vmatprep.subr.bf16.mxu0 0
  %734 = vmatpush1.bf16.msra.mxu0 0
  %735 = vmatprep.subr.bf16.mxu0 0
  %736 = vmatpush1.bf16.msra.mxu0 0
  %737 = vmatprep.subr.bf16.mxu0 0
  %738 = vmatpush1.bf16.msra.mxu0 0
  %739 = vmatprep.subr.bf16.mxu0 0
  %740 = vmatpush1.bf16.msra.mxu0 0
  %741 = vmatprep.subr.bf16.mxu0 0
  %742 = vmatpush1.bf16.msra.mxu0 0
  %743 = vmatprep.subr.bf16.mxu0 0
  %744 = vmatpush1.bf16.msra.mxu0 0
  %745 = vmatprep.subr.bf16.mxu0 0
  %746 = vmatpush1.bf16.msra.mxu0 0
  %747 = vmatprep.subr.bf16.mxu0 %v728
  %748 = vmatpush1.bf16.msra.mxu0 %v725
  %749 = vmatprep.subr.bf16.mxu0 0
  %750 = vmatpush2.bf16.msra.mxu0 0
  %751 = vmatprep.subr.bf16.mxu0 0
  %752 = vmatpush2.bf16.msra.mxu0 0
  %753 = vmatprep.subr.bf16.mxu0 0
  %754 = vmatpush2.bf16.msra.mxu0 0
  %755 = vmatprep.subr.bf16.mxu0 0
  %756 = vmatpush2.bf16.msra.mxu0 0
  %757 = vmatprep.subr.bf16.mxu0 0
  %758 = vmatpush2.bf16.msra.mxu0 0
  %759 = vmatprep.subr.bf16.mxu0 0
  %760 = vmatpush2.bf16.msra.mxu0 0
  %761 = vmatprep.subr.bf16.mxu0 0
  %762 = vmatpush2.bf16.msra.mxu0 0
  %763 = vmatprep.subr.bf16.mxu0 0
  %764 = vmatpush2.bf16.msra.mxu0 0
  %765 = vmatprep.mubr.bf16.mxu0 0
  %766 = vmatmul.mubr.bf16.gmra.mxu0 %v722
  %v767 = vpop.f32.mrf.mxu0
  %v768 = vadd.f32 0.0, %v767
  %v769 = vpop.f32.mrf.mxu0
  %v770 = vadd.f32 0.0, %v769
  %v771 = vpop.f32.mrf.mxu0
  %v772 = vpop.f32.mrf.mxu0
  %773 = vdwg.mxu0
  %774 = vmatprep.subr.bf16.mxu0 0
  %775 = vmatpush1.bf16.msra.mxu0 0
  %776 = vmatprep.subr.bf16.mxu0 0
  %777 = vmatpush1.bf16.msra.mxu0 0
  %778 = vmatprep.subr.bf16.mxu0 0
  %779 = vmatpush1.bf16.msra.mxu0 0
  %780 = vmatprep.subr.bf16.mxu0 0
  %781 = vmatpush1.bf16.msra.mxu0 0
  %782 = vmatprep.subr.bf16.mxu0 0
  %783 = vmatpush1.bf16.msra.mxu0 0
  %784 = vmatprep.subr.bf16.mxu0 0
  %785 = vmatpush1.bf16.msra.mxu0 0
  %786 = vmatprep.subr.bf16.mxu0 0
  %787 = vmatpush1.bf16.msra.mxu0 0
  %788 = vmatprep.subr.bf16.mxu0 0
  %789 = vmatpush1.bf16.msra.mxu0 %v731
  %790 = vmatprep.subr.bf16.mxu0 0
  %791 = vmatpush2.bf16.msra.mxu0 0
  %792 = vmatprep.subr.bf16.mxu0 0
  %793 = vmatpush2.bf16.msra.mxu0 0
  %794 = vmatprep.subr.bf16.mxu0 0
  %795 = vmatpush2.bf16.msra.mxu0 0
  %796 = vmatprep.subr.bf16.mxu0 0
  %797 = vmatpush2.bf16.msra.mxu0 0
  %798 = vmatprep.subr.bf16.mxu0 0
  %799 = vmatpush2.bf16.msra.mxu0 0
  %800 = vmatprep.subr.bf16.mxu0 0
  %801 = vmatpush2.bf16.msra.mxu0 0
  %802 = vmatprep.subr.bf16.mxu0 0
  %803 = vmatpush2.bf16.msra.mxu0 0
  %804 = vmatprep.subr.bf16.mxu0 0
  %805 = vmatpush2.bf16.msra.mxu0 0
  %806 = vmatprep.mubr.bf16.mxu0 0
  %807 = vmatmul.mubr.bf16.gmra.mxu0 %v722
  %v808 = vpop.f32.mrf.mxu0
  %v809 = vadd.f32 0.0, %v808
  %v810 = vpop.f32.mrf.mxu0
  %v811 = vpop.f32.mrf.mxu0
  %v812 = vpop.f32.mrf.mxu0
  %813 = vdwg.mxu0
  %v814 = vadd.f32 %v703, %v768
  %v815 = vadd.f32 %v704, %v770
  %v816 = vadd.f32 %v705, %v809
  %v817 = vld [vmem:[%s1] sm:$0xf]
  %v819 = vunpack.c.l.b16 %v817
  %v820 = vpack.c.b16 %v819, %v819
  %821 = vrot.lane.b32.xlu0 %v820, 100
  %v822 = vpop.permute.xlu0 %821
  %823 = vrot.lane.b32.xlu0 %v56, 91
  %v824 = vpop.permute.xlu0 %823
  %825 = vrot.lane.b32.xlu0 %v64, 91
  %v826 = vpop.permute.xlu0 %825
  %827 = vrot.lane.b32.xlu0 %v63, 91
  %v828 = vpop.permute.xlu0 %827
  %vm829 = vcmask 744448
  %v830 = vsel %vm829, %v824, %v826
  %v831 = vsel %vm829, %v826, %v828
  %v833 = vsel %vm74, %v822, 0
  %v836 = vsel %vm78, %v830, 0
  %v839 = vsel %vm78, %v831, 0
  %v842 = vsel %vm78, %v828, 0
  %844 = vmatprep.subr.bf16.mxu0 0
  %845 = vmatpush1.bf16.msra.mxu0 0
  %846 = vmatprep.subr.bf16.mxu0 0
  %847 = vmatpush1.bf16.msra.mxu0 0
  %848 = vmatprep.subr.bf16.mxu0 0
  %849 = vmatpush1.bf16.msra.mxu0 0
  %850 = vmatprep.subr.bf16.mxu0 0
  %851 = vmatpush1.bf16.msra.mxu0 0
  %852 = vmatprep.subr.bf16.mxu0 0
  %853 = vmatpush1.bf16.msra.mxu0 0
  %854 = vmatprep.subr.bf16.mxu0 0
  %855 = vmatpush1.bf16.msra.mxu0 0
  %856 = vmatprep.subr.bf16.mxu0 0
  %857 = vmatpush1.bf16.msra.mxu0 0
  %858 = vmatprep.subr.bf16.mxu0 %v839
  %859 = vmatpush1.bf16.msra.mxu0 %v836
  %860 = vmatprep.subr.bf16.mxu0 0
  %861 = vmatpush2.bf16.msra.mxu0 0
  %862 = vmatprep.subr.bf16.mxu0 0
  %863 = vmatpush2.bf16.msra.mxu0 0
  %864 = vmatprep.subr.bf16.mxu0 0
  %865 = vmatpush2.bf16.msra.mxu0 0
  %866 = vmatprep.subr.bf16.mxu0 0
  %867 = vmatpush2.bf16.msra.mxu0 0
  %868 = vmatprep.subr.bf16.mxu0 0
  %869 = vmatpush2.bf16.msra.mxu0 0
  %870 = vmatprep.subr.bf16.mxu0 0
  %871 = vmatpush2.bf16.msra.mxu0 0
  %872 = vmatprep.subr.bf16.mxu0 0
  %873 = vmatpush2.bf16.msra.mxu0 0
  %874 = vmatprep.subr.bf16.mxu0 0
  %875 = vmatpush2.bf16.msra.mxu0 0
  %876 = vmatprep.mubr.bf16.mxu0 0
  %877 = vmatmul.mubr.bf16.gmra.mxu0 %v833
  %v878 = vpop.f32.mrf.mxu0
  %v879 = vadd.f32 0.0, %v878
  %v880 = vpop.f32.mrf.mxu0
  %v881 = vadd.f32 0.0, %v880
  %v882 = vpop.f32.mrf.mxu0
  %v883 = vpop.f32.mrf.mxu0
  %884 = vdwg.mxu0
  %885 = vmatprep.subr.bf16.mxu0 0
  %886 = vmatpush1.bf16.msra.mxu0 0
  %887 = vmatprep.subr.bf16.mxu0 0
  %888 = vmatpush1.bf16.msra.mxu0 0
  %889 = vmatprep.subr.bf16.mxu0 0
  %890 = vmatpush1.bf16.msra.mxu0 0
  %891 = vmatprep.subr.bf16.mxu0 0
  %892 = vmatpush1.bf16.msra.mxu0 0
  %893 = vmatprep.subr.bf16.mxu0 0
  %894 = vmatpush1.bf16.msra.mxu0 0
  %895 = vmatprep.subr.bf16.mxu0 0
  %896 = vmatpush1.bf16.msra.mxu0 0
  %897 = vmatprep.subr.bf16.mxu0 0
  %898 = vmatpush1.bf16.msra.mxu0 0
  %899 = vmatprep.subr.bf16.mxu0 0
  %900 = vmatpush1.bf16.msra.mxu0 %v842
  %901 = vmatprep.subr.bf16.mxu0 0
  %902 = vmatpush2.bf16.msra.mxu0 0
  %903 = vmatprep.subr.bf16.mxu0 0
  %904 = vmatpush2.bf16.msra.mxu0 0
  %905 = vmatprep.subr.bf16.mxu0 0
  %906 = vmatpush2.bf16.msra.mxu0 0
  %907 = vmatprep.subr.bf16.mxu0 0
  %908 = vmatpush2.bf16.msra.mxu0 0
  %909 = vmatprep.subr.bf16.mxu0 0
  %910 = vmatpush2.bf16.msra.mxu0 0
  %911 = vmatprep.subr.bf16.mxu0 0
  %912 = vmatpush2.bf16.msra.mxu0 0
  %913 = vmatprep.subr.bf16.mxu0 0
  %914 = vmatpush2.bf16.msra.mxu0 0
  %915 = vmatprep.subr.bf16.mxu0 0
  %916 = vmatpush2.bf16.msra.mxu0 0
  %917 = vmatprep.mubr.bf16.mxu0 0
  %918 = vmatmul.mubr.bf16.gmra.mxu0 %v833
  %v919 = vpop.f32.mrf.mxu0
  %v920 = vadd.f32 0.0, %v919
  %v921 = vpop.f32.mrf.mxu0
  %v922 = vpop.f32.mrf.mxu0
  %v923 = vpop.f32.mrf.mxu0
  %924 = vdwg.mxu0
  %v925 = vadd.f32 %v814, %v879
  %v926 = vadd.f32 %v815, %v881
  %v927 = vadd.f32 %v816, %v920
  %v928 = vld [vmem:[%s1] sm:$0xf]
  %v930 = vunpack.c.l.b16 %v928
  %v931 = vpack.c.b16 %v930, %v930
  %932 = vrot.lane.b32.xlu0 %v931, 96
  %v933 = vpop.permute.xlu0 %932
  %934 = vrot.lane.b32.xlu0 %v56, 90
  %v935 = vpop.permute.xlu0 %934
  %936 = vrot.lane.b32.xlu0 %v64, 90
  %v937 = vpop.permute.xlu0 %936
  %938 = vrot.lane.b32.xlu0 %v63, 90
  %v939 = vpop.permute.xlu0 %938
  %vm940 = vcmask 736256
  %v941 = vsel %vm940, %v935, %v937
  %v942 = vsel %vm940, %v937, %v939
  %v944 = vsel %vm74, %v933, 0
  %v947 = vsel %vm78, %v941, 0
  %v950 = vsel %vm78, %v942, 0
  %v953 = vsel %vm78, %v939, 0
  %955 = vmatprep.subr.bf16.mxu0 0
  %956 = vmatpush1.bf16.msra.mxu0 0
  %957 = vmatprep.subr.bf16.mxu0 0
  %958 = vmatpush1.bf16.msra.mxu0 0
  %959 = vmatprep.subr.bf16.mxu0 0
  %960 = vmatpush1.bf16.msra.mxu0 0
  %961 = vmatprep.subr.bf16.mxu0 0
  %962 = vmatpush1.bf16.msra.mxu0 0
  %963 = vmatprep.subr.bf16.mxu0 0
  %964 = vmatpush1.bf16.msra.mxu0 0
  %965 = vmatprep.subr.bf16.mxu0 0
  %966 = vmatpush1.bf16.msra.mxu0 0
  %967 = vmatprep.subr.bf16.mxu0 0
  %968 = vmatpush1.bf16.msra.mxu0 0
  %969 = vmatprep.subr.bf16.mxu0 %v950
  %970 = vmatpush1.bf16.msra.mxu0 %v947
  %971 = vmatprep.subr.bf16.mxu0 0
  %972 = vmatpush2.bf16.msra.mxu0 0
  %973 = vmatprep.subr.bf16.mxu0 0
  %974 = vmatpush2.bf16.msra.mxu0 0
  %975 = vmatprep.subr.bf16.mxu0 0
  %976 = vmatpush2.bf16.msra.mxu0 0
  %977 = vmatprep.subr.bf16.mxu0 0
  %978 = vmatpush2.bf16.msra.mxu0 0
  %979 = vmatprep.subr.bf16.mxu0 0
  %980 = vmatpush2.bf16.msra.mxu0 0
  %981 = vmatprep.subr.bf16.mxu0 0
  %982 = vmatpush2.bf16.msra.mxu0 0
  %983 = vmatprep.subr.bf16.mxu0 0
  %984 = vmatpush2.bf16.msra.mxu0 0
  %985 = vmatprep.subr.bf16.mxu0 0
  %986 = vmatpush2.bf16.msra.mxu0 0
  %987 = vmatprep.mubr.bf16.mxu0 0
  %988 = vmatmul.mubr.bf16.gmra.mxu0 %v944
  %v989 = vpop.f32.mrf.mxu0
  %v990 = vadd.f32 0.0, %v989
  %v991 = vpop.f32.mrf.mxu0
  %v992 = vadd.f32 0.0, %v991
  %v993 = vpop.f32.mrf.mxu0
  %v994 = vpop.f32.mrf.mxu0
  %995 = vdwg.mxu0
  %996 = vmatprep.subr.bf16.mxu0 0
  %997 = vmatpush1.bf16.msra.mxu0 0
  %998 = vmatprep.subr.bf16.mxu0 0
  %999 = vmatpush1.bf16.msra.mxu0 0
  %1000 = vmatprep.subr.bf16.mxu0 0
  %1001 = vmatpush1.bf16.msra.mxu0 0
  %1002 = vmatprep.subr.bf16.mxu0 0
  %1003 = vmatpush1.bf16.msra.mxu0 0
  %1004 = vmatprep.subr.bf16.mxu0 0
  %1005 = vmatpush1.bf16.msra.mxu0 0
  %1006 = vmatprep.subr.bf16.mxu0 0
  %1007 = vmatpush1.bf16.msra.mxu0 0
  %1008 = vmatprep.subr.bf16.mxu0 0
  %1009 = vmatpush1.bf16.msra.mxu0 0
  %1010 = vmatprep.subr.bf16.mxu0 0
  %1011 = vmatpush1.bf16.msra.mxu0 %v953
  %1012 = vmatprep.subr.bf16.mxu0 0
  %1013 = vmatpush2.bf16.msra.mxu0 0
  %1014 = vmatprep.subr.bf16.mxu0 0
  %1015 = vmatpush2.bf16.msra.mxu0 0
  %1016 = vmatprep.subr.bf16.mxu0 0
  %1017 = vmatpush2.bf16.msra.mxu0 0
  %1018 = vmatprep.subr.bf16.mxu0 0
  %1019 = vmatpush2.bf16.msra.mxu0 0
  %1020 = vmatprep.subr.bf16.mxu0 0
  %1021 = vmatpush2.bf16.msra.mxu0 0
  %1022 = vmatprep.subr.bf16.mxu0 0
  %1023 = vmatpush2.bf16.msra.mxu0 0
  %1024 = vmatprep.subr.bf16.mxu0 0
  %1025 = vmatpush2.bf16.msra.mxu0 0
  %1026 = vmatprep.subr.bf16.mxu0 0
  %1027 = vmatpush2.bf16.msra.mxu0 0
  %1028 = vmatprep.mubr.bf16.mxu0 0
  %1029 = vmatmul.mubr.bf16.gmra.mxu0 %v944
  %v1030 = vpop.f32.mrf.mxu0
  %v1031 = vadd.f32 0.0, %v1030
  %v1032 = vpop.f32.mrf.mxu0
  %v1033 = vpop.f32.mrf.mxu0
  %v1034 = vpop.f32.mrf.mxu0
  %1035 = vdwg.mxu0
  %v1036 = vadd.f32 %v925, %v990
  %v1037 = vadd.f32 %v926, %v992
  %v1038 = vadd.f32 %v927, %v1031
  %s1039 = scalar_lea.vmem %s0, 6
  %v1040 = vld [vmem:[%s1039] sm:$0x3f]
  %v1042 = vcombine.high %v1040, %v1040
  %v1044 = vunpack.c.l.s4 1983009808
  %v1045 = vunpack.c.0.s8 %v1044
  %v1046 = vlaneseq
  %v1047 = vshrl.u32 %v1046, 7
  %v1048 = vsub.s32 %v1045, %v1047
  %v1049 = vrot.slane %v1040, %v1048
  %v1051 = vunpack.c.l.s4 1983009808
  %v1052 = vunpack.c.0.s8 %v1051
  %v1053 = vlaneseq
  %v1054 = vshrl.u32 %v1053, 7
  %v1055 = vsub.s32 %v1052, %v1054
  %v1056 = vrot.slane %v1042, %v1055
  %v1057 = vcombine.high %v1049, %v1049
  %1058 = vrot.lane.b32.xlu0 %v1049, 127
  %v1059 = vpop.permute.xlu0 %1058
  %1060 = vrot.lane.b32.xlu0 %v1057, 127
  %v1061 = vpop.permute.xlu0 %1060
  %1062 = vrot.lane.b32.xlu0 %v1056, 127
  %v1063 = vpop.permute.xlu0 %1062
  %v1064 = vsel %vm71, %v1059, %v1061
  %v1065 = vsel %vm71, %v1061, %v1063
  %v1067 = vsel %vm78, %v1064, 0
  %v1070 = vsel %vm78, %v1065, 0
  %v1073 = vsel %vm78, %v1063, 0
  %1075 = vmatprep.subr.bf16.mxu0 0
  %1076 = vmatpush1.bf16.msra.mxu0 0
  %1077 = vmatprep.subr.bf16.mxu0 0
  %1078 = vmatpush1.bf16.msra.mxu0 0
  %1079 = vmatprep.subr.bf16.mxu0 0
  %1080 = vmatpush1.bf16.msra.mxu0 0
  %1081 = vmatprep.subr.bf16.mxu0 0
  %1082 = vmatpush1.bf16.msra.mxu0 0
  %1083 = vmatprep.subr.bf16.mxu0 0
  %1084 = vmatpush1.bf16.msra.mxu0 0
  %1085 = vmatprep.subr.bf16.mxu0 0
  %1086 = vmatpush1.bf16.msra.mxu0 0
  %1087 = vmatprep.subr.bf16.mxu0 0
  %1088 = vmatpush1.bf16.msra.mxu0 0
  %1089 = vmatprep.subr.bf16.mxu0 %v1070
  %1090 = vmatpush1.bf16.msra.mxu0 %v1067
  %1091 = vmatprep.subr.bf16.mxu0 0
  %1092 = vmatpush2.bf16.msra.mxu0 0
  %1093 = vmatprep.subr.bf16.mxu0 0
  %1094 = vmatpush2.bf16.msra.mxu0 0
  %1095 = vmatprep.subr.bf16.mxu0 0
  %1096 = vmatpush2.bf16.msra.mxu0 0
  %1097 = vmatprep.subr.bf16.mxu0 0
  %1098 = vmatpush2.bf16.msra.mxu0 0
  %1099 = vmatprep.subr.bf16.mxu0 0
  %1100 = vmatpush2.bf16.msra.mxu0 0
  %1101 = vmatprep.subr.bf16.mxu0 0
  %1102 = vmatpush2.bf16.msra.mxu0 0
  %1103 = vmatprep.subr.bf16.mxu0 0
  %1104 = vmatpush2.bf16.msra.mxu0 0
  %1105 = vmatprep.subr.bf16.mxu0 0
  %1106 = vmatpush2.bf16.msra.mxu0 0
  %1107 = vmatprep.mubr.bf16.mxu0 0
  %1108 = vmatmul.mubr.bf16.gmra.mxu0 %v76
  %v1109 = vpop.f32.mrf.mxu0
  %v1110 = vadd.f32 0.0, %v1109
  %v1111 = vpop.f32.mrf.mxu0
  %v1112 = vadd.f32 0.0, %v1111
  %v1113 = vpop.f32.mrf.mxu0
  %v1114 = vpop.f32.mrf.mxu0
  %1115 = vdwg.mxu0
  %1116 = vmatprep.subr.bf16.mxu0 0
  %1117 = vmatpush1.bf16.msra.mxu0 0
  %1118 = vmatprep.subr.bf16.mxu0 0
  %1119 = vmatpush1.bf16.msra.mxu0 0
  %1120 = vmatprep.subr.bf16.mxu0 0
  %1121 = vmatpush1.bf16.msra.mxu0 0
  %1122 = vmatprep.subr.bf16.mxu0 0
  %1123 = vmatpush1.bf16.msra.mxu0 0
  %1124 = vmatprep.subr.bf16.mxu0 0
  %1125 = vmatpush1.bf16.msra.mxu0 0
  %1126 = vmatprep.subr.bf16.mxu0 0
  %1127 = vmatpush1.bf16.msra.mxu0 0
  %1128 = vmatprep.subr.bf16.mxu0 0
  %1129 = vmatpush1.bf16.msra.mxu0 0
  %1130 = vmatprep.subr.bf16.mxu0 0
  %1131 = vmatpush1.bf16.msra.mxu0 %v1073
  %1132 = vmatprep.subr.bf16.mxu0 0
  %1133 = vmatpush2.bf16.msra.mxu0 0
  %1134 = vmatprep.subr.bf16.mxu0 0
  %1135 = vmatpush2.bf16.msra.mxu0 0
  %1136 = vmatprep.subr.bf16.mxu0 0
  %1137 = vmatpush2.bf16.msra.mxu0 0
  %1138 = vmatprep.subr.bf16.mxu0 0
  %1139 = vmatpush2.bf16.msra.mxu0 0
  %1140 = vmatprep.subr.bf16.mxu0 0
  %1141 = vmatpush2.bf16.msra.mxu0 0
  %1142 = vmatprep.subr.bf16.mxu0 0
  %1143 = vmatpush2.bf16.msra.mxu0 0
  %1144 = vmatprep.subr.bf16.mxu0 0
  %1145 = vmatpush2.bf16.msra.mxu0 0
  %1146 = vmatprep.subr.bf16.mxu0 0
  %1147 = vmatpush2.bf16.msra.mxu0 0
  %1148 = vmatprep.mubr.bf16.mxu0 0
  %1149 = vmatmul.mubr.bf16.gmra.mxu0 %v76
  %v1150 = vpop.f32.mrf.mxu0
  %v1151 = vadd.f32 0.0, %v1150
  %v1152 = vpop.f32.mrf.mxu0
  %v1153 = vpop.f32.mrf.mxu0
  %v1154 = vpop.f32.mrf.mxu0
  %1155 = vdwg.mxu0
  %v1157 = vsel %vm78, %v1049, 0
  %v1160 = vsel %vm78, %v1057, 0
  %v1163 = vsel %vm78, %v1056, 0
  %1165 = vmatprep.subr.bf16.mxu0 0
  %1166 = vmatpush1.bf16.msra.mxu0 0
  %1167 = vmatprep.subr.bf16.mxu0 0
  %1168 = vmatpush1.bf16.msra.mxu0 0
  %1169 = vmatprep.subr.bf16.mxu0 0
  %1170 = vmatpush1.bf16.msra.mxu0 0
  %1171 = vmatprep.subr.bf16.mxu0 0
  %1172 = vmatpush1.bf16.msra.mxu0 0
  %1173 = vmatprep.subr.bf16.mxu0 0
  %1174 = vmatpush1.bf16.msra.mxu0 0
  %1175 = vmatprep.subr.bf16.mxu0 0
  %1176 = vmatpush1.bf16.msra.mxu0 0
  %1177 = vmatprep.subr.bf16.mxu0 0
  %1178 = vmatpush1.bf16.msra.mxu0 0
  %1179 = vmatprep.subr.bf16.mxu0 %v1160
  %1180 = vmatpush1.bf16.msra.mxu0 %v1157
  %1181 = vmatprep.subr.bf16.mxu0 0
  %1182 = vmatpush2.bf16.msra.mxu0 0
  %1183 = vmatprep.subr.bf16.mxu0 0
  %1184 = vmatpush2.bf16.msra.mxu0 0
  %1185 = vmatprep.subr.bf16.mxu0 0
  %1186 = vmatpush2.bf16.msra.mxu0 0
  %1187 = vmatprep.subr.bf16.mxu0 0
  %1188 = vmatpush2.bf16.msra.mxu0 0
  %1189 = vmatprep.subr.bf16.mxu0 0
  %1190 = vmatpush2.bf16.msra.mxu0 0
  %1191 = vmatprep.subr.bf16.mxu0 0
  %1192 = vmatpush2.bf16.msra.mxu0 0
  %1193 = vmatprep.subr.bf16.mxu0 0
  %1194 = vmatpush2.bf16.msra.mxu0 0
  %1195 = vmatprep.subr.bf16.mxu0 0
  %1196 = vmatpush2.bf16.msra.mxu0 0
  %1197 = vmatprep.mubr.bf16.mxu0 0
  %1198 = vmatmul.mubr.bf16.gmra.mxu0 %v170
  %v1199 = vpop.f32.mrf.mxu0
  %v1200 = vadd.f32 %v1110, %v1199
  %v1201 = vpop.f32.mrf.mxu0
  %v1202 = vadd.f32 %v1112, %v1201
  %v1203 = vpop.f32.mrf.mxu0
  %v1204 = vpop.f32.mrf.mxu0
  %1205 = vdwg.mxu0
  %1206 = vmatprep.subr.bf16.mxu0 0
  %1207 = vmatpush1.bf16.msra.mxu0 0
  %1208 = vmatprep.subr.bf16.mxu0 0
  %1209 = vmatpush1.bf16.msra.mxu0 0
  %1210 = vmatprep.subr.bf16.mxu0 0
  %1211 = vmatpush1.bf16.msra.mxu0 0
  %1212 = vmatprep.subr.bf16.mxu0 0
  %1213 = vmatpush1.bf16.msra.mxu0 0
  %1214 = vmatprep.subr.bf16.mxu0 0
  %1215 = vmatpush1.bf16.msra.mxu0 0
  %1216 = vmatprep.subr.bf16.mxu0 0
  %1217 = vmatpush1.bf16.msra.mxu0 0
  %1218 = vmatprep.subr.bf16.mxu0 0
  %1219 = vmatpush1.bf16.msra.mxu0 0
  %1220 = vmatprep.subr.bf16.mxu0 0
  %1221 = vmatpush1.bf16.msra.mxu0 %v1163
  %1222 = vmatprep.subr.bf16.mxu0 0
  %1223 = vmatpush2.bf16.msra.mxu0 0
  %1224 = vmatprep.subr.bf16.mxu0 0
  %1225 = vmatpush2.bf16.msra.mxu0 0
  %1226 = vmatprep.subr.bf16.mxu0 0
  %1227 = vmatpush2.bf16.msra.mxu0 0
  %1228 = vmatprep.subr.bf16.mxu0 0
  %1229 = vmatpush2.bf16.msra.mxu0 0
  %1230 = vmatprep.subr.bf16.mxu0 0
  %1231 = vmatpush2.bf16.msra.mxu0 0
  %1232 = vmatprep.subr.bf16.mxu0 0
  %1233 = vmatpush2.bf16.msra.mxu0 0
  %1234 = vmatprep.subr.bf16.mxu0 0
  %1235 = vmatpush2.bf16.msra.mxu0 0
  %1236 = vmatprep.subr.bf16.mxu0 0
  %1237 = vmatpush2.bf16.msra.mxu0 0
  %1238 = vmatprep.mubr.bf16.mxu0 0
  %1239 = vmatmul.mubr.bf16.gmra.mxu0 %v170
  %v1240 = vpop.f32.mrf.mxu0
  %v1241 = vadd.f32 %v1151, %v1240
  %v1242 = vpop.f32.mrf.mxu0
  %v1243 = vpop.f32.mrf.mxu0
  %v1244 = vpop.f32.mrf.mxu0
  %1245 = vdwg.mxu0
  %1246 = vrot.lane.b32.xlu0 %v1049, 126
  %v1247 = vpop.permute.xlu0 %1246
  %1248 = vrot.lane.b32.xlu0 %v1057, 126
  %v1249 = vpop.permute.xlu0 %1248
  %1250 = vrot.lane.b32.xlu0 %v1056, 126
  %v1251 = vpop.permute.xlu0 %1250
  %v1252 = vsel %vm274, %v1247, %v1249
  %v1253 = vsel %vm274, %v1249, %v1251
  %v1255 = vsel %vm78, %v1252, 0
  %v1258 = vsel %vm78, %v1253, 0
  %v1261 = vsel %vm78, %v1251, 0
  %1263 = vmatprep.subr.bf16.mxu0 0
  %1264 = vmatpush1.bf16.msra.mxu0 0
  %1265 = vmatprep.subr.bf16.mxu0 0
  %1266 = vmatpush1.bf16.msra.mxu0 0
  %1267 = vmatprep.subr.bf16.mxu0 0
  %1268 = vmatpush1.bf16.msra.mxu0 0
  %1269 = vmatprep.subr.bf16.mxu0 0
  %1270 = vmatpush1.bf16.msra.mxu0 0
  %1271 = vmatprep.subr.bf16.mxu0 0
  %1272 = vmatpush1.bf16.msra.mxu0 0
  %1273 = vmatprep.subr.bf16.mxu0 0
  %1274 = vmatpush1.bf16.msra.mxu0 0
  %1275 = vmatprep.subr.bf16.mxu0 0
  %1276 = vmatpush1.bf16.msra.mxu0 0
  %1277 = vmatprep.subr.bf16.mxu0 %v1258
  %1278 = vmatpush1.bf16.msra.mxu0 %v1255
  %1279 = vmatprep.subr.bf16.mxu0 0
  %1280 = vmatpush2.bf16.msra.mxu0 0
  %1281 = vmatprep.subr.bf16.mxu0 0
  %1282 = vmatpush2.bf16.msra.mxu0 0
  %1283 = vmatprep.subr.bf16.mxu0 0
  %1284 = vmatpush2.bf16.msra.mxu0 0
  %1285 = vmatprep.subr.bf16.mxu0 0
  %1286 = vmatpush2.bf16.msra.mxu0 0
  %1287 = vmatprep.subr.bf16.mxu0 0
  %1288 = vmatpush2.bf16.msra.mxu0 0
  %1289 = vmatprep.subr.bf16.mxu0 0
  %1290 = vmatpush2.bf16.msra.mxu0 0
  %1291 = vmatprep.subr.bf16.mxu0 0
  %1292 = vmatpush2.bf16.msra.mxu0 0
  %1293 = vmatprep.subr.bf16.mxu0 0
  %1294 = vmatpush2.bf16.msra.mxu0 0
  %1295 = vmatprep.mubr.bf16.mxu0 0
  %1296 = vmatmul.mubr.bf16.gmra.mxu0 %v278
  %v1297 = vpop.f32.mrf.mxu0
  %v1298 = vadd.f32 0.0, %v1297
  %v1299 = vpop.f32.mrf.mxu0
  %v1300 = vadd.f32 0.0, %v1299
  %v1301 = vpop.f32.mrf.mxu0
  %v1302 = vpop.f32.mrf.mxu0
  %1303 = vdwg.mxu0
  %1304 = vmatprep.subr.bf16.mxu0 0
  %1305 = vmatpush1.bf16.msra.mxu0 0
  %1306 = vmatprep.subr.bf16.mxu0 0
  %1307 = vmatpush1.bf16.msra.mxu0 0
  %1308 = vmatprep.subr.bf16.mxu0 0
  %1309 = vmatpush1.bf16.msra.mxu0 0
  %1310 = vmatprep.subr.bf16.mxu0 0
  %1311 = vmatpush1.bf16.msra.mxu0 0
  %1312 = vmatprep.subr.bf16.mxu0 0
  %1313 = vmatpush1.bf16.msra.mxu0 0
  %1314 = vmatprep.subr.bf16.mxu0 0
  %1315 = vmatpush1.bf16.msra.mxu0 0
  %1316 = vmatprep.subr.bf16.mxu0 0
  %1317 = vmatpush1.bf16.msra.mxu0 0
  %1318 = vmatprep.subr.bf16.mxu0 0
  %1319 = vmatpush1.bf16.msra.mxu0 %v1261
  %1320 = vmatprep.subr.bf16.mxu0 0
  %1321 = vmatpush2.bf16.msra.mxu0 0
  %1322 = vmatprep.subr.bf16.mxu0 0
  %1323 = vmatpush2.bf16.msra.mxu0 0
  %1324 = vmatprep.subr.bf16.mxu0 0
  %1325 = vmatpush2.bf16.msra.mxu0 0
  %1326 = vmatprep.subr.bf16.mxu0 0
  %1327 = vmatpush2.bf16.msra.mxu0 0
  %1328 = vmatprep.subr.bf16.mxu0 0
  %1329 = vmatpush2.bf16.msra.mxu0 0
  %1330 = vmatprep.subr.bf16.mxu0 0
  %1331 = vmatpush2.bf16.msra.mxu0 0
  %1332 = vmatprep.subr.bf16.mxu0 0
  %1333 = vmatpush2.bf16.msra.mxu0 0
  %1334 = vmatprep.subr.bf16.mxu0 0
  %1335 = vmatpush2.bf16.msra.mxu0 0
  %1336 = vmatprep.mubr.bf16.mxu0 0
  %1337 = vmatmul.mubr.bf16.gmra.mxu0 %v278
  %v1338 = vpop.f32.mrf.mxu0
  %v1339 = vadd.f32 0.0, %v1338
  %v1340 = vpop.f32.mrf.mxu0
  %v1341 = vpop.f32.mrf.mxu0
  %v1342 = vpop.f32.mrf.mxu0
  %1343 = vdwg.mxu0
  %v1344 = vadd.f32 %v1200, %v1298
  %v1345 = vadd.f32 %v1202, %v1300
  %v1346 = vadd.f32 %v1241, %v1339
  %1347 = vrot.lane.b32.xlu0 %v1049, 110
  %v1348 = vpop.permute.xlu0 %1347
  %1349 = vrot.lane.b32.xlu0 %v1057, 110
  %v1350 = vpop.permute.xlu0 %1349
  %1351 = vrot.lane.b32.xlu0 %v1056, 110
  %v1352 = vpop.permute.xlu0 %1351
  %v1353 = vsel %vm385, %v1348, %v1350
  %v1354 = vsel %vm385, %v1350, %v1352
  %v1356 = vsel %vm78, %v1353, 0
  %v1359 = vsel %vm78, %v1354, 0
  %v1362 = vsel %vm78, %v1352, 0
  %1364 = vmatprep.subr.bf16.mxu0 0
  %1365 = vmatpush1.bf16.msra.mxu0 0
  %1366 = vmatprep.subr.bf16.mxu0 0
  %1367 = vmatpush1.bf16.msra.mxu0 0
  %1368 = vmatprep.subr.bf16.mxu0 0
  %1369 = vmatpush1.bf16.msra.mxu0 0
  %1370 = vmatprep.subr.bf16.mxu0 0
  %1371 = vmatpush1.bf16.msra.mxu0 0
  %1372 = vmatprep.subr.bf16.mxu0 0
  %1373 = vmatpush1.bf16.msra.mxu0 0
  %1374 = vmatprep.subr.bf16.mxu0 0
  %1375 = vmatpush1.bf16.msra.mxu0 0
  %1376 = vmatprep.subr.bf16.mxu0 0
  %1377 = vmatpush1.bf16.msra.mxu0 0
  %1378 = vmatprep.subr.bf16.mxu0 %v1359
  %1379 = vmatpush1.bf16.msra.mxu0 %v1356
  %1380 = vmatprep.subr.bf16.mxu0 0
  %1381 = vmatpush2.bf16.msra.mxu0 0
  %1382 = vmatprep.subr.bf16.mxu0 0
  %1383 = vmatpush2.bf16.msra.mxu0 0
  %1384 = vmatprep.subr.bf16.mxu0 0
  %1385 = vmatpush2.bf16.msra.mxu0 0
  %1386 = vmatprep.subr.bf16.mxu0 0
  %1387 = vmatpush2.bf16.msra.mxu0 0
  %1388 = vmatprep.subr.bf16.mxu0 0
  %1389 = vmatpush2.bf16.msra.mxu0 0
  %1390 = vmatprep.subr.bf16.mxu0 0
  %1391 = vmatpush2.bf16.msra.mxu0 0
  %1392 = vmatprep.subr.bf16.mxu0 0
  %1393 = vmatpush2.bf16.msra.mxu0 0
  %1394 = vmatprep.subr.bf16.mxu0 0
  %1395 = vmatpush2.bf16.msra.mxu0 0
  %1396 = vmatprep.mubr.bf16.mxu0 0
  %1397 = vmatmul.mubr.bf16.gmra.mxu0 %v389
  %v1398 = vpop.f32.mrf.mxu0
  %v1399 = vadd.f32 0.0, %v1398
  %v1400 = vpop.f32.mrf.mxu0
  %v1401 = vadd.f32 0.0, %v1400
  %v1402 = vpop.f32.mrf.mxu0
  %v1403 = vpop.f32.mrf.mxu0
  %1404 = vdwg.mxu0
  %1405 = vmatprep.subr.bf16.mxu0 0
  %1406 = vmatpush1.bf16.msra.mxu0 0
  %1407 = vmatprep.subr.bf16.mxu0 0
  %1408 = vmatpush1.bf16.msra.mxu0 0
  %1409 = vmatprep.subr.bf16.mxu0 0
  %1410 = vmatpush1.bf16.msra.mxu0 0
  %1411 = vmatprep.subr.bf16.mxu0 0
  %1412 = vmatpush1.bf16.msra.mxu0 0
  %1413 = vmatprep.subr.bf16.mxu0 0
  %1414 = vmatpush1.bf16.msra.mxu0 0
  %1415 = vmatprep.subr.bf16.mxu0 0
  %1416 = vmatpush1.bf16.msra.mxu0 0
  %1417 = vmatprep.subr.bf16.mxu0 0
  %1418 = vmatpush1.bf16.msra.mxu0 0
  %1419 = vmatprep.subr.bf16.mxu0 0
  %1420 = vmatpush1.bf16.msra.mxu0 %v1362
  %1421 = vmatprep.subr.bf16.mxu0 0
  %1422 = vmatpush2.bf16.msra.mxu0 0
  %1423 = vmatprep.subr.bf16.mxu0 0
  %1424 = vmatpush2.bf16.msra.mxu0 0
  %1425 = vmatprep.subr.bf16.mxu0 0
  %1426 = vmatpush2.bf16.msra.mxu0 0
  %1427 = vmatprep.subr.bf16.mxu0 0
  %1428 = vmatpush2.bf16.msra.mxu0 0
  %1429 = vmatprep.subr.bf16.mxu0 0
  %1430 = vmatpush2.bf16.msra.mxu0 0
  %1431 = vmatprep.subr.bf16.mxu0 0
  %1432 = vmatpush2.bf16.msra.mxu0 0
  %1433 = vmatprep.subr.bf16.mxu0 0
  %1434 = vmatpush2.bf16.msra.mxu0 0
  %1435 = vmatprep.subr.bf16.mxu0 0
  %1436 = vmatpush2.bf16.msra.mxu0 0
  %1437 = vmatprep.mubr.bf16.mxu0 0
  %1438 = vmatmul.mubr.bf16.gmra.mxu0 %v389
  %v1439 = vpop.f32.mrf.mxu0
  %v1440 = vadd.f32 0.0, %v1439
  %v1441 = vpop.f32.mrf.mxu0
  %v1442 = vpop.f32.mrf.mxu0
  %v1443 = vpop.f32.mrf.mxu0
  %1444 = vdwg.mxu0
  %v1445 = vadd.f32 %v1344, %v1399
  %v1446 = vadd.f32 %v1345, %v1401
  %v1447 = vadd.f32 %v1346, %v1440
  %1448 = vrot.lane.b32.xlu0 %v1049, 109
  %v1449 = vpop.permute.xlu0 %1448
  %1450 = vrot.lane.b32.xlu0 %v1057, 109
  %v1451 = vpop.permute.xlu0 %1450
  %1452 = vrot.lane.b32.xlu0 %v1056, 109
  %v1453 = vpop.permute.xlu0 %1452
  %v1454 = vsel %vm496, %v1449, %v1451
  %v1455 = vsel %vm496, %v1451, %v1453
  %v1457 = vsel %vm78, %v1454, 0
  %v1460 = vsel %vm78, %v1455, 0
  %v1463 = vsel %vm78, %v1453, 0
  %1465 = vmatprep.subr.bf16.mxu0 0
  %1466 = vmatpush1.bf16.msra.mxu0 0
  %1467 = vmatprep.subr.bf16.mxu0 0
  %1468 = vmatpush1.bf16.msra.mxu0 0
  %1469 = vmatprep.subr.bf16.mxu0 0
  %1470 = vmatpush1.bf16.msra.mxu0 0
  %1471 = vmatprep.subr.bf16.mxu0 0
  %1472 = vmatpush1.bf16.msra.mxu0 0
  %1473 = vmatprep.subr.bf16.mxu0 0
  %1474 = vmatpush1.bf16.msra.mxu0 0
  %1475 = vmatprep.subr.bf16.mxu0 0
  %1476 = vmatpush1.bf16.msra.mxu0 0
  %1477 = vmatprep.subr.bf16.mxu0 0
  %1478 = vmatpush1.bf16.msra.mxu0 0
  %1479 = vmatprep.subr.bf16.mxu0 %v1460
  %1480 = vmatpush1.bf16.msra.mxu0 %v1457
  %1481 = vmatprep.subr.bf16.mxu0 0
  %1482 = vmatpush2.bf16.msra.mxu0 0
  %1483 = vmatprep.subr.bf16.mxu0 0
  %1484 = vmatpush2.bf16.msra.mxu0 0
  %1485 = vmatprep.subr.bf16.mxu0 0
  %1486 = vmatpush2.bf16.msra.mxu0 0
  %1487 = vmatprep.subr.bf16.mxu0 0
  %1488 = vmatpush2.bf16.msra.mxu0 0
  %1489 = vmatprep.subr.bf16.mxu0 0
  %1490 = vmatpush2.bf16.msra.mxu0 0
  %1491 = vmatprep.subr.bf16.mxu0 0
  %1492 = vmatpush2.bf16.msra.mxu0 0
  %1493 = vmatprep.subr.bf16.mxu0 0
  %1494 = vmatpush2.bf16.msra.mxu0 0
  %1495 = vmatprep.subr.bf16.mxu0 0
  %1496 = vmatpush2.bf16.msra.mxu0 0
  %1497 = vmatprep.mubr.bf16.mxu0 0
  %1498 = vmatmul.mubr.bf16.gmra.mxu0 %v500
  %v1499 = vpop.f32.mrf.mxu0
  %v1500 = vadd.f32 0.0, %v1499
  %v1501 = vpop.f32.mrf.mxu0
  %v1502 = vadd.f32 0.0, %v1501
  %v1503 = vpop.f32.mrf.mxu0
  %v1504 = vpop.f32.mrf.mxu0
  %1505 = vdwg.mxu0
  %1506 = vmatprep.subr.bf16.mxu0 0
  %1507 = vmatpush1.bf16.msra.mxu0 0
  %1508 = vmatprep.subr.bf16.mxu0 0
  %1509 = vmatpush1.bf16.msra.mxu0 0
  %1510 = vmatprep.subr.bf16.mxu0 0
  %1511 = vmatpush1.bf16.msra.mxu0 0
  %1512 = vmatprep.subr.bf16.mxu0 0
  %1513 = vmatpush1.bf16.msra.mxu0 0
  %1514 = vmatprep.subr.bf16.mxu0 0
  %1515 = vmatpush1.bf16.msra.mxu0 0
  %1516 = vmatprep.subr.bf16.mxu0 0
  %1517 = vmatpush1.bf16.msra.mxu0 0
  %1518 = vmatprep.subr.bf16.mxu0 0
  %1519 = vmatpush1.bf16.msra.mxu0 0
  %1520 = vmatprep.subr.bf16.mxu0 0
  %1521 = vmatpush1.bf16.msra.mxu0 %v1463
  %1522 = vmatprep.subr.bf16.mxu0 0
  %1523 = vmatpush2.bf16.msra.mxu0 0
  %1524 = vmatprep.subr.bf16.mxu0 0
  %1525 = vmatpush2.bf16.msra.mxu0 0
  %1526 = vmatprep.subr.bf16.mxu0 0
  %1527 = vmatpush2.bf16.msra.mxu0 0
  %1528 = vmatprep.subr.bf16.mxu0 0
  %1529 = vmatpush2.bf16.msra.mxu0 0
  %1530 = vmatprep.subr.bf16.mxu0 0
  %1531 = vmatpush2.bf16.msra.mxu0 0
  %1532 = vmatprep.subr.bf16.mxu0 0
  %1533 = vmatpush2.bf16.msra.mxu0 0
  %1534 = vmatprep.subr.bf16.mxu0 0
  %1535 = vmatpush2.bf16.msra.mxu0 0
  %1536 = vmatprep.subr.bf16.mxu0 0
  %1537 = vmatpush2.bf16.msra.mxu0 0
  %1538 = vmatprep.mubr.bf16.mxu0 0
  %1539 = vmatmul.mubr.bf16.gmra.mxu0 %v500
  %v1540 = vpop.f32.mrf.mxu0
  %v1541 = vadd.f32 0.0, %v1540
  %v1542 = vpop.f32.mrf.mxu0
  %v1543 = vpop.f32.mrf.mxu0
  %v1544 = vpop.f32.mrf.mxu0
  %1545 = vdwg.mxu0
  %v1546 = vadd.f32 %v1445, %v1500
  %v1547 = vadd.f32 %v1446, %v1502
  %v1548 = vadd.f32 %v1447, %v1541
  %1549 = vrot.lane.b32.xlu0 %v1049, 108
  %v1550 = vpop.permute.xlu0 %1549
  %1551 = vrot.lane.b32.xlu0 %v1057, 108
  %v1552 = vpop.permute.xlu0 %1551
  %1553 = vrot.lane.b32.xlu0 %v1056, 108
  %v1554 = vpop.permute.xlu0 %1553
  %v1555 = vsel %vm607, %v1550, %v1552
  %v1556 = vsel %vm607, %v1552, %v1554
  %v1558 = vsel %vm78, %v1555, 0
  %v1561 = vsel %vm78, %v1556, 0
  %v1564 = vsel %vm78, %v1554, 0
  %1566 = vmatprep.subr.bf16.mxu0 0
  %1567 = vmatpush1.bf16.msra.mxu0 0
  %1568 = vmatprep.subr.bf16.mxu0 0
  %1569 = vmatpush1.bf16.msra.mxu0 0
  %1570 = vmatprep.subr.bf16.mxu0 0
  %1571 = vmatpush1.bf16.msra.mxu0 0
  %1572 = vmatprep.subr.bf16.mxu0 0
  %1573 = vmatpush1.bf16.msra.mxu0 0
  %1574 = vmatprep.subr.bf16.mxu0 0
  %1575 = vmatpush1.bf16.msra.mxu0 0
  %1576 = vmatprep.subr.bf16.mxu0 0
  %1577 = vmatpush1.bf16.msra.mxu0 0
  %1578 = vmatprep.subr.bf16.mxu0 0
  %1579 = vmatpush1.bf16.msra.mxu0 0
  %1580 = vmatprep.subr.bf16.mxu0 %v1561
  %1581 = vmatpush1.bf16.msra.mxu0 %v1558
  %1582 = vmatprep.subr.bf16.mxu0 0
  %1583 = vmatpush2.bf16.msra.mxu0 0
  %1584 = vmatprep.subr.bf16.mxu0 0
  %1585 = vmatpush2.bf16.msra.mxu0 0
  %1586 = vmatprep.subr.bf16.mxu0 0
  %1587 = vmatpush2.bf16.msra.mxu0 0
  %1588 = vmatprep.subr.bf16.mxu0 0
  %1589 = vmatpush2.bf16.msra.mxu0 0
  %1590 = vmatprep.subr.bf16.mxu0 0
  %1591 = vmatpush2.bf16.msra.mxu0 0
  %1592 = vmatprep.subr.bf16.mxu0 0
  %1593 = vmatpush2.bf16.msra.mxu0 0
  %1594 = vmatprep.subr.bf16.mxu0 0
  %1595 = vmatpush2.bf16.msra.mxu0 0
  %1596 = vmatprep.subr.bf16.mxu0 0
  %1597 = vmatpush2.bf16.msra.mxu0 0
  %1598 = vmatprep.mubr.bf16.mxu0 0
  %1599 = vmatmul.mubr.bf16.gmra.mxu0 %v611
  %v1600 = vpop.f32.mrf.mxu0
  %v1601 = vadd.f32 0.0, %v1600
  %v1602 = vpop.f32.mrf.mxu0
  %v1603 = vadd.f32 0.0, %v1602
  %v1604 = vpop.f32.mrf.mxu0
  %v1605 = vpop.f32.mrf.mxu0
  %1606 = vdwg.mxu0
  %1607 = vmatprep.subr.bf16.mxu0 0
  %1608 = vmatpush1.bf16.msra.mxu0 0
  %1609 = vmatprep.subr.bf16.mxu0 0
  %1610 = vmatpush1.bf16.msra.mxu0 0
  %1611 = vmatprep.subr.bf16.mxu0 0
  %1612 = vmatpush1.bf16.msra.mxu0 0
  %1613 = vmatprep.subr.bf16.mxu0 0
  %1614 = vmatpush1.bf16.msra.mxu0 0
  %1615 = vmatprep.subr.bf16.mxu0 0
  %1616 = vmatpush1.bf16.msra.mxu0 0
  %1617 = vmatprep.subr.bf16.mxu0 0
  %1618 = vmatpush1.bf16.msra.mxu0 0
  %1619 = vmatprep.subr.bf16.mxu0 0
  %1620 = vmatpush1.bf16.msra.mxu0 0
  %1621 = vmatprep.subr.bf16.mxu0 0
  %1622 = vmatpush1.bf16.msra.mxu0 %v1564
  %1623 = vmatprep.subr.bf16.mxu0 0
  %1624 = vmatpush2.bf16.msra.mxu0 0
  %1625 = vmatprep.subr.bf16.mxu0 0
  %1626 = vmatpush2.bf16.msra.mxu0 0
  %1627 = vmatprep.subr.bf16.mxu0 0
  %1628 = vmatpush2.bf16.msra.mxu0 0
  %1629 = vmatprep.subr.bf16.mxu0 0
  %1630 = vmatpush2.bf16.msra.mxu0 0
  %1631 = vmatprep.subr.bf16.mxu0 0
  %1632 = vmatpush2.bf16.msra.mxu0 0
  %1633 = vmatprep.subr.bf16.mxu0 0
  %1634 = vmatpush2.bf16.msra.mxu0 0
  %1635 = vmatprep.subr.bf16.mxu0 0
  %1636 = vmatpush2.bf16.msra.mxu0 0
  %1637 = vmatprep.subr.bf16.mxu0 0
  %1638 = vmatpush2.bf16.msra.mxu0 0
  %1639 = vmatprep.mubr.bf16.mxu0 0
  %1640 = vmatmul.mubr.bf16.gmra.mxu0 %v611
  %v1641 = vpop.f32.mrf.mxu0
  %v1642 = vadd.f32 0.0, %v1641
  %v1643 = vpop.f32.mrf.mxu0
  %v1644 = vpop.f32.mrf.mxu0
  %v1645 = vpop.f32.mrf.mxu0
  %1646 = vdwg.mxu0
  %v1647 = vadd.f32 %v1546, %v1601
  %v1648 = vadd.f32 %v1547, %v1603
  %v1649 = vadd.f32 %v1548, %v1642
  %1650 = vrot.lane.b32.xlu0 %v1049, 92
  %v1651 = vpop.permute.xlu0 %1650
  %1652 = vrot.lane.b32.xlu0 %v1057, 92
  %v1653 = vpop.permute.xlu0 %1652
  %1654 = vrot.lane.b32.xlu0 %v1056, 92
  %v1655 = vpop.permute.xlu0 %1654
  %v1656 = vsel %vm718, %v1651, %v1653
  %v1657 = vsel %vm718, %v1653, %v1655
  %v1659 = vsel %vm78, %v1656, 0
  %v1662 = vsel %vm78, %v1657, 0
  %v1665 = vsel %vm78, %v1655, 0
  %1667 = vmatprep.subr.bf16.mxu0 0
  %1668 = vmatpush1.bf16.msra.mxu0 0
  %1669 = vmatprep.subr.bf16.mxu0 0
  %1670 = vmatpush1.bf16.msra.mxu0 0
  %1671 = vmatprep.subr.bf16.mxu0 0
  %1672 = vmatpush1.bf16.msra.mxu0 0
  %1673 = vmatprep.subr.bf16.mxu0 0
  %1674 = vmatpush1.bf16.msra.mxu0 0
  %1675 = vmatprep.subr.bf16.mxu0 0
  %1676 = vmatpush1.bf16.msra.mxu0 0
  %1677 = vmatprep.subr.bf16.mxu0 0
  %1678 = vmatpush1.bf16.msra.mxu0 0
  %1679 = vmatprep.subr.bf16.mxu0 0
  %1680 = vmatpush1.bf16.msra.mxu0 0
  %1681 = vmatprep.subr.bf16.mxu0 %v1662
  %1682 = vmatpush1.bf16.msra.mxu0 %v1659
  %1683 = vmatprep.subr.bf16.mxu0 0
  %1684 = vmatpush2.bf16.msra.mxu0 0
  %1685 = vmatprep.subr.bf16.mxu0 0
  %1686 = vmatpush2.bf16.msra.mxu0 0
  %1687 = vmatprep.subr.bf16.mxu0 0
  %1688 = vmatpush2.bf16.msra.mxu0 0
  %1689 = vmatprep.subr.bf16.mxu0 0
  %1690 = vmatpush2.bf16.msra.mxu0 0
  %1691 = vmatprep.subr.bf16.mxu0 0
  %1692 = vmatpush2.bf16.msra.mxu0 0
  %1693 = vmatprep.subr.bf16.mxu0 0
  %1694 = vmatpush2.bf16.msra.mxu0 0
  %1695 = vmatprep.subr.bf16.mxu0 0
  %1696 = vmatpush2.bf16.msra.mxu0 0
  %1697 = vmatprep.subr.bf16.mxu0 0
  %1698 = vmatpush2.bf16.msra.mxu0 0
  %1699 = vmatprep.mubr.bf16.mxu0 0
  %1700 = vmatmul.mubr.bf16.gmra.mxu0 %v722
  %v1701 = vpop.f32.mrf.mxu0
  %v1702 = vadd.f32 0.0, %v1701
  %v1703 = vpop.f32.mrf.mxu0
  %v1704 = vadd.f32 0.0, %v1703
  %v1705 = vpop.f32.mrf.mxu0
  %v1706 = vpop.f32.mrf.mxu0
  %1707 = vdwg.mxu0
  %1708 = vmatprep.subr.bf16.mxu0 0
  %1709 = vmatpush1.bf16.msra.mxu0 0
  %1710 = vmatprep.subr.bf16.mxu0 0
  %1711 = vmatpush1.bf16.msra.mxu0 0
  %1712 = vmatprep.subr.bf16.mxu0 0
  %1713 = vmatpush1.bf16.msra.mxu0 0
  %1714 = vmatprep.subr.bf16.mxu0 0
  %1715 = vmatpush1.bf16.msra.mxu0 0
  %1716 = vmatprep.subr.bf16.mxu0 0
  %1717 = vmatpush1.bf16.msra.mxu0 0
  %1718 = vmatprep.subr.bf16.mxu0 0
  %1719 = vmatpush1.bf16.msra.mxu0 0
  %1720 = vmatprep.subr.bf16.mxu0 0
  %1721 = vmatpush1.bf16.msra.mxu0 0
  %1722 = vmatprep.subr.bf16.mxu0 0
  %1723 = vmatpush1.bf16.msra.mxu0 %v1665
  %1724 = vmatprep.subr.bf16.mxu0 0
  %1725 = vmatpush2.bf16.msra.mxu0 0
  %1726 = vmatprep.subr.bf16.mxu0 0
  %1727 = vmatpush2.bf16.msra.mxu0 0
  %1728 = vmatprep.subr.bf16.mxu0 0
  %1729 = vmatpush2.bf16.msra.mxu0 0
  %1730 = vmatprep.subr.bf16.mxu0 0
  %1731 = vmatpush2.bf16.msra.mxu0 0
  %1732 = vmatprep.subr.bf16.mxu0 0
  %1733 = vmatpush2.bf16.msra.mxu0 0
  %1734 = vmatprep.subr.bf16.mxu0 0
  %1735 = vmatpush2.bf16.msra.mxu0 0
  %1736 = vmatprep.subr.bf16.mxu0 0
  %1737 = vmatpush2.bf16.msra.mxu0 0
  %1738 = vmatprep.subr.bf16.mxu0 0
  %1739 = vmatpush2.bf16.msra.mxu0 0
  %1740 = vmatprep.mubr.bf16.mxu0 0
  %1741 = vmatmul.mubr.bf16.gmra.mxu0 %v722
  %v1742 = vpop.f32.mrf.mxu0
  %v1743 = vadd.f32 0.0, %v1742
  %v1744 = vpop.f32.mrf.mxu0
  %v1745 = vpop.f32.mrf.mxu0
  %v1746 = vpop.f32.mrf.mxu0
  %1747 = vdwg.mxu0
  %v1748 = vadd.f32 %v1647, %v1702
  %v1749 = vadd.f32 %v1648, %v1704
  %v1750 = vadd.f32 %v1649, %v1743
  %1751 = vrot.lane.b32.xlu0 %v1049, 91
  %v1752 = vpop.permute.xlu0 %1751
  %1753 = vrot.lane.b32.xlu0 %v1057, 91
  %v1754 = vpop.permute.xlu0 %1753
  %1755 = vrot.lane.b32.xlu0 %v1056, 91
  %v1756 = vpop.permute.xlu0 %1755
  %v1757 = vsel %vm829, %v1752, %v1754
  %v1758 = vsel %vm829, %v1754, %v1756
  %v1760 = vsel %vm78, %v1757, 0
  %v1763 = vsel %vm78, %v1758, 0
  %v1766 = vsel %vm78, %v1756, 0
  %1768 = vmatprep.subr.bf16.mxu0 0
  %1769 = vmatpush1.bf16.msra.mxu0 0
  %1770 = vmatprep.subr.bf16.mxu0 0
  %1771 = vmatpush1.bf16.msra.mxu0 0
  %1772 = vmatprep.subr.bf16.mxu0 0
  %1773 = vmatpush1.bf16.msra.mxu0 0
  %1774 = vmatprep.subr.bf16.mxu0 0
  %1775 = vmatpush1.bf16.msra.mxu0 0
  %1776 = vmatprep.subr.bf16.mxu0 0
  %1777 = vmatpush1.bf16.msra.mxu0 0
  %1778 = vmatprep.subr.bf16.mxu0 0
  %1779 = vmatpush1.bf16.msra.mxu0 0
  %1780 = vmatprep.subr.bf16.mxu0 0
  %1781 = vmatpush1.bf16.msra.mxu0 0
  %1782 = vmatprep.subr.bf16.mxu0 %v1763
  %1783 = vmatpush1.bf16.msra.mxu0 %v1760
  %1784 = vmatprep.subr.bf16.mxu0 0
  %1785 = vmatpush2.bf16.msra.mxu0 0
  %1786 = vmatprep.subr.bf16.mxu0 0
  %1787 = vmatpush2.bf16.msra.mxu0 0
  %1788 = vmatprep.subr.bf16.mxu0 0
  %1789 = vmatpush2.bf16.msra.mxu0 0
  %1790 = vmatprep.subr.bf16.mxu0 0
  %1791 = vmatpush2.bf16.msra.mxu0 0
  %1792 = vmatprep.subr.bf16.mxu0 0
  %1793 = vmatpush2.bf16.msra.mxu0 0
  %1794 = vmatprep.subr.bf16.mxu0 0
  %1795 = vmatpush2.bf16.msra.mxu0 0
  %1796 = vmatprep.subr.bf16.mxu0 0
  %1797 = vmatpush2.bf16.msra.mxu0 0
  %1798 = vmatprep.subr.bf16.mxu0 0
  %1799 = vmatpush2.bf16.msra.mxu0 0
  %1800 = vmatprep.mubr.bf16.mxu0 0
  %1801 = vmatmul.mubr.bf16.gmra.mxu0 %v833
  %v1802 = vpop.f32.mrf.mxu0
  %v1803 = vadd.f32 0.0, %v1802
  %v1804 = vpop.f32.mrf.mxu0
  %v1805 = vadd.f32 0.0, %v1804
  %v1806 = vpop.f32.mrf.mxu0
  %v1807 = vpop.f32.mrf.mxu0
  %1808 = vdwg.mxu0
  %1809 = vmatprep.subr.bf16.mxu0 0
  %1810 = vmatpush1.bf16.msra.mxu0 0
  %1811 = vmatprep.subr.bf16.mxu0 0
  %1812 = vmatpush1.bf16.msra.mxu0 0
  %1813 = vmatprep.subr.bf16.mxu0 0
  %1814 = vmatpush1.bf16.msra.mxu0 0
  %1815 = vmatprep.subr.bf16.mxu0 0
  %1816 = vmatpush1.bf16.msra.mxu0 0
  %1817 = vmatprep.subr.bf16.mxu0 0
  %1818 = vmatpush1.bf16.msra.mxu0 0
  %1819 = vmatprep.subr.bf16.mxu0 0
  %1820 = vmatpush1.bf16.msra.mxu0 0
  %1821 = vmatprep.subr.bf16.mxu0 0
  %1822 = vmatpush1.bf16.msra.mxu0 0
  %1823 = vmatprep.subr.bf16.mxu0 0
  %1824 = vmatpush1.bf16.msra.mxu0 %v1766
  %1825 = vmatprep.subr.bf16.mxu0 0
  %1826 = vmatpush2.bf16.msra.mxu0 0
  %1827 = vmatprep.subr.bf16.mxu0 0
  %1828 = vmatpush2.bf16.msra.mxu0 0
  %1829 = vmatprep.subr.bf16.mxu0 0
  %1830 = vmatpush2.bf16.msra.mxu0 0
  %1831 = vmatprep.subr.bf16.mxu0 0
  %1832 = vmatpush2.bf16.msra.mxu0 0
  %1833 = vmatprep.subr.bf16.mxu0 0
  %1834 = vmatpush2.bf16.msra.mxu0 0
  %1835 = vmatprep.subr.bf16.mxu0 0
  %1836 = vmatpush2.bf16.msra.mxu0 0
  %1837 = vmatprep.subr.bf16.mxu0 0
  %1838 = vmatpush2.bf16.msra.mxu0 0
  %1839 = vmatprep.subr.bf16.mxu0 0
  %1840 = vmatpush2.bf16.msra.mxu0 0
  %1841 = vmatprep.mubr.bf16.mxu0 0
  %1842 = vmatmul.mubr.bf16.gmra.mxu0 %v833
  %v1843 = vpop.f32.mrf.mxu0
  %v1844 = vadd.f32 0.0, %v1843
  %v1845 = vpop.f32.mrf.mxu0
  %v1846 = vpop.f32.mrf.mxu0
  %v1847 = vpop.f32.mrf.mxu0
  %1848 = vdwg.mxu0
  %v1849 = vadd.f32 %v1748, %v1803
  %v1850 = vadd.f32 %v1749, %v1805
  %v1851 = vadd.f32 %v1750, %v1844
  %1852 = vrot.lane.b32.xlu0 %v1049, 90
  %v1853 = vpop.permute.xlu0 %1852
  %1854 = vrot.lane.b32.xlu0 %v1057, 90
  %v1855 = vpop.permute.xlu0 %1854
  %1856 = vrot.lane.b32.xlu0 %v1056, 90
  %v1857 = vpop.permute.xlu0 %1856
  %v1858 = vsel %vm940, %v1853, %v1855
  %v1859 = vsel %vm940, %v1855, %v1857
  %v1861 = vsel %vm78, %v1858, 0
  %v1864 = vsel %vm78, %v1859, 0
  %v1867 = vsel %vm78, %v1857, 0
  %1869 = vmatprep.subr.bf16.mxu0 0
  %1870 = vmatpush1.bf16.msra.mxu0 0
  %1871 = vmatprep.subr.bf16.mxu0 0
  %1872 = vmatpush1.bf16.msra.mxu0 0
  %1873 = vmatprep.subr.bf16.mxu0 0
  %1874 = vmatpush1.bf16.msra.mxu0 0
  %1875 = vmatprep.subr.bf16.mxu0 0
  %1876 = vmatpush1.bf16.msra.mxu0 0
  %1877 = vmatprep.subr.bf16.mxu0 0
  %1878 = vmatpush1.bf16.msra.mxu0 0
  %1879 = vmatprep.subr.bf16.mxu0 0
  %1880 = vmatpush1.bf16.msra.mxu0 0
  %1881 = vmatprep.subr.bf16.mxu0 0
  %1882 = vmatpush1.bf16.msra.mxu0 0
  %1883 = vmatprep.subr.bf16.mxu0 %v1864
  %1884 = vmatpush1.bf16.msra.mxu0 %v1861
  %1885 = vmatprep.subr.bf16.mxu0 0
  %1886 = vmatpush2.bf16.msra.mxu0 0
  %1887 = vmatprep.subr.bf16.mxu0 0
  %1888 = vmatpush2.bf16.msra.mxu0 0
  %1889 = vmatprep.subr.bf16.mxu0 0
  %1890 = vmatpush2.bf16.msra.mxu0 0
  %1891 = vmatprep.subr.bf16.mxu0 0
  %1892 = vmatpush2.bf16.msra.mxu0 0
  %1893 = vmatprep.subr.bf16.mxu0 0
  %1894 = vmatpush2.bf16.msra.mxu0 0
  %1895 = vmatprep.subr.bf16.mxu0 0
  %1896 = vmatpush2.bf16.msra.mxu0 0
  %1897 = vmatprep.subr.bf16.mxu0 0
  %1898 = vmatpush2.bf16.msra.mxu0 0
  %1899 = vmatprep.subr.bf16.mxu0 0
  %1900 = vmatpush2.bf16.msra.mxu0 0
  %1901 = vmatprep.mubr.bf16.mxu0 0
  %1902 = vmatmul.mubr.bf16.gmra.mxu0 %v944
  %v1903 = vpop.f32.mrf.mxu0
  %v1904 = vadd.f32 0.0, %v1903
  %v1905 = vpop.f32.mrf.mxu0
  %v1906 = vadd.f32 0.0, %v1905
  %v1907 = vpop.f32.mrf.mxu0
  %v1908 = vpop.f32.mrf.mxu0
  %1909 = vdwg.mxu0
  %1910 = vmatprep.subr.bf16.mxu0 0
  %1911 = vmatpush1.bf16.msra.mxu0 0
  %1912 = vmatprep.subr.bf16.mxu0 0
  %1913 = vmatpush1.bf16.msra.mxu0 0
  %1914 = vmatprep.subr.bf16.mxu0 0
  %1915 = vmatpush1.bf16.msra.mxu0 0
  %1916 = vmatprep.subr.bf16.mxu0 0
  %1917 = vmatpush1.bf16.msra.mxu0 0
  %1918 = vmatprep.subr.bf16.mxu0 0
  %1919 = vmatpush1.bf16.msra.mxu0 0
  %1920 = vmatprep.subr.bf16.mxu0 0
  %1921 = vmatpush1.bf16.msra.mxu0 0
  %1922 = vmatprep.subr.bf16.mxu0 0
  %1923 = vmatpush1.bf16.msra.mxu0 0
  %1924 = vmatprep.subr.bf16.mxu0 0
  %1925 = vmatpush1.bf16.msra.mxu0 %v1867
  %1926 = vmatprep.subr.bf16.mxu0 0
  %1927 = vmatpush2.bf16.msra.mxu0 0
  %1928 = vmatprep.subr.bf16.mxu0 0
  %1929 = vmatpush2.bf16.msra.mxu0 0
  %1930 = vmatprep.subr.bf16.mxu0 0
  %1931 = vmatpush2.bf16.msra.mxu0 0
  %1932 = vmatprep.subr.bf16.mxu0 0
  %1933 = vmatpush2.bf16.msra.mxu0 0
  %1934 = vmatprep.subr.bf16.mxu0 0
  %1935 = vmatpush2.bf16.msra.mxu0 0
  %1936 = vmatprep.subr.bf16.mxu0 0
  %1937 = vmatpush2.bf16.msra.mxu0 0
  %1938 = vmatprep.subr.bf16.mxu0 0
  %1939 = vmatpush2.bf16.msra.mxu0 0
  %1940 = vmatprep.subr.bf16.mxu0 0
  %1941 = vmatpush2.bf16.msra.mxu0 0
  %1942 = vmatprep.mubr.bf16.mxu0 0
  %1943 = vmatmul.mubr.bf16.gmra.mxu0 %v944
  %v1944 = vpop.f32.mrf.mxu0
  %v1945 = vadd.f32 0.0, %v1944
  %v1946 = vpop.f32.mrf.mxu0
  %v1947 = vpop.f32.mrf.mxu0
  %v1948 = vpop.f32.mrf.mxu0
  %1949 = vdwg.mxu0
  %v1950 = vadd.f32 %v1849, %v1904
  %v1951 = vadd.f32 %v1850, %v1906
  %v1952 = vadd.f32 %v1851, %v1945
  %v1954 = vlaneseq
  %v1955 = vshrl.u32 %v1954, 7
  %v1956 = vsub.s32 0, %v1955
  %v1957 = vrot.slane %v38, %v1956
  %v1958 = vlaneseq
  %v1959 = vshrl.u32 %v1958, 7
  %v1960 = vsub.s32 1, %v1959
  %v1961 = vrot.slane %v38, %v1960
  %v1962 = vlaneseq
  %v1963 = vshrl.u32 %v1962, 7
  %v1964 = vsub.s32 2, %v1963
  %v1965 = vrot.slane %v38, %v1964
  %v1969 = vmul.f32 %v1036, %v1957
  %v1970 = vmul.f32 %v1037, %v1961
  %v1971 = vmul.f32 %v1038, %v1965
  %v1972 = vadd.f32 %v1969, %v1970
  %vm1973 = vcmask 244736
  %v1974 = vsel %vm1973, %v1971, 0.0
  %v1975 = vadd.f32 %v1972, %v1974
  %1976 = vadd.xlane.f32.xlu0 %v1975
  %v1977 = vpop.xlane.xlu0 %1976
  %v1978 = vadd.f32 %v1977, 0.0
  %v1979 = vmul.f32 %v1950, %v1957
  %v1980 = vmul.f32 %v1951, %v1961
  %v1981 = vmul.f32 %v1952, %v1965
  %v1982 = vadd.f32 %v1979, %v1980
  %v1983 = vsel %vm1973, %v1981, 0.0
  %v1984 = vadd.f32 %v1982, %v1983
  %1985 = vadd.xlane.f32.xlu0 %v1984
  %v1986 = vpop.xlane.xlu0 %1985
  %v1987 = vadd.f32 %v1978, %v1986
  %v1988 = vmul.f32 %v1987, 0.001953125
  %v1989 = vsub.f32 %v1036, %v1988
  %v1990 = vsub.f32 %v1037, %v1988
  %v1991 = vsub.f32 %v1038, %v1988
  %v1992 = vmul.f32 %v1989, %v1989
  %v1993 = vmul.f32 %v1990, %v1990
  %v1994 = vmul.f32 %v1991, %v1991
  %v1995 = vmul.f32 %v1992, %v1957
  %v1996 = vmul.f32 %v1993, %v1961
  %v1997 = vmul.f32 %v1994, %v1965
  %v1998 = vadd.f32 %v1995, %v1996
  %v1999 = vsel %vm1973, %v1997, 0.0
  %v2000 = vadd.f32 %v1998, %v1999
  %2001 = vadd.xlane.f32.xlu0 %v2000
  %v2002 = vpop.xlane.xlu0 %2001
  %v2003 = vadd.f32 %v2002, 0.0
  %v2004 = vsub.f32 %v1950, %v1988
  %v2005 = vsub.f32 %v1951, %v1988
  %v2006 = vsub.f32 %v1952, %v1988
  %v2007 = vmul.f32 %v2004, %v2004
  %v2008 = vmul.f32 %v2005, %v2005
  %v2009 = vmul.f32 %v2006, %v2006
  %v2010 = vmul.f32 %v2007, %v1957
  %v2011 = vmul.f32 %v2008, %v1961
  %v2012 = vmul.f32 %v2009, %v1965
  %v2013 = vadd.f32 %v2010, %v2011
  %v2014 = vsel %vm1973, %v2012, 0.0
  %v2015 = vadd.f32 %v2013, %v2014
  %2016 = vadd.xlane.f32.xlu0 %v2015
  %v2017 = vpop.xlane.xlu0 %2016
  %v2018 = vadd.f32 %v2003, %v2017
  %v2019 = vmul.f32 %v2018, 0.001953125
  %v2020 = vadd.f32 %v2019, 1e-05
  %v2021 = vrsqrt.pop %v2020
  %v2022 = vmul.f32 %v40, %v2021
  %v2023 = vmul.f32 %v1988, %v2022
  %2025 = vrot.lane.b32.xlu0 %v2023, 1
  %v2026 = vpop.permute.xlu0 %2025
  %v2028 = vsub.f32 %v40, %v2026
  %2030 = vset.pattern.permute.xlu0 0
  %2031 = vperm.xlu0 %2030, %v2022
  %v2032 = vpop.permute.xlu0 %2031
  %v2034 = vmul.f32 %v1036, %v2032
  %v2035 = vmul.f32 %v1037, %v2032
  %v2036 = vmul.f32 %v1038, %v2032
  %2038 = vset.pattern.permute.xlu0 1
  %2039 = vperm.xlu0 %2038, %v2028
  %v2040 = vpop.permute.xlu0 %2039
  %v2042 = vadd.f32 %v2034, %v2040
  %v2043 = vadd.f32 %v2035, %v2040
  %v2044 = vadd.f32 %v2036, %v2040
  %v2045 = vmax.f32 %v2042, 0.0
  %v2046 = vmax.f32 %v2043, 0.0
  %v2047 = vmax.f32 %v2044, 0.0
  %v2048 = vmul.f32 %v1950, %v2032
  %v2049 = vmul.f32 %v1951, %v2032
  %v2050 = vmul.f32 %v1952, %v2032
  %v2051 = vadd.f32 %v2048, %v2040
  %v2052 = vadd.f32 %v2049, %v2040
  %v2053 = vadd.f32 %v2050, %v2040
  %v2054 = vmax.f32 %v2051, 0.0
  %v2055 = vmax.f32 %v2052, 0.0
  %v2056 = vmax.f32 %v2053, 0.0
  %v2057 = vmul.f32 %v2045, %v1957
  %v2058 = vmul.f32 %v2046, %v1961
  %v2059 = vmul.f32 %v2047, %v1965
  %v2060 = vpack.c.bf16 %v2057, %v2057
  %v2061 = vpack.c.bf16 %v2058, %v2058
  %v2062 = vpack.c.bf16 %v2059, %v2059
  %v2066 = vunpack.c.l.b16 %v2060
  %v2067 = vunpack.c.l.b16 %v2061
  %v2068 = vunpack.c.l.b16 %v2062
  %v2069 = vpack.c.b16 %v2067, %v2066
  %v2070 = vpack.c.b16 %v2068, %v2068
  %2071 = vrot.lane.b32.xlu0 %v2069, 19
  %v2072 = vpop.permute.xlu0 %2071
  %2073 = vrot.lane.b32.xlu0 %v2070, 19
  %v2074 = vpop.permute.xlu0 %2073
  %v2075 = vrot.slane %v2072, 4
  %vm2076 = vcmask 154624
  %v2077 = vsel %vm2076, %v2075, %v2072
  %v2078 = vsel %vm2076, %v2075, %v2074
  %vm2081 = vcmask 1043608
  %vm2082 = vcmask 1047556
  %vm2083 = vmor %vm2082, %vm2081
  %2084 = vst.msk [vmem:[#allocation2] sm:$0xff] %vm2083, %v2077
  %vm2085 = vcmask 396288
  %2086 = vst.msk [vmem:[#allocation2 + $0x8] sm:$0xf] %vm2085, %v2078
  %v2087 = vmul.f32 %v2054, %v1957
  %v2088 = vmul.f32 %v2055, %v1961
  %v2089 = vmul.f32 %v2056, %v1965
  %v2090 = vpack.c.bf16 %v2087, %v2087
  %v2091 = vpack.c.bf16 %v2088, %v2088
  %v2092 = vpack.c.bf16 %v2089, %v2089
  %v2096 = vunpack.c.l.b16 %v2090
  %v2097 = vunpack.c.l.b16 %v2091
  %v2098 = vunpack.c.l.b16 %v2092
  %v2099 = vpack.c.b16 %v2097, %v2096
  %v2100 = vpack.c.b16 %v2098, %v2098
  %2101 = vrot.lane.b32.xlu0 %v2099, 19
  %v2102 = vpop.permute.xlu0 %2101
  %2103 = vrot.lane.b32.xlu0 %v2100, 19
  %v2104 = vpop.permute.xlu0 %2103
  %v2105 = vrot.slane %v2102, 4
  %v2106 = vsel %vm2076, %v2105, %v2102
  %v2107 = vsel %vm2076, %v2105, %v2104
  %s2110 = scalar_lea.vmem [#allocation2], 12
  %2111 = vst.msk [vmem:[%s2110] sm:$0xff] %vm2083, %v2106
  %2112 = vst.msk [vmem:[%s2110 + $0x8] sm:$0xf] %vm2085, %v2107
  %v2113 = vld [vmem:[%s4] sm:$0xff]
  %v2114 = vld [vmem:[#allocation2] sm:$0xff]
  %v2115 = vld [vmem:[#allocation2 + $0x8] sm:$0xf]
  %v2116 = vld [vmem:[%s2] sm:$0xf]
  %v2118 = vunpack.c.l.b16 %v2116
  %v2119 = vpack.c.b16 %v2118, %v2118
  %2120 = vrot.lane.b32.xlu0 %v2119, 120
  %v2121 = vpop.permute.xlu0 %2120
  %v2124 = vunpack.c.l.b16 %v2114
  %v2125 = vunpack.c.h.b16 %v2114
  %v2126 = vunpack.c.l.b16 %v2115
  %v2127 = vpack.c.b16 %v2124, %v2124
  %v2128 = vpack.c.b16 %v2125, %v2125
  %v2129 = vpack.c.b16 %v2126, %v2126
  %2130 = vrot.lane.b32.xlu0 %v2127, 127
  %v2131 = vpop.permute.xlu0 %2130
  %2132 = vrot.lane.b32.xlu0 %v2128, 127
  %v2133 = vpop.permute.xlu0 %2132
  %2134 = vrot.lane.b32.xlu0 %v2129, 127
  %v2135 = vpop.permute.xlu0 %2134
  %v2136 = vsel %vm71, %v2131, %v2133
  %v2137 = vsel %vm71, %v2133, %v2135
  %vm2138 = vcmask 64512
  %v2140 = vsel %vm2138, %v2121, 0
  %vm2142 = vcmask 1043456
  %v2144 = vsel %vm2142, %v2136, 0
  %v2147 = vsel %vm2142, %v2137, 0
  %v2150 = vsel %vm2142, %v2135, 0
  %2152 = vmatprep.subr.bf16.mxu0 0
  %2153 = vmatpush1.bf16.msra.mxu0 0
  %2154 = vmatprep.subr.bf16.mxu0 0
  %2155 = vmatpush1.bf16.msra.mxu0 0
  %2156 = vmatprep.subr.bf16.mxu0 0
  %2157 = vmatpush1.bf16.msra.mxu0 0
  %2158 = vmatprep.subr.bf16.mxu0 0
  %2159 = vmatpush1.bf16.msra.mxu0 0
  %2160 = vmatprep.subr.bf16.mxu0 0
  %2161 = vmatpush1.bf16.msra.mxu0 0
  %2162 = vmatprep.subr.bf16.mxu0 0
  %2163 = vmatpush1.bf16.msra.mxu0 0
  %2164 = vmatprep.subr.bf16.mxu0 0
  %2165 = vmatpush1.bf16.msra.mxu0 0
  %2166 = vmatprep.subr.bf16.mxu0 %v2147
  %2167 = vmatpush1.bf16.msra.mxu0 %v2144
  %2168 = vmatprep.subr.bf16.mxu0 0
  %2169 = vmatpush2.bf16.msra.mxu0 0
  %2170 = vmatprep.subr.bf16.mxu0 0
  %2171 = vmatpush2.bf16.msra.mxu0 0
  %2172 = vmatprep.subr.bf16.mxu0 0
  %2173 = vmatpush2.bf16.msra.mxu0 0
  %2174 = vmatprep.subr.bf16.mxu0 0
  %2175 = vmatpush2.bf16.msra.mxu0 0
  %2176 = vmatprep.subr.bf16.mxu0 0
  %2177 = vmatpush2.bf16.msra.mxu0 0
  %2178 = vmatprep.subr.bf16.mxu0 0
  %2179 = vmatpush2.bf16.msra.mxu0 0
  %2180 = vmatprep.subr.bf16.mxu0 0
  %2181 = vmatpush2.bf16.msra.mxu0 0
  %2182 = vmatprep.subr.bf16.mxu0 0
  %2183 = vmatpush2.bf16.msra.mxu0 0
  %2184 = vmatprep.mubr.bf16.mxu0 0
  %2185 = vmatmul.mubr.bf16.gmra.mxu0 %v2140
  %v2186 = vpop.f32.mrf.mxu0
  %v2187 = vadd.f32 0.0, %v2186
  %v2188 = vpop.f32.mrf.mxu0
  %v2189 = vadd.f32 0.0, %v2188
  %v2190 = vpop.f32.mrf.mxu0
  %v2191 = vpop.f32.mrf.mxu0
  %2192 = vdwg.mxu0
  %2193 = vmatprep.subr.bf16.mxu0 0
  %2194 = vmatpush1.bf16.msra.mxu0 0
  %2195 = vmatprep.subr.bf16.mxu0 0
  %2196 = vmatpush1.bf16.msra.mxu0 0
  %2197 = vmatprep.subr.bf16.mxu0 0
  %2198 = vmatpush1.bf16.msra.mxu0 0
  %2199 = vmatprep.subr.bf16.mxu0 0
  %2200 = vmatpush1.bf16.msra.mxu0 0
  %2201 = vmatprep.subr.bf16.mxu0 0
  %2202 = vmatpush1.bf16.msra.mxu0 0
  %2203 = vmatprep.subr.bf16.mxu0 0
  %2204 = vmatpush1.bf16.msra.mxu0 0
  %2205 = vmatprep.subr.bf16.mxu0 0
  %2206 = vmatpush1.bf16.msra.mxu0 0
  %2207 = vmatprep.subr.bf16.mxu0 0
  %2208 = vmatpush1.bf16.msra.mxu0 %v2150
  %2209 = vmatprep.subr.bf16.mxu0 0
  %2210 = vmatpush2.bf16.msra.mxu0 0
  %2211 = vmatprep.subr.bf16.mxu0 0
  %2212 = vmatpush2.bf16.msra.mxu0 0
  %2213 = vmatprep.subr.bf16.mxu0 0
  %2214 = vmatpush2.bf16.msra.mxu0 0
  %2215 = vmatprep.subr.bf16.mxu0 0
  %2216 = vmatpush2.bf16.msra.mxu0 0
  %2217 = vmatprep.subr.bf16.mxu0 0
  %2218 = vmatpush2.bf16.msra.mxu0 0
  %2219 = vmatprep.subr.bf16.mxu0 0
  %2220 = vmatpush2.bf16.msra.mxu0 0
  %2221 = vmatprep.subr.bf16.mxu0 0
  %2222 = vmatpush2.bf16.msra.mxu0 0
  %2223 = vmatprep.subr.bf16.mxu0 0
  %2224 = vmatpush2.bf16.msra.mxu0 0
  %2225 = vmatprep.mubr.bf16.mxu0 0
  %2226 = vmatmul.mubr.bf16.gmra.mxu0 %v2140
  %v2227 = vpop.f32.mrf.mxu0
  %v2228 = vadd.f32 0.0, %v2227
  %v2229 = vpop.f32.mrf.mxu0
  %v2230 = vpop.f32.mrf.mxu0
  %v2231 = vpop.f32.mrf.mxu0
  %2232 = vdwg.mxu0
  %v2234 = vsel %vm2138, %v2116, 0
  %v2237 = vsel %vm2142, %v2127, 0
  %v2240 = vsel %vm2142, %v2128, 0
  %v2243 = vsel %vm2142, %v2129, 0
  %2245 = vmatprep.subr.bf16.mxu0 0
  %2246 = vmatpush1.bf16.msra.mxu0 0
  %2247 = vmatprep.subr.bf16.mxu0 0
  %2248 = vmatpush1.bf16.msra.mxu0 0
  %2249 = vmatprep.subr.bf16.mxu0 0
  %2250 = vmatpush1.bf16.msra.mxu0 0
  %2251 = vmatprep.subr.bf16.mxu0 0
  %2252 = vmatpush1.bf16.msra.mxu0 0
  %2253 = vmatprep.subr.bf16.mxu0 0
  %2254 = vmatpush1.bf16.msra.mxu0 0
  %2255 = vmatprep.subr.bf16.mxu0 0
  %2256 = vmatpush1.bf16.msra.mxu0 0
  %2257 = vmatprep.subr.bf16.mxu0 0
  %2258 = vmatpush1.bf16.msra.mxu0 0
  %2259 = vmatprep.subr.bf16.mxu0 %v2240
  %2260 = vmatpush1.bf16.msra.mxu0 %v2237
  %2261 = vmatprep.subr.bf16.mxu0 0
  %2262 = vmatpush2.bf16.msra.mxu0 0
  %2263 = vmatprep.subr.bf16.mxu0 0
  %2264 = vmatpush2.bf16.msra.mxu0 0
  %2265 = vmatprep.subr.bf16.mxu0 0
  %2266 = vmatpush2.bf16.msra.mxu0 0
  %2267 = vmatprep.subr.bf16.mxu0 0
  %2268 = vmatpush2.bf16.msra.mxu0 0
  %2269 = vmatprep.subr.bf16.mxu0 0
  %2270 = vmatpush2.bf16.msra.mxu0 0
  %2271 = vmatprep.subr.bf16.mxu0 0
  %2272 = vmatpush2.bf16.msra.mxu0 0
  %2273 = vmatprep.subr.bf16.mxu0 0
  %2274 = vmatpush2.bf16.msra.mxu0 0
  %2275 = vmatprep.subr.bf16.mxu0 0
  %2276 = vmatpush2.bf16.msra.mxu0 0
  %2277 = vmatprep.mubr.bf16.mxu0 0
  %2278 = vmatmul.mubr.bf16.gmra.mxu0 %v2234
  %v2279 = vpop.f32.mrf.mxu0
  %v2280 = vadd.f32 %v2187, %v2279
  %v2281 = vpop.f32.mrf.mxu0
  %v2282 = vadd.f32 %v2189, %v2281
  %v2283 = vpop.f32.mrf.mxu0
  %v2284 = vpop.f32.mrf.mxu0
  %2285 = vdwg.mxu0
  %2286 = vmatprep.subr.bf16.mxu0 0
  %2287 = vmatpush1.bf16.msra.mxu0 0
  %2288 = vmatprep.subr.bf16.mxu0 0
  %2289 = vmatpush1.bf16.msra.mxu0 0
  %2290 = vmatprep.subr.bf16.mxu0 0
  %2291 = vmatpush1.bf16.msra.mxu0 0
  %2292 = vmatprep.subr.bf16.mxu0 0
  %2293 = vmatpush1.bf16.msra.mxu0 0
  %2294 = vmatprep.subr.bf16.mxu0 0
  %2295 = vmatpush1.bf16.msra.mxu0 0
  %2296 = vmatprep.subr.bf16.mxu0 0
  %2297 = vmatpush1.bf16.msra.mxu0 0
  %2298 = vmatprep.subr.bf16.mxu0 0
  %2299 = vmatpush1.bf16.msra.mxu0 0
  %2300 = vmatprep.subr.bf16.mxu0 0
  %2301 = vmatpush1.bf16.msra.mxu0 %v2243
  %2302 = vmatprep.subr.bf16.mxu0 0
  %2303 = vmatpush2.bf16.msra.mxu0 0
  %2304 = vmatprep.subr.bf16.mxu0 0
  %2305 = vmatpush2.bf16.msra.mxu0 0
  %2306 = vmatprep.subr.bf16.mxu0 0
  %2307 = vmatpush2.bf16.msra.mxu0 0
  %2308 = vmatprep.subr.bf16.mxu0 0
  %2309 = vmatpush2.bf16.msra.mxu0 0
  %2310 = vmatprep.subr.bf16.mxu0 0
  %2311 = vmatpush2.bf16.msra.mxu0 0
  %2312 = vmatprep.subr.bf16.mxu0 0
  %2313 = vmatpush2.bf16.msra.mxu0 0
  %2314 = vmatprep.subr.bf16.mxu0 0
  %2315 = vmatpush2.bf16.msra.mxu0 0
  %2316 = vmatprep.subr.bf16.mxu0 0
  %2317 = vmatpush2.bf16.msra.mxu0 0
  %2318 = vmatprep.mubr.bf16.mxu0 0
  %2319 = vmatmul.mubr.bf16.gmra.mxu0 %v2234
  %v2320 = vpop.f32.mrf.mxu0
  %v2321 = vadd.f32 %v2228, %v2320
  %v2322 = vpop.f32.mrf.mxu0
  %v2323 = vpop.f32.mrf.mxu0
  %v2324 = vpop.f32.mrf.mxu0
  %2325 = vdwg.mxu0
  %2326 = vrot.lane.b32.xlu0 %v2119, 112
  %v2327 = vpop.permute.xlu0 %2326
  %2328 = vrot.lane.b32.xlu0 %v2127, 126
  %v2329 = vpop.permute.xlu0 %2328
  %2330 = vrot.lane.b32.xlu0 %v2128, 126
  %v2331 = vpop.permute.xlu0 %2330
  %2332 = vrot.lane.b32.xlu0 %v2129, 126
  %v2333 = vpop.permute.xlu0 %2332
  %v2334 = vsel %vm274, %v2329, %v2331
  %v2335 = vsel %vm274, %v2331, %v2333
  %v2337 = vsel %vm2138, %v2327, 0
  %v2340 = vsel %vm2142, %v2334, 0
  %v2343 = vsel %vm2142, %v2335, 0
  %v2346 = vsel %vm2142, %v2333, 0
  %2348 = vmatprep.subr.bf16.mxu0 0
  %2349 = vmatpush1.bf16.msra.mxu0 0
  %2350 = vmatprep.subr.bf16.mxu0 0
  %2351 = vmatpush1.bf16.msra.mxu0 0
  %2352 = vmatprep.subr.bf16.mxu0 0
  %2353 = vmatpush1.bf16.msra.mxu0 0
  %2354 = vmatprep.subr.bf16.mxu0 0
  %2355 = vmatpush1.bf16.msra.mxu0 0
  %2356 = vmatprep.subr.bf16.mxu0 0
  %2357 = vmatpush1.bf16.msra.mxu0 0
  %2358 = vmatprep.subr.bf16.mxu0 0
  %2359 = vmatpush1.bf16.msra.mxu0 0
  %2360 = vmatprep.subr.bf16.mxu0 0
  %2361 = vmatpush1.bf16.msra.mxu0 0
  %2362 = vmatprep.subr.bf16.mxu0 %v2343
  %2363 = vmatpush1.bf16.msra.mxu0 %v2340
  %2364 = vmatprep.subr.bf16.mxu0 0
  %2365 = vmatpush2.bf16.msra.mxu0 0
  %2366 = vmatprep.subr.bf16.mxu0 0
  %2367 = vmatpush2.bf16.msra.mxu0 0
  %2368 = vmatprep.subr.bf16.mxu0 0
  %2369 = vmatpush2.bf16.msra.mxu0 0
  %2370 = vmatprep.subr.bf16.mxu0 0
  %2371 = vmatpush2.bf16.msra.mxu0 0
  %2372 = vmatprep.subr.bf16.mxu0 0
  %2373 = vmatpush2.bf16.msra.mxu0 0
  %2374 = vmatprep.subr.bf16.mxu0 0
  %2375 = vmatpush2.bf16.msra.mxu0 0
  %2376 = vmatprep.subr.bf16.mxu0 0
  %2377 = vmatpush2.bf16.msra.mxu0 0
  %2378 = vmatprep.subr.bf16.mxu0 0
  %2379 = vmatpush2.bf16.msra.mxu0 0
  %2380 = vmatprep.mubr.bf16.mxu0 0
  %2381 = vmatmul.mubr.bf16.gmra.mxu0 %v2337
  %v2382 = vpop.f32.mrf.mxu0
  %v2383 = vadd.f32 0.0, %v2382
  %v2384 = vpop.f32.mrf.mxu0
  %v2385 = vadd.f32 0.0, %v2384
  %v2386 = vpop.f32.mrf.mxu0
  %v2387 = vpop.f32.mrf.mxu0
  %2388 = vdwg.mxu0
  %2389 = vmatprep.subr.bf16.mxu0 0
  %2390 = vmatpush1.bf16.msra.mxu0 0
  %2391 = vmatprep.subr.bf16.mxu0 0
  %2392 = vmatpush1.bf16.msra.mxu0 0
  %2393 = vmatprep.subr.bf16.mxu0 0
  %2394 = vmatpush1.bf16.msra.mxu0 0
  %2395 = vmatprep.subr.bf16.mxu0 0
  %2396 = vmatpush1.bf16.msra.mxu0 0
  %2397 = vmatprep.subr.bf16.mxu0 0
  %2398 = vmatpush1.bf16.msra.mxu0 0
  %2399 = vmatprep.subr.bf16.mxu0 0
  %2400 = vmatpush1.bf16.msra.mxu0 0
  %2401 = vmatprep.subr.bf16.mxu0 0
  %2402 = vmatpush1.bf16.msra.mxu0 0
  %2403 = vmatprep.subr.bf16.mxu0 0
  %2404 = vmatpush1.bf16.msra.mxu0 %v2346
  %2405 = vmatprep.subr.bf16.mxu0 0
  %2406 = vmatpush2.bf16.msra.mxu0 0
  %2407 = vmatprep.subr.bf16.mxu0 0
  %2408 = vmatpush2.bf16.msra.mxu0 0
  %2409 = vmatprep.subr.bf16.mxu0 0
  %2410 = vmatpush2.bf16.msra.mxu0 0
  %2411 = vmatprep.subr.bf16.mxu0 0
  %2412 = vmatpush2.bf16.msra.mxu0 0
  %2413 = vmatprep.subr.bf16.mxu0 0
  %2414 = vmatpush2.bf16.msra.mxu0 0
  %2415 = vmatprep.subr.bf16.mxu0 0
  %2416 = vmatpush2.bf16.msra.mxu0 0
  %2417 = vmatprep.subr.bf16.mxu0 0
  %2418 = vmatpush2.bf16.msra.mxu0 0
  %2419 = vmatprep.subr.bf16.mxu0 0
  %2420 = vmatpush2.bf16.msra.mxu0 0
  %2421 = vmatprep.mubr.bf16.mxu0 0
  %2422 = vmatmul.mubr.bf16.gmra.mxu0 %v2337
  %v2423 = vpop.f32.mrf.mxu0
  %v2424 = vadd.f32 0.0, %v2423
  %v2425 = vpop.f32.mrf.mxu0
  %v2426 = vpop.f32.mrf.mxu0
  %v2427 = vpop.f32.mrf.mxu0
  %2428 = vdwg.mxu0
  %v2429 = vadd.f32 %v2280, %v2383
  %v2430 = vadd.f32 %v2282, %v2385
  %v2431 = vadd.f32 %v2321, %v2424
  %2432 = vrot.lane.b32.xlu0 %v2119, 104
  %v2433 = vpop.permute.xlu0 %2432
  %2434 = vrot.lane.b32.xlu0 %v2127, 110
  %v2435 = vpop.permute.xlu0 %2434
  %2436 = vrot.lane.b32.xlu0 %v2128, 110
  %v2437 = vpop.permute.xlu0 %2436
  %2438 = vrot.lane.b32.xlu0 %v2129, 110
  %v2439 = vpop.permute.xlu0 %2438
  %v2440 = vsel %vm385, %v2435, %v2437
  %v2441 = vsel %vm385, %v2437, %v2439
  %v2443 = vsel %vm2138, %v2433, 0
  %v2446 = vsel %vm2142, %v2440, 0
  %v2449 = vsel %vm2142, %v2441, 0
  %v2452 = vsel %vm2142, %v2439, 0
  %2454 = vmatprep.subr.bf16.mxu0 0
  %2455 = vmatpush1.bf16.msra.mxu0 0
  %2456 = vmatprep.subr.bf16.mxu0 0
  %2457 = vmatpush1.bf16.msra.mxu0 0
  %2458 = vmatprep.subr.bf16.mxu0 0
  %2459 = vmatpush1.bf16.msra.mxu0 0
  %2460 = vmatprep.subr.bf16.mxu0 0
  %2461 = vmatpush1.bf16.msra.mxu0 0
  %2462 = vmatprep.subr.bf16.mxu0 0
  %2463 = vmatpush1.bf16.msra.mxu0 0
  %2464 = vmatprep.subr.bf16.mxu0 0
  %2465 = vmatpush1.bf16.msra.mxu0 0
  %2466 = vmatprep.subr.bf16.mxu0 0
  %2467 = vmatpush1.bf16.msra.mxu0 0
  %2468 = vmatprep.subr.bf16.mxu0 %v2449
  %2469 = vmatpush1.bf16.msra.mxu0 %v2446
  %2470 = vmatprep.subr.bf16.mxu0 0
  %2471 = vmatpush2.bf16.msra.mxu0 0
  %2472 = vmatprep.subr.bf16.mxu0 0
  %2473 = vmatpush2.bf16.msra.mxu0 0
  %2474 = vmatprep.subr.bf16.mxu0 0
  %2475 = vmatpush2.bf16.msra.mxu0 0
  %2476 = vmatprep.subr.bf16.mxu0 0
  %2477 = vmatpush2.bf16.msra.mxu0 0
  %2478 = vmatprep.subr.bf16.mxu0 0
  %2479 = vmatpush2.bf16.msra.mxu0 0
  %2480 = vmatprep.subr.bf16.mxu0 0
  %2481 = vmatpush2.bf16.msra.mxu0 0
  %2482 = vmatprep.subr.bf16.mxu0 0
  %2483 = vmatpush2.bf16.msra.mxu0 0
  %2484 = vmatprep.subr.bf16.mxu0 0
  %2485 = vmatpush2.bf16.msra.mxu0 0
  %2486 = vmatprep.mubr.bf16.mxu0 0
  %2487 = vmatmul.mubr.bf16.gmra.mxu0 %v2443
  %v2488 = vpop.f32.mrf.mxu0
  %v2489 = vadd.f32 0.0, %v2488
  %v2490 = vpop.f32.mrf.mxu0
  %v2491 = vadd.f32 0.0, %v2490
  %v2492 = vpop.f32.mrf.mxu0
  %v2493 = vpop.f32.mrf.mxu0
  %2494 = vdwg.mxu0
  %2495 = vmatprep.subr.bf16.mxu0 0
  %2496 = vmatpush1.bf16.msra.mxu0 0
  %2497 = vmatprep.subr.bf16.mxu0 0
  %2498 = vmatpush1.bf16.msra.mxu0 0
  %2499 = vmatprep.subr.bf16.mxu0 0
  %2500 = vmatpush1.bf16.msra.mxu0 0
  %2501 = vmatprep.subr.bf16.mxu0 0
  %2502 = vmatpush1.bf16.msra.mxu0 0
  %2503 = vmatprep.subr.bf16.mxu0 0
  %2504 = vmatpush1.bf16.msra.mxu0 0
  %2505 = vmatprep.subr.bf16.mxu0 0
  %2506 = vmatpush1.bf16.msra.mxu0 0
  %2507 = vmatprep.subr.bf16.mxu0 0
  %2508 = vmatpush1.bf16.msra.mxu0 0
  %2509 = vmatprep.subr.bf16.mxu0 0
  %2510 = vmatpush1.bf16.msra.mxu0 %v2452
  %2511 = vmatprep.subr.bf16.mxu0 0
  %2512 = vmatpush2.bf16.msra.mxu0 0
  %2513 = vmatprep.subr.bf16.mxu0 0
  %2514 = vmatpush2.bf16.msra.mxu0 0
  %2515 = vmatprep.subr.bf16.mxu0 0
  %2516 = vmatpush2.bf16.msra.mxu0 0
  %2517 = vmatprep.subr.bf16.mxu0 0
  %2518 = vmatpush2.bf16.msra.mxu0 0
  %2519 = vmatprep.subr.bf16.mxu0 0
  %2520 = vmatpush2.bf16.msra.mxu0 0
  %2521 = vmatprep.subr.bf16.mxu0 0
  %2522 = vmatpush2.bf16.msra.mxu0 0
  %2523 = vmatprep.subr.bf16.mxu0 0
  %2524 = vmatpush2.bf16.msra.mxu0 0
  %2525 = vmatprep.subr.bf16.mxu0 0
  %2526 = vmatpush2.bf16.msra.mxu0 0
  %2527 = vmatprep.mubr.bf16.mxu0 0
  %2528 = vmatmul.mubr.bf16.gmra.mxu0 %v2443
  %v2529 = vpop.f32.mrf.mxu0
  %v2530 = vadd.f32 0.0, %v2529
  %v2531 = vpop.f32.mrf.mxu0
  %v2532 = vpop.f32.mrf.mxu0
  %v2533 = vpop.f32.mrf.mxu0
  %2534 = vdwg.mxu0
  %v2535 = vadd.f32 %v2429, %v2489
  %v2536 = vadd.f32 %v2430, %v2491
  %v2537 = vadd.f32 %v2431, %v2530
  %2538 = vrot.lane.b32.xlu0 %v2119, 96
  %v2539 = vpop.permute.xlu0 %2538
  %2540 = vrot.lane.b32.xlu0 %v2127, 109
  %v2541 = vpop.permute.xlu0 %2540
  %2542 = vrot.lane.b32.xlu0 %v2128, 109
  %v2543 = vpop.permute.xlu0 %2542
  %2544 = vrot.lane.b32.xlu0 %v2129, 109
  %v2545 = vpop.permute.xlu0 %2544
  %v2546 = vsel %vm496, %v2541, %v2543
  %v2547 = vsel %vm496, %v2543, %v2545
  %v2549 = vsel %vm2138, %v2539, 0
  %v2552 = vsel %vm2142, %v2546, 0
  %v2555 = vsel %vm2142, %v2547, 0
  %v2558 = vsel %vm2142, %v2545, 0
  %2560 = vmatprep.subr.bf16.mxu0 0
  %2561 = vmatpush1.bf16.msra.mxu0 0
  %2562 = vmatprep.subr.bf16.mxu0 0
  %2563 = vmatpush1.bf16.msra.mxu0 0
  %2564 = vmatprep.subr.bf16.mxu0 0
  %2565 = vmatpush1.bf16.msra.mxu0 0
  %2566 = vmatprep.subr.bf16.mxu0 0
  %2567 = vmatpush1.bf16.msra.mxu0 0
  %2568 = vmatprep.subr.bf16.mxu0 0
  %2569 = vmatpush1.bf16.msra.mxu0 0
  %2570 = vmatprep.subr.bf16.mxu0 0
  %2571 = vmatpush1.bf16.msra.mxu0 0
  %2572 = vmatprep.subr.bf16.mxu0 0
  %2573 = vmatpush1.bf16.msra.mxu0 0
  %2574 = vmatprep.subr.bf16.mxu0 %v2555
  %2575 = vmatpush1.bf16.msra.mxu0 %v2552
  %2576 = vmatprep.subr.bf16.mxu0 0
  %2577 = vmatpush2.bf16.msra.mxu0 0
  %2578 = vmatprep.subr.bf16.mxu0 0
  %2579 = vmatpush2.bf16.msra.mxu0 0
  %2580 = vmatprep.subr.bf16.mxu0 0
  %2581 = vmatpush2.bf16.msra.mxu0 0
  %2582 = vmatprep.subr.bf16.mxu0 0
  %2583 = vmatpush2.bf16.msra.mxu0 0
  %2584 = vmatprep.subr.bf16.mxu0 0
  %2585 = vmatpush2.bf16.msra.mxu0 0
  %2586 = vmatprep.subr.bf16.mxu0 0
  %2587 = vmatpush2.bf16.msra.mxu0 0
  %2588 = vmatprep.subr.bf16.mxu0 0
  %2589 = vmatpush2.bf16.msra.mxu0 0
  %2590 = vmatprep.subr.bf16.mxu0 0
  %2591 = vmatpush2.bf16.msra.mxu0 0
  %2592 = vmatprep.mubr.bf16.mxu0 0
  %2593 = vmatmul.mubr.bf16.gmra.mxu0 %v2549
  %v2594 = vpop.f32.mrf.mxu0
  %v2595 = vadd.f32 0.0, %v2594
  %v2596 = vpop.f32.mrf.mxu0
  %v2597 = vadd.f32 0.0, %v2596
  %v2598 = vpop.f32.mrf.mxu0
  %v2599 = vpop.f32.mrf.mxu0
  %2600 = vdwg.mxu0
  %2601 = vmatprep.subr.bf16.mxu0 0
  %2602 = vmatpush1.bf16.msra.mxu0 0
  %2603 = vmatprep.subr.bf16.mxu0 0
  %2604 = vmatpush1.bf16.msra.mxu0 0
  %2605 = vmatprep.subr.bf16.mxu0 0
  %2606 = vmatpush1.bf16.msra.mxu0 0
  %2607 = vmatprep.subr.bf16.mxu0 0
  %2608 = vmatpush1.bf16.msra.mxu0 0
  %2609 = vmatprep.subr.bf16.mxu0 0
  %2610 = vmatpush1.bf16.msra.mxu0 0
  %2611 = vmatprep.subr.bf16.mxu0 0
  %2612 = vmatpush1.bf16.msra.mxu0 0
  %2613 = vmatprep.subr.bf16.mxu0 0
  %2614 = vmatpush1.bf16.msra.mxu0 0
  %2615 = vmatprep.subr.bf16.mxu0 0
  %2616 = vmatpush1.bf16.msra.mxu0 %v2558
  %2617 = vmatprep.subr.bf16.mxu0 0
  %2618 = vmatpush2.bf16.msra.mxu0 0
  %2619 = vmatprep.subr.bf16.mxu0 0
  %2620 = vmatpush2.bf16.msra.mxu0 0
  %2621 = vmatprep.subr.bf16.mxu0 0
  %2622 = vmatpush2.bf16.msra.mxu0 0
  %2623 = vmatprep.subr.bf16.mxu0 0
  %2624 = vmatpush2.bf16.msra.mxu0 0
  %2625 = vmatprep.subr.bf16.mxu0 0
  %2626 = vmatpush2.bf16.msra.mxu0 0
  %2627 = vmatprep.subr.bf16.mxu0 0
  %2628 = vmatpush2.bf16.msra.mxu0 0
  %2629 = vmatprep.subr.bf16.mxu0 0
  %2630 = vmatpush2.bf16.msra.mxu0 0
  %2631 = vmatprep.subr.bf16.mxu0 0
  %2632 = vmatpush2.bf16.msra.mxu0 0
  %2633 = vmatprep.mubr.bf16.mxu0 0
  %2634 = vmatmul.mubr.bf16.gmra.mxu0 %v2549
  %v2635 = vpop.f32.mrf.mxu0
  %v2636 = vadd.f32 0.0, %v2635
  %v2637 = vpop.f32.mrf.mxu0
  %v2638 = vpop.f32.mrf.mxu0
  %v2639 = vpop.f32.mrf.mxu0
  %2640 = vdwg.mxu0
  %v2641 = vadd.f32 %v2535, %v2595
  %v2642 = vadd.f32 %v2536, %v2597
  %v2643 = vadd.f32 %v2537, %v2636
  %2644 = vrot.lane.b32.xlu0 %v2119, 88
  %v2645 = vpop.permute.xlu0 %2644
  %2646 = vrot.lane.b32.xlu0 %v2127, 108
  %v2647 = vpop.permute.xlu0 %2646
  %2648 = vrot.lane.b32.xlu0 %v2128, 108
  %v2649 = vpop.permute.xlu0 %2648
  %2650 = vrot.lane.b32.xlu0 %v2129, 108
  %v2651 = vpop.permute.xlu0 %2650
  %v2652 = vsel %vm607, %v2647, %v2649
  %v2653 = vsel %vm607, %v2649, %v2651
  %v2655 = vsel %vm2138, %v2645, 0
  %v2658 = vsel %vm2142, %v2652, 0
  %v2661 = vsel %vm2142, %v2653, 0
  %v2664 = vsel %vm2142, %v2651, 0
  %2666 = vmatprep.subr.bf16.mxu0 0
  %2667 = vmatpush1.bf16.msra.mxu0 0
  %2668 = vmatprep.subr.bf16.mxu0 0
  %2669 = vmatpush1.bf16.msra.mxu0 0
  %2670 = vmatprep.subr.bf16.mxu0 0
  %2671 = vmatpush1.bf16.msra.mxu0 0
  %2672 = vmatprep.subr.bf16.mxu0 0
  %2673 = vmatpush1.bf16.msra.mxu0 0
  %2674 = vmatprep.subr.bf16.mxu0 0
  %2675 = vmatpush1.bf16.msra.mxu0 0
  %2676 = vmatprep.subr.bf16.mxu0 0
  %2677 = vmatpush1.bf16.msra.mxu0 0
  %2678 = vmatprep.subr.bf16.mxu0 0
  %2679 = vmatpush1.bf16.msra.mxu0 0
  %2680 = vmatprep.subr.bf16.mxu0 %v2661
  %2681 = vmatpush1.bf16.msra.mxu0 %v2658
  %2682 = vmatprep.subr.bf16.mxu0 0
  %2683 = vmatpush2.bf16.msra.mxu0 0
  %2684 = vmatprep.subr.bf16.mxu0 0
  %2685 = vmatpush2.bf16.msra.mxu0 0
  %2686 = vmatprep.subr.bf16.mxu0 0
  %2687 = vmatpush2.bf16.msra.mxu0 0
  %2688 = vmatprep.subr.bf16.mxu0 0
  %2689 = vmatpush2.bf16.msra.mxu0 0
  %2690 = vmatprep.subr.bf16.mxu0 0
  %2691 = vmatpush2.bf16.msra.mxu0 0
  %2692 = vmatprep.subr.bf16.mxu0 0
  %2693 = vmatpush2.bf16.msra.mxu0 0
  %2694 = vmatprep.subr.bf16.mxu0 0
  %2695 = vmatpush2.bf16.msra.mxu0 0
  %2696 = vmatprep.subr.bf16.mxu0 0
  %2697 = vmatpush2.bf16.msra.mxu0 0
  %2698 = vmatprep.mubr.bf16.mxu0 0
  %2699 = vmatmul.mubr.bf16.gmra.mxu0 %v2655
  %v2700 = vpop.f32.mrf.mxu0
  %v2701 = vadd.f32 0.0, %v2700
  %v2702 = vpop.f32.mrf.mxu0
  %v2703 = vadd.f32 0.0, %v2702
  %v2704 = vpop.f32.mrf.mxu0
  %v2705 = vpop.f32.mrf.mxu0
  %2706 = vdwg.mxu0
  %2707 = vmatprep.subr.bf16.mxu0 0
  %2708 = vmatpush1.bf16.msra.mxu0 0
  %2709 = vmatprep.subr.bf16.mxu0 0
  %2710 = vmatpush1.bf16.msra.mxu0 0
  %2711 = vmatprep.subr.bf16.mxu0 0
  %2712 = vmatpush1.bf16.msra.mxu0 0
  %2713 = vmatprep.subr.bf16.mxu0 0
  %2714 = vmatpush1.bf16.msra.mxu0 0
  %2715 = vmatprep.subr.bf16.mxu0 0
  %2716 = vmatpush1.bf16.msra.mxu0 0
  %2717 = vmatprep.subr.bf16.mxu0 0
  %2718 = vmatpush1.bf16.msra.mxu0 0
  %2719 = vmatprep.subr.bf16.mxu0 0
  %2720 = vmatpush1.bf16.msra.mxu0 0
  %2721 = vmatprep.subr.bf16.mxu0 0
  %2722 = vmatpush1.bf16.msra.mxu0 %v2664
  %2723 = vmatprep.subr.bf16.mxu0 0
  %2724 = vmatpush2.bf16.msra.mxu0 0
  %2725 = vmatprep.subr.bf16.mxu0 0
  %2726 = vmatpush2.bf16.msra.mxu0 0
  %2727 = vmatprep.subr.bf16.mxu0 0
  %2728 = vmatpush2.bf16.msra.mxu0 0
  %2729 = vmatprep.subr.bf16.mxu0 0
  %2730 = vmatpush2.bf16.msra.mxu0 0
  %2731 = vmatprep.subr.bf16.mxu0 0
  %2732 = vmatpush2.bf16.msra.mxu0 0
  %2733 = vmatprep.subr.bf16.mxu0 0
  %2734 = vmatpush2.bf16.msra.mxu0 0
  %2735 = vmatprep.subr.bf16.mxu0 0
  %2736 = vmatpush2.bf16.msra.mxu0 0
  %2737 = vmatprep.subr.bf16.mxu0 0
  %2738 = vmatpush2.bf16.msra.mxu0 0
  %2739 = vmatprep.mubr.bf16.mxu0 0
  %2740 = vmatmul.mubr.bf16.gmra.mxu0 %v2655
  %v2741 = vpop.f32.mrf.mxu0
  %v2742 = vadd.f32 0.0, %v2741
  %v2743 = vpop.f32.mrf.mxu0
  %v2744 = vpop.f32.mrf.mxu0
  %v2745 = vpop.f32.mrf.mxu0
  %2746 = vdwg.mxu0
  %v2747 = vadd.f32 %v2641, %v2701
  %v2748 = vadd.f32 %v2642, %v2703
  %v2749 = vadd.f32 %v2643, %v2742
  %2750 = vrot.lane.b32.xlu0 %v2119, 80
  %v2751 = vpop.permute.xlu0 %2750
  %2752 = vrot.lane.b32.xlu0 %v2127, 92
  %v2753 = vpop.permute.xlu0 %2752
  %2754 = vrot.lane.b32.xlu0 %v2128, 92
  %v2755 = vpop.permute.xlu0 %2754
  %2756 = vrot.lane.b32.xlu0 %v2129, 92
  %v2757 = vpop.permute.xlu0 %2756
  %v2758 = vsel %vm718, %v2753, %v2755
  %v2759 = vsel %vm718, %v2755, %v2757
  %v2761 = vsel %vm2138, %v2751, 0
  %v2764 = vsel %vm2142, %v2758, 0
  %v2767 = vsel %vm2142, %v2759, 0
  %v2770 = vsel %vm2142, %v2757, 0
  %2772 = vmatprep.subr.bf16.mxu0 0
  %2773 = vmatpush1.bf16.msra.mxu0 0
  %2774 = vmatprep.subr.bf16.mxu0 0
  %2775 = vmatpush1.bf16.msra.mxu0 0
  %2776 = vmatprep.subr.bf16.mxu0 0
  %2777 = vmatpush1.bf16.msra.mxu0 0
  %2778 = vmatprep.subr.bf16.mxu0 0
  %2779 = vmatpush1.bf16.msra.mxu0 0
  %2780 = vmatprep.subr.bf16.mxu0 0
  %2781 = vmatpush1.bf16.msra.mxu0 0
  %2782 = vmatprep.subr.bf16.mxu0 0
  %2783 = vmatpush1.bf16.msra.mxu0 0
  %2784 = vmatprep.subr.bf16.mxu0 0
  %2785 = vmatpush1.bf16.msra.mxu0 0
  %2786 = vmatprep.subr.bf16.mxu0 %v2767
  %2787 = vmatpush1.bf16.msra.mxu0 %v2764
  %2788 = vmatprep.subr.bf16.mxu0 0
  %2789 = vmatpush2.bf16.msra.mxu0 0
  %2790 = vmatprep.subr.bf16.mxu0 0
  %2791 = vmatpush2.bf16.msra.mxu0 0
  %2792 = vmatprep.subr.bf16.mxu0 0
  %2793 = vmatpush2.bf16.msra.mxu0 0
  %2794 = vmatprep.subr.bf16.mxu0 0
  %2795 = vmatpush2.bf16.msra.mxu0 0
  %2796 = vmatprep.subr.bf16.mxu0 0
  %2797 = vmatpush2.bf16.msra.mxu0 0
  %2798 = vmatprep.subr.bf16.mxu0 0
  %2799 = vmatpush2.bf16.msra.mxu0 0
  %2800 = vmatprep.subr.bf16.mxu0 0
  %2801 = vmatpush2.bf16.msra.mxu0 0
  %2802 = vmatprep.subr.bf16.mxu0 0
  %2803 = vmatpush2.bf16.msra.mxu0 0
  %2804 = vmatprep.mubr.bf16.mxu0 0
  %2805 = vmatmul.mubr.bf16.gmra.mxu0 %v2761
  %v2806 = vpop.f32.mrf.mxu0
  %v2807 = vadd.f32 0.0, %v2806
  %v2808 = vpop.f32.mrf.mxu0
  %v2809 = vadd.f32 0.0, %v2808
  %v2810 = vpop.f32.mrf.mxu0
  %v2811 = vpop.f32.mrf.mxu0
  %2812 = vdwg.mxu0
  %2813 = vmatprep.subr.bf16.mxu0 0
  %2814 = vmatpush1.bf16.msra.mxu0 0
  %2815 = vmatprep.subr.bf16.mxu0 0
  %2816 = vmatpush1.bf16.msra.mxu0 0
  %2817 = vmatprep.subr.bf16.mxu0 0
  %2818 = vmatpush1.bf16.msra.mxu0 0
  %2819 = vmatprep.subr.bf16.mxu0 0
  %2820 = vmatpush1.bf16.msra.mxu0 0
  %2821 = vmatprep.subr.bf16.mxu0 0
  %2822 = vmatpush1.bf16.msra.mxu0 0
  %2823 = vmatprep.subr.bf16.mxu0 0
  %2824 = vmatpush1.bf16.msra.mxu0 0
  %2825 = vmatprep.subr.bf16.mxu0 0
  %2826 = vmatpush1.bf16.msra.mxu0 0
  %2827 = vmatprep.subr.bf16.mxu0 0
  %2828 = vmatpush1.bf16.msra.mxu0 %v2770
  %2829 = vmatprep.subr.bf16.mxu0 0
  %2830 = vmatpush2.bf16.msra.mxu0 0
  %2831 = vmatprep.subr.bf16.mxu0 0
  %2832 = vmatpush2.bf16.msra.mxu0 0
  %2833 = vmatprep.subr.bf16.mxu0 0
  %2834 = vmatpush2.bf16.msra.mxu0 0
  %2835 = vmatprep.subr.bf16.mxu0 0
  %2836 = vmatpush2.bf16.msra.mxu0 0
  %2837 = vmatprep.subr.bf16.mxu0 0
  %2838 = vmatpush2.bf16.msra.mxu0 0
  %2839 = vmatprep.subr.bf16.mxu0 0
  %2840 = vmatpush2.bf16.msra.mxu0 0
  %2841 = vmatprep.subr.bf16.mxu0 0
  %2842 = vmatpush2.bf16.msra.mxu0 0
  %2843 = vmatprep.subr.bf16.mxu0 0
  %2844 = vmatpush2.bf16.msra.mxu0 0
  %2845 = vmatprep.mubr.bf16.mxu0 0
  %2846 = vmatmul.mubr.bf16.gmra.mxu0 %v2761
  %v2847 = vpop.f32.mrf.mxu0
  %v2848 = vadd.f32 0.0, %v2847
  %v2849 = vpop.f32.mrf.mxu0
  %v2850 = vpop.f32.mrf.mxu0
  %v2851 = vpop.f32.mrf.mxu0
  %2852 = vdwg.mxu0
  %v2853 = vadd.f32 %v2747, %v2807
  %v2854 = vadd.f32 %v2748, %v2809
  %v2855 = vadd.f32 %v2749, %v2848
  %2856 = vrot.lane.b32.xlu0 %v2119, 72
  %v2857 = vpop.permute.xlu0 %2856
  %2858 = vrot.lane.b32.xlu0 %v2127, 91
  %v2859 = vpop.permute.xlu0 %2858
  %2860 = vrot.lane.b32.xlu0 %v2128, 91
  %v2861 = vpop.permute.xlu0 %2860
  %2862 = vrot.lane.b32.xlu0 %v2129, 91
  %v2863 = vpop.permute.xlu0 %2862
  %v2864 = vsel %vm829, %v2859, %v2861
  %v2865 = vsel %vm829, %v2861, %v2863
  %v2867 = vsel %vm2138, %v2857, 0
  %v2870 = vsel %vm2142, %v2864, 0
  %v2873 = vsel %vm2142, %v2865, 0
  %v2876 = vsel %vm2142, %v2863, 0
  %2878 = vmatprep.subr.bf16.mxu0 0
  %2879 = vmatpush1.bf16.msra.mxu0 0
  %2880 = vmatprep.subr.bf16.mxu0 0
  %2881 = vmatpush1.bf16.msra.mxu0 0
  %2882 = vmatprep.subr.bf16.mxu0 0
  %2883 = vmatpush1.bf16.msra.mxu0 0
  %2884 = vmatprep.subr.bf16.mxu0 0
  %2885 = vmatpush1.bf16.msra.mxu0 0
  %2886 = vmatprep.subr.bf16.mxu0 0
  %2887 = vmatpush1.bf16.msra.mxu0 0
  %2888 = vmatprep.subr.bf16.mxu0 0
  %2889 = vmatpush1.bf16.msra.mxu0 0
  %2890 = vmatprep.subr.bf16.mxu0 0
  %2891 = vmatpush1.bf16.msra.mxu0 0
  %2892 = vmatprep.subr.bf16.mxu0 %v2873
  %2893 = vmatpush1.bf16.msra.mxu0 %v2870
  %2894 = vmatprep.subr.bf16.mxu0 0
  %2895 = vmatpush2.bf16.msra.mxu0 0
  %2896 = vmatprep.subr.bf16.mxu0 0
  %2897 = vmatpush2.bf16.msra.mxu0 0
  %2898 = vmatprep.subr.bf16.mxu0 0
  %2899 = vmatpush2.bf16.msra.mxu0 0
  %2900 = vmatprep.subr.bf16.mxu0 0
  %2901 = vmatpush2.bf16.msra.mxu0 0
  %2902 = vmatprep.subr.bf16.mxu0 0
  %2903 = vmatpush2.bf16.msra.mxu0 0
  %2904 = vmatprep.subr.bf16.mxu0 0
  %2905 = vmatpush2.bf16.msra.mxu0 0
  %2906 = vmatprep.subr.bf16.mxu0 0
  %2907 = vmatpush2.bf16.msra.mxu0 0
  %2908 = vmatprep.subr.bf16.mxu0 0
  %2909 = vmatpush2.bf16.msra.mxu0 0
  %2910 = vmatprep.mubr.bf16.mxu0 0
  %2911 = vmatmul.mubr.bf16.gmra.mxu0 %v2867
  %v2912 = vpop.f32.mrf.mxu0
  %v2913 = vadd.f32 0.0, %v2912
  %v2914 = vpop.f32.mrf.mxu0
  %v2915 = vadd.f32 0.0, %v2914
  %v2916 = vpop.f32.mrf.mxu0
  %v2917 = vpop.f32.mrf.mxu0
  %2918 = vdwg.mxu0
  %2919 = vmatprep.subr.bf16.mxu0 0
  %2920 = vmatpush1.bf16.msra.mxu0 0
  %2921 = vmatprep.subr.bf16.mxu0 0
  %2922 = vmatpush1.bf16.msra.mxu0 0
  %2923 = vmatprep.subr.bf16.mxu0 0
  %2924 = vmatpush1.bf16.msra.mxu0 0
  %2925 = vmatprep.subr.bf16.mxu0 0
  %2926 = vmatpush1.bf16.msra.mxu0 0
  %2927 = vmatprep.subr.bf16.mxu0 0
  %2928 = vmatpush1.bf16.msra.mxu0 0
  %2929 = vmatprep.subr.bf16.mxu0 0
  %2930 = vmatpush1.bf16.msra.mxu0 0
  %2931 = vmatprep.subr.bf16.mxu0 0
  %2932 = vmatpush1.bf16.msra.mxu0 0
  %2933 = vmatprep.subr.bf16.mxu0 0
  %2934 = vmatpush1.bf16.msra.mxu0 %v2876
  %2935 = vmatprep.subr.bf16.mxu0 0
  %2936 = vmatpush2.bf16.msra.mxu0 0
  %2937 = vmatprep.subr.bf16.mxu0 0
  %2938 = vmatpush2.bf16.msra.mxu0 0
  %2939 = vmatprep.subr.bf16.mxu0 0
  %2940 = vmatpush2.bf16.msra.mxu0 0
  %2941 = vmatprep.subr.bf16.mxu0 0
  %2942 = vmatpush2.bf16.msra.mxu0 0
  %2943 = vmatprep.subr.bf16.mxu0 0
  %2944 = vmatpush2.bf16.msra.mxu0 0
  %2945 = vmatprep.subr.bf16.mxu0 0
  %2946 = vmatpush2.bf16.msra.mxu0 0
  %2947 = vmatprep.subr.bf16.mxu0 0
  %2948 = vmatpush2.bf16.msra.mxu0 0
  %2949 = vmatprep.subr.bf16.mxu0 0
  %2950 = vmatpush2.bf16.msra.mxu0 0
  %2951 = vmatprep.mubr.bf16.mxu0 0
  %2952 = vmatmul.mubr.bf16.gmra.mxu0 %v2867
  %v2953 = vpop.f32.mrf.mxu0
  %v2954 = vadd.f32 0.0, %v2953
  %v2955 = vpop.f32.mrf.mxu0
  %v2956 = vpop.f32.mrf.mxu0
  %v2957 = vpop.f32.mrf.mxu0
  %2958 = vdwg.mxu0
  %v2959 = vadd.f32 %v2853, %v2913
  %v2960 = vadd.f32 %v2854, %v2915
  %v2961 = vadd.f32 %v2855, %v2954
  %2962 = vrot.lane.b32.xlu0 %v2119, 64
  %v2963 = vpop.permute.xlu0 %2962
  %2964 = vrot.lane.b32.xlu0 %v2127, 90
  %v2965 = vpop.permute.xlu0 %2964
  %2966 = vrot.lane.b32.xlu0 %v2128, 90
  %v2967 = vpop.permute.xlu0 %2966
  %2968 = vrot.lane.b32.xlu0 %v2129, 90
  %v2969 = vpop.permute.xlu0 %2968
  %v2970 = vsel %vm940, %v2965, %v2967
  %v2971 = vsel %vm940, %v2967, %v2969
  %v2973 = vsel %vm2138, %v2963, 0
  %v2976 = vsel %vm2142, %v2970, 0
  %v2979 = vsel %vm2142, %v2971, 0
  %v2982 = vsel %vm2142, %v2969, 0
  %2984 = vmatprep.subr.bf16.mxu0 0
  %2985 = vmatpush1.bf16.msra.mxu0 0
  %2986 = vmatprep.subr.bf16.mxu0 0
  %2987 = vmatpush1.bf16.msra.mxu0 0
  %2988 = vmatprep.subr.bf16.mxu0 0
  %2989 = vmatpush1.bf16.msra.mxu0 0
  %2990 = vmatprep.subr.bf16.mxu0 0
  %2991 = vmatpush1.bf16.msra.mxu0 0
  %2992 = vmatprep.subr.bf16.mxu0 0
  %2993 = vmatpush1.bf16.msra.mxu0 0
  %2994 = vmatprep.subr.bf16.mxu0 0
  %2995 = vmatpush1.bf16.msra.mxu0 0
  %2996 = vmatprep.subr.bf16.mxu0 0
  %2997 = vmatpush1.bf16.msra.mxu0 0
  %2998 = vmatprep.subr.bf16.mxu0 %v2979
  %2999 = vmatpush1.bf16.msra.mxu0 %v2976
  %3000 = vmatprep.subr.bf16.mxu0 0
  %3001 = vmatpush2.bf16.msra.mxu0 0
  %3002 = vmatprep.subr.bf16.mxu0 0
  %3003 = vmatpush2.bf16.msra.mxu0 0
  %3004 = vmatprep.subr.bf16.mxu0 0
  %3005 = vmatpush2.bf16.msra.mxu0 0
  %3006 = vmatprep.subr.bf16.mxu0 0
  %3007 = vmatpush2.bf16.msra.mxu0 0
  %3008 = vmatprep.subr.bf16.mxu0 0
  %3009 = vmatpush2.bf16.msra.mxu0 0
  %3010 = vmatprep.subr.bf16.mxu0 0
  %3011 = vmatpush2.bf16.msra.mxu0 0
  %3012 = vmatprep.subr.bf16.mxu0 0
  %3013 = vmatpush2.bf16.msra.mxu0 0
  %3014 = vmatprep.subr.bf16.mxu0 0
  %3015 = vmatpush2.bf16.msra.mxu0 0
  %3016 = vmatprep.mubr.bf16.mxu0 0
  %3017 = vmatmul.mubr.bf16.gmra.mxu0 %v2973
  %v3018 = vpop.f32.mrf.mxu0
  %v3019 = vadd.f32 0.0, %v3018
  %v3020 = vpop.f32.mrf.mxu0
  %v3021 = vadd.f32 0.0, %v3020
  %v3022 = vpop.f32.mrf.mxu0
  %v3023 = vpop.f32.mrf.mxu0
  %3024 = vdwg.mxu0
  %3025 = vmatprep.subr.bf16.mxu0 0
  %3026 = vmatpush1.bf16.msra.mxu0 0
  %3027 = vmatprep.subr.bf16.mxu0 0
  %3028 = vmatpush1.bf16.msra.mxu0 0
  %3029 = vmatprep.subr.bf16.mxu0 0
  %3030 = vmatpush1.bf16.msra.mxu0 0
  %3031 = vmatprep.subr.bf16.mxu0 0
  %3032 = vmatpush1.bf16.msra.mxu0 0
  %3033 = vmatprep.subr.bf16.mxu0 0
  %3034 = vmatpush1.bf16.msra.mxu0 0
  %3035 = vmatprep.subr.bf16.mxu0 0
  %3036 = vmatpush1.bf16.msra.mxu0 0
  %3037 = vmatprep.subr.bf16.mxu0 0
  %3038 = vmatpush1.bf16.msra.mxu0 0
  %3039 = vmatprep.subr.bf16.mxu0 0
  %3040 = vmatpush1.bf16.msra.mxu0 %v2982
  %3041 = vmatprep.subr.bf16.mxu0 0
  %3042 = vmatpush2.bf16.msra.mxu0 0
  %3043 = vmatprep.subr.bf16.mxu0 0
  %3044 = vmatpush2.bf16.msra.mxu0 0
  %3045 = vmatprep.subr.bf16.mxu0 0
  %3046 = vmatpush2.bf16.msra.mxu0 0
  %3047 = vmatprep.subr.bf16.mxu0 0
  %3048 = vmatpush2.bf16.msra.mxu0 0
  %3049 = vmatprep.subr.bf16.mxu0 0
  %3050 = vmatpush2.bf16.msra.mxu0 0
  %3051 = vmatprep.subr.bf16.mxu0 0
  %3052 = vmatpush2.bf16.msra.mxu0 0
  %3053 = vmatprep.subr.bf16.mxu0 0
  %3054 = vmatpush2.bf16.msra.mxu0 0
  %3055 = vmatprep.subr.bf16.mxu0 0
  %3056 = vmatpush2.bf16.msra.mxu0 0
  %3057 = vmatprep.mubr.bf16.mxu0 0
  %3058 = vmatmul.mubr.bf16.gmra.mxu0 %v2973
  %v3059 = vpop.f32.mrf.mxu0
  %v3060 = vadd.f32 0.0, %v3059
  %v3061 = vpop.f32.mrf.mxu0
  %v3062 = vpop.f32.mrf.mxu0
  %v3063 = vpop.f32.mrf.mxu0
  %3064 = vdwg.mxu0
  %v3065 = vadd.f32 %v2959, %v3019
  %v3066 = vadd.f32 %v2960, %v3021
  %v3067 = vadd.f32 %v2961, %v3060
  %v3068 = vld [vmem:[%s2110] sm:$0xff]
  %v3069 = vld [vmem:[%s2110 + $0x8] sm:$0xf]
  %v3072 = vunpack.c.l.b16 %v3068
  %v3073 = vunpack.c.h.b16 %v3068
  %v3074 = vunpack.c.l.b16 %v3069
  %v3075 = vpack.c.b16 %v3072, %v3072
  %v3076 = vpack.c.b16 %v3073, %v3073
  %v3077 = vpack.c.b16 %v3074, %v3074
  %3078 = vrot.lane.b32.xlu0 %v3075, 127
  %v3079 = vpop.permute.xlu0 %3078
  %3080 = vrot.lane.b32.xlu0 %v3076, 127
  %v3081 = vpop.permute.xlu0 %3080
  %3082 = vrot.lane.b32.xlu0 %v3077, 127
  %v3083 = vpop.permute.xlu0 %3082
  %v3084 = vsel %vm71, %v3079, %v3081
  %v3085 = vsel %vm71, %v3081, %v3083
  %v3087 = vsel %vm2142, %v3084, 0
  %v3090 = vsel %vm2142, %v3085, 0
  %v3093 = vsel %vm2142, %v3083, 0
  %3095 = vmatprep.subr.bf16.mxu0 0
  %3096 = vmatpush1.bf16.msra.mxu0 0
  %3097 = vmatprep.subr.bf16.mxu0 0
  %3098 = vmatpush1.bf16.msra.mxu0 0
  %3099 = vmatprep.subr.bf16.mxu0 0
  %3100 = vmatpush1.bf16.msra.mxu0 0
  %3101 = vmatprep.subr.bf16.mxu0 0
  %3102 = vmatpush1.bf16.msra.mxu0 0
  %3103 = vmatprep.subr.bf16.mxu0 0
  %3104 = vmatpush1.bf16.msra.mxu0 0
  %3105 = vmatprep.subr.bf16.mxu0 0
  %3106 = vmatpush1.bf16.msra.mxu0 0
  %3107 = vmatprep.subr.bf16.mxu0 0
  %3108 = vmatpush1.bf16.msra.mxu0 0
  %3109 = vmatprep.subr.bf16.mxu0 %v3090
  %3110 = vmatpush1.bf16.msra.mxu0 %v3087
  %3111 = vmatprep.subr.bf16.mxu0 0
  %3112 = vmatpush2.bf16.msra.mxu0 0
  %3113 = vmatprep.subr.bf16.mxu0 0
  %3114 = vmatpush2.bf16.msra.mxu0 0
  %3115 = vmatprep.subr.bf16.mxu0 0
  %3116 = vmatpush2.bf16.msra.mxu0 0
  %3117 = vmatprep.subr.bf16.mxu0 0
  %3118 = vmatpush2.bf16.msra.mxu0 0
  %3119 = vmatprep.subr.bf16.mxu0 0
  %3120 = vmatpush2.bf16.msra.mxu0 0
  %3121 = vmatprep.subr.bf16.mxu0 0
  %3122 = vmatpush2.bf16.msra.mxu0 0
  %3123 = vmatprep.subr.bf16.mxu0 0
  %3124 = vmatpush2.bf16.msra.mxu0 0
  %3125 = vmatprep.subr.bf16.mxu0 0
  %3126 = vmatpush2.bf16.msra.mxu0 0
  %3127 = vmatprep.mubr.bf16.mxu0 0
  %3128 = vmatmul.mubr.bf16.gmra.mxu0 %v2140
  %v3129 = vpop.f32.mrf.mxu0
  %v3130 = vadd.f32 0.0, %v3129
  %v3131 = vpop.f32.mrf.mxu0
  %v3132 = vadd.f32 0.0, %v3131
  %v3133 = vpop.f32.mrf.mxu0
  %v3134 = vpop.f32.mrf.mxu0
  %3135 = vdwg.mxu0
  %3136 = vmatprep.subr.bf16.mxu0 0
  %3137 = vmatpush1.bf16.msra.mxu0 0
  %3138 = vmatprep.subr.bf16.mxu0 0
  %3139 = vmatpush1.bf16.msra.mxu0 0
  %3140 = vmatprep.subr.bf16.mxu0 0
  %3141 = vmatpush1.bf16.msra.mxu0 0
  %3142 = vmatprep.subr.bf16.mxu0 0
  %3143 = vmatpush1.bf16.msra.mxu0 0
  %3144 = vmatprep.subr.bf16.mxu0 0
  %3145 = vmatpush1.bf16.msra.mxu0 0
  %3146 = vmatprep.subr.bf16.mxu0 0
  %3147 = vmatpush1.bf16.msra.mxu0 0
  %3148 = vmatprep.subr.bf16.mxu0 0
  %3149 = vmatpush1.bf16.msra.mxu0 0
  %3150 = vmatprep.subr.bf16.mxu0 0
  %3151 = vmatpush1.bf16.msra.mxu0 %v3093
  %3152 = vmatprep.subr.bf16.mxu0 0
  %3153 = vmatpush2.bf16.msra.mxu0 0
  %3154 = vmatprep.subr.bf16.mxu0 0
  %3155 = vmatpush2.bf16.msra.mxu0 0
  %3156 = vmatprep.subr.bf16.mxu0 0
  %3157 = vmatpush2.bf16.msra.mxu0 0
  %3158 = vmatprep.subr.bf16.mxu0 0
  %3159 = vmatpush2.bf16.msra.mxu0 0
  %3160 = vmatprep.subr.bf16.mxu0 0
  %3161 = vmatpush2.bf16.msra.mxu0 0
  %3162 = vmatprep.subr.bf16.mxu0 0
  %3163 = vmatpush2.bf16.msra.mxu0 0
  %3164 = vmatprep.subr.bf16.mxu0 0
  %3165 = vmatpush2.bf16.msra.mxu0 0
  %3166 = vmatprep.subr.bf16.mxu0 0
  %3167 = vmatpush2.bf16.msra.mxu0 0
  %3168 = vmatprep.mubr.bf16.mxu0 0
  %3169 = vmatmul.mubr.bf16.gmra.mxu0 %v2140
  %v3170 = vpop.f32.mrf.mxu0
  %v3171 = vadd.f32 0.0, %v3170
  %v3172 = vpop.f32.mrf.mxu0
  %v3173 = vpop.f32.mrf.mxu0
  %v3174 = vpop.f32.mrf.mxu0
  %3175 = vdwg.mxu0
  %v3177 = vsel %vm2142, %v3075, 0
  %v3180 = vsel %vm2142, %v3076, 0
  %v3183 = vsel %vm2142, %v3077, 0
  %3185 = vmatprep.subr.bf16.mxu0 0
  %3186 = vmatpush1.bf16.msra.mxu0 0
  %3187 = vmatprep.subr.bf16.mxu0 0
  %3188 = vmatpush1.bf16.msra.mxu0 0
  %3189 = vmatprep.subr.bf16.mxu0 0
  %3190 = vmatpush1.bf16.msra.mxu0 0
  %3191 = vmatprep.subr.bf16.mxu0 0
  %3192 = vmatpush1.bf16.msra.mxu0 0
  %3193 = vmatprep.subr.bf16.mxu0 0
  %3194 = vmatpush1.bf16.msra.mxu0 0
  %3195 = vmatprep.subr.bf16.mxu0 0
  %3196 = vmatpush1.bf16.msra.mxu0 0
  %3197 = vmatprep.subr.bf16.mxu0 0
  %3198 = vmatpush1.bf16.msra.mxu0 0
  %3199 = vmatprep.subr.bf16.mxu0 %v3180
  %3200 = vmatpush1.bf16.msra.mxu0 %v3177
  %3201 = vmatprep.subr.bf16.mxu0 0
  %3202 = vmatpush2.bf16.msra.mxu0 0
  %3203 = vmatprep.subr.bf16.mxu0 0
  %3204 = vmatpush2.bf16.msra.mxu0 0
  %3205 = vmatprep.subr.bf16.mxu0 0
  %3206 = vmatpush2.bf16.msra.mxu0 0
  %3207 = vmatprep.subr.bf16.mxu0 0
  %3208 = vmatpush2.bf16.msra.mxu0 0
  %3209 = vmatprep.subr.bf16.mxu0 0
  %3210 = vmatpush2.bf16.msra.mxu0 0
  %3211 = vmatprep.subr.bf16.mxu0 0
  %3212 = vmatpush2.bf16.msra.mxu0 0
  %3213 = vmatprep.subr.bf16.mxu0 0
  %3214 = vmatpush2.bf16.msra.mxu0 0
  %3215 = vmatprep.subr.bf16.mxu0 0
  %3216 = vmatpush2.bf16.msra.mxu0 0
  %3217 = vmatprep.mubr.bf16.mxu0 0
  %3218 = vmatmul.mubr.bf16.gmra.mxu0 %v2234
  %v3219 = vpop.f32.mrf.mxu0
  %v3220 = vadd.f32 %v3130, %v3219
  %v3221 = vpop.f32.mrf.mxu0
  %v3222 = vadd.f32 %v3132, %v3221
  %v3223 = vpop.f32.mrf.mxu0
  %v3224 = vpop.f32.mrf.mxu0
  %3225 = vdwg.mxu0
  %3226 = vmatprep.subr.bf16.mxu0 0
  %3227 = vmatpush1.bf16.msra.mxu0 0
  %3228 = vmatprep.subr.bf16.mxu0 0
  %3229 = vmatpush1.bf16.msra.mxu0 0
  %3230 = vmatprep.subr.bf16.mxu0 0
  %3231 = vmatpush1.bf16.msra.mxu0 0
  %3232 = vmatprep.subr.bf16.mxu0 0
  %3233 = vmatpush1.bf16.msra.mxu0 0
  %3234 = vmatprep.subr.bf16.mxu0 0
  %3235 = vmatpush1.bf16.msra.mxu0 0
  %3236 = vmatprep.subr.bf16.mxu0 0
  %3237 = vmatpush1.bf16.msra.mxu0 0
  %3238 = vmatprep.subr.bf16.mxu0 0
  %3239 = vmatpush1.bf16.msra.mxu0 0
  %3240 = vmatprep.subr.bf16.mxu0 0
  %3241 = vmatpush1.bf16.msra.mxu0 %v3183
  %3242 = vmatprep.subr.bf16.mxu0 0
  %3243 = vmatpush2.bf16.msra.mxu0 0
  %3244 = vmatprep.subr.bf16.mxu0 0
  %3245 = vmatpush2.bf16.msra.mxu0 0
  %3246 = vmatprep.subr.bf16.mxu0 0
  %3247 = vmatpush2.bf16.msra.mxu0 0
  %3248 = vmatprep.subr.bf16.mxu0 0
  %3249 = vmatpush2.bf16.msra.mxu0 0
  %3250 = vmatprep.subr.bf16.mxu0 0
  %3251 = vmatpush2.bf16.msra.mxu0 0
  %3252 = vmatprep.subr.bf16.mxu0 0
  %3253 = vmatpush2.bf16.msra.mxu0 0
  %3254 = vmatprep.subr.bf16.mxu0 0
  %3255 = vmatpush2.bf16.msra.mxu0 0
  %3256 = vmatprep.subr.bf16.mxu0 0
  %3257 = vmatpush2.bf16.msra.mxu0 0
  %3258 = vmatprep.mubr.bf16.mxu0 0
  %3259 = vmatmul.mubr.bf16.gmra.mxu0 %v2234
  %v3260 = vpop.f32.mrf.mxu0
  %v3261 = vadd.f32 %v3171, %v3260
  %v3262 = vpop.f32.mrf.mxu0
  %v3263 = vpop.f32.mrf.mxu0
  %v3264 = vpop.f32.mrf.mxu0
  %3265 = vdwg.mxu0
  %3266 = vrot.lane.b32.xlu0 %v3075, 126
  %v3267 = vpop.permute.xlu0 %3266
  %3268 = vrot.lane.b32.xlu0 %v3076, 126
  %v3269 = vpop.permute.xlu0 %3268
  %3270 = vrot.lane.b32.xlu0 %v3077, 126
  %v3271 = vpop.permute.xlu0 %3270
  %v3272 = vsel %vm274, %v3267, %v3269
  %v3273 = vsel %vm274, %v3269, %v3271
  %v3275 = vsel %vm2142, %v3272, 0
  %v3278 = vsel %vm2142, %v3273, 0
  %v3281 = vsel %vm2142, %v3271, 0
  %3283 = vmatprep.subr.bf16.mxu0 0
  %3284 = vmatpush1.bf16.msra.mxu0 0
  %3285 = vmatprep.subr.bf16.mxu0 0
  %3286 = vmatpush1.bf16.msra.mxu0 0
  %3287 = vmatprep.subr.bf16.mxu0 0
  %3288 = vmatpush1.bf16.msra.mxu0 0
  %3289 = vmatprep.subr.bf16.mxu0 0
  %3290 = vmatpush1.bf16.msra.mxu0 0
  %3291 = vmatprep.subr.bf16.mxu0 0
  %3292 = vmatpush1.bf16.msra.mxu0 0
  %3293 = vmatprep.subr.bf16.mxu0 0
  %3294 = vmatpush1.bf16.msra.mxu0 0
  %3295 = vmatprep.subr.bf16.mxu0 0
  %3296 = vmatpush1.bf16.msra.mxu0 0
  %3297 = vmatprep.subr.bf16.mxu0 %v3278
  %3298 = vmatpush1.bf16.msra.mxu0 %v3275
  %3299 = vmatprep.subr.bf16.mxu0 0
  %3300 = vmatpush2.bf16.msra.mxu0 0
  %3301 = vmatprep.subr.bf16.mxu0 0
  %3302 = vmatpush2.bf16.msra.mxu0 0
  %3303 = vmatprep.subr.bf16.mxu0 0
  %3304 = vmatpush2.bf16.msra.mxu0 0
  %3305 = vmatprep.subr.bf16.mxu0 0
  %3306 = vmatpush2.bf16.msra.mxu0 0
  %3307 = vmatprep.subr.bf16.mxu0 0
  %3308 = vmatpush2.bf16.msra.mxu0 0
  %3309 = vmatprep.subr.bf16.mxu0 0
  %3310 = vmatpush2.bf16.msra.mxu0 0
  %3311 = vmatprep.subr.bf16.mxu0 0
  %3312 = vmatpush2.bf16.msra.mxu0 0
  %3313 = vmatprep.subr.bf16.mxu0 0
  %3314 = vmatpush2.bf16.msra.mxu0 0
  %3315 = vmatprep.mubr.bf16.mxu0 0
  %3316 = vmatmul.mubr.bf16.gmra.mxu0 %v2337
  %v3317 = vpop.f32.mrf.mxu0
  %v3318 = vadd.f32 0.0, %v3317
  %v3319 = vpop.f32.mrf.mxu0
  %v3320 = vadd.f32 0.0, %v3319
  %v3321 = vpop.f32.mrf.mxu0
  %v3322 = vpop.f32.mrf.mxu0
  %3323 = vdwg.mxu0
  %3324 = vmatprep.subr.bf16.mxu0 0
  %3325 = vmatpush1.bf16.msra.mxu0 0
  %3326 = vmatprep.subr.bf16.mxu0 0
  %3327 = vmatpush1.bf16.msra.mxu0 0
  %3328 = vmatprep.subr.bf16.mxu0 0
  %3329 = vmatpush1.bf16.msra.mxu0 0
  %3330 = vmatprep.subr.bf16.mxu0 0
  %3331 = vmatpush1.bf16.msra.mxu0 0
  %3332 = vmatprep.subr.bf16.mxu0 0
  %3333 = vmatpush1.bf16.msra.mxu0 0
  %3334 = vmatprep.subr.bf16.mxu0 0
  %3335 = vmatpush1.bf16.msra.mxu0 0
  %3336 = vmatprep.subr.bf16.mxu0 0
  %3337 = vmatpush1.bf16.msra.mxu0 0
  %3338 = vmatprep.subr.bf16.mxu0 0
  %3339 = vmatpush1.bf16.msra.mxu0 %v3281
  %3340 = vmatprep.subr.bf16.mxu0 0
  %3341 = vmatpush2.bf16.msra.mxu0 0
  %3342 = vmatprep.subr.bf16.mxu0 0
  %3343 = vmatpush2.bf16.msra.mxu0 0
  %3344 = vmatprep.subr.bf16.mxu0 0
  %3345 = vmatpush2.bf16.msra.mxu0 0
  %3346 = vmatprep.subr.bf16.mxu0 0
  %3347 = vmatpush2.bf16.msra.mxu0 0
  %3348 = vmatprep.subr.bf16.mxu0 0
  %3349 = vmatpush2.bf16.msra.mxu0 0
  %3350 = vmatprep.subr.bf16.mxu0 0
  %3351 = vmatpush2.bf16.msra.mxu0 0
  %3352 = vmatprep.subr.bf16.mxu0 0
  %3353 = vmatpush2.bf16.msra.mxu0 0
  %3354 = vmatprep.subr.bf16.mxu0 0
  %3355 = vmatpush2.bf16.msra.mxu0 0
  %3356 = vmatprep.mubr.bf16.mxu0 0
  %3357 = vmatmul.mubr.bf16.gmra.mxu0 %v2337
  %v3358 = vpop.f32.mrf.mxu0
  %v3359 = vadd.f32 0.0, %v3358
  %v3360 = vpop.f32.mrf.mxu0
  %v3361 = vpop.f32.mrf.mxu0
  %v3362 = vpop.f32.mrf.mxu0
  %3363 = vdwg.mxu0
  %v3364 = vadd.f32 %v3220, %v3318
  %v3365 = vadd.f32 %v3222, %v3320
  %v3366 = vadd.f32 %v3261, %v3359
  %3367 = vrot.lane.b32.xlu0 %v3075, 110
  %v3368 = vpop.permute.xlu0 %3367
  %3369 = vrot.lane.b32.xlu0 %v3076, 110
  %v3370 = vpop.permute.xlu0 %3369
  %3371 = vrot.lane.b32.xlu0 %v3077, 110
  %v3372 = vpop.permute.xlu0 %3371
  %v3373 = vsel %vm385, %v3368, %v3370
  %v3374 = vsel %vm385, %v3370, %v3372
  %v3376 = vsel %vm2142, %v3373, 0
  %v3379 = vsel %vm2142, %v3374, 0
  %v3382 = vsel %vm2142, %v3372, 0
  %3384 = vmatprep.subr.bf16.mxu0 0
  %3385 = vmatpush1.bf16.msra.mxu0 0
  %3386 = vmatprep.subr.bf16.mxu0 0
  %3387 = vmatpush1.bf16.msra.mxu0 0
  %3388 = vmatprep.subr.bf16.mxu0 0
  %3389 = vmatpush1.bf16.msra.mxu0 0
  %3390 = vmatprep.subr.bf16.mxu0 0
  %3391 = vmatpush1.bf16.msra.mxu0 0
  %3392 = vmatprep.subr.bf16.mxu0 0
  %3393 = vmatpush1.bf16.msra.mxu0 0
  %3394 = vmatprep.subr.bf16.mxu0 0
  %3395 = vmatpush1.bf16.msra.mxu0 0
  %3396 = vmatprep.subr.bf16.mxu0 0
  %3397 = vmatpush1.bf16.msra.mxu0 0
  %3398 = vmatprep.subr.bf16.mxu0 %v3379
  %3399 = vmatpush1.bf16.msra.mxu0 %v3376
  %3400 = vmatprep.subr.bf16.mxu0 0
  %3401 = vmatpush2.bf16.msra.mxu0 0
  %3402 = vmatprep.subr.bf16.mxu0 0
  %3403 = vmatpush2.bf16.msra.mxu0 0
  %3404 = vmatprep.subr.bf16.mxu0 0
  %3405 = vmatpush2.bf16.msra.mxu0 0
  %3406 = vmatprep.subr.bf16.mxu0 0
  %3407 = vmatpush2.bf16.msra.mxu0 0
  %3408 = vmatprep.subr.bf16.mxu0 0
  %3409 = vmatpush2.bf16.msra.mxu0 0
  %3410 = vmatprep.subr.bf16.mxu0 0
  %3411 = vmatpush2.bf16.msra.mxu0 0
  %3412 = vmatprep.subr.bf16.mxu0 0
  %3413 = vmatpush2.bf16.msra.mxu0 0
  %3414 = vmatprep.subr.bf16.mxu0 0
  %3415 = vmatpush2.bf16.msra.mxu0 0
  %3416 = vmatprep.mubr.bf16.mxu0 0
  %3417 = vmatmul.mubr.bf16.gmra.mxu0 %v2443
  %v3418 = vpop.f32.mrf.mxu0
  %v3419 = vadd.f32 0.0, %v3418
  %v3420 = vpop.f32.mrf.mxu0
  %v3421 = vadd.f32 0.0, %v3420
  %v3422 = vpop.f32.mrf.mxu0
  %v3423 = vpop.f32.mrf.mxu0
  %3424 = vdwg.mxu0
  %3425 = vmatprep.subr.bf16.mxu0 0
  %3426 = vmatpush1.bf16.msra.mxu0 0
  %3427 = vmatprep.subr.bf16.mxu0 0
  %3428 = vmatpush1.bf16.msra.mxu0 0
  %3429 = vmatprep.subr.bf16.mxu0 0
  %3430 = vmatpush1.bf16.msra.mxu0 0
  %3431 = vmatprep.subr.bf16.mxu0 0
  %3432 = vmatpush1.bf16.msra.mxu0 0
  %3433 = vmatprep.subr.bf16.mxu0 0
  %3434 = vmatpush1.bf16.msra.mxu0 0
  %3435 = vmatprep.subr.bf16.mxu0 0
  %3436 = vmatpush1.bf16.msra.mxu0 0
  %3437 = vmatprep.subr.bf16.mxu0 0
  %3438 = vmatpush1.bf16.msra.mxu0 0
  %3439 = vmatprep.subr.bf16.mxu0 0
  %3440 = vmatpush1.bf16.msra.mxu0 %v3382
  %3441 = vmatprep.subr.bf16.mxu0 0
  %3442 = vmatpush2.bf16.msra.mxu0 0
  %3443 = vmatprep.subr.bf16.mxu0 0
  %3444 = vmatpush2.bf16.msra.mxu0 0
  %3445 = vmatprep.subr.bf16.mxu0 0
  %3446 = vmatpush2.bf16.msra.mxu0 0
  %3447 = vmatprep.subr.bf16.mxu0 0
  %3448 = vmatpush2.bf16.msra.mxu0 0
  %3449 = vmatprep.subr.bf16.mxu0 0
  %3450 = vmatpush2.bf16.msra.mxu0 0
  %3451 = vmatprep.subr.bf16.mxu0 0
  %3452 = vmatpush2.bf16.msra.mxu0 0
  %3453 = vmatprep.subr.bf16.mxu0 0
  %3454 = vmatpush2.bf16.msra.mxu0 0
  %3455 = vmatprep.subr.bf16.mxu0 0
  %3456 = vmatpush2.bf16.msra.mxu0 0
  %3457 = vmatprep.mubr.bf16.mxu0 0
  %3458 = vmatmul.mubr.bf16.gmra.mxu0 %v2443
  %v3459 = vpop.f32.mrf.mxu0
  %v3460 = vadd.f32 0.0, %v3459
  %v3461 = vpop.f32.mrf.mxu0
  %v3462 = vpop.f32.mrf.mxu0
  %v3463 = vpop.f32.mrf.mxu0
  %3464 = vdwg.mxu0
  %v3465 = vadd.f32 %v3364, %v3419
  %v3466 = vadd.f32 %v3365, %v3421
  %v3467 = vadd.f32 %v3366, %v3460
  %3468 = vrot.lane.b32.xlu0 %v3075, 109
  %v3469 = vpop.permute.xlu0 %3468
  %3470 = vrot.lane.b32.xlu0 %v3076, 109
  %v3471 = vpop.permute.xlu0 %3470
  %3472 = vrot.lane.b32.xlu0 %v3077, 109
  %v3473 = vpop.permute.xlu0 %3472
  %v3474 = vsel %vm496, %v3469, %v3471
  %v3475 = vsel %vm496, %v3471, %v3473
  %v3477 = vsel %vm2142, %v3474, 0
  %v3480 = vsel %vm2142, %v3475, 0
  %v3483 = vsel %vm2142, %v3473, 0
  %3485 = vmatprep.subr.bf16.mxu0 0
  %3486 = vmatpush1.bf16.msra.mxu0 0
  %3487 = vmatprep.subr.bf16.mxu0 0
  %3488 = vmatpush1.bf16.msra.mxu0 0
  %3489 = vmatprep.subr.bf16.mxu0 0
  %3490 = vmatpush1.bf16.msra.mxu0 0
  %3491 = vmatprep.subr.bf16.mxu0 0
  %3492 = vmatpush1.bf16.msra.mxu0 0
  %3493 = vmatprep.subr.bf16.mxu0 0
  %3494 = vmatpush1.bf16.msra.mxu0 0
  %3495 = vmatprep.subr.bf16.mxu0 0
  %3496 = vmatpush1.bf16.msra.mxu0 0
  %3497 = vmatprep.subr.bf16.mxu0 0
  %3498 = vmatpush1.bf16.msra.mxu0 0
  %3499 = vmatprep.subr.bf16.mxu0 %v3480
  %3500 = vmatpush1.bf16.msra.mxu0 %v3477
  %3501 = vmatprep.subr.bf16.mxu0 0
  %3502 = vmatpush2.bf16.msra.mxu0 0
  %3503 = vmatprep.subr.bf16.mxu0 0
  %3504 = vmatpush2.bf16.msra.mxu0 0
  %3505 = vmatprep.subr.bf16.mxu0 0
  %3506 = vmatpush2.bf16.msra.mxu0 0
  %3507 = vmatprep.subr.bf16.mxu0 0
  %3508 = vmatpush2.bf16.msra.mxu0 0
  %3509 = vmatprep.subr.bf16.mxu0 0
  %3510 = vmatpush2.bf16.msra.mxu0 0
  %3511 = vmatprep.subr.bf16.mxu0 0
  %3512 = vmatpush2.bf16.msra.mxu0 0
  %3513 = vmatprep.subr.bf16.mxu0 0
  %3514 = vmatpush2.bf16.msra.mxu0 0
  %3515 = vmatprep.subr.bf16.mxu0 0
  %3516 = vmatpush2.bf16.msra.mxu0 0
  %3517 = vmatprep.mubr.bf16.mxu0 0
  %3518 = vmatmul.mubr.bf16.gmra.mxu0 %v2549
  %v3519 = vpop.f32.mrf.mxu0
  %v3520 = vadd.f32 0.0, %v3519
  %v3521 = vpop.f32.mrf.mxu0
  %v3522 = vadd.f32 0.0, %v3521
  %v3523 = vpop.f32.mrf.mxu0
  %v3524 = vpop.f32.mrf.mxu0
  %3525 = vdwg.mxu0
  %3526 = vmatprep.subr.bf16.mxu0 0
  %3527 = vmatpush1.bf16.msra.mxu0 0
  %3528 = vmatprep.subr.bf16.mxu0 0
  %3529 = vmatpush1.bf16.msra.mxu0 0
  %3530 = vmatprep.subr.bf16.mxu0 0
  %3531 = vmatpush1.bf16.msra.mxu0 0
  %3532 = vmatprep.subr.bf16.mxu0 0
  %3533 = vmatpush1.bf16.msra.mxu0 0
  %3534 = vmatprep.subr.bf16.mxu0 0
  %3535 = vmatpush1.bf16.msra.mxu0 0
  %3536 = vmatprep.subr.bf16.mxu0 0
  %3537 = vmatpush1.bf16.msra.mxu0 0
  %3538 = vmatprep.subr.bf16.mxu0 0
  %3539 = vmatpush1.bf16.msra.mxu0 0
  %3540 = vmatprep.subr.bf16.mxu0 0
  %3541 = vmatpush1.bf16.msra.mxu0 %v3483
  %3542 = vmatprep.subr.bf16.mxu0 0
  %3543 = vmatpush2.bf16.msra.mxu0 0
  %3544 = vmatprep.subr.bf16.mxu0 0
  %3545 = vmatpush2.bf16.msra.mxu0 0
  %3546 = vmatprep.subr.bf16.mxu0 0
  %3547 = vmatpush2.bf16.msra.mxu0 0
  %3548 = vmatprep.subr.bf16.mxu0 0
  %3549 = vmatpush2.bf16.msra.mxu0 0
  %3550 = vmatprep.subr.bf16.mxu0 0
  %3551 = vmatpush2.bf16.msra.mxu0 0
  %3552 = vmatprep.subr.bf16.mxu0 0
  %3553 = vmatpush2.bf16.msra.mxu0 0
  %3554 = vmatprep.subr.bf16.mxu0 0
  %3555 = vmatpush2.bf16.msra.mxu0 0
  %3556 = vmatprep.subr.bf16.mxu0 0
  %3557 = vmatpush2.bf16.msra.mxu0 0
  %3558 = vmatprep.mubr.bf16.mxu0 0
  %3559 = vmatmul.mubr.bf16.gmra.mxu0 %v2549
  %v3560 = vpop.f32.mrf.mxu0
  %v3561 = vadd.f32 0.0, %v3560
  %v3562 = vpop.f32.mrf.mxu0
  %v3563 = vpop.f32.mrf.mxu0
  %v3564 = vpop.f32.mrf.mxu0
  %3565 = vdwg.mxu0
  %v3566 = vadd.f32 %v3465, %v3520
  %v3567 = vadd.f32 %v3466, %v3522
  %v3568 = vadd.f32 %v3467, %v3561
  %3569 = vrot.lane.b32.xlu0 %v3075, 108
  %v3570 = vpop.permute.xlu0 %3569
  %3571 = vrot.lane.b32.xlu0 %v3076, 108
  %v3572 = vpop.permute.xlu0 %3571
  %3573 = vrot.lane.b32.xlu0 %v3077, 108
  %v3574 = vpop.permute.xlu0 %3573
  %v3575 = vsel %vm607, %v3570, %v3572
  %v3576 = vsel %vm607, %v3572, %v3574
  %v3578 = vsel %vm2142, %v3575, 0
  %v3581 = vsel %vm2142, %v3576, 0
  %v3584 = vsel %vm2142, %v3574, 0
  %3586 = vmatprep.subr.bf16.mxu0 0
  %3587 = vmatpush1.bf16.msra.mxu0 0
  %3588 = vmatprep.subr.bf16.mxu0 0
  %3589 = vmatpush1.bf16.msra.mxu0 0
  %3590 = vmatprep.subr.bf16.mxu0 0
  %3591 = vmatpush1.bf16.msra.mxu0 0
  %3592 = vmatprep.subr.bf16.mxu0 0
  %3593 = vmatpush1.bf16.msra.mxu0 0
  %3594 = vmatprep.subr.bf16.mxu0 0
  %3595 = vmatpush1.bf16.msra.mxu0 0
  %3596 = vmatprep.subr.bf16.mxu0 0
  %3597 = vmatpush1.bf16.msra.mxu0 0
  %3598 = vmatprep.subr.bf16.mxu0 0
  %3599 = vmatpush1.bf16.msra.mxu0 0
  %3600 = vmatprep.subr.bf16.mxu0 %v3581
  %3601 = vmatpush1.bf16.msra.mxu0 %v3578
  %3602 = vmatprep.subr.bf16.mxu0 0
  %3603 = vmatpush2.bf16.msra.mxu0 0
  %3604 = vmatprep.subr.bf16.mxu0 0
  %3605 = vmatpush2.bf16.msra.mxu0 0
  %3606 = vmatprep.subr.bf16.mxu0 0
  %3607 = vmatpush2.bf16.msra.mxu0 0
  %3608 = vmatprep.subr.bf16.mxu0 0
  %3609 = vmatpush2.bf16.msra.mxu0 0
  %3610 = vmatprep.subr.bf16.mxu0 0
  %3611 = vmatpush2.bf16.msra.mxu0 0
  %3612 = vmatprep.subr.bf16.mxu0 0
  %3613 = vmatpush2.bf16.msra.mxu0 0
  %3614 = vmatprep.subr.bf16.mxu0 0
  %3615 = vmatpush2.bf16.msra.mxu0 0
  %3616 = vmatprep.subr.bf16.mxu0 0
  %3617 = vmatpush2.bf16.msra.mxu0 0
  %3618 = vmatprep.mubr.bf16.mxu0 0
  %3619 = vmatmul.mubr.bf16.gmra.mxu0 %v2655
  %v3620 = vpop.f32.mrf.mxu0
  %v3621 = vadd.f32 0.0, %v3620
  %v3622 = vpop.f32.mrf.mxu0
  %v3623 = vadd.f32 0.0, %v3622
  %v3624 = vpop.f32.mrf.mxu0
  %v3625 = vpop.f32.mrf.mxu0
  %3626 = vdwg.mxu0
  %3627 = vmatprep.subr.bf16.mxu0 0
  %3628 = vmatpush1.bf16.msra.mxu0 0
  %3629 = vmatprep.subr.bf16.mxu0 0
  %3630 = vmatpush1.bf16.msra.mxu0 0
  %3631 = vmatprep.subr.bf16.mxu0 0
  %3632 = vmatpush1.bf16.msra.mxu0 0
  %3633 = vmatprep.subr.bf16.mxu0 0
  %3634 = vmatpush1.bf16.msra.mxu0 0
  %3635 = vmatprep.subr.bf16.mxu0 0
  %3636 = vmatpush1.bf16.msra.mxu0 0
  %3637 = vmatprep.subr.bf16.mxu0 0
  %3638 = vmatpush1.bf16.msra.mxu0 0
  %3639 = vmatprep.subr.bf16.mxu0 0
  %3640 = vmatpush1.bf16.msra.mxu0 0
  %3641 = vmatprep.subr.bf16.mxu0 0
  %3642 = vmatpush1.bf16.msra.mxu0 %v3584
  %3643 = vmatprep.subr.bf16.mxu0 0
  %3644 = vmatpush2.bf16.msra.mxu0 0
  %3645 = vmatprep.subr.bf16.mxu0 0
  %3646 = vmatpush2.bf16.msra.mxu0 0
  %3647 = vmatprep.subr.bf16.mxu0 0
  %3648 = vmatpush2.bf16.msra.mxu0 0
  %3649 = vmatprep.subr.bf16.mxu0 0
  %3650 = vmatpush2.bf16.msra.mxu0 0
  %3651 = vmatprep.subr.bf16.mxu0 0
  %3652 = vmatpush2.bf16.msra.mxu0 0
  %3653 = vmatprep.subr.bf16.mxu0 0
  %3654 = vmatpush2.bf16.msra.mxu0 0
  %3655 = vmatprep.subr.bf16.mxu0 0
  %3656 = vmatpush2.bf16.msra.mxu0 0
  %3657 = vmatprep.subr.bf16.mxu0 0
  %3658 = vmatpush2.bf16.msra.mxu0 0
  %3659 = vmatprep.mubr.bf16.mxu0 0
  %3660 = vmatmul.mubr.bf16.gmra.mxu0 %v2655
  %v3661 = vpop.f32.mrf.mxu0
  %v3662 = vadd.f32 0.0, %v3661
  %v3663 = vpop.f32.mrf.mxu0
  %v3664 = vpop.f32.mrf.mxu0
  %v3665 = vpop.f32.mrf.mxu0
  %3666 = vdwg.mxu0
  %v3667 = vadd.f32 %v3566, %v3621
  %v3668 = vadd.f32 %v3567, %v3623
  %v3669 = vadd.f32 %v3568, %v3662
  %3670 = vrot.lane.b32.xlu0 %v3075, 92
  %v3671 = vpop.permute.xlu0 %3670
  %3672 = vrot.lane.b32.xlu0 %v3076, 92
  %v3673 = vpop.permute.xlu0 %3672
  %3674 = vrot.lane.b32.xlu0 %v3077, 92
  %v3675 = vpop.permute.xlu0 %3674
  %v3676 = vsel %vm718, %v3671, %v3673
  %v3677 = vsel %vm718, %v3673, %v3675
  %v3679 = vsel %vm2142, %v3676, 0
  %v3682 = vsel %vm2142, %v3677, 0
  %v3685 = vsel %vm2142, %v3675, 0
  %3687 = vmatprep.subr.bf16.mxu0 0
  %3688 = vmatpush1.bf16.msra.mxu0 0
  %3689 = vmatprep.subr.bf16.mxu0 0
  %3690 = vmatpush1.bf16.msra.mxu0 0
  %3691 = vmatprep.subr.bf16.mxu0 0
  %3692 = vmatpush1.bf16.msra.mxu0 0
  %3693 = vmatprep.subr.bf16.mxu0 0
  %3694 = vmatpush1.bf16.msra.mxu0 0
  %3695 = vmatprep.subr.bf16.mxu0 0
  %3696 = vmatpush1.bf16.msra.mxu0 0
  %3697 = vmatprep.subr.bf16.mxu0 0
  %3698 = vmatpush1.bf16.msra.mxu0 0
  %3699 = vmatprep.subr.bf16.mxu0 0
  %3700 = vmatpush1.bf16.msra.mxu0 0
  %3701 = vmatprep.subr.bf16.mxu0 %v3682
  %3702 = vmatpush1.bf16.msra.mxu0 %v3679
  %3703 = vmatprep.subr.bf16.mxu0 0
  %3704 = vmatpush2.bf16.msra.mxu0 0
  %3705 = vmatprep.subr.bf16.mxu0 0
  %3706 = vmatpush2.bf16.msra.mxu0 0
  %3707 = vmatprep.subr.bf16.mxu0 0
  %3708 = vmatpush2.bf16.msra.mxu0 0
  %3709 = vmatprep.subr.bf16.mxu0 0
  %3710 = vmatpush2.bf16.msra.mxu0 0
  %3711 = vmatprep.subr.bf16.mxu0 0
  %3712 = vmatpush2.bf16.msra.mxu0 0
  %3713 = vmatprep.subr.bf16.mxu0 0
  %3714 = vmatpush2.bf16.msra.mxu0 0
  %3715 = vmatprep.subr.bf16.mxu0 0
  %3716 = vmatpush2.bf16.msra.mxu0 0
  %3717 = vmatprep.subr.bf16.mxu0 0
  %3718 = vmatpush2.bf16.msra.mxu0 0
  %3719 = vmatprep.mubr.bf16.mxu0 0
  %3720 = vmatmul.mubr.bf16.gmra.mxu0 %v2761
  %v3721 = vpop.f32.mrf.mxu0
  %v3722 = vadd.f32 0.0, %v3721
  %v3723 = vpop.f32.mrf.mxu0
  %v3724 = vadd.f32 0.0, %v3723
  %v3725 = vpop.f32.mrf.mxu0
  %v3726 = vpop.f32.mrf.mxu0
  %3727 = vdwg.mxu0
  %3728 = vmatprep.subr.bf16.mxu0 0
  %3729 = vmatpush1.bf16.msra.mxu0 0
  %3730 = vmatprep.subr.bf16.mxu0 0
  %3731 = vmatpush1.bf16.msra.mxu0 0
  %3732 = vmatprep.subr.bf16.mxu0 0
  %3733 = vmatpush1.bf16.msra.mxu0 0
  %3734 = vmatprep.subr.bf16.mxu0 0
  %3735 = vmatpush1.bf16.msra.mxu0 0
  %3736 = vmatprep.subr.bf16.mxu0 0
  %3737 = vmatpush1.bf16.msra.mxu0 0
  %3738 = vmatprep.subr.bf16.mxu0 0
  %3739 = vmatpush1.bf16.msra.mxu0 0
  %3740 = vmatprep.subr.bf16.mxu0 0
  %3741 = vmatpush1.bf16.msra.mxu0 0
  %3742 = vmatprep.subr.bf16.mxu0 0
  %3743 = vmatpush1.bf16.msra.mxu0 %v3685
  %3744 = vmatprep.subr.bf16.mxu0 0
  %3745 = vmatpush2.bf16.msra.mxu0 0
  %3746 = vmatprep.subr.bf16.mxu0 0
  %3747 = vmatpush2.bf16.msra.mxu0 0
  %3748 = vmatprep.subr.bf16.mxu0 0
  %3749 = vmatpush2.bf16.msra.mxu0 0
  %3750 = vmatprep.subr.bf16.mxu0 0
  %3751 = vmatpush2.bf16.msra.mxu0 0
  %3752 = vmatprep.subr.bf16.mxu0 0
  %3753 = vmatpush2.bf16.msra.mxu0 0
  %3754 = vmatprep.subr.bf16.mxu0 0
  %3755 = vmatpush2.bf16.msra.mxu0 0
  %3756 = vmatprep.subr.bf16.mxu0 0
  %3757 = vmatpush2.bf16.msra.mxu0 0
  %3758 = vmatprep.subr.bf16.mxu0 0
  %3759 = vmatpush2.bf16.msra.mxu0 0
  %3760 = vmatprep.mubr.bf16.mxu0 0
  %3761 = vmatmul.mubr.bf16.gmra.mxu0 %v2761
  %v3762 = vpop.f32.mrf.mxu0
  %v3763 = vadd.f32 0.0, %v3762
  %v3764 = vpop.f32.mrf.mxu0
  %v3765 = vpop.f32.mrf.mxu0
  %v3766 = vpop.f32.mrf.mxu0
  %3767 = vdwg.mxu0
  %v3768 = vadd.f32 %v3667, %v3722
  %v3769 = vadd.f32 %v3668, %v3724
  %v3770 = vadd.f32 %v3669, %v3763
  %3771 = vrot.lane.b32.xlu0 %v3075, 91
  %v3772 = vpop.permute.xlu0 %3771
  %3773 = vrot.lane.b32.xlu0 %v3076, 91
  %v3774 = vpop.permute.xlu0 %3773
  %3775 = vrot.lane.b32.xlu0 %v3077, 91
  %v3776 = vpop.permute.xlu0 %3775
  %v3777 = vsel %vm829, %v3772, %v3774
  %v3778 = vsel %vm829, %v3774, %v3776
  %v3780 = vsel %vm2142, %v3777, 0
  %v3783 = vsel %vm2142, %v3778, 0
  %v3786 = vsel %vm2142, %v3776, 0
  %3788 = vmatprep.subr.bf16.mxu0 0
  %3789 = vmatpush1.bf16.msra.mxu0 0
  %3790 = vmatprep.subr.bf16.mxu0 0
  %3791 = vmatpush1.bf16.msra.mxu0 0
  %3792 = vmatprep.subr.bf16.mxu0 0
  %3793 = vmatpush1.bf16.msra.mxu0 0
  %3794 = vmatprep.subr.bf16.mxu0 0
  %3795 = vmatpush1.bf16.msra.mxu0 0
  %3796 = vmatprep.subr.bf16.mxu0 0
  %3797 = vmatpush1.bf16.msra.mxu0 0
  %3798 = vmatprep.subr.bf16.mxu0 0
  %3799 = vmatpush1.bf16.msra.mxu0 0
  %3800 = vmatprep.subr.bf16.mxu0 0
  %3801 = vmatpush1.bf16.msra.mxu0 0
  %3802 = vmatprep.subr.bf16.mxu0 %v3783
  %3803 = vmatpush1.bf16.msra.mxu0 %v3780
  %3804 = vmatprep.subr.bf16.mxu0 0
  %3805 = vmatpush2.bf16.msra.mxu0 0
  %3806 = vmatprep.subr.bf16.mxu0 0
  %3807 = vmatpush2.bf16.msra.mxu0 0
  %3808 = vmatprep.subr.bf16.mxu0 0
  %3809 = vmatpush2.bf16.msra.mxu0 0
  %3810 = vmatprep.subr.bf16.mxu0 0
  %3811 = vmatpush2.bf16.msra.mxu0 0
  %3812 = vmatprep.subr.bf16.mxu0 0
  %3813 = vmatpush2.bf16.msra.mxu0 0
  %3814 = vmatprep.subr.bf16.mxu0 0
  %3815 = vmatpush2.bf16.msra.mxu0 0
  %3816 = vmatprep.subr.bf16.mxu0 0
  %3817 = vmatpush2.bf16.msra.mxu0 0
  %3818 = vmatprep.subr.bf16.mxu0 0
  %3819 = vmatpush2.bf16.msra.mxu0 0
  %3820 = vmatprep.mubr.bf16.mxu0 0
  %3821 = vmatmul.mubr.bf16.gmra.mxu0 %v2867
  %v3822 = vpop.f32.mrf.mxu0
  %v3823 = vadd.f32 0.0, %v3822
  %v3824 = vpop.f32.mrf.mxu0
  %v3825 = vadd.f32 0.0, %v3824
  %v3826 = vpop.f32.mrf.mxu0
  %v3827 = vpop.f32.mrf.mxu0
  %3828 = vdwg.mxu0
  %3829 = vmatprep.subr.bf16.mxu0 0
  %3830 = vmatpush1.bf16.msra.mxu0 0
  %3831 = vmatprep.subr.bf16.mxu0 0
  %3832 = vmatpush1.bf16.msra.mxu0 0
  %3833 = vmatprep.subr.bf16.mxu0 0
  %3834 = vmatpush1.bf16.msra.mxu0 0
  %3835 = vmatprep.subr.bf16.mxu0 0
  %3836 = vmatpush1.bf16.msra.mxu0 0
  %3837 = vmatprep.subr.bf16.mxu0 0
  %3838 = vmatpush1.bf16.msra.mxu0 0
  %3839 = vmatprep.subr.bf16.mxu0 0
  %3840 = vmatpush1.bf16.msra.mxu0 0
  %3841 = vmatprep.subr.bf16.mxu0 0
  %3842 = vmatpush1.bf16.msra.mxu0 0
  %3843 = vmatprep.subr.bf16.mxu0 0
  %3844 = vmatpush1.bf16.msra.mxu0 %v3786
  %3845 = vmatprep.subr.bf16.mxu0 0
  %3846 = vmatpush2.bf16.msra.mxu0 0
  %3847 = vmatprep.subr.bf16.mxu0 0
  %3848 = vmatpush2.bf16.msra.mxu0 0
  %3849 = vmatprep.subr.bf16.mxu0 0
  %3850 = vmatpush2.bf16.msra.mxu0 0
  %3851 = vmatprep.subr.bf16.mxu0 0
  %3852 = vmatpush2.bf16.msra.mxu0 0
  %3853 = vmatprep.subr.bf16.mxu0 0
  %3854 = vmatpush2.bf16.msra.mxu0 0
  %3855 = vmatprep.subr.bf16.mxu0 0
  %3856 = vmatpush2.bf16.msra.mxu0 0
  %3857 = vmatprep.subr.bf16.mxu0 0
  %3858 = vmatpush2.bf16.msra.mxu0 0
  %3859 = vmatprep.subr.bf16.mxu0 0
  %3860 = vmatpush2.bf16.msra.mxu0 0
  %3861 = vmatprep.mubr.bf16.mxu0 0
  %3862 = vmatmul.mubr.bf16.gmra.mxu0 %v2867
  %v3863 = vpop.f32.mrf.mxu0
  %v3864 = vadd.f32 0.0, %v3863
  %v3865 = vpop.f32.mrf.mxu0
  %v3866 = vpop.f32.mrf.mxu0
  %v3867 = vpop.f32.mrf.mxu0
  %3868 = vdwg.mxu0
  %v3869 = vadd.f32 %v3768, %v3823
  %v3870 = vadd.f32 %v3769, %v3825
  %v3871 = vadd.f32 %v3770, %v3864
  %3872 = vrot.lane.b32.xlu0 %v3075, 90
  %v3873 = vpop.permute.xlu0 %3872
  %3874 = vrot.lane.b32.xlu0 %v3076, 90
  %v3875 = vpop.permute.xlu0 %3874
  %3876 = vrot.lane.b32.xlu0 %v3077, 90
  %v3877 = vpop.permute.xlu0 %3876
  %v3878 = vsel %vm940, %v3873, %v3875
  %v3879 = vsel %vm940, %v3875, %v3877
  %v3881 = vsel %vm2142, %v3878, 0
  %v3884 = vsel %vm2142, %v3879, 0
  %v3887 = vsel %vm2142, %v3877, 0
  %3889 = vmatprep.subr.bf16.mxu0 0
  %3890 = vmatpush1.bf16.msra.mxu0 0
  %3891 = vmatprep.subr.bf16.mxu0 0
  %3892 = vmatpush1.bf16.msra.mxu0 0
  %3893 = vmatprep.subr.bf16.mxu0 0
  %3894 = vmatpush1.bf16.msra.mxu0 0
  %3895 = vmatprep.subr.bf16.mxu0 0
  %3896 = vmatpush1.bf16.msra.mxu0 0
  %3897 = vmatprep.subr.bf16.mxu0 0
  %3898 = vmatpush1.bf16.msra.mxu0 0
  %3899 = vmatprep.subr.bf16.mxu0 0
  %3900 = vmatpush1.bf16.msra.mxu0 0
  %3901 = vmatprep.subr.bf16.mxu0 0
  %3902 = vmatpush1.bf16.msra.mxu0 0
  %3903 = vmatprep.subr.bf16.mxu0 %v3884
  %3904 = vmatpush1.bf16.msra.mxu0 %v3881
  %3905 = vmatprep.subr.bf16.mxu0 0
  %3906 = vmatpush2.bf16.msra.mxu0 0
  %3907 = vmatprep.subr.bf16.mxu0 0
  %3908 = vmatpush2.bf16.msra.mxu0 0
  %3909 = vmatprep.subr.bf16.mxu0 0
  %3910 = vmatpush2.bf16.msra.mxu0 0
  %3911 = vmatprep.subr.bf16.mxu0 0
  %3912 = vmatpush2.bf16.msra.mxu0 0
  %3913 = vmatprep.subr.bf16.mxu0 0
  %3914 = vmatpush2.bf16.msra.mxu0 0
  %3915 = vmatprep.subr.bf16.mxu0 0
  %3916 = vmatpush2.bf16.msra.mxu0 0
  %3917 = vmatprep.subr.bf16.mxu0 0
  %3918 = vmatpush2.bf16.msra.mxu0 0
  %3919 = vmatprep.subr.bf16.mxu0 0
  %3920 = vmatpush2.bf16.msra.mxu0 0
  %3921 = vmatprep.mubr.bf16.mxu0 0
  %3922 = vmatmul.mubr.bf16.gmra.mxu0 %v2973
  %v3923 = vpop.f32.mrf.mxu0
  %v3924 = vadd.f32 0.0, %v3923
  %v3925 = vpop.f32.mrf.mxu0
  %v3926 = vadd.f32 0.0, %v3925
  %v3927 = vpop.f32.mrf.mxu0
  %v3928 = vpop.f32.mrf.mxu0
  %3929 = vdwg.mxu0
  %3930 = vmatprep.subr.bf16.mxu0 0
  %3931 = vmatpush1.bf16.msra.mxu0 0
  %3932 = vmatprep.subr.bf16.mxu0 0
  %3933 = vmatpush1.bf16.msra.mxu0 0
  %3934 = vmatprep.subr.bf16.mxu0 0
  %3935 = vmatpush1.bf16.msra.mxu0 0
  %3936 = vmatprep.subr.bf16.mxu0 0
  %3937 = vmatpush1.bf16.msra.mxu0 0
  %3938 = vmatprep.subr.bf16.mxu0 0
  %3939 = vmatpush1.bf16.msra.mxu0 0
  %3940 = vmatprep.subr.bf16.mxu0 0
  %3941 = vmatpush1.bf16.msra.mxu0 0
  %3942 = vmatprep.subr.bf16.mxu0 0
  %3943 = vmatpush1.bf16.msra.mxu0 0
  %3944 = vmatprep.subr.bf16.mxu0 0
  %3945 = vmatpush1.bf16.msra.mxu0 %v3887
  %3946 = vmatprep.subr.bf16.mxu0 0
  %3947 = vmatpush2.bf16.msra.mxu0 0
  %3948 = vmatprep.subr.bf16.mxu0 0
  %3949 = vmatpush2.bf16.msra.mxu0 0
  %3950 = vmatprep.subr.bf16.mxu0 0
  %3951 = vmatpush2.bf16.msra.mxu0 0
  %3952 = vmatprep.subr.bf16.mxu0 0
  %3953 = vmatpush2.bf16.msra.mxu0 0
  %3954 = vmatprep.subr.bf16.mxu0 0
  %3955 = vmatpush2.bf16.msra.mxu0 0
  %3956 = vmatprep.subr.bf16.mxu0 0
  %3957 = vmatpush2.bf16.msra.mxu0 0
  %3958 = vmatprep.subr.bf16.mxu0 0
  %3959 = vmatpush2.bf16.msra.mxu0 0
  %3960 = vmatprep.subr.bf16.mxu0 0
  %3961 = vmatpush2.bf16.msra.mxu0 0
  %3962 = vmatprep.mubr.bf16.mxu0 0
  %3963 = vmatmul.mubr.bf16.gmra.mxu0 %v2973
  %v3964 = vpop.f32.mrf.mxu0
  %v3965 = vadd.f32 0.0, %v3964
  %v3966 = vpop.f32.mrf.mxu0
  %v3967 = vpop.f32.mrf.mxu0
  %v3968 = vpop.f32.mrf.mxu0
  %3969 = vdwg.mxu0
  %v3970 = vadd.f32 %v3869, %v3924
  %v3971 = vadd.f32 %v3870, %v3926
  %v3972 = vadd.f32 %v3871, %v3965
  %v3973 = vmul.f32 %v3065, %v1957
  %v3974 = vmul.f32 %v3066, %v1961
  %v3975 = vmul.f32 %v3067, %v1965
  %v3976 = vadd.f32 %v3973, %v3974
  %v3977 = vsel %vm1973, %v3975, 0.0
  %v3978 = vadd.f32 %v3976, %v3977
  %3979 = vadd.xlane.f32.xlu0 %v3978
  %v3980 = vpop.xlane.xlu0 %3979
  %v3981 = vadd.f32 %v3980, 0.0
  %v3982 = vmul.f32 %v3970, %v1957
  %v3983 = vmul.f32 %v3971, %v1961
  %v3984 = vmul.f32 %v3972, %v1965
  %v3985 = vadd.f32 %v3982, %v3983
  %v3986 = vsel %vm1973, %v3984, 0.0
  %v3987 = vadd.f32 %v3985, %v3986
  %3988 = vadd.xlane.f32.xlu0 %v3987
  %v3989 = vpop.xlane.xlu0 %3988
  %v3990 = vadd.f32 %v3981, %v3989
  %v3991 = vmul.f32 %v3990, 0.001953125
  %v3992 = vsub.f32 %v3065, %v3991
  %v3993 = vsub.f32 %v3066, %v3991
  %v3994 = vsub.f32 %v3067, %v3991
  %v3995 = vmul.f32 %v3992, %v3992
  %v3996 = vmul.f32 %v3993, %v3993
  %v3997 = vmul.f32 %v3994, %v3994
  %v3998 = vmul.f32 %v3995, %v1957
  %v3999 = vmul.f32 %v3996, %v1961
  %v4000 = vmul.f32 %v3997, %v1965
  %v4001 = vadd.f32 %v3998, %v3999
  %v4002 = vsel %vm1973, %v4000, 0.0
  %v4003 = vadd.f32 %v4001, %v4002
  %4004 = vadd.xlane.f32.xlu0 %v4003
  %v4005 = vpop.xlane.xlu0 %4004
  %v4006 = vadd.f32 %v4005, 0.0
  %v4007 = vsub.f32 %v3970, %v3991
  %v4008 = vsub.f32 %v3971, %v3991
  %v4009 = vsub.f32 %v3972, %v3991
  %v4010 = vmul.f32 %v4007, %v4007
  %v4011 = vmul.f32 %v4008, %v4008
  %v4012 = vmul.f32 %v4009, %v4009
  %v4013 = vmul.f32 %v4010, %v1957
  %v4014 = vmul.f32 %v4011, %v1961
  %v4015 = vmul.f32 %v4012, %v1965
  %v4016 = vadd.f32 %v4013, %v4014
  %v4017 = vsel %vm1973, %v4015, 0.0
  %v4018 = vadd.f32 %v4016, %v4017
  %4019 = vadd.xlane.f32.xlu0 %v4018
  %v4020 = vpop.xlane.xlu0 %4019
  %v4021 = vadd.f32 %v4006, %v4020
  %v4022 = vmul.f32 %v4021, 0.001953125
  %v4023 = vadd.f32 %v4022, 1e-05
  %v4024 = vrsqrt.pop %v4023
  %v4025 = vmul.f32 %v2113, %v4024
  %v4026 = vmul.f32 %v3991, %v4025
  %4028 = vrot.lane.b32.xlu0 %v4026, 1
  %v4029 = vpop.permute.xlu0 %4028
  %v4031 = vsub.f32 %v2113, %v4029
  %4033 = vset.pattern.permute.xlu0 2
  %4034 = vperm.xlu0 %4033, %v4025
  %v4035 = vpop.permute.xlu0 %4034
  %v4037 = vmul.f32 %v3065, %v4035
  %v4038 = vmul.f32 %v3066, %v4035
  %v4039 = vmul.f32 %v3067, %v4035
  %4041 = vset.pattern.permute.xlu0 3
  %4042 = vperm.xlu0 %4041, %v4031
  %v4043 = vpop.permute.xlu0 %4042
  %v4045 = vadd.f32 %v4037, %v4043
  %v4046 = vadd.f32 %v4038, %v4043
  %v4047 = vadd.f32 %v4039, %v4043
  %v4048 = vmax.f32 %v4045, 0.0
  %v4049 = vmax.f32 %v4046, 0.0
  %v4050 = vmax.f32 %v4047, 0.0
  %v4051 = vmul.f32 %v3970, %v4035
  %v4052 = vmul.f32 %v3971, %v4035
  %v4053 = vmul.f32 %v3972, %v4035
  %v4054 = vadd.f32 %v4051, %v4043
  %v4055 = vadd.f32 %v4052, %v4043
  %v4056 = vadd.f32 %v4053, %v4043
  %v4057 = vmax.f32 %v4054, 0.0
  %v4058 = vmax.f32 %v4055, 0.0
  %v4059 = vmax.f32 %v4056, 0.0
  %v4060 = vmul.f32 %v4048, %v1957
  %v4061 = vmul.f32 %v4049, %v1961
  %v4062 = vmul.f32 %v4050, %v1965
  %4066 = vrot.lane.b32.xlu0 %v4060, 19
  %v4067 = vpop.permute.xlu0 %4066
  %4068 = vrot.lane.b32.xlu0 %v4061, 19
  %v4069 = vpop.permute.xlu0 %4068
  %4070 = vrot.lane.b32.xlu0 %v4062, 19
  %v4071 = vpop.permute.xlu0 %4070
  %vm4072 = vcmask 154624
  %v4073 = vsel %vm4072, %v4067, %v4069
  %v4074 = vsel %vm4072, %v4069, %v4071
  %vm4078 = vcmask 1047704
  %4079 = vst.msk [vmem:[%s7] sm:$0xff] %vm4078, %v4067
  %4080 = vst [vmem:[%s7 + $0x8] sm:$0xff] %v4073
  %vm4081 = vcmask 400384
  %4082 = vst.msk [vmem:[%s7 + $0x10] sm:$0xff] %vm4081, %v4074
  %v4083 = vpack.c.bf16 %v4060, %v4060
  %v4084 = vpack.c.bf16 %v4061, %v4061
  %v4085 = vpack.c.bf16 %v4062, %v4062
  %v4089 = vunpack.c.l.b16 %v4083
  %v4090 = vunpack.c.l.b16 %v4084
  %v4091 = vunpack.c.l.b16 %v4085
  %v4092 = vpack.c.b16 %v4090, %v4089
  %v4093 = vpack.c.b16 %v4091, %v4091
  %4094 = vrot.lane.b32.xlu0 %v4092, 19
  %v4095 = vpop.permute.xlu0 %4094
  %4096 = vrot.lane.b32.xlu0 %v4093, 19
  %v4097 = vpop.permute.xlu0 %4096
  %v4098 = vrot.slane %v4095, 4
  %v4099 = vsel %vm2076, %v4098, %v4095
  %v4100 = vsel %vm2076, %v4098, %v4097
  %4103 = vst.msk [vmem:[#allocation3] sm:$0xff] %vm2083, %v4099
  %4104 = vst.msk [vmem:[#allocation3 + $0x8] sm:$0xf] %vm2085, %v4100
  %v4105 = vmul.f32 %v4057, %v1957
  %v4106 = vmul.f32 %v4058, %v1961
  %v4107 = vmul.f32 %v4059, %v1965
  %4111 = vrot.lane.b32.xlu0 %v4105, 19
  %v4112 = vpop.permute.xlu0 %4111
  %4113 = vrot.lane.b32.xlu0 %v4106, 19
  %v4114 = vpop.permute.xlu0 %4113
  %4115 = vrot.lane.b32.xlu0 %v4107, 19
  %v4116 = vpop.permute.xlu0 %4115
  %v4117 = vsel %vm4072, %v4112, %v4114
  %v4118 = vsel %vm4072, %v4114, %v4116
  %s4122 = scalar_lea.vmem %s7, 24
  %4123 = vst.msk [vmem:[%s4122] sm:$0xff] %vm4078, %v4112
  %4124 = vst [vmem:[%s4122 + $0x8] sm:$0xff] %v4117
  %4125 = vst.msk [vmem:[%s4122 + $0x10] sm:$0xff] %vm4081, %v4118
  %v4126 = vpack.c.bf16 %v4105, %v4105
  %v4127 = vpack.c.bf16 %v4106, %v4106
  %v4128 = vpack.c.bf16 %v4107, %v4107
  %v4132 = vunpack.c.l.b16 %v4126
  %v4133 = vunpack.c.l.b16 %v4127
  %v4134 = vunpack.c.l.b16 %v4128
  %v4135 = vpack.c.b16 %v4133, %v4132
  %v4136 = vpack.c.b16 %v4134, %v4134
  %4137 = vrot.lane.b32.xlu0 %v4135, 19
  %v4138 = vpop.permute.xlu0 %4137
  %4139 = vrot.lane.b32.xlu0 %v4136, 19
  %v4140 = vpop.permute.xlu0 %4139
  %v4141 = vrot.slane %v4138, 4
  %v4142 = vsel %vm2076, %v4141, %v4138
  %v4143 = vsel %vm2076, %v4141, %v4140
  %s4146 = scalar_lea.vmem [#allocation3], 12
  %4147 = vst.msk [vmem:[%s4146] sm:$0xff] %vm2083, %v4142
  %4148 = vst.msk [vmem:[%s4146 + $0x8] sm:$0xf] %vm2085, %v4143
  %v4149 = vld [vmem:[%s4] sm:$0xff]
  %v4150 = vld [vmem:[#allocation3] sm:$0xff]
  %v4151 = vld [vmem:[#allocation3 + $0x8] sm:$0xf]
  %v4152 = vld [vmem:[%s3] sm:$0xf]
  %v4154 = vunpack.c.l.b16 %v4152
  %v4155 = vpack.c.b16 %v4154, %v4154
  %4156 = vrot.lane.b32.xlu0 %v4155, 120
  %v4157 = vpop.permute.xlu0 %4156
  %v4160 = vunpack.c.l.b16 %v4150
  %v4161 = vunpack.c.h.b16 %v4150
  %v4162 = vunpack.c.l.b16 %v4151
  %v4163 = vpack.c.b16 %v4160, %v4160
  %v4164 = vpack.c.b16 %v4161, %v4161
  %v4165 = vpack.c.b16 %v4162, %v4162
  %4166 = vrot.lane.b32.xlu0 %v4163, 127
  %v4167 = vpop.permute.xlu0 %4166
  %4168 = vrot.lane.b32.xlu0 %v4164, 127
  %v4169 = vpop.permute.xlu0 %4168
  %4170 = vrot.lane.b32.xlu0 %v4165, 127
  %v4171 = vpop.permute.xlu0 %4170
  %v4172 = vsel %vm71, %v4167, %v4169
  %v4173 = vsel %vm71, %v4169, %v4171
  %v4175 = vsel %vm2138, %v4157, 0
  %v4178 = vsel %vm2142, %v4172, 0
  %v4181 = vsel %vm2142, %v4173, 0
  %v4184 = vsel %vm2142, %v4171, 0
  %4186 = vmatprep.subr.bf16.mxu0 0
  %4187 = vmatpush1.bf16.msra.mxu0 0
  %4188 = vmatprep.subr.bf16.mxu0 0
  %4189 = vmatpush1.bf16.msra.mxu0 0
  %4190 = vmatprep.subr.bf16.mxu0 0
  %4191 = vmatpush1.bf16.msra.mxu0 0
  %4192 = vmatprep.subr.bf16.mxu0 0
  %4193 = vmatpush1.bf16.msra.mxu0 0
  %4194 = vmatprep.subr.bf16.mxu0 0
  %4195 = vmatpush1.bf16.msra.mxu0 0
  %4196 = vmatprep.subr.bf16.mxu0 0
  %4197 = vmatpush1.bf16.msra.mxu0 0
  %4198 = vmatprep.subr.bf16.mxu0 0
  %4199 = vmatpush1.bf16.msra.mxu0 0
  %4200 = vmatprep.subr.bf16.mxu0 %v4181
  %4201 = vmatpush1.bf16.msra.mxu0 %v4178
  %4202 = vmatprep.subr.bf16.mxu0 0
  %4203 = vmatpush2.bf16.msra.mxu0 0
  %4204 = vmatprep.subr.bf16.mxu0 0
  %4205 = vmatpush2.bf16.msra.mxu0 0
  %4206 = vmatprep.subr.bf16.mxu0 0
  %4207 = vmatpush2.bf16.msra.mxu0 0
  %4208 = vmatprep.subr.bf16.mxu0 0
  %4209 = vmatpush2.bf16.msra.mxu0 0
  %4210 = vmatprep.subr.bf16.mxu0 0
  %4211 = vmatpush2.bf16.msra.mxu0 0
  %4212 = vmatprep.subr.bf16.mxu0 0
  %4213 = vmatpush2.bf16.msra.mxu0 0
  %4214 = vmatprep.subr.bf16.mxu0 0
  %4215 = vmatpush2.bf16.msra.mxu0 0
  %4216 = vmatprep.subr.bf16.mxu0 0
  %4217 = vmatpush2.bf16.msra.mxu0 0
  %4218 = vmatprep.mubr.bf16.mxu0 0
  %4219 = vmatmul.mubr.bf16.gmra.mxu0 %v4175
  %v4220 = vpop.f32.mrf.mxu0
  %v4221 = vadd.f32 0.0, %v4220
  %v4222 = vpop.f32.mrf.mxu0
  %v4223 = vadd.f32 0.0, %v4222
  %v4224 = vpop.f32.mrf.mxu0
  %v4225 = vpop.f32.mrf.mxu0
  %4226 = vdwg.mxu0
  %4227 = vmatprep.subr.bf16.mxu0 0
  %4228 = vmatpush1.bf16.msra.mxu0 0
  %4229 = vmatprep.subr.bf16.mxu0 0
  %4230 = vmatpush1.bf16.msra.mxu0 0
  %4231 = vmatprep.subr.bf16.mxu0 0
  %4232 = vmatpush1.bf16.msra.mxu0 0
  %4233 = vmatprep.subr.bf16.mxu0 0
  %4234 = vmatpush1.bf16.msra.mxu0 0
  %4235 = vmatprep.subr.bf16.mxu0 0
  %4236 = vmatpush1.bf16.msra.mxu0 0
  %4237 = vmatprep.subr.bf16.mxu0 0
  %4238 = vmatpush1.bf16.msra.mxu0 0
  %4239 = vmatprep.subr.bf16.mxu0 0
  %4240 = vmatpush1.bf16.msra.mxu0 0
  %4241 = vmatprep.subr.bf16.mxu0 0
  %4242 = vmatpush1.bf16.msra.mxu0 %v4184
  %4243 = vmatprep.subr.bf16.mxu0 0
  %4244 = vmatpush2.bf16.msra.mxu0 0
  %4245 = vmatprep.subr.bf16.mxu0 0
  %4246 = vmatpush2.bf16.msra.mxu0 0
  %4247 = vmatprep.subr.bf16.mxu0 0
  %4248 = vmatpush2.bf16.msra.mxu0 0
  %4249 = vmatprep.subr.bf16.mxu0 0
  %4250 = vmatpush2.bf16.msra.mxu0 0
  %4251 = vmatprep.subr.bf16.mxu0 0
  %4252 = vmatpush2.bf16.msra.mxu0 0
  %4253 = vmatprep.subr.bf16.mxu0 0
  %4254 = vmatpush2.bf16.msra.mxu0 0
  %4255 = vmatprep.subr.bf16.mxu0 0
  %4256 = vmatpush2.bf16.msra.mxu0 0
  %4257 = vmatprep.subr.bf16.mxu0 0
  %4258 = vmatpush2.bf16.msra.mxu0 0
  %4259 = vmatprep.mubr.bf16.mxu0 0
  %4260 = vmatmul.mubr.bf16.gmra.mxu0 %v4175
  %v4261 = vpop.f32.mrf.mxu0
  %v4262 = vadd.f32 0.0, %v4261
  %v4263 = vpop.f32.mrf.mxu0
  %v4264 = vpop.f32.mrf.mxu0
  %v4265 = vpop.f32.mrf.mxu0
  %4266 = vdwg.mxu0
  %v4268 = vsel %vm2138, %v4152, 0
  %v4271 = vsel %vm2142, %v4163, 0
  %v4274 = vsel %vm2142, %v4164, 0
  %v4277 = vsel %vm2142, %v4165, 0
  %4279 = vmatprep.subr.bf16.mxu0 0
  %4280 = vmatpush1.bf16.msra.mxu0 0
  %4281 = vmatprep.subr.bf16.mxu0 0
  %4282 = vmatpush1.bf16.msra.mxu0 0
  %4283 = vmatprep.subr.bf16.mxu0 0
  %4284 = vmatpush1.bf16.msra.mxu0 0
  %4285 = vmatprep.subr.bf16.mxu0 0
  %4286 = vmatpush1.bf16.msra.mxu0 0
  %4287 = vmatprep.subr.bf16.mxu0 0
  %4288 = vmatpush1.bf16.msra.mxu0 0
  %4289 = vmatprep.subr.bf16.mxu0 0
  %4290 = vmatpush1.bf16.msra.mxu0 0
  %4291 = vmatprep.subr.bf16.mxu0 0
  %4292 = vmatpush1.bf16.msra.mxu0 0
  %4293 = vmatprep.subr.bf16.mxu0 %v4274
  %4294 = vmatpush1.bf16.msra.mxu0 %v4271
  %4295 = vmatprep.subr.bf16.mxu0 0
  %4296 = vmatpush2.bf16.msra.mxu0 0
  %4297 = vmatprep.subr.bf16.mxu0 0
  %4298 = vmatpush2.bf16.msra.mxu0 0
  %4299 = vmatprep.subr.bf16.mxu0 0
  %4300 = vmatpush2.bf16.msra.mxu0 0
  %4301 = vmatprep.subr.bf16.mxu0 0
  %4302 = vmatpush2.bf16.msra.mxu0 0
  %4303 = vmatprep.subr.bf16.mxu0 0
  %4304 = vmatpush2.bf16.msra.mxu0 0
  %4305 = vmatprep.subr.bf16.mxu0 0
  %4306 = vmatpush2.bf16.msra.mxu0 0
  %4307 = vmatprep.subr.bf16.mxu0 0
  %4308 = vmatpush2.bf16.msra.mxu0 0
  %4309 = vmatprep.subr.bf16.mxu0 0
  %4310 = vmatpush2.bf16.msra.mxu0 0
  %4311 = vmatprep.mubr.bf16.mxu0 0
  %4312 = vmatmul.mubr.bf16.gmra.mxu0 %v4268
  %v4313 = vpop.f32.mrf.mxu0
  %v4314 = vadd.f32 %v4221, %v4313
  %v4315 = vpop.f32.mrf.mxu0
  %v4316 = vadd.f32 %v4223, %v4315
  %v4317 = vpop.f32.mrf.mxu0
  %v4318 = vpop.f32.mrf.mxu0
  %4319 = vdwg.mxu0
  %4320 = vmatprep.subr.bf16.mxu0 0
  %4321 = vmatpush1.bf16.msra.mxu0 0
  %4322 = vmatprep.subr.bf16.mxu0 0
  %4323 = vmatpush1.bf16.msra.mxu0 0
  %4324 = vmatprep.subr.bf16.mxu0 0
  %4325 = vmatpush1.bf16.msra.mxu0 0
  %4326 = vmatprep.subr.bf16.mxu0 0
  %4327 = vmatpush1.bf16.msra.mxu0 0
  %4328 = vmatprep.subr.bf16.mxu0 0
  %4329 = vmatpush1.bf16.msra.mxu0 0
  %4330 = vmatprep.subr.bf16.mxu0 0
  %4331 = vmatpush1.bf16.msra.mxu0 0
  %4332 = vmatprep.subr.bf16.mxu0 0
  %4333 = vmatpush1.bf16.msra.mxu0 0
  %4334 = vmatprep.subr.bf16.mxu0 0
  %4335 = vmatpush1.bf16.msra.mxu0 %v4277
  %4336 = vmatprep.subr.bf16.mxu0 0
  %4337 = vmatpush2.bf16.msra.mxu0 0
  %4338 = vmatprep.subr.bf16.mxu0 0
  %4339 = vmatpush2.bf16.msra.mxu0 0
  %4340 = vmatprep.subr.bf16.mxu0 0
  %4341 = vmatpush2.bf16.msra.mxu0 0
  %4342 = vmatprep.subr.bf16.mxu0 0
  %4343 = vmatpush2.bf16.msra.mxu0 0
  %4344 = vmatprep.subr.bf16.mxu0 0
  %4345 = vmatpush2.bf16.msra.mxu0 0
  %4346 = vmatprep.subr.bf16.mxu0 0
  %4347 = vmatpush2.bf16.msra.mxu0 0
  %4348 = vmatprep.subr.bf16.mxu0 0
  %4349 = vmatpush2.bf16.msra.mxu0 0
  %4350 = vmatprep.subr.bf16.mxu0 0
  %4351 = vmatpush2.bf16.msra.mxu0 0
  %4352 = vmatprep.mubr.bf16.mxu0 0
  %4353 = vmatmul.mubr.bf16.gmra.mxu0 %v4268
  %v4354 = vpop.f32.mrf.mxu0
  %v4355 = vadd.f32 %v4262, %v4354
  %v4356 = vpop.f32.mrf.mxu0
  %v4357 = vpop.f32.mrf.mxu0
  %v4358 = vpop.f32.mrf.mxu0
  %4359 = vdwg.mxu0
  %4360 = vrot.lane.b32.xlu0 %v4155, 112
  %v4361 = vpop.permute.xlu0 %4360
  %4362 = vrot.lane.b32.xlu0 %v4163, 126
  %v4363 = vpop.permute.xlu0 %4362
  %4364 = vrot.lane.b32.xlu0 %v4164, 126
  %v4365 = vpop.permute.xlu0 %4364
  %4366 = vrot.lane.b32.xlu0 %v4165, 126
  %v4367 = vpop.permute.xlu0 %4366
  %v4368 = vsel %vm274, %v4363, %v4365
  %v4369 = vsel %vm274, %v4365, %v4367
  %v4371 = vsel %vm2138, %v4361, 0
  %v4374 = vsel %vm2142, %v4368, 0
  %v4377 = vsel %vm2142, %v4369, 0
  %v4380 = vsel %vm2142, %v4367, 0
  %4382 = vmatprep.subr.bf16.mxu0 0
  %4383 = vmatpush1.bf16.msra.mxu0 0
  %4384 = vmatprep.subr.bf16.mxu0 0
  %4385 = vmatpush1.bf16.msra.mxu0 0
  %4386 = vmatprep.subr.bf16.mxu0 0
  %4387 = vmatpush1.bf16.msra.mxu0 0
  %4388 = vmatprep.subr.bf16.mxu0 0
  %4389 = vmatpush1.bf16.msra.mxu0 0
  %4390 = vmatprep.subr.bf16.mxu0 0
  %4391 = vmatpush1.bf16.msra.mxu0 0
  %4392 = vmatprep.subr.bf16.mxu0 0
  %4393 = vmatpush1.bf16.msra.mxu0 0
  %4394 = vmatprep.subr.bf16.mxu0 0
  %4395 = vmatpush1.bf16.msra.mxu0 0
  %4396 = vmatprep.subr.bf16.mxu0 %v4377
  %4397 = vmatpush1.bf16.msra.mxu0 %v4374
  %4398 = vmatprep.subr.bf16.mxu0 0
  %4399 = vmatpush2.bf16.msra.mxu0 0
  %4400 = vmatprep.subr.bf16.mxu0 0
  %4401 = vmatpush2.bf16.msra.mxu0 0
  %4402 = vmatprep.subr.bf16.mxu0 0
  %4403 = vmatpush2.bf16.msra.mxu0 0
  %4404 = vmatprep.subr.bf16.mxu0 0
  %4405 = vmatpush2.bf16.msra.mxu0 0
  %4406 = vmatprep.subr.bf16.mxu0 0
  %4407 = vmatpush2.bf16.msra.mxu0 0
  %4408 = vmatprep.subr.bf16.mxu0 0
  %4409 = vmatpush2.bf16.msra.mxu0 0
  %4410 = vmatprep.subr.bf16.mxu0 0
  %4411 = vmatpush2.bf16.msra.mxu0 0
  %4412 = vmatprep.subr.bf16.mxu0 0
  %4413 = vmatpush2.bf16.msra.mxu0 0
  %4414 = vmatprep.mubr.bf16.mxu0 0
  %4415 = vmatmul.mubr.bf16.gmra.mxu0 %v4371
  %v4416 = vpop.f32.mrf.mxu0
  %v4417 = vadd.f32 0.0, %v4416
  %v4418 = vpop.f32.mrf.mxu0
  %v4419 = vadd.f32 0.0, %v4418
  %v4420 = vpop.f32.mrf.mxu0
  %v4421 = vpop.f32.mrf.mxu0
  %4422 = vdwg.mxu0
  %4423 = vmatprep.subr.bf16.mxu0 0
  %4424 = vmatpush1.bf16.msra.mxu0 0
  %4425 = vmatprep.subr.bf16.mxu0 0
  %4426 = vmatpush1.bf16.msra.mxu0 0
  %4427 = vmatprep.subr.bf16.mxu0 0
  %4428 = vmatpush1.bf16.msra.mxu0 0
  %4429 = vmatprep.subr.bf16.mxu0 0
  %4430 = vmatpush1.bf16.msra.mxu0 0
  %4431 = vmatprep.subr.bf16.mxu0 0
  %4432 = vmatpush1.bf16.msra.mxu0 0
  %4433 = vmatprep.subr.bf16.mxu0 0
  %4434 = vmatpush1.bf16.msra.mxu0 0
  %4435 = vmatprep.subr.bf16.mxu0 0
  %4436 = vmatpush1.bf16.msra.mxu0 0
  %4437 = vmatprep.subr.bf16.mxu0 0
  %4438 = vmatpush1.bf16.msra.mxu0 %v4380
  %4439 = vmatprep.subr.bf16.mxu0 0
  %4440 = vmatpush2.bf16.msra.mxu0 0
  %4441 = vmatprep.subr.bf16.mxu0 0
  %4442 = vmatpush2.bf16.msra.mxu0 0
  %4443 = vmatprep.subr.bf16.mxu0 0
  %4444 = vmatpush2.bf16.msra.mxu0 0
  %4445 = vmatprep.subr.bf16.mxu0 0
  %4446 = vmatpush2.bf16.msra.mxu0 0
  %4447 = vmatprep.subr.bf16.mxu0 0
  %4448 = vmatpush2.bf16.msra.mxu0 0
  %4449 = vmatprep.subr.bf16.mxu0 0
  %4450 = vmatpush2.bf16.msra.mxu0 0
  %4451 = vmatprep.subr.bf16.mxu0 0
  %4452 = vmatpush2.bf16.msra.mxu0 0
  %4453 = vmatprep.subr.bf16.mxu0 0
  %4454 = vmatpush2.bf16.msra.mxu0 0
  %4455 = vmatprep.mubr.bf16.mxu0 0
  %4456 = vmatmul.mubr.bf16.gmra.mxu0 %v4371
  %v4457 = vpop.f32.mrf.mxu0
  %v4458 = vadd.f32 0.0, %v4457
  %v4459 = vpop.f32.mrf.mxu0
  %v4460 = vpop.f32.mrf.mxu0
  %v4461 = vpop.f32.mrf.mxu0
  %4462 = vdwg.mxu0
  %v4463 = vadd.f32 %v4314, %v4417
  %v4464 = vadd.f32 %v4316, %v4419
  %v4465 = vadd.f32 %v4355, %v4458
  %4466 = vrot.lane.b32.xlu0 %v4155, 104
  %v4467 = vpop.permute.xlu0 %4466
  %4468 = vrot.lane.b32.xlu0 %v4163, 110
  %v4469 = vpop.permute.xlu0 %4468
  %4470 = vrot.lane.b32.xlu0 %v4164, 110
  %v4471 = vpop.permute.xlu0 %4470
  %4472 = vrot.lane.b32.xlu0 %v4165, 110
  %v4473 = vpop.permute.xlu0 %4472
  %v4474 = vsel %vm385, %v4469, %v4471
  %v4475 = vsel %vm385, %v4471, %v4473
  %v4477 = vsel %vm2138, %v4467, 0
  %v4480 = vsel %vm2142, %v4474, 0
  %v4483 = vsel %vm2142, %v4475, 0
  %v4486 = vsel %vm2142, %v4473, 0
  %4488 = vmatprep.subr.bf16.mxu0 0
  %4489 = vmatpush1.bf16.msra.mxu0 0
  %4490 = vmatprep.subr.bf16.mxu0 0
  %4491 = vmatpush1.bf16.msra.mxu0 0
  %4492 = vmatprep.subr.bf16.mxu0 0
  %4493 = vmatpush1.bf16.msra.mxu0 0
  %4494 = vmatprep.subr.bf16.mxu0 0
  %4495 = vmatpush1.bf16.msra.mxu0 0
  %4496 = vmatprep.subr.bf16.mxu0 0
  %4497 = vmatpush1.bf16.msra.mxu0 0
  %4498 = vmatprep.subr.bf16.mxu0 0
  %4499 = vmatpush1.bf16.msra.mxu0 0
  %4500 = vmatprep.subr.bf16.mxu0 0
  %4501 = vmatpush1.bf16.msra.mxu0 0
  %4502 = vmatprep.subr.bf16.mxu0 %v4483
  %4503 = vmatpush1.bf16.msra.mxu0 %v4480
  %4504 = vmatprep.subr.bf16.mxu0 0
  %4505 = vmatpush2.bf16.msra.mxu0 0
  %4506 = vmatprep.subr.bf16.mxu0 0
  %4507 = vmatpush2.bf16.msra.mxu0 0
  %4508 = vmatprep.subr.bf16.mxu0 0
  %4509 = vmatpush2.bf16.msra.mxu0 0
  %4510 = vmatprep.subr.bf16.mxu0 0
  %4511 = vmatpush2.bf16.msra.mxu0 0
  %4512 = vmatprep.subr.bf16.mxu0 0
  %4513 = vmatpush2.bf16.msra.mxu0 0
  %4514 = vmatprep.subr.bf16.mxu0 0
  %4515 = vmatpush2.bf16.msra.mxu0 0
  %4516 = vmatprep.subr.bf16.mxu0 0
  %4517 = vmatpush2.bf16.msra.mxu0 0
  %4518 = vmatprep.subr.bf16.mxu0 0
  %4519 = vmatpush2.bf16.msra.mxu0 0
  %4520 = vmatprep.mubr.bf16.mxu0 0
  %4521 = vmatmul.mubr.bf16.gmra.mxu0 %v4477
  %v4522 = vpop.f32.mrf.mxu0
  %v4523 = vadd.f32 0.0, %v4522
  %v4524 = vpop.f32.mrf.mxu0
  %v4525 = vadd.f32 0.0, %v4524
  %v4526 = vpop.f32.mrf.mxu0
  %v4527 = vpop.f32.mrf.mxu0
  %4528 = vdwg.mxu0
  %4529 = vmatprep.subr.bf16.mxu0 0
  %4530 = vmatpush1.bf16.msra.mxu0 0
  %4531 = vmatprep.subr.bf16.mxu0 0
  %4532 = vmatpush1.bf16.msra.mxu0 0
  %4533 = vmatprep.subr.bf16.mxu0 0
  %4534 = vmatpush1.bf16.msra.mxu0 0
  %4535 = vmatprep.subr.bf16.mxu0 0
  %4536 = vmatpush1.bf16.msra.mxu0 0
  %4537 = vmatprep.subr.bf16.mxu0 0
  %4538 = vmatpush1.bf16.msra.mxu0 0
  %4539 = vmatprep.subr.bf16.mxu0 0
  %4540 = vmatpush1.bf16.msra.mxu0 0
  %4541 = vmatprep.subr.bf16.mxu0 0
  %4542 = vmatpush1.bf16.msra.mxu0 0
  %4543 = vmatprep.subr.bf16.mxu0 0
  %4544 = vmatpush1.bf16.msra.mxu0 %v4486
  %4545 = vmatprep.subr.bf16.mxu0 0
  %4546 = vmatpush2.bf16.msra.mxu0 0
  %4547 = vmatprep.subr.bf16.mxu0 0
  %4548 = vmatpush2.bf16.msra.mxu0 0
  %4549 = vmatprep.subr.bf16.mxu0 0
  %4550 = vmatpush2.bf16.msra.mxu0 0
  %4551 = vmatprep.subr.bf16.mxu0 0
  %4552 = vmatpush2.bf16.msra.mxu0 0
  %4553 = vmatprep.subr.bf16.mxu0 0
  %4554 = vmatpush2.bf16.msra.mxu0 0
  %4555 = vmatprep.subr.bf16.mxu0 0
  %4556 = vmatpush2.bf16.msra.mxu0 0
  %4557 = vmatprep.subr.bf16.mxu0 0
  %4558 = vmatpush2.bf16.msra.mxu0 0
  %4559 = vmatprep.subr.bf16.mxu0 0
  %4560 = vmatpush2.bf16.msra.mxu0 0
  %4561 = vmatprep.mubr.bf16.mxu0 0
  %4562 = vmatmul.mubr.bf16.gmra.mxu0 %v4477
  %v4563 = vpop.f32.mrf.mxu0
  %v4564 = vadd.f32 0.0, %v4563
  %v4565 = vpop.f32.mrf.mxu0
  %v4566 = vpop.f32.mrf.mxu0
  %v4567 = vpop.f32.mrf.mxu0
  %4568 = vdwg.mxu0
  %v4569 = vadd.f32 %v4463, %v4523
  %v4570 = vadd.f32 %v4464, %v4525
  %v4571 = vadd.f32 %v4465, %v4564
  %4572 = vrot.lane.b32.xlu0 %v4155, 96
  %v4573 = vpop.permute.xlu0 %4572
  %4574 = vrot.lane.b32.xlu0 %v4163, 109
  %v4575 = vpop.permute.xlu0 %4574
  %4576 = vrot.lane.b32.xlu0 %v4164, 109
  %v4577 = vpop.permute.xlu0 %4576
  %4578 = vrot.lane.b32.xlu0 %v4165, 109
  %v4579 = vpop.permute.xlu0 %4578
  %v4580 = vsel %vm496, %v4575, %v4577
  %v4581 = vsel %vm496, %v4577, %v4579
  %v4583 = vsel %vm2138, %v4573, 0
  %v4586 = vsel %vm2142, %v4580, 0
  %v4589 = vsel %vm2142, %v4581, 0
  %v4592 = vsel %vm2142, %v4579, 0
  %4594 = vmatprep.subr.bf16.mxu0 0
  %4595 = vmatpush1.bf16.msra.mxu0 0
  %4596 = vmatprep.subr.bf16.mxu0 0
  %4597 = vmatpush1.bf16.msra.mxu0 0
  %4598 = vmatprep.subr.bf16.mxu0 0
  %4599 = vmatpush1.bf16.msra.mxu0 0
  %4600 = vmatprep.subr.bf16.mxu0 0
  %4601 = vmatpush1.bf16.msra.mxu0 0
  %4602 = vmatprep.subr.bf16.mxu0 0
  %4603 = vmatpush1.bf16.msra.mxu0 0
  %4604 = vmatprep.subr.bf16.mxu0 0
  %4605 = vmatpush1.bf16.msra.mxu0 0
  %4606 = vmatprep.subr.bf16.mxu0 0
  %4607 = vmatpush1.bf16.msra.mxu0 0
  %4608 = vmatprep.subr.bf16.mxu0 %v4589
  %4609 = vmatpush1.bf16.msra.mxu0 %v4586
  %4610 = vmatprep.subr.bf16.mxu0 0
  %4611 = vmatpush2.bf16.msra.mxu0 0
  %4612 = vmatprep.subr.bf16.mxu0 0
  %4613 = vmatpush2.bf16.msra.mxu0 0
  %4614 = vmatprep.subr.bf16.mxu0 0
  %4615 = vmatpush2.bf16.msra.mxu0 0
  %4616 = vmatprep.subr.bf16.mxu0 0
  %4617 = vmatpush2.bf16.msra.mxu0 0
  %4618 = vmatprep.subr.bf16.mxu0 0
  %4619 = vmatpush2.bf16.msra.mxu0 0
  %4620 = vmatprep.subr.bf16.mxu0 0
  %4621 = vmatpush2.bf16.msra.mxu0 0
  %4622 = vmatprep.subr.bf16.mxu0 0
  %4623 = vmatpush2.bf16.msra.mxu0 0
  %4624 = vmatprep.subr.bf16.mxu0 0
  %4625 = vmatpush2.bf16.msra.mxu0 0
  %4626 = vmatprep.mubr.bf16.mxu0 0
  %4627 = vmatmul.mubr.bf16.gmra.mxu0 %v4583
  %v4628 = vpop.f32.mrf.mxu0
  %v4629 = vadd.f32 0.0, %v4628
  %v4630 = vpop.f32.mrf.mxu0
  %v4631 = vadd.f32 0.0, %v4630
  %v4632 = vpop.f32.mrf.mxu0
  %v4633 = vpop.f32.mrf.mxu0
  %4634 = vdwg.mxu0
  %4635 = vmatprep.subr.bf16.mxu0 0
  %4636 = vmatpush1.bf16.msra.mxu0 0
  %4637 = vmatprep.subr.bf16.mxu0 0
  %4638 = vmatpush1.bf16.msra.mxu0 0
  %4639 = vmatprep.subr.bf16.mxu0 0
  %4640 = vmatpush1.bf16.msra.mxu0 0
  %4641 = vmatprep.subr.bf16.mxu0 0
  %4642 = vmatpush1.bf16.msra.mxu0 0
  %4643 = vmatprep.subr.bf16.mxu0 0
  %4644 = vmatpush1.bf16.msra.mxu0 0
  %4645 = vmatprep.subr.bf16.mxu0 0
  %4646 = vmatpush1.bf16.msra.mxu0 0
  %4647 = vmatprep.subr.bf16.mxu0 0
  %4648 = vmatpush1.bf16.msra.mxu0 0
  %4649 = vmatprep.subr.bf16.mxu0 0
  %4650 = vmatpush1.bf16.msra.mxu0 %v4592
  %4651 = vmatprep.subr.bf16.mxu0 0
  %4652 = vmatpush2.bf16.msra.mxu0 0
  %4653 = vmatprep.subr.bf16.mxu0 0
  %4654 = vmatpush2.bf16.msra.mxu0 0
  %4655 = vmatprep.subr.bf16.mxu0 0
  %4656 = vmatpush2.bf16.msra.mxu0 0
  %4657 = vmatprep.subr.bf16.mxu0 0
  %4658 = vmatpush2.bf16.msra.mxu0 0
  %4659 = vmatprep.subr.bf16.mxu0 0
  %4660 = vmatpush2.bf16.msra.mxu0 0
  %4661 = vmatprep.subr.bf16.mxu0 0
  %4662 = vmatpush2.bf16.msra.mxu0 0
  %4663 = vmatprep.subr.bf16.mxu0 0
  %4664 = vmatpush2.bf16.msra.mxu0 0
  %4665 = vmatprep.subr.bf16.mxu0 0
  %4666 = vmatpush2.bf16.msra.mxu0 0
  %4667 = vmatprep.mubr.bf16.mxu0 0
  %4668 = vmatmul.mubr.bf16.gmra.mxu0 %v4583
  %v4669 = vpop.f32.mrf.mxu0
  %v4670 = vadd.f32 0.0, %v4669
  %v4671 = vpop.f32.mrf.mxu0
  %v4672 = vpop.f32.mrf.mxu0
  %v4673 = vpop.f32.mrf.mxu0
  %4674 = vdwg.mxu0
  %v4675 = vadd.f32 %v4569, %v4629
  %v4676 = vadd.f32 %v4570, %v4631
  %v4677 = vadd.f32 %v4571, %v4670
  %4678 = vrot.lane.b32.xlu0 %v4155, 88
  %v4679 = vpop.permute.xlu0 %4678
  %4680 = vrot.lane.b32.xlu0 %v4163, 108
  %v4681 = vpop.permute.xlu0 %4680
  %4682 = vrot.lane.b32.xlu0 %v4164, 108
  %v4683 = vpop.permute.xlu0 %4682
  %4684 = vrot.lane.b32.xlu0 %v4165, 108
  %v4685 = vpop.permute.xlu0 %4684
  %v4686 = vsel %vm607, %v4681, %v4683
  %v4687 = vsel %vm607, %v4683, %v4685
  %v4689 = vsel %vm2138, %v4679, 0
  %v4692 = vsel %vm2142, %v4686, 0
  %v4695 = vsel %vm2142, %v4687, 0
  %v4698 = vsel %vm2142, %v4685, 0
  %4700 = vmatprep.subr.bf16.mxu0 0
  %4701 = vmatpush1.bf16.msra.mxu0 0
  %4702 = vmatprep.subr.bf16.mxu0 0
  %4703 = vmatpush1.bf16.msra.mxu0 0
  %4704 = vmatprep.subr.bf16.mxu0 0
  %4705 = vmatpush1.bf16.msra.mxu0 0
  %4706 = vmatprep.subr.bf16.mxu0 0
  %4707 = vmatpush1.bf16.msra.mxu0 0
  %4708 = vmatprep.subr.bf16.mxu0 0
  %4709 = vmatpush1.bf16.msra.mxu0 0
  %4710 = vmatprep.subr.bf16.mxu0 0
  %4711 = vmatpush1.bf16.msra.mxu0 0
  %4712 = vmatprep.subr.bf16.mxu0 0
  %4713 = vmatpush1.bf16.msra.mxu0 0
  %4714 = vmatprep.subr.bf16.mxu0 %v4695
  %4715 = vmatpush1.bf16.msra.mxu0 %v4692
  %4716 = vmatprep.subr.bf16.mxu0 0
  %4717 = vmatpush2.bf16.msra.mxu0 0
  %4718 = vmatprep.subr.bf16.mxu0 0
  %4719 = vmatpush2.bf16.msra.mxu0 0
  %4720 = vmatprep.subr.bf16.mxu0 0
  %4721 = vmatpush2.bf16.msra.mxu0 0
  %4722 = vmatprep.subr.bf16.mxu0 0
  %4723 = vmatpush2.bf16.msra.mxu0 0
  %4724 = vmatprep.subr.bf16.mxu0 0
  %4725 = vmatpush2.bf16.msra.mxu0 0
  %4726 = vmatprep.subr.bf16.mxu0 0
  %4727 = vmatpush2.bf16.msra.mxu0 0
  %4728 = vmatprep.subr.bf16.mxu0 0
  %4729 = vmatpush2.bf16.msra.mxu0 0
  %4730 = vmatprep.subr.bf16.mxu0 0
  %4731 = vmatpush2.bf16.msra.mxu0 0
  %4732 = vmatprep.mubr.bf16.mxu0 0
  %4733 = vmatmul.mubr.bf16.gmra.mxu0 %v4689
  %v4734 = vpop.f32.mrf.mxu0
  %v4735 = vadd.f32 0.0, %v4734
  %v4736 = vpop.f32.mrf.mxu0
  %v4737 = vadd.f32 0.0, %v4736
  %v4738 = vpop.f32.mrf.mxu0
  %v4739 = vpop.f32.mrf.mxu0
  %4740 = vdwg.mxu0
  %4741 = vmatprep.subr.bf16.mxu0 0
  %4742 = vmatpush1.bf16.msra.mxu0 0
  %4743 = vmatprep.subr.bf16.mxu0 0
  %4744 = vmatpush1.bf16.msra.mxu0 0
  %4745 = vmatprep.subr.bf16.mxu0 0
  %4746 = vmatpush1.bf16.msra.mxu0 0
  %4747 = vmatprep.subr.bf16.mxu0 0
  %4748 = vmatpush1.bf16.msra.mxu0 0
  %4749 = vmatprep.subr.bf16.mxu0 0
  %4750 = vmatpush1.bf16.msra.mxu0 0
  %4751 = vmatprep.subr.bf16.mxu0 0
  %4752 = vmatpush1.bf16.msra.mxu0 0
  %4753 = vmatprep.subr.bf16.mxu0 0
  %4754 = vmatpush1.bf16.msra.mxu0 0
  %4755 = vmatprep.subr.bf16.mxu0 0
  %4756 = vmatpush1.bf16.msra.mxu0 %v4698
  %4757 = vmatprep.subr.bf16.mxu0 0
  %4758 = vmatpush2.bf16.msra.mxu0 0
  %4759 = vmatprep.subr.bf16.mxu0 0
  %4760 = vmatpush2.bf16.msra.mxu0 0
  %4761 = vmatprep.subr.bf16.mxu0 0
  %4762 = vmatpush2.bf16.msra.mxu0 0
  %4763 = vmatprep.subr.bf16.mxu0 0
  %4764 = vmatpush2.bf16.msra.mxu0 0
  %4765 = vmatprep.subr.bf16.mxu0 0
  %4766 = vmatpush2.bf16.msra.mxu0 0
  %4767 = vmatprep.subr.bf16.mxu0 0
  %4768 = vmatpush2.bf16.msra.mxu0 0
  %4769 = vmatprep.subr.bf16.mxu0 0
  %4770 = vmatpush2.bf16.msra.mxu0 0
  %4771 = vmatprep.subr.bf16.mxu0 0
  %4772 = vmatpush2.bf16.msra.mxu0 0
  %4773 = vmatprep.mubr.bf16.mxu0 0
  %4774 = vmatmul.mubr.bf16.gmra.mxu0 %v4689
  %v4775 = vpop.f32.mrf.mxu0
  %v4776 = vadd.f32 0.0, %v4775
  %v4777 = vpop.f32.mrf.mxu0
  %v4778 = vpop.f32.mrf.mxu0
  %v4779 = vpop.f32.mrf.mxu0
  %4780 = vdwg.mxu0
  %v4781 = vadd.f32 %v4675, %v4735
  %v4782 = vadd.f32 %v4676, %v4737
  %v4783 = vadd.f32 %v4677, %v4776
  %4784 = vrot.lane.b32.xlu0 %v4155, 80
  %v4785 = vpop.permute.xlu0 %4784
  %4786 = vrot.lane.b32.xlu0 %v4163, 92
  %v4787 = vpop.permute.xlu0 %4786
  %4788 = vrot.lane.b32.xlu0 %v4164, 92
  %v4789 = vpop.permute.xlu0 %4788
  %4790 = vrot.lane.b32.xlu0 %v4165, 92
  %v4791 = vpop.permute.xlu0 %4790
  %v4792 = vsel %vm718, %v4787, %v4789
  %v4793 = vsel %vm718, %v4789, %v4791
  %v4795 = vsel %vm2138, %v4785, 0
  %v4798 = vsel %vm2142, %v4792, 0
  %v4801 = vsel %vm2142, %v4793, 0
  %v4804 = vsel %vm2142, %v4791, 0
  %4806 = vmatprep.subr.bf16.mxu0 0
  %4807 = vmatpush1.bf16.msra.mxu0 0
  %4808 = vmatprep.subr.bf16.mxu0 0
  %4809 = vmatpush1.bf16.msra.mxu0 0
  %4810 = vmatprep.subr.bf16.mxu0 0
  %4811 = vmatpush1.bf16.msra.mxu0 0
  %4812 = vmatprep.subr.bf16.mxu0 0
  %4813 = vmatpush1.bf16.msra.mxu0 0
  %4814 = vmatprep.subr.bf16.mxu0 0
  %4815 = vmatpush1.bf16.msra.mxu0 0
  %4816 = vmatprep.subr.bf16.mxu0 0
  %4817 = vmatpush1.bf16.msra.mxu0 0
  %4818 = vmatprep.subr.bf16.mxu0 0
  %4819 = vmatpush1.bf16.msra.mxu0 0
  %4820 = vmatprep.subr.bf16.mxu0 %v4801
  %4821 = vmatpush1.bf16.msra.mxu0 %v4798
  %4822 = vmatprep.subr.bf16.mxu0 0
  %4823 = vmatpush2.bf16.msra.mxu0 0
  %4824 = vmatprep.subr.bf16.mxu0 0
  %4825 = vmatpush2.bf16.msra.mxu0 0
  %4826 = vmatprep.subr.bf16.mxu0 0
  %4827 = vmatpush2.bf16.msra.mxu0 0
  %4828 = vmatprep.subr.bf16.mxu0 0
  %4829 = vmatpush2.bf16.msra.mxu0 0
  %4830 = vmatprep.subr.bf16.mxu0 0
  %4831 = vmatpush2.bf16.msra.mxu0 0
  %4832 = vmatprep.subr.bf16.mxu0 0
  %4833 = vmatpush2.bf16.msra.mxu0 0
  %4834 = vmatprep.subr.bf16.mxu0 0
  %4835 = vmatpush2.bf16.msra.mxu0 0
  %4836 = vmatprep.subr.bf16.mxu0 0
  %4837 = vmatpush2.bf16.msra.mxu0 0
  %4838 = vmatprep.mubr.bf16.mxu0 0
  %4839 = vmatmul.mubr.bf16.gmra.mxu0 %v4795
  %v4840 = vpop.f32.mrf.mxu0
  %v4841 = vadd.f32 0.0, %v4840
  %v4842 = vpop.f32.mrf.mxu0
  %v4843 = vadd.f32 0.0, %v4842
  %v4844 = vpop.f32.mrf.mxu0
  %v4845 = vpop.f32.mrf.mxu0
  %4846 = vdwg.mxu0
  %4847 = vmatprep.subr.bf16.mxu0 0
  %4848 = vmatpush1.bf16.msra.mxu0 0
  %4849 = vmatprep.subr.bf16.mxu0 0
  %4850 = vmatpush1.bf16.msra.mxu0 0
  %4851 = vmatprep.subr.bf16.mxu0 0
  %4852 = vmatpush1.bf16.msra.mxu0 0
  %4853 = vmatprep.subr.bf16.mxu0 0
  %4854 = vmatpush1.bf16.msra.mxu0 0
  %4855 = vmatprep.subr.bf16.mxu0 0
  %4856 = vmatpush1.bf16.msra.mxu0 0
  %4857 = vmatprep.subr.bf16.mxu0 0
  %4858 = vmatpush1.bf16.msra.mxu0 0
  %4859 = vmatprep.subr.bf16.mxu0 0
  %4860 = vmatpush1.bf16.msra.mxu0 0
  %4861 = vmatprep.subr.bf16.mxu0 0
  %4862 = vmatpush1.bf16.msra.mxu0 %v4804
  %4863 = vmatprep.subr.bf16.mxu0 0
  %4864 = vmatpush2.bf16.msra.mxu0 0
  %4865 = vmatprep.subr.bf16.mxu0 0
  %4866 = vmatpush2.bf16.msra.mxu0 0
  %4867 = vmatprep.subr.bf16.mxu0 0
  %4868 = vmatpush2.bf16.msra.mxu0 0
  %4869 = vmatprep.subr.bf16.mxu0 0
  %4870 = vmatpush2.bf16.msra.mxu0 0
  %4871 = vmatprep.subr.bf16.mxu0 0
  %4872 = vmatpush2.bf16.msra.mxu0 0
  %4873 = vmatprep.subr.bf16.mxu0 0
  %4874 = vmatpush2.bf16.msra.mxu0 0
  %4875 = vmatprep.subr.bf16.mxu0 0
  %4876 = vmatpush2.bf16.msra.mxu0 0
  %4877 = vmatprep.subr.bf16.mxu0 0
  %4878 = vmatpush2.bf16.msra.mxu0 0
  %4879 = vmatprep.mubr.bf16.mxu0 0
  %4880 = vmatmul.mubr.bf16.gmra.mxu0 %v4795
  %v4881 = vpop.f32.mrf.mxu0
  %v4882 = vadd.f32 0.0, %v4881
  %v4883 = vpop.f32.mrf.mxu0
  %v4884 = vpop.f32.mrf.mxu0
  %v4885 = vpop.f32.mrf.mxu0
  %4886 = vdwg.mxu0
  %v4887 = vadd.f32 %v4781, %v4841
  %v4888 = vadd.f32 %v4782, %v4843
  %v4889 = vadd.f32 %v4783, %v4882
  %4890 = vrot.lane.b32.xlu0 %v4155, 72
  %v4891 = vpop.permute.xlu0 %4890
  %4892 = vrot.lane.b32.xlu0 %v4163, 91
  %v4893 = vpop.permute.xlu0 %4892
  %4894 = vrot.lane.b32.xlu0 %v4164, 91
  %v4895 = vpop.permute.xlu0 %4894
  %4896 = vrot.lane.b32.xlu0 %v4165, 91
  %v4897 = vpop.permute.xlu0 %4896
  %v4898 = vsel %vm829, %v4893, %v4895
  %v4899 = vsel %vm829, %v4895, %v4897
  %v4901 = vsel %vm2138, %v4891, 0
  %v4904 = vsel %vm2142, %v4898, 0
  %v4907 = vsel %vm2142, %v4899, 0
  %v4910 = vsel %vm2142, %v4897, 0
  %4912 = vmatprep.subr.bf16.mxu0 0
  %4913 = vmatpush1.bf16.msra.mxu0 0
  %4914 = vmatprep.subr.bf16.mxu0 0
  %4915 = vmatpush1.bf16.msra.mxu0 0
  %4916 = vmatprep.subr.bf16.mxu0 0
  %4917 = vmatpush1.bf16.msra.mxu0 0
  %4918 = vmatprep.subr.bf16.mxu0 0
  %4919 = vmatpush1.bf16.msra.mxu0 0
  %4920 = vmatprep.subr.bf16.mxu0 0
  %4921 = vmatpush1.bf16.msra.mxu0 0
  %4922 = vmatprep.subr.bf16.mxu0 0
  %4923 = vmatpush1.bf16.msra.mxu0 0
  %4924 = vmatprep.subr.bf16.mxu0 0
  %4925 = vmatpush1.bf16.msra.mxu0 0
  %4926 = vmatprep.subr.bf16.mxu0 %v4907
  %4927 = vmatpush1.bf16.msra.mxu0 %v4904
  %4928 = vmatprep.subr.bf16.mxu0 0
  %4929 = vmatpush2.bf16.msra.mxu0 0
  %4930 = vmatprep.subr.bf16.mxu0 0
  %4931 = vmatpush2.bf16.msra.mxu0 0
  %4932 = vmatprep.subr.bf16.mxu0 0
  %4933 = vmatpush2.bf16.msra.mxu0 0
  %4934 = vmatprep.subr.bf16.mxu0 0
  %4935 = vmatpush2.bf16.msra.mxu0 0
  %4936 = vmatprep.subr.bf16.mxu0 0
  %4937 = vmatpush2.bf16.msra.mxu0 0
  %4938 = vmatprep.subr.bf16.mxu0 0
  %4939 = vmatpush2.bf16.msra.mxu0 0
  %4940 = vmatprep.subr.bf16.mxu0 0
  %4941 = vmatpush2.bf16.msra.mxu0 0
  %4942 = vmatprep.subr.bf16.mxu0 0
  %4943 = vmatpush2.bf16.msra.mxu0 0
  %4944 = vmatprep.mubr.bf16.mxu0 0
  %4945 = vmatmul.mubr.bf16.gmra.mxu0 %v4901
  %v4946 = vpop.f32.mrf.mxu0
  %v4947 = vadd.f32 0.0, %v4946
  %v4948 = vpop.f32.mrf.mxu0
  %v4949 = vadd.f32 0.0, %v4948
  %v4950 = vpop.f32.mrf.mxu0
  %v4951 = vpop.f32.mrf.mxu0
  %4952 = vdwg.mxu0
  %4953 = vmatprep.subr.bf16.mxu0 0
  %4954 = vmatpush1.bf16.msra.mxu0 0
  %4955 = vmatprep.subr.bf16.mxu0 0
  %4956 = vmatpush1.bf16.msra.mxu0 0
  %4957 = vmatprep.subr.bf16.mxu0 0
  %4958 = vmatpush1.bf16.msra.mxu0 0
  %4959 = vmatprep.subr.bf16.mxu0 0
  %4960 = vmatpush1.bf16.msra.mxu0 0
  %4961 = vmatprep.subr.bf16.mxu0 0
  %4962 = vmatpush1.bf16.msra.mxu0 0
  %4963 = vmatprep.subr.bf16.mxu0 0
  %4964 = vmatpush1.bf16.msra.mxu0 0
  %4965 = vmatprep.subr.bf16.mxu0 0
  %4966 = vmatpush1.bf16.msra.mxu0 0
  %4967 = vmatprep.subr.bf16.mxu0 0
  %4968 = vmatpush1.bf16.msra.mxu0 %v4910
  %4969 = vmatprep.subr.bf16.mxu0 0
  %4970 = vmatpush2.bf16.msra.mxu0 0
  %4971 = vmatprep.subr.bf16.mxu0 0
  %4972 = vmatpush2.bf16.msra.mxu0 0
  %4973 = vmatprep.subr.bf16.mxu0 0
  %4974 = vmatpush2.bf16.msra.mxu0 0
  %4975 = vmatprep.subr.bf16.mxu0 0
  %4976 = vmatpush2.bf16.msra.mxu0 0
  %4977 = vmatprep.subr.bf16.mxu0 0
  %4978 = vmatpush2.bf16.msra.mxu0 0
  %4979 = vmatprep.subr.bf16.mxu0 0
  %4980 = vmatpush2.bf16.msra.mxu0 0
  %4981 = vmatprep.subr.bf16.mxu0 0
  %4982 = vmatpush2.bf16.msra.mxu0 0
  %4983 = vmatprep.subr.bf16.mxu0 0
  %4984 = vmatpush2.bf16.msra.mxu0 0
  %4985 = vmatprep.mubr.bf16.mxu0 0
  %4986 = vmatmul.mubr.bf16.gmra.mxu0 %v4901
  %v4987 = vpop.f32.mrf.mxu0
  %v4988 = vadd.f32 0.0, %v4987
  %v4989 = vpop.f32.mrf.mxu0
  %v4990 = vpop.f32.mrf.mxu0
  %v4991 = vpop.f32.mrf.mxu0
  %4992 = vdwg.mxu0
  %v4993 = vadd.f32 %v4887, %v4947
  %v4994 = vadd.f32 %v4888, %v4949
  %v4995 = vadd.f32 %v4889, %v4988
  %4996 = vrot.lane.b32.xlu0 %v4155, 64
  %v4997 = vpop.permute.xlu0 %4996
  %4998 = vrot.lane.b32.xlu0 %v4163, 90
  %v4999 = vpop.permute.xlu0 %4998
  %5000 = vrot.lane.b32.xlu0 %v4164, 90
  %v5001 = vpop.permute.xlu0 %5000
  %5002 = vrot.lane.b32.xlu0 %v4165, 90
  %v5003 = vpop.permute.xlu0 %5002
  %v5004 = vsel %vm940, %v4999, %v5001
  %v5005 = vsel %vm940, %v5001, %v5003
  %v5007 = vsel %vm2138, %v4997, 0
  %v5010 = vsel %vm2142, %v5004, 0
  %v5013 = vsel %vm2142, %v5005, 0
  %v5016 = vsel %vm2142, %v5003, 0
  %5018 = vmatprep.subr.bf16.mxu0 0
  %5019 = vmatpush1.bf16.msra.mxu0 0
  %5020 = vmatprep.subr.bf16.mxu0 0
  %5021 = vmatpush1.bf16.msra.mxu0 0
  %5022 = vmatprep.subr.bf16.mxu0 0
  %5023 = vmatpush1.bf16.msra.mxu0 0
  %5024 = vmatprep.subr.bf16.mxu0 0
  %5025 = vmatpush1.bf16.msra.mxu0 0
  %5026 = vmatprep.subr.bf16.mxu0 0
  %5027 = vmatpush1.bf16.msra.mxu0 0
  %5028 = vmatprep.subr.bf16.mxu0 0
  %5029 = vmatpush1.bf16.msra.mxu0 0
  %5030 = vmatprep.subr.bf16.mxu0 0
  %5031 = vmatpush1.bf16.msra.mxu0 0
  %5032 = vmatprep.subr.bf16.mxu0 %v5013
  %5033 = vmatpush1.bf16.msra.mxu0 %v5010
  %5034 = vmatprep.subr.bf16.mxu0 0
  %5035 = vmatpush2.bf16.msra.mxu0 0
  %5036 = vmatprep.subr.bf16.mxu0 0
  %5037 = vmatpush2.bf16.msra.mxu0 0
  %5038 = vmatprep.subr.bf16.mxu0 0
  %5039 = vmatpush2.bf16.msra.mxu0 0
  %5040 = vmatprep.subr.bf16.mxu0 0
  %5041 = vmatpush2.bf16.msra.mxu0 0
  %5042 = vmatprep.subr.bf16.mxu0 0
  %5043 = vmatpush2.bf16.msra.mxu0 0
  %5044 = vmatprep.subr.bf16.mxu0 0
  %5045 = vmatpush2.bf16.msra.mxu0 0
  %5046 = vmatprep.subr.bf16.mxu0 0
  %5047 = vmatpush2.bf16.msra.mxu0 0
  %5048 = vmatprep.subr.bf16.mxu0 0
  %5049 = vmatpush2.bf16.msra.mxu0 0
  %5050 = vmatprep.mubr.bf16.mxu0 0
  %5051 = vmatmul.mubr.bf16.gmra.mxu0 %v5007
  %v5052 = vpop.f32.mrf.mxu0
  %v5053 = vadd.f32 0.0, %v5052
  %v5054 = vpop.f32.mrf.mxu0
  %v5055 = vadd.f32 0.0, %v5054
  %v5056 = vpop.f32.mrf.mxu0
  %v5057 = vpop.f32.mrf.mxu0
  %5058 = vdwg.mxu0
  %5059 = vmatprep.subr.bf16.mxu0 0
  %5060 = vmatpush1.bf16.msra.mxu0 0
  %5061 = vmatprep.subr.bf16.mxu0 0
  %5062 = vmatpush1.bf16.msra.mxu0 0
  %5063 = vmatprep.subr.bf16.mxu0 0
  %5064 = vmatpush1.bf16.msra.mxu0 0
  %5065 = vmatprep.subr.bf16.mxu0 0
  %5066 = vmatpush1.bf16.msra.mxu0 0
  %5067 = vmatprep.subr.bf16.mxu0 0
  %5068 = vmatpush1.bf16.msra.mxu0 0
  %5069 = vmatprep.subr.bf16.mxu0 0
  %5070 = vmatpush1.bf16.msra.mxu0 0
  %5071 = vmatprep.subr.bf16.mxu0 0
  %5072 = vmatpush1.bf16.msra.mxu0 0
  %5073 = vmatprep.subr.bf16.mxu0 0
  %5074 = vmatpush1.bf16.msra.mxu0 %v5016
  %5075 = vmatprep.subr.bf16.mxu0 0
  %5076 = vmatpush2.bf16.msra.mxu0 0
  %5077 = vmatprep.subr.bf16.mxu0 0
  %5078 = vmatpush2.bf16.msra.mxu0 0
  %5079 = vmatprep.subr.bf16.mxu0 0
  %5080 = vmatpush2.bf16.msra.mxu0 0
  %5081 = vmatprep.subr.bf16.mxu0 0
  %5082 = vmatpush2.bf16.msra.mxu0 0
  %5083 = vmatprep.subr.bf16.mxu0 0
  %5084 = vmatpush2.bf16.msra.mxu0 0
  %5085 = vmatprep.subr.bf16.mxu0 0
  %5086 = vmatpush2.bf16.msra.mxu0 0
  %5087 = vmatprep.subr.bf16.mxu0 0
  %5088 = vmatpush2.bf16.msra.mxu0 0
  %5089 = vmatprep.subr.bf16.mxu0 0
  %5090 = vmatpush2.bf16.msra.mxu0 0
  %5091 = vmatprep.mubr.bf16.mxu0 0
  %5092 = vmatmul.mubr.bf16.gmra.mxu0 %v5007
  %v5093 = vpop.f32.mrf.mxu0
  %v5094 = vadd.f32 0.0, %v5093
  %v5095 = vpop.f32.mrf.mxu0
  %v5096 = vpop.f32.mrf.mxu0
  %v5097 = vpop.f32.mrf.mxu0
  %5098 = vdwg.mxu0
  %v5099 = vadd.f32 %v4993, %v5053
  %v5100 = vadd.f32 %v4994, %v5055
  %v5101 = vadd.f32 %v4995, %v5094
  %v5102 = vld [vmem:[%s4146] sm:$0xff]
  %v5103 = vld [vmem:[%s4146 + $0x8] sm:$0xf]
  %v5106 = vunpack.c.l.b16 %v5102
  %v5107 = vunpack.c.h.b16 %v5102
  %v5108 = vunpack.c.l.b16 %v5103
  %v5109 = vpack.c.b16 %v5106, %v5106
  %v5110 = vpack.c.b16 %v5107, %v5107
  %v5111 = vpack.c.b16 %v5108, %v5108
  %5112 = vrot.lane.b32.xlu0 %v5109, 127
  %v5113 = vpop.permute.xlu0 %5112
  %5114 = vrot.lane.b32.xlu0 %v5110, 127
  %v5115 = vpop.permute.xlu0 %5114
  %5116 = vrot.lane.b32.xlu0 %v5111, 127
  %v5117 = vpop.permute.xlu0 %5116
  %v5118 = vsel %vm71, %v5113, %v5115
  %v5119 = vsel %vm71, %v5115, %v5117
  %v5121 = vsel %vm2142, %v5118, 0
  %v5124 = vsel %vm2142, %v5119, 0
  %v5127 = vsel %vm2142, %v5117, 0
  %5129 = vmatprep.subr.bf16.mxu0 0
  %5130 = vmatpush1.bf16.msra.mxu0 0
  %5131 = vmatprep.subr.bf16.mxu0 0
  %5132 = vmatpush1.bf16.msra.mxu0 0
  %5133 = vmatprep.subr.bf16.mxu0 0
  %5134 = vmatpush1.bf16.msra.mxu0 0
  %5135 = vmatprep.subr.bf16.mxu0 0
  %5136 = vmatpush1.bf16.msra.mxu0 0
  %5137 = vmatprep.subr.bf16.mxu0 0
  %5138 = vmatpush1.bf16.msra.mxu0 0
  %5139 = vmatprep.subr.bf16.mxu0 0
  %5140 = vmatpush1.bf16.msra.mxu0 0
  %5141 = vmatprep.subr.bf16.mxu0 0
  %5142 = vmatpush1.bf16.msra.mxu0 0
  %5143 = vmatprep.subr.bf16.mxu0 %v5124
  %5144 = vmatpush1.bf16.msra.mxu0 %v5121
  %5145 = vmatprep.subr.bf16.mxu0 0
  %5146 = vmatpush2.bf16.msra.mxu0 0
  %5147 = vmatprep.subr.bf16.mxu0 0
  %5148 = vmatpush2.bf16.msra.mxu0 0
  %5149 = vmatprep.subr.bf16.mxu0 0
  %5150 = vmatpush2.bf16.msra.mxu0 0
  %5151 = vmatprep.subr.bf16.mxu0 0
  %5152 = vmatpush2.bf16.msra.mxu0 0
  %5153 = vmatprep.subr.bf16.mxu0 0
  %5154 = vmatpush2.bf16.msra.mxu0 0
  %5155 = vmatprep.subr.bf16.mxu0 0
  %5156 = vmatpush2.bf16.msra.mxu0 0
  %5157 = vmatprep.subr.bf16.mxu0 0
  %5158 = vmatpush2.bf16.msra.mxu0 0
  %5159 = vmatprep.subr.bf16.mxu0 0
  %5160 = vmatpush2.bf16.msra.mxu0 0
  %5161 = vmatprep.mubr.bf16.mxu0 0
  %5162 = vmatmul.mubr.bf16.gmra.mxu0 %v4175
  %v5163 = vpop.f32.mrf.mxu0
  %v5164 = vadd.f32 0.0, %v5163
  %v5165 = vpop.f32.mrf.mxu0
  %v5166 = vadd.f32 0.0, %v5165
  %v5167 = vpop.f32.mrf.mxu0
  %v5168 = vpop.f32.mrf.mxu0
  %5169 = vdwg.mxu0
  %5170 = vmatprep.subr.bf16.mxu0 0
  %5171 = vmatpush1.bf16.msra.mxu0 0
  %5172 = vmatprep.subr.bf16.mxu0 0
  %5173 = vmatpush1.bf16.msra.mxu0 0
  %5174 = vmatprep.subr.bf16.mxu0 0
  %5175 = vmatpush1.bf16.msra.mxu0 0
  %5176 = vmatprep.subr.bf16.mxu0 0
  %5177 = vmatpush1.bf16.msra.mxu0 0
  %5178 = vmatprep.subr.bf16.mxu0 0
  %5179 = vmatpush1.bf16.msra.mxu0 0
  %5180 = vmatprep.subr.bf16.mxu0 0
  %5181 = vmatpush1.bf16.msra.mxu0 0
  %5182 = vmatprep.subr.bf16.mxu0 0
  %5183 = vmatpush1.bf16.msra.mxu0 0
  %5184 = vmatprep.subr.bf16.mxu0 0
  %5185 = vmatpush1.bf16.msra.mxu0 %v5127
  %5186 = vmatprep.subr.bf16.mxu0 0
  %5187 = vmatpush2.bf16.msra.mxu0 0
  %5188 = vmatprep.subr.bf16.mxu0 0
  %5189 = vmatpush2.bf16.msra.mxu0 0
  %5190 = vmatprep.subr.bf16.mxu0 0
  %5191 = vmatpush2.bf16.msra.mxu0 0
  %5192 = vmatprep.subr.bf16.mxu0 0
  %5193 = vmatpush2.bf16.msra.mxu0 0
  %5194 = vmatprep.subr.bf16.mxu0 0
  %5195 = vmatpush2.bf16.msra.mxu0 0
  %5196 = vmatprep.subr.bf16.mxu0 0
  %5197 = vmatpush2.bf16.msra.mxu0 0
  %5198 = vmatprep.subr.bf16.mxu0 0
  %5199 = vmatpush2.bf16.msra.mxu0 0
  %5200 = vmatprep.subr.bf16.mxu0 0
  %5201 = vmatpush2.bf16.msra.mxu0 0
  %5202 = vmatprep.mubr.bf16.mxu0 0
  %5203 = vmatmul.mubr.bf16.gmra.mxu0 %v4175
  %v5204 = vpop.f32.mrf.mxu0
  %v5205 = vadd.f32 0.0, %v5204
  %v5206 = vpop.f32.mrf.mxu0
  %v5207 = vpop.f32.mrf.mxu0
  %v5208 = vpop.f32.mrf.mxu0
  %5209 = vdwg.mxu0
  %v5211 = vsel %vm2142, %v5109, 0
  %v5214 = vsel %vm2142, %v5110, 0
  %v5217 = vsel %vm2142, %v5111, 0
  %5219 = vmatprep.subr.bf16.mxu0 0
  %5220 = vmatpush1.bf16.msra.mxu0 0
  %5221 = vmatprep.subr.bf16.mxu0 0
  %5222 = vmatpush1.bf16.msra.mxu0 0
  %5223 = vmatprep.subr.bf16.mxu0 0
  %5224 = vmatpush1.bf16.msra.mxu0 0
  %5225 = vmatprep.subr.bf16.mxu0 0
  %5226 = vmatpush1.bf16.msra.mxu0 0
  %5227 = vmatprep.subr.bf16.mxu0 0
  %5228 = vmatpush1.bf16.msra.mxu0 0
  %5229 = vmatprep.subr.bf16.mxu0 0
  %5230 = vmatpush1.bf16.msra.mxu0 0
  %5231 = vmatprep.subr.bf16.mxu0 0
  %5232 = vmatpush1.bf16.msra.mxu0 0
  %5233 = vmatprep.subr.bf16.mxu0 %v5214
  %5234 = vmatpush1.bf16.msra.mxu0 %v5211
  %5235 = vmatprep.subr.bf16.mxu0 0
  %5236 = vmatpush2.bf16.msra.mxu0 0
  %5237 = vmatprep.subr.bf16.mxu0 0
  %5238 = vmatpush2.bf16.msra.mxu0 0
  %5239 = vmatprep.subr.bf16.mxu0 0
  %5240 = vmatpush2.bf16.msra.mxu0 0
  %5241 = vmatprep.subr.bf16.mxu0 0
  %5242 = vmatpush2.bf16.msra.mxu0 0
  %5243 = vmatprep.subr.bf16.mxu0 0
  %5244 = vmatpush2.bf16.msra.mxu0 0
  %5245 = vmatprep.subr.bf16.mxu0 0
  %5246 = vmatpush2.bf16.msra.mxu0 0
  %5247 = vmatprep.subr.bf16.mxu0 0
  %5248 = vmatpush2.bf16.msra.mxu0 0
  %5249 = vmatprep.subr.bf16.mxu0 0
  %5250 = vmatpush2.bf16.msra.mxu0 0
  %5251 = vmatprep.mubr.bf16.mxu0 0
  %5252 = vmatmul.mubr.bf16.gmra.mxu0 %v4268
  %v5253 = vpop.f32.mrf.mxu0
  %v5254 = vadd.f32 %v5164, %v5253
  %v5255 = vpop.f32.mrf.mxu0
  %v5256 = vadd.f32 %v5166, %v5255
  %v5257 = vpop.f32.mrf.mxu0
  %v5258 = vpop.f32.mrf.mxu0
  %5259 = vdwg.mxu0
  %5260 = vmatprep.subr.bf16.mxu0 0
  %5261 = vmatpush1.bf16.msra.mxu0 0
  %5262 = vmatprep.subr.bf16.mxu0 0
  %5263 = vmatpush1.bf16.msra.mxu0 0
  %5264 = vmatprep.subr.bf16.mxu0 0
  %5265 = vmatpush1.bf16.msra.mxu0 0
  %5266 = vmatprep.subr.bf16.mxu0 0
  %5267 = vmatpush1.bf16.msra.mxu0 0
  %5268 = vmatprep.subr.bf16.mxu0 0
  %5269 = vmatpush1.bf16.msra.mxu0 0
  %5270 = vmatprep.subr.bf16.mxu0 0
  %5271 = vmatpush1.bf16.msra.mxu0 0
  %5272 = vmatprep.subr.bf16.mxu0 0
  %5273 = vmatpush1.bf16.msra.mxu0 0
  %5274 = vmatprep.subr.bf16.mxu0 0
  %5275 = vmatpush1.bf16.msra.mxu0 %v5217
  %5276 = vmatprep.subr.bf16.mxu0 0
  %5277 = vmatpush2.bf16.msra.mxu0 0
  %5278 = vmatprep.subr.bf16.mxu0 0
  %5279 = vmatpush2.bf16.msra.mxu0 0
  %5280 = vmatprep.subr.bf16.mxu0 0
  %5281 = vmatpush2.bf16.msra.mxu0 0
  %5282 = vmatprep.subr.bf16.mxu0 0
  %5283 = vmatpush2.bf16.msra.mxu0 0
  %5284 = vmatprep.subr.bf16.mxu0 0
  %5285 = vmatpush2.bf16.msra.mxu0 0
  %5286 = vmatprep.subr.bf16.mxu0 0
  %5287 = vmatpush2.bf16.msra.mxu0 0
  %5288 = vmatprep.subr.bf16.mxu0 0
  %5289 = vmatpush2.bf16.msra.mxu0 0
  %5290 = vmatprep.subr.bf16.mxu0 0
  %5291 = vmatpush2.bf16.msra.mxu0 0
  %5292 = vmatprep.mubr.bf16.mxu0 0
  %5293 = vmatmul.mubr.bf16.gmra.mxu0 %v4268
  %v5294 = vpop.f32.mrf.mxu0
  %v5295 = vadd.f32 %v5205, %v5294
  %v5296 = vpop.f32.mrf.mxu0
  %v5297 = vpop.f32.mrf.mxu0
  %v5298 = vpop.f32.mrf.mxu0
  %5299 = vdwg.mxu0
  %5300 = vrot.lane.b32.xlu0 %v5109, 126
  %v5301 = vpop.permute.xlu0 %5300
  %5302 = vrot.lane.b32.xlu0 %v5110, 126
  %v5303 = vpop.permute.xlu0 %5302
  %5304 = vrot.lane.b32.xlu0 %v5111, 126
  %v5305 = vpop.permute.xlu0 %5304
  %v5306 = vsel %vm274, %v5301, %v5303
  %v5307 = vsel %vm274, %v5303, %v5305
  %v5309 = vsel %vm2142, %v5306, 0
  %v5312 = vsel %vm2142, %v5307, 0
  %v5315 = vsel %vm2142, %v5305, 0
  %5317 = vmatprep.subr.bf16.mxu0 0
  %5318 = vmatpush1.bf16.msra.mxu0 0
  %5319 = vmatprep.subr.bf16.mxu0 0
  %5320 = vmatpush1.bf16.msra.mxu0 0
  %5321 = vmatprep.subr.bf16.mxu0 0
  %5322 = vmatpush1.bf16.msra.mxu0 0
  %5323 = vmatprep.subr.bf16.mxu0 0
  %5324 = vmatpush1.bf16.msra.mxu0 0
  %5325 = vmatprep.subr.bf16.mxu0 0
  %5326 = vmatpush1.bf16.msra.mxu0 0
  %5327 = vmatprep.subr.bf16.mxu0 0
  %5328 = vmatpush1.bf16.msra.mxu0 0
  %5329 = vmatprep.subr.bf16.mxu0 0
  %5330 = vmatpush1.bf16.msra.mxu0 0
  %5331 = vmatprep.subr.bf16.mxu0 %v5312
  %5332 = vmatpush1.bf16.msra.mxu0 %v5309
  %5333 = vmatprep.subr.bf16.mxu0 0
  %5334 = vmatpush2.bf16.msra.mxu0 0
  %5335 = vmatprep.subr.bf16.mxu0 0
  %5336 = vmatpush2.bf16.msra.mxu0 0
  %5337 = vmatprep.subr.bf16.mxu0 0
  %5338 = vmatpush2.bf16.msra.mxu0 0
  %5339 = vmatprep.subr.bf16.mxu0 0
  %5340 = vmatpush2.bf16.msra.mxu0 0
  %5341 = vmatprep.subr.bf16.mxu0 0
  %5342 = vmatpush2.bf16.msra.mxu0 0
  %5343 = vmatprep.subr.bf16.mxu0 0
  %5344 = vmatpush2.bf16.msra.mxu0 0
  %5345 = vmatprep.subr.bf16.mxu0 0
  %5346 = vmatpush2.bf16.msra.mxu0 0
  %5347 = vmatprep.subr.bf16.mxu0 0
  %5348 = vmatpush2.bf16.msra.mxu0 0
  %5349 = vmatprep.mubr.bf16.mxu0 0
  %5350 = vmatmul.mubr.bf16.gmra.mxu0 %v4371
  %v5351 = vpop.f32.mrf.mxu0
  %v5352 = vadd.f32 0.0, %v5351
  %v5353 = vpop.f32.mrf.mxu0
  %v5354 = vadd.f32 0.0, %v5353
  %v5355 = vpop.f32.mrf.mxu0
  %v5356 = vpop.f32.mrf.mxu0
  %5357 = vdwg.mxu0
  %5358 = vmatprep.subr.bf16.mxu0 0
  %5359 = vmatpush1.bf16.msra.mxu0 0
  %5360 = vmatprep.subr.bf16.mxu0 0
  %5361 = vmatpush1.bf16.msra.mxu0 0
  %5362 = vmatprep.subr.bf16.mxu0 0
  %5363 = vmatpush1.bf16.msra.mxu0 0
  %5364 = vmatprep.subr.bf16.mxu0 0
  %5365 = vmatpush1.bf16.msra.mxu0 0
  %5366 = vmatprep.subr.bf16.mxu0 0
  %5367 = vmatpush1.bf16.msra.mxu0 0
  %5368 = vmatprep.subr.bf16.mxu0 0
  %5369 = vmatpush1.bf16.msra.mxu0 0
  %5370 = vmatprep.subr.bf16.mxu0 0
  %5371 = vmatpush1.bf16.msra.mxu0 0
  %5372 = vmatprep.subr.bf16.mxu0 0
  %5373 = vmatpush1.bf16.msra.mxu0 %v5315
  %5374 = vmatprep.subr.bf16.mxu0 0
  %5375 = vmatpush2.bf16.msra.mxu0 0
  %5376 = vmatprep.subr.bf16.mxu0 0
  %5377 = vmatpush2.bf16.msra.mxu0 0
  %5378 = vmatprep.subr.bf16.mxu0 0
  %5379 = vmatpush2.bf16.msra.mxu0 0
  %5380 = vmatprep.subr.bf16.mxu0 0
  %5381 = vmatpush2.bf16.msra.mxu0 0
  %5382 = vmatprep.subr.bf16.mxu0 0
  %5383 = vmatpush2.bf16.msra.mxu0 0
  %5384 = vmatprep.subr.bf16.mxu0 0
  %5385 = vmatpush2.bf16.msra.mxu0 0
  %5386 = vmatprep.subr.bf16.mxu0 0
  %5387 = vmatpush2.bf16.msra.mxu0 0
  %5388 = vmatprep.subr.bf16.mxu0 0
  %5389 = vmatpush2.bf16.msra.mxu0 0
  %5390 = vmatprep.mubr.bf16.mxu0 0
  %5391 = vmatmul.mubr.bf16.gmra.mxu0 %v4371
  %v5392 = vpop.f32.mrf.mxu0
  %v5393 = vadd.f32 0.0, %v5392
  %v5394 = vpop.f32.mrf.mxu0
  %v5395 = vpop.f32.mrf.mxu0
  %v5396 = vpop.f32.mrf.mxu0
  %5397 = vdwg.mxu0
  %v5398 = vadd.f32 %v5254, %v5352
  %v5399 = vadd.f32 %v5256, %v5354
  %v5400 = vadd.f32 %v5295, %v5393
  %5401 = vrot.lane.b32.xlu0 %v5109, 110
  %v5402 = vpop.permute.xlu0 %5401
  %5403 = vrot.lane.b32.xlu0 %v5110, 110
  %v5404 = vpop.permute.xlu0 %5403
  %5405 = vrot.lane.b32.xlu0 %v5111, 110
  %v5406 = vpop.permute.xlu0 %5405
  %v5407 = vsel %vm385, %v5402, %v5404
  %v5408 = vsel %vm385, %v5404, %v5406
  %v5410 = vsel %vm2142, %v5407, 0
  %v5413 = vsel %vm2142, %v5408, 0
  %v5416 = vsel %vm2142, %v5406, 0
  %5418 = vmatprep.subr.bf16.mxu0 0
  %5419 = vmatpush1.bf16.msra.mxu0 0
  %5420 = vmatprep.subr.bf16.mxu0 0
  %5421 = vmatpush1.bf16.msra.mxu0 0
  %5422 = vmatprep.subr.bf16.mxu0 0
  %5423 = vmatpush1.bf16.msra.mxu0 0
  %5424 = vmatprep.subr.bf16.mxu0 0
  %5425 = vmatpush1.bf16.msra.mxu0 0
  %5426 = vmatprep.subr.bf16.mxu0 0
  %5427 = vmatpush1.bf16.msra.mxu0 0
  %5428 = vmatprep.subr.bf16.mxu0 0
  %5429 = vmatpush1.bf16.msra.mxu0 0
  %5430 = vmatprep.subr.bf16.mxu0 0
  %5431 = vmatpush1.bf16.msra.mxu0 0
  %5432 = vmatprep.subr.bf16.mxu0 %v5413
  %5433 = vmatpush1.bf16.msra.mxu0 %v5410
  %5434 = vmatprep.subr.bf16.mxu0 0
  %5435 = vmatpush2.bf16.msra.mxu0 0
  %5436 = vmatprep.subr.bf16.mxu0 0
  %5437 = vmatpush2.bf16.msra.mxu0 0
  %5438 = vmatprep.subr.bf16.mxu0 0
  %5439 = vmatpush2.bf16.msra.mxu0 0
  %5440 = vmatprep.subr.bf16.mxu0 0
  %5441 = vmatpush2.bf16.msra.mxu0 0
  %5442 = vmatprep.subr.bf16.mxu0 0
  %5443 = vmatpush2.bf16.msra.mxu0 0
  %5444 = vmatprep.subr.bf16.mxu0 0
  %5445 = vmatpush2.bf16.msra.mxu0 0
  %5446 = vmatprep.subr.bf16.mxu0 0
  %5447 = vmatpush2.bf16.msra.mxu0 0
  %5448 = vmatprep.subr.bf16.mxu0 0
  %5449 = vmatpush2.bf16.msra.mxu0 0
  %5450 = vmatprep.mubr.bf16.mxu0 0
  %5451 = vmatmul.mubr.bf16.gmra.mxu0 %v4477
  %v5452 = vpop.f32.mrf.mxu0
  %v5453 = vadd.f32 0.0, %v5452
  %v5454 = vpop.f32.mrf.mxu0
  %v5455 = vadd.f32 0.0, %v5454
  %v5456 = vpop.f32.mrf.mxu0
  %v5457 = vpop.f32.mrf.mxu0
  %5458 = vdwg.mxu0
  %5459 = vmatprep.subr.bf16.mxu0 0
  %5460 = vmatpush1.bf16.msra.mxu0 0
  %5461 = vmatprep.subr.bf16.mxu0 0
  %5462 = vmatpush1.bf16.msra.mxu0 0
  %5463 = vmatprep.subr.bf16.mxu0 0
  %5464 = vmatpush1.bf16.msra.mxu0 0
  %5465 = vmatprep.subr.bf16.mxu0 0
  %5466 = vmatpush1.bf16.msra.mxu0 0
  %5467 = vmatprep.subr.bf16.mxu0 0
  %5468 = vmatpush1.bf16.msra.mxu0 0
  %5469 = vmatprep.subr.bf16.mxu0 0
  %5470 = vmatpush1.bf16.msra.mxu0 0
  %5471 = vmatprep.subr.bf16.mxu0 0
  %5472 = vmatpush1.bf16.msra.mxu0 0
  %5473 = vmatprep.subr.bf16.mxu0 0
  %5474 = vmatpush1.bf16.msra.mxu0 %v5416
  %5475 = vmatprep.subr.bf16.mxu0 0
  %5476 = vmatpush2.bf16.msra.mxu0 0
  %5477 = vmatprep.subr.bf16.mxu0 0
  %5478 = vmatpush2.bf16.msra.mxu0 0
  %5479 = vmatprep.subr.bf16.mxu0 0
  %5480 = vmatpush2.bf16.msra.mxu0 0
  %5481 = vmatprep.subr.bf16.mxu0 0
  %5482 = vmatpush2.bf16.msra.mxu0 0
  %5483 = vmatprep.subr.bf16.mxu0 0
  %5484 = vmatpush2.bf16.msra.mxu0 0
  %5485 = vmatprep.subr.bf16.mxu0 0
  %5486 = vmatpush2.bf16.msra.mxu0 0
  %5487 = vmatprep.subr.bf16.mxu0 0
  %5488 = vmatpush2.bf16.msra.mxu0 0
  %5489 = vmatprep.subr.bf16.mxu0 0
  %5490 = vmatpush2.bf16.msra.mxu0 0
  %5491 = vmatprep.mubr.bf16.mxu0 0
  %5492 = vmatmul.mubr.bf16.gmra.mxu0 %v4477
  %v5493 = vpop.f32.mrf.mxu0
  %v5494 = vadd.f32 0.0, %v5493
  %v5495 = vpop.f32.mrf.mxu0
  %v5496 = vpop.f32.mrf.mxu0
  %v5497 = vpop.f32.mrf.mxu0
  %5498 = vdwg.mxu0
  %v5499 = vadd.f32 %v5398, %v5453
  %v5500 = vadd.f32 %v5399, %v5455
  %v5501 = vadd.f32 %v5400, %v5494
  %5502 = vrot.lane.b32.xlu0 %v5109, 109
  %v5503 = vpop.permute.xlu0 %5502
  %5504 = vrot.lane.b32.xlu0 %v5110, 109
  %v5505 = vpop.permute.xlu0 %5504
  %5506 = vrot.lane.b32.xlu0 %v5111, 109
  %v5507 = vpop.permute.xlu0 %5506
  %v5508 = vsel %vm496, %v5503, %v5505
  %v5509 = vsel %vm496, %v5505, %v5507
  %v5511 = vsel %vm2142, %v5508, 0
  %v5514 = vsel %vm2142, %v5509, 0
  %v5517 = vsel %vm2142, %v5507, 0
  %5519 = vmatprep.subr.bf16.mxu0 0
  %5520 = vmatpush1.bf16.msra.mxu0 0
  %5521 = vmatprep.subr.bf16.mxu0 0
  %5522 = vmatpush1.bf16.msra.mxu0 0
  %5523 = vmatprep.subr.bf16.mxu0 0
  %5524 = vmatpush1.bf16.msra.mxu0 0
  %5525 = vmatprep.subr.bf16.mxu0 0
  %5526 = vmatpush1.bf16.msra.mxu0 0
  %5527 = vmatprep.subr.bf16.mxu0 0
  %5528 = vmatpush1.bf16.msra.mxu0 0
  %5529 = vmatprep.subr.bf16.mxu0 0
  %5530 = vmatpush1.bf16.msra.mxu0 0
  %5531 = vmatprep.subr.bf16.mxu0 0
  %5532 = vmatpush1.bf16.msra.mxu0 0
  %5533 = vmatprep.subr.bf16.mxu0 %v5514
  %5534 = vmatpush1.bf16.msra.mxu0 %v5511
  %5535 = vmatprep.subr.bf16.mxu0 0
  %5536 = vmatpush2.bf16.msra.mxu0 0
  %5537 = vmatprep.subr.bf16.mxu0 0
  %5538 = vmatpush2.bf16.msra.mxu0 0
  %5539 = vmatprep.subr.bf16.mxu0 0
  %5540 = vmatpush2.bf16.msra.mxu0 0
  %5541 = vmatprep.subr.bf16.mxu0 0
  %5542 = vmatpush2.bf16.msra.mxu0 0
  %5543 = vmatprep.subr.bf16.mxu0 0
  %5544 = vmatpush2.bf16.msra.mxu0 0
  %5545 = vmatprep.subr.bf16.mxu0 0
  %5546 = vmatpush2.bf16.msra.mxu0 0
  %5547 = vmatprep.subr.bf16.mxu0 0
  %5548 = vmatpush2.bf16.msra.mxu0 0
  %5549 = vmatprep.subr.bf16.mxu0 0
  %5550 = vmatpush2.bf16.msra.mxu0 0
  %5551 = vmatprep.mubr.bf16.mxu0 0
  %5552 = vmatmul.mubr.bf16.gmra.mxu0 %v4583
  %v5553 = vpop.f32.mrf.mxu0
  %v5554 = vadd.f32 0.0, %v5553
  %v5555 = vpop.f32.mrf.mxu0
  %v5556 = vadd.f32 0.0, %v5555
  %v5557 = vpop.f32.mrf.mxu0
  %v5558 = vpop.f32.mrf.mxu0
  %5559 = vdwg.mxu0
  %5560 = vmatprep.subr.bf16.mxu0 0
  %5561 = vmatpush1.bf16.msra.mxu0 0
  %5562 = vmatprep.subr.bf16.mxu0 0
  %5563 = vmatpush1.bf16.msra.mxu0 0
  %5564 = vmatprep.subr.bf16.mxu0 0
  %5565 = vmatpush1.bf16.msra.mxu0 0
  %5566 = vmatprep.subr.bf16.mxu0 0
  %5567 = vmatpush1.bf16.msra.mxu0 0
  %5568 = vmatprep.subr.bf16.mxu0 0
  %5569 = vmatpush1.bf16.msra.mxu0 0
  %5570 = vmatprep.subr.bf16.mxu0 0
  %5571 = vmatpush1.bf16.msra.mxu0 0
  %5572 = vmatprep.subr.bf16.mxu0 0
  %5573 = vmatpush1.bf16.msra.mxu0 0
  %5574 = vmatprep.subr.bf16.mxu0 0
  %5575 = vmatpush1.bf16.msra.mxu0 %v5517
  %5576 = vmatprep.subr.bf16.mxu0 0
  %5577 = vmatpush2.bf16.msra.mxu0 0
  %5578 = vmatprep.subr.bf16.mxu0 0
  %5579 = vmatpush2.bf16.msra.mxu0 0
  %5580 = vmatprep.subr.bf16.mxu0 0
  %5581 = vmatpush2.bf16.msra.mxu0 0
  %5582 = vmatprep.subr.bf16.mxu0 0
  %5583 = vmatpush2.bf16.msra.mxu0 0
  %5584 = vmatprep.subr.bf16.mxu0 0
  %5585 = vmatpush2.bf16.msra.mxu0 0
  %5586 = vmatprep.subr.bf16.mxu0 0
  %5587 = vmatpush2.bf16.msra.mxu0 0
  %5588 = vmatprep.subr.bf16.mxu0 0
  %5589 = vmatpush2.bf16.msra.mxu0 0
  %5590 = vmatprep.subr.bf16.mxu0 0
  %5591 = vmatpush2.bf16.msra.mxu0 0
  %5592 = vmatprep.mubr.bf16.mxu0 0
  %5593 = vmatmul.mubr.bf16.gmra.mxu0 %v4583
  %v5594 = vpop.f32.mrf.mxu0
  %v5595 = vadd.f32 0.0, %v5594
  %v5596 = vpop.f32.mrf.mxu0
  %v5597 = vpop.f32.mrf.mxu0
  %v5598 = vpop.f32.mrf.mxu0
  %5599 = vdwg.mxu0
  %v5600 = vadd.f32 %v5499, %v5554
  %v5601 = vadd.f32 %v5500, %v5556
  %v5602 = vadd.f32 %v5501, %v5595
  %5603 = vrot.lane.b32.xlu0 %v5109, 108
  %v5604 = vpop.permute.xlu0 %5603
  %5605 = vrot.lane.b32.xlu0 %v5110, 108
  %v5606 = vpop.permute.xlu0 %5605
  %5607 = vrot.lane.b32.xlu0 %v5111, 108
  %v5608 = vpop.permute.xlu0 %5607
  %v5609 = vsel %vm607, %v5604, %v5606
  %v5610 = vsel %vm607, %v5606, %v5608
  %v5612 = vsel %vm2142, %v5609, 0
  %v5615 = vsel %vm2142, %v5610, 0
  %v5618 = vsel %vm2142, %v5608, 0
  %5620 = vmatprep.subr.bf16.mxu0 0
  %5621 = vmatpush1.bf16.msra.mxu0 0
  %5622 = vmatprep.subr.bf16.mxu0 0
  %5623 = vmatpush1.bf16.msra.mxu0 0
  %5624 = vmatprep.subr.bf16.mxu0 0
  %5625 = vmatpush1.bf16.msra.mxu0 0
  %5626 = vmatprep.subr.bf16.mxu0 0
  %5627 = vmatpush1.bf16.msra.mxu0 0
  %5628 = vmatprep.subr.bf16.mxu0 0
  %5629 = vmatpush1.bf16.msra.mxu0 0
  %5630 = vmatprep.subr.bf16.mxu0 0
  %5631 = vmatpush1.bf16.msra.mxu0 0
  %5632 = vmatprep.subr.bf16.mxu0 0
  %5633 = vmatpush1.bf16.msra.mxu0 0
  %5634 = vmatprep.subr.bf16.mxu0 %v5615
  %5635 = vmatpush1.bf16.msra.mxu0 %v5612
  %5636 = vmatprep.subr.bf16.mxu0 0
  %5637 = vmatpush2.bf16.msra.mxu0 0
  %5638 = vmatprep.subr.bf16.mxu0 0
  %5639 = vmatpush2.bf16.msra.mxu0 0
  %5640 = vmatprep.subr.bf16.mxu0 0
  %5641 = vmatpush2.bf16.msra.mxu0 0
  %5642 = vmatprep.subr.bf16.mxu0 0
  %5643 = vmatpush2.bf16.msra.mxu0 0
  %5644 = vmatprep.subr.bf16.mxu0 0
  %5645 = vmatpush2.bf16.msra.mxu0 0
  %5646 = vmatprep.subr.bf16.mxu0 0
  %5647 = vmatpush2.bf16.msra.mxu0 0
  %5648 = vmatprep.subr.bf16.mxu0 0
  %5649 = vmatpush2.bf16.msra.mxu0 0
  %5650 = vmatprep.subr.bf16.mxu0 0
  %5651 = vmatpush2.bf16.msra.mxu0 0
  %5652 = vmatprep.mubr.bf16.mxu0 0
  %5653 = vmatmul.mubr.bf16.gmra.mxu0 %v4689
  %v5654 = vpop.f32.mrf.mxu0
  %v5655 = vadd.f32 0.0, %v5654
  %v5656 = vpop.f32.mrf.mxu0
  %v5657 = vadd.f32 0.0, %v5656
  %v5658 = vpop.f32.mrf.mxu0
  %v5659 = vpop.f32.mrf.mxu0
  %5660 = vdwg.mxu0
  %5661 = vmatprep.subr.bf16.mxu0 0
  %5662 = vmatpush1.bf16.msra.mxu0 0
  %5663 = vmatprep.subr.bf16.mxu0 0
  %5664 = vmatpush1.bf16.msra.mxu0 0
  %5665 = vmatprep.subr.bf16.mxu0 0
  %5666 = vmatpush1.bf16.msra.mxu0 0
  %5667 = vmatprep.subr.bf16.mxu0 0
  %5668 = vmatpush1.bf16.msra.mxu0 0
  %5669 = vmatprep.subr.bf16.mxu0 0
  %5670 = vmatpush1.bf16.msra.mxu0 0
  %5671 = vmatprep.subr.bf16.mxu0 0
  %5672 = vmatpush1.bf16.msra.mxu0 0
  %5673 = vmatprep.subr.bf16.mxu0 0
  %5674 = vmatpush1.bf16.msra.mxu0 0
  %5675 = vmatprep.subr.bf16.mxu0 0
  %5676 = vmatpush1.bf16.msra.mxu0 %v5618
  %5677 = vmatprep.subr.bf16.mxu0 0
  %5678 = vmatpush2.bf16.msra.mxu0 0
  %5679 = vmatprep.subr.bf16.mxu0 0
  %5680 = vmatpush2.bf16.msra.mxu0 0
  %5681 = vmatprep.subr.bf16.mxu0 0
  %5682 = vmatpush2.bf16.msra.mxu0 0
  %5683 = vmatprep.subr.bf16.mxu0 0
  %5684 = vmatpush2.bf16.msra.mxu0 0
  %5685 = vmatprep.subr.bf16.mxu0 0
  %5686 = vmatpush2.bf16.msra.mxu0 0
  %5687 = vmatprep.subr.bf16.mxu0 0
  %5688 = vmatpush2.bf16.msra.mxu0 0
  %5689 = vmatprep.subr.bf16.mxu0 0
  %5690 = vmatpush2.bf16.msra.mxu0 0
  %5691 = vmatprep.subr.bf16.mxu0 0
  %5692 = vmatpush2.bf16.msra.mxu0 0
  %5693 = vmatprep.mubr.bf16.mxu0 0
  %5694 = vmatmul.mubr.bf16.gmra.mxu0 %v4689
  %v5695 = vpop.f32.mrf.mxu0
  %v5696 = vadd.f32 0.0, %v5695
  %v5697 = vpop.f32.mrf.mxu0
  %v5698 = vpop.f32.mrf.mxu0
  %v5699 = vpop.f32.mrf.mxu0
  %5700 = vdwg.mxu0
  %v5701 = vadd.f32 %v5600, %v5655
  %v5702 = vadd.f32 %v5601, %v5657
  %v5703 = vadd.f32 %v5602, %v5696
  %5704 = vrot.lane.b32.xlu0 %v5109, 92
  %v5705 = vpop.permute.xlu0 %5704
  %5706 = vrot.lane.b32.xlu0 %v5110, 92
  %v5707 = vpop.permute.xlu0 %5706
  %5708 = vrot.lane.b32.xlu0 %v5111, 92
  %v5709 = vpop.permute.xlu0 %5708
  %v5710 = vsel %vm718, %v5705, %v5707
  %v5711 = vsel %vm718, %v5707, %v5709
  %v5713 = vsel %vm2142, %v5710, 0
  %v5716 = vsel %vm2142, %v5711, 0
  %v5719 = vsel %vm2142, %v5709, 0
  %5721 = vmatprep.subr.bf16.mxu0 0
  %5722 = vmatpush1.bf16.msra.mxu0 0
  %5723 = vmatprep.subr.bf16.mxu0 0
  %5724 = vmatpush1.bf16.msra.mxu0 0
  %5725 = vmatprep.subr.bf16.mxu0 0
  %5726 = vmatpush1.bf16.msra.mxu0 0
  %5727 = vmatprep.subr.bf16.mxu0 0
  %5728 = vmatpush1.bf16.msra.mxu0 0
  %5729 = vmatprep.subr.bf16.mxu0 0
  %5730 = vmatpush1.bf16.msra.mxu0 0
  %5731 = vmatprep.subr.bf16.mxu0 0
  %5732 = vmatpush1.bf16.msra.mxu0 0
  %5733 = vmatprep.subr.bf16.mxu0 0
  %5734 = vmatpush1.bf16.msra.mxu0 0
  %5735 = vmatprep.subr.bf16.mxu0 %v5716
  %5736 = vmatpush1.bf16.msra.mxu0 %v5713
  %5737 = vmatprep.subr.bf16.mxu0 0
  %5738 = vmatpush2.bf16.msra.mxu0 0
  %5739 = vmatprep.subr.bf16.mxu0 0
  %5740 = vmatpush2.bf16.msra.mxu0 0
  %5741 = vmatprep.subr.bf16.mxu0 0
  %5742 = vmatpush2.bf16.msra.mxu0 0
  %5743 = vmatprep.subr.bf16.mxu0 0
  %5744 = vmatpush2.bf16.msra.mxu0 0
  %5745 = vmatprep.subr.bf16.mxu0 0
  %5746 = vmatpush2.bf16.msra.mxu0 0
  %5747 = vmatprep.subr.bf16.mxu0 0
  %5748 = vmatpush2.bf16.msra.mxu0 0
  %5749 = vmatprep.subr.bf16.mxu0 0
  %5750 = vmatpush2.bf16.msra.mxu0 0
  %5751 = vmatprep.subr.bf16.mxu0 0
  %5752 = vmatpush2.bf16.msra.mxu0 0
  %5753 = vmatprep.mubr.bf16.mxu0 0
  %5754 = vmatmul.mubr.bf16.gmra.mxu0 %v4795
  %v5755 = vpop.f32.mrf.mxu0
  %v5756 = vadd.f32 0.0, %v5755
  %v5757 = vpop.f32.mrf.mxu0
  %v5758 = vadd.f32 0.0, %v5757
  %v5759 = vpop.f32.mrf.mxu0
  %v5760 = vpop.f32.mrf.mxu0
  %5761 = vdwg.mxu0
  %5762 = vmatprep.subr.bf16.mxu0 0
  %5763 = vmatpush1.bf16.msra.mxu0 0
  %5764 = vmatprep.subr.bf16.mxu0 0
  %5765 = vmatpush1.bf16.msra.mxu0 0
  %5766 = vmatprep.subr.bf16.mxu0 0
  %5767 = vmatpush1.bf16.msra.mxu0 0
  %5768 = vmatprep.subr.bf16.mxu0 0
  %5769 = vmatpush1.bf16.msra.mxu0 0
  %5770 = vmatprep.subr.bf16.mxu0 0
  %5771 = vmatpush1.bf16.msra.mxu0 0
  %5772 = vmatprep.subr.bf16.mxu0 0
  %5773 = vmatpush1.bf16.msra.mxu0 0
  %5774 = vmatprep.subr.bf16.mxu0 0
  %5775 = vmatpush1.bf16.msra.mxu0 0
  %5776 = vmatprep.subr.bf16.mxu0 0
  %5777 = vmatpush1.bf16.msra.mxu0 %v5719
  %5778 = vmatprep.subr.bf16.mxu0 0
  %5779 = vmatpush2.bf16.msra.mxu0 0
  %5780 = vmatprep.subr.bf16.mxu0 0
  %5781 = vmatpush2.bf16.msra.mxu0 0
  %5782 = vmatprep.subr.bf16.mxu0 0
  %5783 = vmatpush2.bf16.msra.mxu0 0
  %5784 = vmatprep.subr.bf16.mxu0 0
  %5785 = vmatpush2.bf16.msra.mxu0 0
  %5786 = vmatprep.subr.bf16.mxu0 0
  %5787 = vmatpush2.bf16.msra.mxu0 0
  %5788 = vmatprep.subr.bf16.mxu0 0
  %5789 = vmatpush2.bf16.msra.mxu0 0
  %5790 = vmatprep.subr.bf16.mxu0 0
  %5791 = vmatpush2.bf16.msra.mxu0 0
  %5792 = vmatprep.subr.bf16.mxu0 0
  %5793 = vmatpush2.bf16.msra.mxu0 0
  %5794 = vmatprep.mubr.bf16.mxu0 0
  %5795 = vmatmul.mubr.bf16.gmra.mxu0 %v4795
  %v5796 = vpop.f32.mrf.mxu0
  %v5797 = vadd.f32 0.0, %v5796
  %v5798 = vpop.f32.mrf.mxu0
  %v5799 = vpop.f32.mrf.mxu0
  %v5800 = vpop.f32.mrf.mxu0
  %5801 = vdwg.mxu0
  %v5802 = vadd.f32 %v5701, %v5756
  %v5803 = vadd.f32 %v5702, %v5758
  %v5804 = vadd.f32 %v5703, %v5797
  %5805 = vrot.lane.b32.xlu0 %v5109, 91
  %v5806 = vpop.permute.xlu0 %5805
  %5807 = vrot.lane.b32.xlu0 %v5110, 91
  %v5808 = vpop.permute.xlu0 %5807
  %5809 = vrot.lane.b32.xlu0 %v5111, 91
  %v5810 = vpop.permute.xlu0 %5809
  %v5811 = vsel %vm829, %v5806, %v5808
  %v5812 = vsel %vm829, %v5808, %v5810
  %v5814 = vsel %vm2142, %v5811, 0
  %v5817 = vsel %vm2142, %v5812, 0
  %v5820 = vsel %vm2142, %v5810, 0
  %5822 = vmatprep.subr.bf16.mxu0 0
  %5823 = vmatpush1.bf16.msra.mxu0 0
  %5824 = vmatprep.subr.bf16.mxu0 0
  %5825 = vmatpush1.bf16.msra.mxu0 0
  %5826 = vmatprep.subr.bf16.mxu0 0
  %5827 = vmatpush1.bf16.msra.mxu0 0
  %5828 = vmatprep.subr.bf16.mxu0 0
  %5829 = vmatpush1.bf16.msra.mxu0 0
  %5830 = vmatprep.subr.bf16.mxu0 0
  %5831 = vmatpush1.bf16.msra.mxu0 0
  %5832 = vmatprep.subr.bf16.mxu0 0
  %5833 = vmatpush1.bf16.msra.mxu0 0
  %5834 = vmatprep.subr.bf16.mxu0 0
  %5835 = vmatpush1.bf16.msra.mxu0 0
  %5836 = vmatprep.subr.bf16.mxu0 %v5817
  %5837 = vmatpush1.bf16.msra.mxu0 %v5814
  %5838 = vmatprep.subr.bf16.mxu0 0
  %5839 = vmatpush2.bf16.msra.mxu0 0
  %5840 = vmatprep.subr.bf16.mxu0 0
  %5841 = vmatpush2.bf16.msra.mxu0 0
  %5842 = vmatprep.subr.bf16.mxu0 0
  %5843 = vmatpush2.bf16.msra.mxu0 0
  %5844 = vmatprep.subr.bf16.mxu0 0
  %5845 = vmatpush2.bf16.msra.mxu0 0
  %5846 = vmatprep.subr.bf16.mxu0 0
  %5847 = vmatpush2.bf16.msra.mxu0 0
  %5848 = vmatprep.subr.bf16.mxu0 0
  %5849 = vmatpush2.bf16.msra.mxu0 0
  %5850 = vmatprep.subr.bf16.mxu0 0
  %5851 = vmatpush2.bf16.msra.mxu0 0
  %5852 = vmatprep.subr.bf16.mxu0 0
  %5853 = vmatpush2.bf16.msra.mxu0 0
  %5854 = vmatprep.mubr.bf16.mxu0 0
  %5855 = vmatmul.mubr.bf16.gmra.mxu0 %v4901
  %v5856 = vpop.f32.mrf.mxu0
  %v5857 = vadd.f32 0.0, %v5856
  %v5858 = vpop.f32.mrf.mxu0
  %v5859 = vadd.f32 0.0, %v5858
  %v5860 = vpop.f32.mrf.mxu0
  %v5861 = vpop.f32.mrf.mxu0
  %5862 = vdwg.mxu0
  %5863 = vmatprep.subr.bf16.mxu0 0
  %5864 = vmatpush1.bf16.msra.mxu0 0
  %5865 = vmatprep.subr.bf16.mxu0 0
  %5866 = vmatpush1.bf16.msra.mxu0 0
  %5867 = vmatprep.subr.bf16.mxu0 0
  %5868 = vmatpush1.bf16.msra.mxu0 0
  %5869 = vmatprep.subr.bf16.mxu0 0
  %5870 = vmatpush1.bf16.msra.mxu0 0
  %5871 = vmatprep.subr.bf16.mxu0 0
  %5872 = vmatpush1.bf16.msra.mxu0 0
  %5873 = vmatprep.subr.bf16.mxu0 0
  %5874 = vmatpush1.bf16.msra.mxu0 0
  %5875 = vmatprep.subr.bf16.mxu0 0
  %5876 = vmatpush1.bf16.msra.mxu0 0
  %5877 = vmatprep.subr.bf16.mxu0 0
  %5878 = vmatpush1.bf16.msra.mxu0 %v5820
  %5879 = vmatprep.subr.bf16.mxu0 0
  %5880 = vmatpush2.bf16.msra.mxu0 0
  %5881 = vmatprep.subr.bf16.mxu0 0
  %5882 = vmatpush2.bf16.msra.mxu0 0
  %5883 = vmatprep.subr.bf16.mxu0 0
  %5884 = vmatpush2.bf16.msra.mxu0 0
  %5885 = vmatprep.subr.bf16.mxu0 0
  %5886 = vmatpush2.bf16.msra.mxu0 0
  %5887 = vmatprep.subr.bf16.mxu0 0
  %5888 = vmatpush2.bf16.msra.mxu0 0
  %5889 = vmatprep.subr.bf16.mxu0 0
  %5890 = vmatpush2.bf16.msra.mxu0 0
  %5891 = vmatprep.subr.bf16.mxu0 0
  %5892 = vmatpush2.bf16.msra.mxu0 0
  %5893 = vmatprep.subr.bf16.mxu0 0
  %5894 = vmatpush2.bf16.msra.mxu0 0
  %5895 = vmatprep.mubr.bf16.mxu0 0
  %5896 = vmatmul.mubr.bf16.gmra.mxu0 %v4901
  %v5897 = vpop.f32.mrf.mxu0
  %v5898 = vadd.f32 0.0, %v5897
  %v5899 = vpop.f32.mrf.mxu0
  %v5900 = vpop.f32.mrf.mxu0
  %v5901 = vpop.f32.mrf.mxu0
  %5902 = vdwg.mxu0
  %v5903 = vadd.f32 %v5802, %v5857
  %v5904 = vadd.f32 %v5803, %v5859
  %v5905 = vadd.f32 %v5804, %v5898
  %5906 = vrot.lane.b32.xlu0 %v5109, 90
  %v5907 = vpop.permute.xlu0 %5906
  %5908 = vrot.lane.b32.xlu0 %v5110, 90
  %v5909 = vpop.permute.xlu0 %5908
  %5910 = vrot.lane.b32.xlu0 %v5111, 90
  %v5911 = vpop.permute.xlu0 %5910
  %v5912 = vsel %vm940, %v5907, %v5909
  %v5913 = vsel %vm940, %v5909, %v5911
  %v5915 = vsel %vm2142, %v5912, 0
  %v5918 = vsel %vm2142, %v5913, 0
  %v5921 = vsel %vm2142, %v5911, 0
  %5923 = vmatprep.subr.bf16.mxu0 0
  %5924 = vmatpush1.bf16.msra.mxu0 0
  %5925 = vmatprep.subr.bf16.mxu0 0
  %5926 = vmatpush1.bf16.msra.mxu0 0
  %5927 = vmatprep.subr.bf16.mxu0 0
  %5928 = vmatpush1.bf16.msra.mxu0 0
  %5929 = vmatprep.subr.bf16.mxu0 0
  %5930 = vmatpush1.bf16.msra.mxu0 0
  %5931 = vmatprep.subr.bf16.mxu0 0
  %5932 = vmatpush1.bf16.msra.mxu0 0
  %5933 = vmatprep.subr.bf16.mxu0 0
  %5934 = vmatpush1.bf16.msra.mxu0 0
  %5935 = vmatprep.subr.bf16.mxu0 0
  %5936 = vmatpush1.bf16.msra.mxu0 0
  %5937 = vmatprep.subr.bf16.mxu0 %v5918
  %5938 = vmatpush1.bf16.msra.mxu0 %v5915
  %5939 = vmatprep.subr.bf16.mxu0 0
  %5940 = vmatpush2.bf16.msra.mxu0 0
  %5941 = vmatprep.subr.bf16.mxu0 0
  %5942 = vmatpush2.bf16.msra.mxu0 0
  %5943 = vmatprep.subr.bf16.mxu0 0
  %5944 = vmatpush2.bf16.msra.mxu0 0
  %5945 = vmatprep.subr.bf16.mxu0 0
  %5946 = vmatpush2.bf16.msra.mxu0 0
  %5947 = vmatprep.subr.bf16.mxu0 0
  %5948 = vmatpush2.bf16.msra.mxu0 0
  %5949 = vmatprep.subr.bf16.mxu0 0
  %5950 = vmatpush2.bf16.msra.mxu0 0
  %5951 = vmatprep.subr.bf16.mxu0 0
  %5952 = vmatpush2.bf16.msra.mxu0 0
  %5953 = vmatprep.subr.bf16.mxu0 0
  %5954 = vmatpush2.bf16.msra.mxu0 0
  %5955 = vmatprep.mubr.bf16.mxu0 0
  %5956 = vmatmul.mubr.bf16.gmra.mxu0 %v5007
  %v5957 = vpop.f32.mrf.mxu0
  %v5958 = vadd.f32 0.0, %v5957
  %v5959 = vpop.f32.mrf.mxu0
  %v5960 = vadd.f32 0.0, %v5959
  %v5961 = vpop.f32.mrf.mxu0
  %v5962 = vpop.f32.mrf.mxu0
  %5963 = vdwg.mxu0
  %5964 = vmatprep.subr.bf16.mxu0 0
  %5965 = vmatpush1.bf16.msra.mxu0 0
  %5966 = vmatprep.subr.bf16.mxu0 0
  %5967 = vmatpush1.bf16.msra.mxu0 0
  %5968 = vmatprep.subr.bf16.mxu0 0
  %5969 = vmatpush1.bf16.msra.mxu0 0
  %5970 = vmatprep.subr.bf16.mxu0 0
  %5971 = vmatpush1.bf16.msra.mxu0 0
  %5972 = vmatprep.subr.bf16.mxu0 0
  %5973 = vmatpush1.bf16.msra.mxu0 0
  %5974 = vmatprep.subr.bf16.mxu0 0
  %5975 = vmatpush1.bf16.msra.mxu0 0
  %5976 = vmatprep.subr.bf16.mxu0 0
  %5977 = vmatpush1.bf16.msra.mxu0 0
  %5978 = vmatprep.subr.bf16.mxu0 0
  %5979 = vmatpush1.bf16.msra.mxu0 %v5921
  %5980 = vmatprep.subr.bf16.mxu0 0
  %5981 = vmatpush2.bf16.msra.mxu0 0
  %5982 = vmatprep.subr.bf16.mxu0 0
  %5983 = vmatpush2.bf16.msra.mxu0 0
  %5984 = vmatprep.subr.bf16.mxu0 0
  %5985 = vmatpush2.bf16.msra.mxu0 0
  %5986 = vmatprep.subr.bf16.mxu0 0
  %5987 = vmatpush2.bf16.msra.mxu0 0
  %5988 = vmatprep.subr.bf16.mxu0 0
  %5989 = vmatpush2.bf16.msra.mxu0 0
  %5990 = vmatprep.subr.bf16.mxu0 0
  %5991 = vmatpush2.bf16.msra.mxu0 0
  %5992 = vmatprep.subr.bf16.mxu0 0
  %5993 = vmatpush2.bf16.msra.mxu0 0
  %5994 = vmatprep.subr.bf16.mxu0 0
  %5995 = vmatpush2.bf16.msra.mxu0 0
  %5996 = vmatprep.mubr.bf16.mxu0 0
  %5997 = vmatmul.mubr.bf16.gmra.mxu0 %v5007
  %v5998 = vpop.f32.mrf.mxu0
  %v5999 = vadd.f32 0.0, %v5998
  %v6000 = vpop.f32.mrf.mxu0
  %v6001 = vpop.f32.mrf.mxu0
  %v6002 = vpop.f32.mrf.mxu0
  %6003 = vdwg.mxu0
  %v6004 = vadd.f32 %v5903, %v5958
  %v6005 = vadd.f32 %v5904, %v5960
  %v6006 = vadd.f32 %v5905, %v5999
  %v6008 = vlaneseq
  %v6009 = vshrl.u32 %v6008, 7
  %v6010 = vsub.s32 0, %v6009
  %v6011 = vrot.slane %v39, %v6010
  %v6012 = vlaneseq
  %v6013 = vshrl.u32 %v6012, 7
  %v6014 = vsub.s32 1, %v6013
  %v6015 = vrot.slane %v39, %v6014
  %v6016 = vlaneseq
  %v6017 = vshrl.u32 %v6016, 7
  %v6018 = vsub.s32 2, %v6017
  %v6019 = vrot.slane %v39, %v6018
  %v6023 = vmul.f32 %v5099, %v6011
  %v6024 = vmul.f32 %v5100, %v6015
  %v6025 = vmul.f32 %v5101, %v6019
  %v6026 = vadd.f32 %v6023, %v6024
  %v6027 = vsel %vm1973, %v6025, 0.0
  %v6028 = vadd.f32 %v6026, %v6027
  %6029 = vadd.xlane.f32.xlu0 %v6028
  %v6030 = vpop.xlane.xlu0 %6029
  %v6031 = vadd.f32 %v6030, 0.0
  %v6032 = vmul.f32 %v6004, %v6011
  %v6033 = vmul.f32 %v6005, %v6015
  %v6034 = vmul.f32 %v6006, %v6019
  %v6035 = vadd.f32 %v6032, %v6033
  %v6036 = vsel %vm1973, %v6034, 0.0
  %v6037 = vadd.f32 %v6035, %v6036
  %6038 = vadd.xlane.f32.xlu0 %v6037
  %v6039 = vpop.xlane.xlu0 %6038
  %v6040 = vadd.f32 %v6031, %v6039
  %v6041 = vmul.f32 %v6040, 0.0078125
  %v6042 = vsub.f32 %v5099, %v6041
  %v6043 = vsub.f32 %v5100, %v6041
  %v6044 = vsub.f32 %v5101, %v6041
  %v6045 = vmul.f32 %v6042, %v6042
  %v6046 = vmul.f32 %v6043, %v6043
  %v6047 = vmul.f32 %v6044, %v6044
  %v6048 = vmul.f32 %v6045, %v6011
  %v6049 = vmul.f32 %v6046, %v6015
  %v6050 = vmul.f32 %v6047, %v6019
  %v6051 = vadd.f32 %v6048, %v6049
  %v6052 = vsel %vm1973, %v6050, 0.0
  %v6053 = vadd.f32 %v6051, %v6052
  %6054 = vadd.xlane.f32.xlu0 %v6053
  %v6055 = vpop.xlane.xlu0 %6054
  %v6056 = vadd.f32 %v6055, 0.0
  %v6057 = vsub.f32 %v6004, %v6041
  %v6058 = vsub.f32 %v6005, %v6041
  %v6059 = vsub.f32 %v6006, %v6041
  %v6060 = vmul.f32 %v6057, %v6057
  %v6061 = vmul.f32 %v6058, %v6058
  %v6062 = vmul.f32 %v6059, %v6059
  %v6063 = vmul.f32 %v6060, %v6011
  %v6064 = vmul.f32 %v6061, %v6015
  %v6065 = vmul.f32 %v6062, %v6019
  %v6066 = vadd.f32 %v6063, %v6064
  %v6067 = vsel %vm1973, %v6065, 0.0
  %v6068 = vadd.f32 %v6066, %v6067
  %6069 = vadd.xlane.f32.xlu0 %v6068
  %v6070 = vpop.xlane.xlu0 %6069
  %v6071 = vadd.f32 %v6056, %v6070
  %v6072 = vmul.f32 %v6071, 0.0078125
  %v6073 = vadd.f32 %v6072, 1e-05
  %v6074 = vrsqrt.pop %v6073
  %v6075 = vmul.f32 %v4149, %v6074
  %v6076 = vmul.f32 %v6041, %v6075
  %6078 = vrot.lane.b32.xlu0 %v6076, 1
  %v6079 = vpop.permute.xlu0 %6078
  %v6081 = vsub.f32 %v4149, %v6079
  %6083 = vset.pattern.permute.xlu0 4
  %6084 = vperm.xlu0 %6083, %v6075
  %v6085 = vpop.permute.xlu0 %6084
  %v6087 = vmul.f32 %v5099, %v6085
  %v6088 = vmul.f32 %v5100, %v6085
  %v6089 = vmul.f32 %v5101, %v6085
  %6091 = vset.pattern.permute.xlu0 5
  %6092 = vperm.xlu0 %6091, %v6081
  %v6093 = vpop.permute.xlu0 %6092
  %v6095 = vadd.f32 %v6087, %v6093
  %v6096 = vadd.f32 %v6088, %v6093
  %v6097 = vadd.f32 %v6089, %v6093
  %v6098 = vmax.f32 %v6095, 0.0
  %v6099 = vmax.f32 %v6096, 0.0
  %v6100 = vmax.f32 %v6097, 0.0
  %v6101 = vmul.f32 %v6004, %v6085
  %v6102 = vmul.f32 %v6005, %v6085
  %v6103 = vmul.f32 %v6006, %v6085
  %v6104 = vadd.f32 %v6101, %v6093
  %v6105 = vadd.f32 %v6102, %v6093
  %v6106 = vadd.f32 %v6103, %v6093
  %v6107 = vmax.f32 %v6104, 0.0
  %v6108 = vmax.f32 %v6105, 0.0
  %v6109 = vmax.f32 %v6106, 0.0
  %6113 = vrot.lane.b32.xlu0 %v6098, 19
  %v6114 = vpop.permute.xlu0 %6113
  %6115 = vrot.lane.b32.xlu0 %v6099, 19
  %v6116 = vpop.permute.xlu0 %6115
  %6117 = vrot.lane.b32.xlu0 %v6100, 19
  %v6118 = vpop.permute.xlu0 %6117
  %v6119 = vsel %vm4072, %v6114, %v6116
  %v6120 = vsel %vm4072, %v6116, %v6118
  %6124 = vst.msk [vmem:[%s8] sm:$0xff] %vm4078, %v6114
  %6125 = vst [vmem:[%s8 + $0x8] sm:$0xff] %v6119
  %6126 = vst.msk [vmem:[%s8 + $0x10] sm:$0xff] %vm4081, %v6120
  %6130 = vrot.lane.b32.xlu0 %v6107, 19
  %v6131 = vpop.permute.xlu0 %6130
  %6132 = vrot.lane.b32.xlu0 %v6108, 19
  %v6133 = vpop.permute.xlu0 %6132
  %6134 = vrot.lane.b32.xlu0 %v6109, 19
  %v6135 = vpop.permute.xlu0 %6134
  %v6136 = vsel %vm4072, %v6131, %v6133
  %v6137 = vsel %vm4072, %v6133, %v6135
  %s6141 = scalar_lea.vmem %s8, 24
  %6142 = vst.msk [vmem:[%s6141] sm:$0xff] %vm4078, %v6131
  %6143 = vst [vmem:[%s6141 + $0x8] sm:$0xff] %v6136
  %6144 = vst.msk [vmem:[%s6141 + $0x10] sm:$0xff] %vm4081, %v6137
  // Predicated region
  $region30: #{downsample_layer_forward.1} parent=0 // pred_check
    _
  $region31: #{downsample_layer_forward.1} parent=0 // pred_check_branch
    %6146 = sbr.rel (0) target = $region33
  $region32: #{downsample_layer_forward.1} parent=0 // pred_region
    _
  $region33: #{downsample_layer_forward.1} parent=0 // pred_fallthru
    _
  // Predicated region
  $region34: #{downsample_layer_forward.1} parent=0 // pred_check
    _
  $region35: #{downsample_layer_forward.1} parent=0 // pred_check_branch
    %6148 = sbr.rel (0) target = $region37
  $region36: #{downsample_layer_forward.1} parent=0 // pred_region
    _
  $region37: #{downsample_layer_forward.1} parent=0 // pred_fallthru
    _
  // Predicated region
  $region38: #{downsample_layer_forward.1} parent=0 // pred_check
    _
  $region39: #{downsample_layer_forward.1} parent=0 // pred_check_branch
    %6150 = sbr.rel (0) target = $region41
  $region40: #{downsample_layer_forward.1} parent=0 // pred_region
    _
  $region41: #{downsample_layer_forward.1} parent=0 // pred_fallthru
    _
  // Predicated region
  $region42: #{downsample_layer_forward.1} parent=0 // pred_check
    _
  $region43: #{downsample_layer_forward.1} parent=0 // pred_check_branch
    %6152 = sbr.rel (0) target = $region45
  $region44: #{downsample_layer_forward.1} parent=0 // pred_region
    _
  $region45: #{downsample_layer_forward.1} parent=0 // pred_fallthru
    _

</llo_original>
